<compile_context>
chip_gen: v6e
topology: v6e:2x2x1
jax: 0.10.0
libtpu: 0.0.40
codegen_flags: <defaults>
</compile_context>

<pallas_src>
import math

import jax
import jax.numpy as jnp
from jax import lax
from jax.experimental import pallas as pl
from jax.experimental.pallas import tpu as pltpu


# -----------------------------------------------------------------------------
# Fused whole-network kernel (one batch element per grid step)
# -----------------------------------------------------------------------------
def _fused_simple_cnn_kernel(H, W):
    dims = [(H, W), (H // 2, W // 2), (H // 4, W // 4)]
    Hp, Wp = H // 8, W // 8

    def conv3x3_relu(a, pad_ref, w_ref, b_ref, Hc, Wc):
        # a:       (Hc*Wc, Cin)  flattened NHWC activation (value)
        # pad_ref: (Hc*Wc + 2*(Wc+1), Cin) VMEM scratch; zero margins = conv padding
        # w_ref:   (3, 3, Cin, Cout) HWIO weights; b_ref: (1, Cout)
        HWc = Hc * Wc
        P = Wc + 1                                   # front margin (one row + one col)
        Cout = w_ref.shape[3]
        pad_ref[...] = jnp.zeros_like(pad_ref)
        pad_ref[pl.ds(P, HWc), :] = a
        col = lax.broadcasted_iota(jnp.int32, (HWc, 1), 0) % Wc
        acc = jnp.zeros((HWc, Cout), jnp.float32)
        for dh in range(3):
            for dw in range(3):
                s = (dh - 1) * Wc + (dw - 1)
                tap = pad_ref[pl.ds(P + s, HWc), :]  # (HWc, Cin), rows out of image = 0
                if dw == 0:      # source col = col-1: invalid where col == 0
                    tap = jnp.where(col >= 1, tap, 0.0)
                elif dw == 2:    # source col = col+1: invalid where col == Wc-1
                    tap = jnp.where(col <= Wc - 2, tap, 0.0)
                acc = acc + jnp.dot(tap, w_ref[dh, dw],
                                    preferred_element_type=jnp.float32)
        return jnp.maximum(acc + b_ref[...], 0.0)

    def pool2x2(y, s_ref):
        # y: (Hc*Wc, C); s_ref: (4, Hc*Wc/4, Hc*Wc) one-hot selectors of the 4
        # positions of each 2x2 window.  Selection commutes with max, so the
        # pool is an elementwise max over 4 lane-dense matmuls.
        p = jnp.dot(s_ref[0], y, preferred_element_type=jnp.float32)
        for j in range(1, 4):
            p = jnp.maximum(p, jnp.dot(s_ref[j], y,
                                       preferred_element_type=jnp.float32))
        return p

    def kernel(x_ref, w1, b1, s1, w2, b2, s2, w3, b3, s3, wf, bf,
               o_ref, pad1, pad2, pad3):
        a = x_ref[0]                                                   # (H*W, 3)
        a = pool2x2(conv3x3_relu(a, pad1, w1, b1, *dims[0]), s1)       # (HW/4, 16)
        a = pool2x2(conv3x3_relu(a, pad2, w2, b2, *dims[1]), s2)       # (HW/16, 32)
        a = pool2x2(conv3x3_relu(a, pad3, w3, b3, *dims[2]), s3)       # (Hp*Wp, 64)
        # fc over the (hw, c)-flattened activation; wf was reordered on the host
        # so this reproduces torch's NCHW x.view(B, -1) @ fc.weight.T exactly.
        acc = bf[...]                                                  # (1, O)
        for hw in range(Hp * Wp):
            acc = acc + jnp.dot(a[hw:hw + 1, :], wf[hw],
                                preferred_element_type=jnp.float32)
        o_ref[0] = acc

    return kernel


def _pool_select_matrices(H, W):
    """(4, (H//2)*(W//2), H*W) one-hot selectors of each 2x2 window's 4 positions."""
    Hp, Wp = H // 2, W // 2
    k = jnp.arange(Hp * Wp, dtype=jnp.int32)
    base = (k // Wp) * (2 * W) + (k % Wp) * 2
    mats = [jax.nn.one_hot(base + off, H * W, dtype=jnp.float32)
            for off in (0, 1, W, W + 1)]
    return jnp.stack(mats)


# -----------------------------------------------------------------------------
# Pallas forward pass + pure-JAX reference
# -----------------------------------------------------------------------------
def forward(params, image_nchw):
    B, C, H, W = image_nchw.shape
    assert C == 3 and H % 8 == 0 and W % 8 == 0, "SimpleCNN needs H, W divisible by 8"
    (w1, b1), (w2, b2), (w3, b3) = params["convs"]
    wf, bf = params["fc"]
    num_outputs = bf.shape[-1]
    Hp, Wp = H // 8, W // 8

    # NCHW -> flattened NHWC rows (index h*W + w on sublanes, channels on lanes).
    x = jnp.transpose(image_nchw, (0, 2, 3, 1)).reshape(B, H * W, 3)
    # Reorder fc rows from torch's NCHW flatten (c*Hp*Wp + hw) to (hw, c) blocks.
    wf_k = wf.reshape(64, Hp * Wp, num_outputs).transpose(1, 0, 2)

    s1 = _pool_select_matrices(H, W)
    s2 = _pool_select_matrices(H // 2, W // 2)
    s3 = _pool_select_matrices(H // 4, W // 4)

    def full(arr):
        ndim = arr.ndim
        return pl.BlockSpec(arr.shape, lambda i, _n=ndim: (0,) * _n)

    out = pl.pallas_call(
        _fused_simple_cnn_kernel(H, W),
        out_shape=jax.ShapeDtypeStruct((B, 1, num_outputs), jnp.float32),
        grid=(B,),
        in_specs=[
            pl.BlockSpec((1, H * W, 3), lambda i: (i, 0, 0)),
            full(w1), full(b1), full(s1),
            full(w2), full(b2), full(s2),
            full(w3), full(b3), full(s3),
            full(wf_k), full(bf),
        ],
        out_specs=pl.BlockSpec((1, 1, num_outputs), lambda i: (i, 0, 0)),
        scratch_shapes=[
            pltpu.VMEM((H * W + 2 * (W + 1), 3), jnp.float32),
            pltpu.VMEM((H * W // 4 + 2 * (W // 2 + 1), 16), jnp.float32),
            pltpu.VMEM((H * W // 16 + 2 * (W // 4 + 1), 32), jnp.float32),
        ],
        compiler_params=pltpu.CompilerParams(dimension_semantics=("parallel",)),
    )(x, w1, b1, s1, w2, b2, s2, w3, b3, s3, wf_k, bf)
    return out.reshape(B, num_outputs)


def reference_forward(params, image_nchw):
    x = jnp.transpose(image_nchw, (0, 2, 3, 1))  # NCHW -> NHWC
    for w, b in params["convs"]:
        x = lax.conv_general_dilated(
            x, w, window_strides=(1, 1), padding="SAME",
            dimension_numbers=("NHWC", "HWIO", "NHWC"),
            precision=lax.Precision.HIGHEST)
        x = jnp.maximum(x + b.reshape(1, 1, 1, -1), 0.0)
        x = lax.reduce_window(x, -jnp.inf, lax.max,
                              (1, 2, 2, 1), (1, 2, 2, 1), "VALID")
    B = x.shape[0]
    flat = jnp.transpose(x, (0, 3, 1, 2)).reshape(B, -1)  # torch NCHW flatten
    wf, bf = params["fc"]
    return jnp.dot(flat, wf, precision=lax.Precision.HIGHEST) + bf


# -----------------------------------------------------------------------------
# Deterministic parameter init (shapes from SimpleCNN.__init__)
# -----------------------------------------------------------------------------
def init_params(key, image_size, num_outputs):
    H, W = image_size
    flattened = 64 * (H // 8) * (W // 8)
    conv_channels = [(3, 16), (16, 32), (32, 64)]
    keys = jax.random.split(key, 2 * len(conv_channels) + 2)
    ki = iter(keys)

    convs = []
    for cin, cout in conv_channels:
        fan_in = 9 * cin
        w = jax.random.normal(next(ki), (3, 3, cin, cout), jnp.float32) / math.sqrt(fan_in)
        b = jax.random.normal(next(ki), (1, cout), jnp.float32) * 0.01
        convs.append((w, b))

    wf = jax.random.normal(next(ki), (flattened, num_outputs), jnp.float32) / math.sqrt(flattened)
    bf = jax.random.normal(next(ki), (1, num_outputs), jnp.float32) * 0.01
    return {"convs": convs, "fc": (wf, bf)}


if __name__ == "__main__":
    image_size = (16, 16)
    num_outputs = 2
    batch = 2

    key = jax.random.PRNGKey(0)
    k_img, k_par = jax.random.split(key)
    image = jax.random.normal(k_img, (batch, 3, *image_size), jnp.float32)  # NCHW
    params = init_params(k_par, image_size, num_outputs)

    fwd = jax.jit(forward)
    out = jax.block_until_ready(fwd(params, image))
    assert out.shape == (batch, num_outputs), out.shape

    ref = jax.block_until_ready(reference_forward(params, image))
    # All-f32 path; conservative bound kept to stay robust to XLA/Mosaic matmul
    # precision choices (observed error is far smaller).
    assert jnp.allclose(out, ref, rtol=2e-2, atol=2e-2), (out, ref)

    print("KERNEL_OK")
</pallas_src>

<mosaic_0001>
module attributes {stable_mosaic.version = 11 : i64} {
  func.func @kernel(%arg0: i32, %arg1: memref<1x256x3xf32, #tpu.memory_space<vmem>>, %arg2: memref<3x3x3x16xf32, #tpu.memory_space<vmem>>, %arg3: memref<1x16xf32, #tpu.memory_space<vmem>>, %arg4: memref<4x64x256xf32, #tpu.memory_space<vmem>>, %arg5: memref<3x3x16x32xf32, #tpu.memory_space<vmem>>, %arg6: memref<1x32xf32, #tpu.memory_space<vmem>>, %arg7: memref<4x16x64xf32, #tpu.memory_space<vmem>>, %arg8: memref<3x3x32x64xf32, #tpu.memory_space<vmem>>, %arg9: memref<1x64xf32, #tpu.memory_space<vmem>>, %arg10: memref<4x4x16xf32, #tpu.memory_space<vmem>>, %arg11: memref<4x64x2xf32, #tpu.memory_space<vmem>>, %arg12: memref<1x2xf32, #tpu.memory_space<vmem>>, %arg13: memref<1x1x2xf32, #tpu.memory_space<vmem>>, %arg14: memref<290x3xf32, #tpu.memory_space<vmem>>, %arg15: memref<82x16xf32, #tpu.memory_space<vmem>>, %arg16: memref<26x32xf32, #tpu.memory_space<vmem>>) attributes {dimension_semantics = [#tpu.dimension_semantics<parallel>], iteration_bounds = array<i64: 2>, scalar_prefetch = 0 : i64, scratch_operands = 3 : i64, tpu.core_type = #tpu.core_type<tc>, window_params = [{transform_indices = @transform_0, window_bounds = array<i64: 1, 256, 3>}, {pipeline_mode = #tpu.pipeline_mode<synchronous>, transform_indices = @transform_1, window_bounds = array<i64: 3, 3, 3, 16>}, {pipeline_mode = #tpu.pipeline_mode<synchronous>, transform_indices = @transform_2, window_bounds = array<i64: 1, 16>}, {pipeline_mode = #tpu.pipeline_mode<synchronous>, transform_indices = @transform_3, window_bounds = array<i64: 4, 64, 256>}, {pipeline_mode = #tpu.pipeline_mode<synchronous>, transform_indices = @transform_4, window_bounds = array<i64: 3, 3, 16, 32>}, {pipeline_mode = #tpu.pipeline_mode<synchronous>, transform_indices = @transform_5, window_bounds = array<i64: 1, 32>}, {pipeline_mode = #tpu.pipeline_mode<synchronous>, transform_indices = @transform_6, window_bounds = array<i64: 4, 16, 64>}, {pipeline_mode = #tpu.pipeline_mode<synchronous>, transform_indices = @transform_7, window_bounds = array<i64: 3, 3, 32, 64>}, {pipeline_mode = #tpu.pipeline_mode<synchronous>, transform_indices = @transform_8, window_bounds = array<i64: 1, 64>}, {pipeline_mode = #tpu.pipeline_mode<synchronous>, transform_indices = @transform_9, window_bounds = array<i64: 4, 4, 16>}, {pipeline_mode = #tpu.pipeline_mode<synchronous>, transform_indices = @transform_10, window_bounds = array<i64: 4, 64, 2>}, {pipeline_mode = #tpu.pipeline_mode<synchronous>, transform_indices = @transform_11, window_bounds = array<i64: 1, 2>}, {transform_indices = @transform_12, window_bounds = array<i64: 1, 1, 2>}]} {
    %c0 = arith.constant 0 : index
    %c0_0 = arith.constant 0 : index
    %c0_1 = arith.constant 0 : index
    %0 = vector.load %arg1[%c0, %c0_0, %c0_1] : memref<1x256x3xf32, #tpu.memory_space<vmem>>, vector<1x256x3xf32>
    %1 = vector.shape_cast %0 : vector<1x256x3xf32> to vector<256x3xf32>
    %cst = arith.constant 0.000000e+00 : f32
    %2 = vector.broadcast %cst : f32 to vector<290x3xf32>
    %c0_2 = arith.constant 0 : index
    %c0_3 = arith.constant 0 : index
    %3 = vector.load %arg14[%c0_2, %c0_3] : memref<290x3xf32, #tpu.memory_space<vmem>>, vector<290x3xf32>
    tpu.vector_store %arg14[%c0_2, %c0_3], %2 {strides = array<i32>} : memref<290x3xf32, #tpu.memory_space<vmem>>, vector<290x3xf32>,
    %c17 = arith.constant 17 : index
    %c0_4 = arith.constant 0 : index
    %4 = vector.load %arg14[%c17, %c0_4] : memref<290x3xf32, #tpu.memory_space<vmem>>, vector<256x3xf32>
    tpu.vector_store %arg14[%c17, %c0_4], %1 {strides = array<i32>} : memref<290x3xf32, #tpu.memory_space<vmem>>, vector<256x3xf32>,
    %5 = tpu.iota {dimensions = array<i32: 0>} : vector<256x1xi32>
    %c16_i32 = arith.constant 16 : i32
    %c0_i32 = arith.constant 0 : i32
    %6 = arith.cmpi eq, %c16_i32, %c0_i32 : i32
    %c1_i32 = arith.constant 1 : i32
    %7 = arith.select %6, %c1_i32, %c16_i32 : i32
    %8 = vector.broadcast %7 : i32 to vector<256x1xi32>
    %9 = arith.remsi %5, %8 : vector<256x1xi32>
    %c0_i32_5 = arith.constant 0 : i32
    %10 = vector.broadcast %c0_i32_5 : i32 to vector<256x1xi32>
    %11 = arith.cmpi ne, %9, %10 : vector<256x1xi32>
    %c0_i32_6 = arith.constant 0 : i32
    %12 = vector.broadcast %c0_i32_6 : i32 to vector<256x1xi32>
    %13 = arith.cmpi slt, %9, %12 : vector<256x1xi32>
    %c0_i32_7 = arith.constant 0 : i32
    %14 = arith.cmpi slt, %7, %c0_i32_7 : i32
    %15 = vector.broadcast %14 : i1 to vector<256x1xi1>
    %16 = vector.broadcast %15 : vector<256x1xi1> to vector<256x1xi1>
    %17 = arith.xori %13, %16 : vector<256x1xi1>
    %18 = arith.andi %17, %11 : vector<256x1xi1>
    %19 = vector.broadcast %7 : i32 to vector<256x1xi32>
    %20 = arith.addi %9, %19 : vector<256x1xi32>
    %21 = arith.select %18, %20, %9 : vector<256x1xi1>, vector<256x1xi32>
    %cst_8 = arith.constant 0.000000e+00 : f32
    %22 = vector.broadcast %cst_8 : f32 to vector<256x16xf32>
    %c0_9 = arith.constant 0 : index
    %c0_10 = arith.constant 0 : index
    %23 = vector.load %arg14[%c0_9, %c0_10] : memref<290x3xf32, #tpu.memory_space<vmem>>, vector<256x3xf32>
    %c1_i32_11 = arith.constant 1 : i32
    %24 = vector.broadcast %c1_i32_11 : i32 to vector<256x1xi32>
    %25 = arith.cmpi sge, %21, %24 : vector<256x1xi32>
    %cst_12 = arith.constant 0.000000e+00 : f32
    %26 = vector.shape_cast %25 : vector<256x1xi1> to vector<256x1xi1>
    %27 = vector.broadcast %26 : vector<256x1xi1> to vector<256x3xi1>
    %28 = vector.broadcast %cst_12 : f32 to vector<256x3xf32>
    %29 = arith.select %27, %23, %28 : vector<256x3xi1>, vector<256x3xf32>
    %c0_13 = arith.constant 0 : index
    %c0_14 = arith.constant 0 : index
    %c0_15 = arith.constant 0 : index
    %c0_16 = arith.constant 0 : index
    %30 = vector.load %arg2[%c0_13, %c0_14, %c0_15, %c0_16] : memref<3x3x3x16xf32, #tpu.memory_space<vmem>>, vector<1x1x3x16xf32>
    %31 = vector.shape_cast %30 : vector<1x1x3x16xf32> to vector<3x16xf32>
    %cst_17 = arith.constant dense<0.000000e+00> : vector<256x16xf32>
    %32 = tpu.matmul %29, %31, %cst_17 {dimension_numbers = #tpu.dot_dimension_numbers<[1], [0], [0], [1], [0, 0, 1, 1], [], []>} : vector<256x3xf32>, vector<3x16xf32>, vector<256x16xf32> -> vector<256x16xf32>
    %33 = arith.addf %22, %32 : vector<256x16xf32>
    %c1 = arith.constant 1 : index
    %c0_18 = arith.constant 0 : index
    %34 = vector.load %arg14[%c1, %c0_18] : memref<290x3xf32, #tpu.memory_space<vmem>>, vector<256x3xf32>
    %c0_19 = arith.constant 0 : index
    %c1_20 = arith.constant 1 : index
    %c0_21 = arith.constant 0 : index
    %c0_22 = arith.constant 0 : index
    %35 = vector.load %arg2[%c0_19, %c1_20, %c0_21, %c0_22] : memref<3x3x3x16xf32, #tpu.memory_space<vmem>>, vector<1x1x3x16xf32>
    %36 = vector.shape_cast %35 : vector<1x1x3x16xf32> to vector<3x16xf32>
    %cst_23 = arith.constant dense<0.000000e+00> : vector<256x16xf32>
    %37 = tpu.matmul %34, %36, %cst_23 {dimension_numbers = #tpu.dot_dimension_numbers<[1], [0], [0], [1], [0, 0, 1, 1], [], []>} : vector<256x3xf32>, vector<3x16xf32>, vector<256x16xf32> -> vector<256x16xf32>
    %38 = arith.addf %33, %37 : vector<256x16xf32>
    %c2 = arith.constant 2 : index
    %c0_24 = arith.constant 0 : index
    %39 = vector.load %arg14[%c2, %c0_24] : memref<290x3xf32, #tpu.memory_space<vmem>>, vector<256x3xf32>
    %c14_i32 = arith.constant 14 : i32
    %40 = vector.broadcast %c14_i32 : i32 to vector<256x1xi32>
    %41 = arith.cmpi sle, %21, %40 : vector<256x1xi32>
    %cst_25 = arith.constant 0.000000e+00 : f32
    %42 = vector.shape_cast %41 : vector<256x1xi1> to vector<256x1xi1>
    %43 = vector.broadcast %42 : vector<256x1xi1> to vector<256x3xi1>
    %44 = vector.broadcast %cst_25 : f32 to vector<256x3xf32>
    %45 = arith.select %43, %39, %44 : vector<256x3xi1>, vector<256x3xf32>
    %c0_26 = arith.constant 0 : index
    %c2_27 = arith.constant 2 : index
    %c0_28 = arith.constant 0 : index
    %c0_29 = arith.constant 0 : index
    %46 = vector.load %arg2[%c0_26, %c2_27, %c0_28, %c0_29] : memref<3x3x3x16xf32, #tpu.memory_space<vmem>>, vector<1x1x3x16xf32>
    %47 = vector.shape_cast %46 : vector<1x1x3x16xf32> to vector<3x16xf32>
    %cst_30 = arith.constant dense<0.000000e+00> : vector<256x16xf32>
    %48 = tpu.matmul %45, %47, %cst_30 {dimension_numbers = #tpu.dot_dimension_numbers<[1], [0], [0], [1], [0, 0, 1, 1], [], []>} : vector<256x3xf32>, vector<3x16xf32>, vector<256x16xf32> -> vector<256x16xf32>
    %49 = arith.addf %38, %48 : vector<256x16xf32>
    %c16 = arith.constant 16 : index
    %c0_31 = arith.constant 0 : index
    %50 = vector.load %arg14[%c16, %c0_31] : memref<290x3xf32, #tpu.memory_space<vmem>>, vector<256x3xf32>
    %c1_i32_32 = arith.constant 1 : i32
    %51 = vector.broadcast %c1_i32_32 : i32 to vector<256x1xi32>
    %52 = arith.cmpi sge, %21, %51 : vector<256x1xi32>
    %cst_33 = arith.constant 0.000000e+00 : f32
    %53 = vector.shape_cast %52 : vector<256x1xi1> to vector<256x1xi1>
    %54 = vector.broadcast %53 : vector<256x1xi1> to vector<256x3xi1>
    %55 = vector.broadcast %cst_33 : f32 to vector<256x3xf32>
    %56 = arith.select %54, %50, %55 : vector<256x3xi1>, vector<256x3xf32>
    %c1_34 = arith.constant 1 : index
    %c0_35 = arith.constant 0 : index
    %c0_36 = arith.constant 0 : index
    %c0_37 = arith.constant 0 : index
    %57 = vector.load %arg2[%c1_34, %c0_35, %c0_36, %c0_37] : memref<3x3x3x16xf32, #tpu.memory_space<vmem>>, vector<1x1x3x16xf32>
    %58 = vector.shape_cast %57 : vector<1x1x3x16xf32> to vector<3x16xf32>
    %cst_38 = arith.constant dense<0.000000e+00> : vector<256x16xf32>
    %59 = tpu.matmul %56, %58, %cst_38 {dimension_numbers = #tpu.dot_dimension_numbers<[1], [0], [0], [1], [0, 0, 1, 1], [], []>} : vector<256x3xf32>, vector<3x16xf32>, vector<256x16xf32> -> vector<256x16xf32>
    %60 = arith.addf %49, %59 : vector<256x16xf32>
    %c17_39 = arith.constant 17 : index
    %c0_40 = arith.constant 0 : index
    %61 = vector.load %arg14[%c17_39, %c0_40] : memref<290x3xf32, #tpu.memory_space<vmem>>, vector<256x3xf32>
    %c1_41 = arith.constant 1 : index
    %c1_42 = arith.constant 1 : index
    %c0_43 = arith.constant 0 : index
    %c0_44 = arith.constant 0 : index
    %62 = vector.load %arg2[%c1_41, %c1_42, %c0_43, %c0_44] : memref<3x3x3x16xf32, #tpu.memory_space<vmem>>, vector<1x1x3x16xf32>
    %63 = vector.shape_cast %62 : vector<1x1x3x16xf32> to vector<3x16xf32>
    %cst_45 = arith.constant dense<0.000000e+00> : vector<256x16xf32>
    %64 = tpu.matmul %61, %63, %cst_45 {dimension_numbers = #tpu.dot_dimension_numbers<[1], [0], [0], [1], [0, 0, 1, 1], [], []>} : vector<256x3xf32>, vector<3x16xf32>, vector<256x16xf32> -> vector<256x16xf32>
    %65 = arith.addf %60, %64 : vector<256x16xf32>
    %c18 = arith.constant 18 : index
    %c0_46 = arith.constant 0 : index
    %66 = vector.load %arg14[%c18, %c0_46] : memref<290x3xf32, #tpu.memory_space<vmem>>, vector<256x3xf32>
    %c14_i32_47 = arith.constant 14 : i32
    %67 = vector.broadcast %c14_i32_47 : i32 to vector<256x1xi32>
    %68 = arith.cmpi sle, %21, %67 : vector<256x1xi32>
    %cst_48 = arith.constant 0.000000e+00 : f32
    %69 = vector.shape_cast %68 : vector<256x1xi1> to vector<256x1xi1>
    %70 = vector.broadcast %69 : vector<256x1xi1> to vector<256x3xi1>
    %71 = vector.broadcast %cst_48 : f32 to vector<256x3xf32>
    %72 = arith.select %70, %66, %71 : vector<256x3xi1>, vector<256x3xf32>
    %c1_49 = arith.constant 1 : index
    %c2_50 = arith.constant 2 : index
    %c0_51 = arith.constant 0 : index
    %c0_52 = arith.constant 0 : index
    %73 = vector.load %arg2[%c1_49, %c2_50, %c0_51, %c0_52] : memref<3x3x3x16xf32, #tpu.memory_space<vmem>>, vector<1x1x3x16xf32>
    %74 = vector.shape_cast %73 : vector<1x1x3x16xf32> to vector<3x16xf32>
    %cst_53 = arith.constant dense<0.000000e+00> : vector<256x16xf32>
    %75 = tpu.matmul %72, %74, %cst_53 {dimension_numbers = #tpu.dot_dimension_numbers<[1], [0], [0], [1], [0, 0, 1, 1], [], []>} : vector<256x3xf32>, vector<3x16xf32>, vector<256x16xf32> -> vector<256x16xf32>
    %76 = arith.addf %65, %75 : vector<256x16xf32>
    %c32 = arith.constant 32 : index
    %c0_54 = arith.constant 0 : index
    %77 = vector.load %arg14[%c32, %c0_54] : memref<290x3xf32, #tpu.memory_space<vmem>>, vector<256x3xf32>
    %c1_i32_55 = arith.constant 1 : i32
    %78 = vector.broadcast %c1_i32_55 : i32 to vector<256x1xi32>
    %79 = arith.cmpi sge, %21, %78 : vector<256x1xi32>
    %cst_56 = arith.constant 0.000000e+00 : f32
    %80 = vector.shape_cast %79 : vector<256x1xi1> to vector<256x1xi1>
    %81 = vector.broadcast %80 : vector<256x1xi1> to vector<256x3xi1>
    %82 = vector.broadcast %cst_56 : f32 to vector<256x3xf32>
    %83 = arith.select %81, %77, %82 : vector<256x3xi1>, vector<256x3xf32>
    %c2_57 = arith.constant 2 : index
    %c0_58 = arith.constant 0 : index
    %c0_59 = arith.constant 0 : index
    %c0_60 = arith.constant 0 : index
    %84 = vector.load %arg2[%c2_57, %c0_58, %c0_59, %c0_60] : memref<3x3x3x16xf32, #tpu.memory_space<vmem>>, vector<1x1x3x16xf32>
    %85 = vector.shape_cast %84 : vector<1x1x3x16xf32> to vector<3x16xf32>
    %cst_61 = arith.constant dense<0.000000e+00> : vector<256x16xf32>
    %86 = tpu.matmul %83, %85, %cst_61 {dimension_numbers = #tpu.dot_dimension_numbers<[1], [0], [0], [1], [0, 0, 1, 1], [], []>} : vector<256x3xf32>, vector<3x16xf32>, vector<256x16xf32> -> vector<256x16xf32>
    %87 = arith.addf %76, %86 : vector<256x16xf32>
    %c33 = arith.constant 33 : index
    %c0_62 = arith.constant 0 : index
    %88 = vector.load %arg14[%c33, %c0_62] : memref<290x3xf32, #tpu.memory_space<vmem>>, vector<256x3xf32>
    %c2_63 = arith.constant 2 : index
    %c1_64 = arith.constant 1 : index
    %c0_65 = arith.constant 0 : index
    %c0_66 = arith.constant 0 : index
    %89 = vector.load %arg2[%c2_63, %c1_64, %c0_65, %c0_66] : memref<3x3x3x16xf32, #tpu.memory_space<vmem>>, vector<1x1x3x16xf32>
    %90 = vector.shape_cast %89 : vector<1x1x3x16xf32> to vector<3x16xf32>
    %cst_67 = arith.constant dense<0.000000e+00> : vector<256x16xf32>
    %91 = tpu.matmul %88, %90, %cst_67 {dimension_numbers = #tpu.dot_dimension_numbers<[1], [0], [0], [1], [0, 0, 1, 1], [], []>} : vector<256x3xf32>, vector<3x16xf32>, vector<256x16xf32> -> vector<256x16xf32>
    %92 = arith.addf %87, %91 : vector<256x16xf32>
    %c34 = arith.constant 34 : index
    %c0_68 = arith.constant 0 : index
    %93 = vector.load %arg14[%c34, %c0_68] : memref<290x3xf32, #tpu.memory_space<vmem>>, vector<256x3xf32>
    %c14_i32_69 = arith.constant 14 : i32
    %94 = vector.broadcast %c14_i32_69 : i32 to vector<256x1xi32>
    %95 = arith.cmpi sle, %21, %94 : vector<256x1xi32>
    %cst_70 = arith.constant 0.000000e+00 : f32
    %96 = vector.shape_cast %95 : vector<256x1xi1> to vector<256x1xi1>
    %97 = vector.broadcast %96 : vector<256x1xi1> to vector<256x3xi1>
    %98 = vector.broadcast %cst_70 : f32 to vector<256x3xf32>
    %99 = arith.select %97, %93, %98 : vector<256x3xi1>, vector<256x3xf32>
    %c2_71 = arith.constant 2 : index
    %c2_72 = arith.constant 2 : index
    %c0_73 = arith.constant 0 : index
    %c0_74 = arith.constant 0 : index
    %100 = vector.load %arg2[%c2_71, %c2_72, %c0_73, %c0_74] : memref<3x3x3x16xf32, #tpu.memory_space<vmem>>, vector<1x1x3x16xf32>
    %101 = vector.shape_cast %100 : vector<1x1x3x16xf32> to vector<3x16xf32>
    %cst_75 = arith.constant dense<0.000000e+00> : vector<256x16xf32>
    %102 = tpu.matmul %99, %101, %cst_75 {dimension_numbers = #tpu.dot_dimension_numbers<[1], [0], [0], [1], [0, 0, 1, 1], [], []>} : vector<256x3xf32>, vector<3x16xf32>, vector<256x16xf32> -> vector<256x16xf32>
    %103 = arith.addf %92, %102 : vector<256x16xf32>
    %c0_76 = arith.constant 0 : index
    %c0_77 = arith.constant 0 : index
    %104 = vector.load %arg3[%c0_76, %c0_77] : memref<1x16xf32, #tpu.memory_space<vmem>>, vector<1x16xf32>
    %105 = vector.broadcast %104 : vector<1x16xf32> to vector<256x16xf32>
    %106 = arith.addf %103, %105 : vector<256x16xf32>
    %cst_78 = arith.constant 0.000000e+00 : f32
    %107 = vector.broadcast %cst_78 : f32 to vector<256x16xf32>
    %108 = arith.maximumf %106, %107 : vector<256x16xf32>
    %c0_79 = arith.constant 0 : index
    %c0_80 = arith.constant 0 : index
    %c0_81 = arith.constant 0 : index
    %109 = vector.load %arg4[%c0_79, %c0_80, %c0_81] : memref<4x64x256xf32, #tpu.memory_space<vmem>>, vector<1x64x256xf32>
    %110 = vector.shape_cast %109 : vector<1x64x256xf32> to vector<64x256xf32>
    %cst_82 = arith.constant dense<0.000000e+00> : vector<64x16xf32>
    %111 = tpu.matmul %110, %108, %cst_82 {dimension_numbers = #tpu.dot_dimension_numbers<[1], [0], [0], [1], [0, 0, 1, 1], [], []>} : vector<64x256xf32>, vector<256x16xf32>, vector<64x16xf32> -> vector<64x16xf32>
    %c1_83 = arith.constant 1 : index
    %c0_84 = arith.constant 0 : index
    %c0_85 = arith.constant 0 : index
    %112 = vector.load %arg4[%c1_83, %c0_84, %c0_85] : memref<4x64x256xf32, #tpu.memory_space<vmem>>, vector<1x64x256xf32>
    %113 = vector.shape_cast %112 : vector<1x64x256xf32> to vector<64x256xf32>
    %cst_86 = arith.constant dense<0.000000e+00> : vector<64x16xf32>
    %114 = tpu.matmul %113, %108, %cst_86 {dimension_numbers = #tpu.dot_dimension_numbers<[1], [0], [0], [1], [0, 0, 1, 1], [], []>} : vector<64x256xf32>, vector<256x16xf32>, vector<64x16xf32> -> vector<64x16xf32>
    %115 = arith.maximumf %111, %114 : vector<64x16xf32>
    %c2_87 = arith.constant 2 : index
    %c0_88 = arith.constant 0 : index
    %c0_89 = arith.constant 0 : index
    %116 = vector.load %arg4[%c2_87, %c0_88, %c0_89] : memref<4x64x256xf32, #tpu.memory_space<vmem>>, vector<1x64x256xf32>
    %117 = vector.shape_cast %116 : vector<1x64x256xf32> to vector<64x256xf32>
    %cst_90 = arith.constant dense<0.000000e+00> : vector<64x16xf32>
    %118 = tpu.matmul %117, %108, %cst_90 {dimension_numbers = #tpu.dot_dimension_numbers<[1], [0], [0], [1], [0, 0, 1, 1], [], []>} : vector<64x256xf32>, vector<256x16xf32>, vector<64x16xf32> -> vector<64x16xf32>
    %119 = arith.maximumf %115, %118 : vector<64x16xf32>
    %c3 = arith.constant 3 : index
    %c0_91 = arith.constant 0 : index
    %c0_92 = arith.constant 0 : index
    %120 = vector.load %arg4[%c3, %c0_91, %c0_92] : memref<4x64x256xf32, #tpu.memory_space<vmem>>, vector<1x64x256xf32>
    %121 = vector.shape_cast %120 : vector<1x64x256xf32> to vector<64x256xf32>
    %cst_93 = arith.constant dense<0.000000e+00> : vector<64x16xf32>
    %122 = tpu.matmul %121, %108, %cst_93 {dimension_numbers = #tpu.dot_dimension_numbers<[1], [0], [0], [1], [0, 0, 1, 1], [], []>} : vector<64x256xf32>, vector<256x16xf32>, vector<64x16xf32> -> vector<64x16xf32>
    %123 = arith.maximumf %119, %122 : vector<64x16xf32>
    %cst_94 = arith.constant 0.000000e+00 : f32
    %124 = vector.broadcast %cst_94 : f32 to vector<82x16xf32>
    %c0_95 = arith.constant 0 : index
    %c0_96 = arith.constant 0 : index
    %125 = vector.load %arg15[%c0_95, %c0_96] : memref<82x16xf32, #tpu.memory_space<vmem>>, vector<82x16xf32>
    tpu.vector_store %arg15[%c0_95, %c0_96], %124 {strides = array<i32>} : memref<82x16xf32, #tpu.memory_space<vmem>>, vector<82x16xf32>,
    %c9 = arith.constant 9 : index
    %c0_97 = arith.constant 0 : index
    %126 = vector.load %arg15[%c9, %c0_97] : memref<82x16xf32, #tpu.memory_space<vmem>>, vector<64x16xf32>
    tpu.vector_store %arg15[%c9, %c0_97], %123 {strides = array<i32>} : memref<82x16xf32, #tpu.memory_space<vmem>>, vector<64x16xf32>,
    %127 = tpu.iota {dimensions = array<i32: 0>} : vector<64x1xi32>
    %c8_i32 = arith.constant 8 : i32
    %c0_i32_98 = arith.constant 0 : i32
    %128 = arith.cmpi eq, %c8_i32, %c0_i32_98 : i32
    %c1_i32_99 = arith.constant 1 : i32
    %129 = arith.select %128, %c1_i32_99, %c8_i32 : i32
    %130 = vector.broadcast %129 : i32 to vector<64x1xi32>
    %131 = arith.remsi %127, %130 : vector<64x1xi32>
    %c0_i32_100 = arith.constant 0 : i32
    %132 = vector.broadcast %c0_i32_100 : i32 to vector<64x1xi32>
    %133 = arith.cmpi ne, %131, %132 : vector<64x1xi32>
    %c0_i32_101 = arith.constant 0 : i32
    %134 = vector.broadcast %c0_i32_101 : i32 to vector<64x1xi32>
    %135 = arith.cmpi slt, %131, %134 : vector<64x1xi32>
    %c0_i32_102 = arith.constant 0 : i32
    %136 = arith.cmpi slt, %129, %c0_i32_102 : i32
    %137 = vector.broadcast %136 : i1 to vector<64x1xi1>
    %138 = vector.broadcast %137 : vector<64x1xi1> to vector<64x1xi1>
    %139 = arith.xori %135, %138 : vector<64x1xi1>
    %140 = arith.andi %139, %133 : vector<64x1xi1>
    %141 = vector.broadcast %129 : i32 to vector<64x1xi32>
    %142 = arith.addi %131, %141 : vector<64x1xi32>
    %143 = arith.select %140, %142, %131 : vector<64x1xi1>, vector<64x1xi32>
    %cst_103 = arith.constant 0.000000e+00 : f32
    %144 = vector.broadcast %cst_103 : f32 to vector<64x32xf32>
    %c0_104 = arith.constant 0 : index
    %c0_105 = arith.constant 0 : index
    %145 = vector.load %arg15[%c0_104, %c0_105] : memref<82x16xf32, #tpu.memory_space<vmem>>, vector<64x16xf32>
    %c1_i32_106 = arith.constant 1 : i32
    %146 = vector.broadcast %c1_i32_106 : i32 to vector<64x1xi32>
    %147 = arith.cmpi sge, %143, %146 : vector<64x1xi32>
    %cst_107 = arith.constant 0.000000e+00 : f32
    %148 = vector.shape_cast %147 : vector<64x1xi1> to vector<64x1xi1>
    %149 = vector.broadcast %148 : vector<64x1xi1> to vector<64x16xi1>
    %150 = vector.broadcast %cst_107 : f32 to vector<64x16xf32>
    %151 = arith.select %149, %145, %150 : vector<64x16xi1>, vector<64x16xf32>
    %c0_108 = arith.constant 0 : index
    %c0_109 = arith.constant 0 : index
    %c0_110 = arith.constant 0 : index
    %c0_111 = arith.constant 0 : index
    %152 = vector.load %arg5[%c0_108, %c0_109, %c0_110, %c0_111] : memref<3x3x16x32xf32, #tpu.memory_space<vmem>>, vector<1x1x16x32xf32>
    %153 = vector.shape_cast %152 : vector<1x1x16x32xf32> to vector<16x32xf32>
    %cst_112 = arith.constant dense<0.000000e+00> : vector<64x32xf32>
    %154 = tpu.matmul %151, %153, %cst_112 {dimension_numbers = #tpu.dot_dimension_numbers<[1], [0], [0], [1], [0, 0, 1, 1], [], []>} : vector<64x16xf32>, vector<16x32xf32>, vector<64x32xf32> -> vector<64x32xf32>
    %155 = arith.addf %144, %154 : vector<64x32xf32>
    %c1_113 = arith.constant 1 : index
    %c0_114 = arith.constant 0 : index
    %156 = vector.load %arg15[%c1_113, %c0_114] : memref<82x16xf32, #tpu.memory_space<vmem>>, vector<64x16xf32>
    %c0_115 = arith.constant 0 : index
    %c1_116 = arith.constant 1 : index
    %c0_117 = arith.constant 0 : index
    %c0_118 = arith.constant 0 : index
    %157 = vector.load %arg5[%c0_115, %c1_116, %c0_117, %c0_118] : memref<3x3x16x32xf32, #tpu.memory_space<vmem>>, vector<1x1x16x32xf32>
    %158 = vector.shape_cast %157 : vector<1x1x16x32xf32> to vector<16x32xf32>
    %cst_119 = arith.constant dense<0.000000e+00> : vector<64x32xf32>
    %159 = tpu.matmul %156, %158, %cst_119 {dimension_numbers = #tpu.dot_dimension_numbers<[1], [0], [0], [1], [0, 0, 1, 1], [], []>} : vector<64x16xf32>, vector<16x32xf32>, vector<64x32xf32> -> vector<64x32xf32>
    %160 = arith.addf %155, %159 : vector<64x32xf32>
    %c2_120 = arith.constant 2 : index
    %c0_121 = arith.constant 0 : index
    %161 = vector.load %arg15[%c2_120, %c0_121] : memref<82x16xf32, #tpu.memory_space<vmem>>, vector<64x16xf32>
    %c6_i32 = arith.constant 6 : i32
    %162 = vector.broadcast %c6_i32 : i32 to vector<64x1xi32>
    %163 = arith.cmpi sle, %143, %162 : vector<64x1xi32>
    %cst_122 = arith.constant 0.000000e+00 : f32
    %164 = vector.shape_cast %163 : vector<64x1xi1> to vector<64x1xi1>
    %165 = vector.broadcast %164 : vector<64x1xi1> to vector<64x16xi1>
    %166 = vector.broadcast %cst_122 : f32 to vector<64x16xf32>
    %167 = arith.select %165, %161, %166 : vector<64x16xi1>, vector<64x16xf32>
    %c0_123 = arith.constant 0 : index
    %c2_124 = arith.constant 2 : index
    %c0_125 = arith.constant 0 : index
    %c0_126 = arith.constant 0 : index
    %168 = vector.load %arg5[%c0_123, %c2_124, %c0_125, %c0_126] : memref<3x3x16x32xf32, #tpu.memory_space<vmem>>, vector<1x1x16x32xf32>
    %169 = vector.shape_cast %168 : vector<1x1x16x32xf32> to vector<16x32xf32>
    %cst_127 = arith.constant dense<0.000000e+00> : vector<64x32xf32>
    %170 = tpu.matmul %167, %169, %cst_127 {dimension_numbers = #tpu.dot_dimension_numbers<[1], [0], [0], [1], [0, 0, 1, 1], [], []>} : vector<64x16xf32>, vector<16x32xf32>, vector<64x32xf32> -> vector<64x32xf32>
    %171 = arith.addf %160, %170 : vector<64x32xf32>
    %c8 = arith.constant 8 : index
    %c0_128 = arith.constant 0 : index
    %172 = vector.load %arg15[%c8, %c0_128] : memref<82x16xf32, #tpu.memory_space<vmem>>, vector<64x16xf32>
    %c1_i32_129 = arith.constant 1 : i32
    %173 = vector.broadcast %c1_i32_129 : i32 to vector<64x1xi32>
    %174 = arith.cmpi sge, %143, %173 : vector<64x1xi32>
    %cst_130 = arith.constant 0.000000e+00 : f32
    %175 = vector.shape_cast %174 : vector<64x1xi1> to vector<64x1xi1>
    %176 = vector.broadcast %175 : vector<64x1xi1> to vector<64x16xi1>
    %177 = vector.broadcast %cst_130 : f32 to vector<64x16xf32>
    %178 = arith.select %176, %172, %177 : vector<64x16xi1>, vector<64x16xf32>
    %c1_131 = arith.constant 1 : index
    %c0_132 = arith.constant 0 : index
    %c0_133 = arith.constant 0 : index
    %c0_134 = arith.constant 0 : index
    %179 = vector.load %arg5[%c1_131, %c0_132, %c0_133, %c0_134] : memref<3x3x16x32xf32, #tpu.memory_space<vmem>>, vector<1x1x16x32xf32>
    %180 = vector.shape_cast %179 : vector<1x1x16x32xf32> to vector<16x32xf32>
    %cst_135 = arith.constant dense<0.000000e+00> : vector<64x32xf32>
    %181 = tpu.matmul %178, %180, %cst_135 {dimension_numbers = #tpu.dot_dimension_numbers<[1], [0], [0], [1], [0, 0, 1, 1], [], []>} : vector<64x16xf32>, vector<16x32xf32>, vector<64x32xf32> -> vector<64x32xf32>
    %182 = arith.addf %171, %181 : vector<64x32xf32>
    %c9_136 = arith.constant 9 : index
    %c0_137 = arith.constant 0 : index
    %183 = vector.load %arg15[%c9_136, %c0_137] : memref<82x16xf32, #tpu.memory_space<vmem>>, vector<64x16xf32>
    %c1_138 = arith.constant 1 : index
    %c1_139 = arith.constant 1 : index
    %c0_140 = arith.constant 0 : index
    %c0_141 = arith.constant 0 : index
    %184 = vector.load %arg5[%c1_138, %c1_139, %c0_140, %c0_141] : memref<3x3x16x32xf32, #tpu.memory_space<vmem>>, vector<1x1x16x32xf32>
    %185 = vector.shape_cast %184 : vector<1x1x16x32xf32> to vector<16x32xf32>
    %cst_142 = arith.constant dense<0.000000e+00> : vector<64x32xf32>
    %186 = tpu.matmul %183, %185, %cst_142 {dimension_numbers = #tpu.dot_dimension_numbers<[1], [0], [0], [1], [0, 0, 1, 1], [], []>} : vector<64x16xf32>, vector<16x32xf32>, vector<64x32xf32> -> vector<64x32xf32>
    %187 = arith.addf %182, %186 : vector<64x32xf32>
    %c10 = arith.constant 10 : index
    %c0_143 = arith.constant 0 : index
    %188 = vector.load %arg15[%c10, %c0_143] : memref<82x16xf32, #tpu.memory_space<vmem>>, vector<64x16xf32>
    %c6_i32_144 = arith.constant 6 : i32
    %189 = vector.broadcast %c6_i32_144 : i32 to vector<64x1xi32>
    %190 = arith.cmpi sle, %143, %189 : vector<64x1xi32>
    %cst_145 = arith.constant 0.000000e+00 : f32
    %191 = vector.shape_cast %190 : vector<64x1xi1> to vector<64x1xi1>
    %192 = vector.broadcast %191 : vector<64x1xi1> to vector<64x16xi1>
    %193 = vector.broadcast %cst_145 : f32 to vector<64x16xf32>
    %194 = arith.select %192, %188, %193 : vector<64x16xi1>, vector<64x16xf32>
    %c1_146 = arith.constant 1 : index
    %c2_147 = arith.constant 2 : index
    %c0_148 = arith.constant 0 : index
    %c0_149 = arith.constant 0 : index
    %195 = vector.load %arg5[%c1_146, %c2_147, %c0_148, %c0_149] : memref<3x3x16x32xf32, #tpu.memory_space<vmem>>, vector<1x1x16x32xf32>
    %196 = vector.shape_cast %195 : vector<1x1x16x32xf32> to vector<16x32xf32>
    %cst_150 = arith.constant dense<0.000000e+00> : vector<64x32xf32>
    %197 = tpu.matmul %194, %196, %cst_150 {dimension_numbers = #tpu.dot_dimension_numbers<[1], [0], [0], [1], [0, 0, 1, 1], [], []>} : vector<64x16xf32>, vector<16x32xf32>, vector<64x32xf32> -> vector<64x32xf32>
    %198 = arith.addf %187, %197 : vector<64x32xf32>
    %c16_151 = arith.constant 16 : index
    %c0_152 = arith.constant 0 : index
    %199 = vector.load %arg15[%c16_151, %c0_152] : memref<82x16xf32, #tpu.memory_space<vmem>>, vector<64x16xf32>
    %c1_i32_153 = arith.constant 1 : i32
    %200 = vector.broadcast %c1_i32_153 : i32 to vector<64x1xi32>
    %201 = arith.cmpi sge, %143, %200 : vector<64x1xi32>
    %cst_154 = arith.constant 0.000000e+00 : f32
    %202 = vector.shape_cast %201 : vector<64x1xi1> to vector<64x1xi1>
    %203 = vector.broadcast %202 : vector<64x1xi1> to vector<64x16xi1>
    %204 = vector.broadcast %cst_154 : f32 to vector<64x16xf32>
    %205 = arith.select %203, %199, %204 : vector<64x16xi1>, vector<64x16xf32>
    %c2_155 = arith.constant 2 : index
    %c0_156 = arith.constant 0 : index
    %c0_157 = arith.constant 0 : index
    %c0_158 = arith.constant 0 : index
    %206 = vector.load %arg5[%c2_155, %c0_156, %c0_157, %c0_158] : memref<3x3x16x32xf32, #tpu.memory_space<vmem>>, vector<1x1x16x32xf32>
    %207 = vector.shape_cast %206 : vector<1x1x16x32xf32> to vector<16x32xf32>
    %cst_159 = arith.constant dense<0.000000e+00> : vector<64x32xf32>
    %208 = tpu.matmul %205, %207, %cst_159 {dimension_numbers = #tpu.dot_dimension_numbers<[1], [0], [0], [1], [0, 0, 1, 1], [], []>} : vector<64x16xf32>, vector<16x32xf32>, vector<64x32xf32> -> vector<64x32xf32>
    %209 = arith.addf %198, %208 : vector<64x32xf32>
    %c17_160 = arith.constant 17 : index
    %c0_161 = arith.constant 0 : index
    %210 = vector.load %arg15[%c17_160, %c0_161] : memref<82x16xf32, #tpu.memory_space<vmem>>, vector<64x16xf32>
    %c2_162 = arith.constant 2 : index
    %c1_163 = arith.constant 1 : index
    %c0_164 = arith.constant 0 : index
    %c0_165 = arith.constant 0 : index
    %211 = vector.load %arg5[%c2_162, %c1_163, %c0_164, %c0_165] : memref<3x3x16x32xf32, #tpu.memory_space<vmem>>, vector<1x1x16x32xf32>
    %212 = vector.shape_cast %211 : vector<1x1x16x32xf32> to vector<16x32xf32>
    %cst_166 = arith.constant dense<0.000000e+00> : vector<64x32xf32>
    %213 = tpu.matmul %210, %212, %cst_166 {dimension_numbers = #tpu.dot_dimension_numbers<[1], [0], [0], [1], [0, 0, 1, 1], [], []>} : vector<64x16xf32>, vector<16x32xf32>, vector<64x32xf32> -> vector<64x32xf32>
    %214 = arith.addf %209, %213 : vector<64x32xf32>
    %c18_167 = arith.constant 18 : index
    %c0_168 = arith.constant 0 : index
    %215 = vector.load %arg15[%c18_167, %c0_168] : memref<82x16xf32, #tpu.memory_space<vmem>>, vector<64x16xf32>
    %c6_i32_169 = arith.constant 6 : i32
    %216 = vector.broadcast %c6_i32_169 : i32 to vector<64x1xi32>
    %217 = arith.cmpi sle, %143, %216 : vector<64x1xi32>
    %cst_170 = arith.constant 0.000000e+00 : f32
    %218 = vector.shape_cast %217 : vector<64x1xi1> to vector<64x1xi1>
    %219 = vector.broadcast %218 : vector<64x1xi1> to vector<64x16xi1>
    %220 = vector.broadcast %cst_170 : f32 to vector<64x16xf32>
    %221 = arith.select %219, %215, %220 : vector<64x16xi1>, vector<64x16xf32>
    %c2_171 = arith.constant 2 : index
    %c2_172 = arith.constant 2 : index
    %c0_173 = arith.constant 0 : index
    %c0_174 = arith.constant 0 : index
    %222 = vector.load %arg5[%c2_171, %c2_172, %c0_173, %c0_174] : memref<3x3x16x32xf32, #tpu.memory_space<vmem>>, vector<1x1x16x32xf32>
    %223 = vector.shape_cast %222 : vector<1x1x16x32xf32> to vector<16x32xf32>
    %cst_175 = arith.constant dense<0.000000e+00> : vector<64x32xf32>
    %224 = tpu.matmul %221, %223, %cst_175 {dimension_numbers = #tpu.dot_dimension_numbers<[1], [0], [0], [1], [0, 0, 1, 1], [], []>} : vector<64x16xf32>, vector<16x32xf32>, vector<64x32xf32> -> vector<64x32xf32>
    %225 = arith.addf %214, %224 : vector<64x32xf32>
    %c0_176 = arith.constant 0 : index
    %c0_177 = arith.constant 0 : index
    %226 = vector.load %arg6[%c0_176, %c0_177] : memref<1x32xf32, #tpu.memory_space<vmem>>, vector<1x32xf32>
    %227 = vector.broadcast %226 : vector<1x32xf32> to vector<64x32xf32>
    %228 = arith.addf %225, %227 : vector<64x32xf32>
    %cst_178 = arith.constant 0.000000e+00 : f32
    %229 = vector.broadcast %cst_178 : f32 to vector<64x32xf32>
    %230 = arith.maximumf %228, %229 : vector<64x32xf32>
    %c0_179 = arith.constant 0 : index
    %c0_180 = arith.constant 0 : index
    %c0_181 = arith.constant 0 : index
    %231 = vector.load %arg7[%c0_179, %c0_180, %c0_181] : memref<4x16x64xf32, #tpu.memory_space<vmem>>, vector<1x16x64xf32>
    %232 = vector.shape_cast %231 : vector<1x16x64xf32> to vector<16x64xf32>
    %cst_182 = arith.constant dense<0.000000e+00> : vector<16x32xf32>
    %233 = tpu.matmul %232, %230, %cst_182 {dimension_numbers = #tpu.dot_dimension_numbers<[1], [0], [0], [1], [0, 0, 1, 1], [], []>} : vector<16x64xf32>, vector<64x32xf32>, vector<16x32xf32> -> vector<16x32xf32>
    %c1_183 = arith.constant 1 : index
    %c0_184 = arith.constant 0 : index
    %c0_185 = arith.constant 0 : index
    %234 = vector.load %arg7[%c1_183, %c0_184, %c0_185] : memref<4x16x64xf32, #tpu.memory_space<vmem>>, vector<1x16x64xf32>
    %235 = vector.shape_cast %234 : vector<1x16x64xf32> to vector<16x64xf32>
    %cst_186 = arith.constant dense<0.000000e+00> : vector<16x32xf32>
    %236 = tpu.matmul %235, %230, %cst_186 {dimension_numbers = #tpu.dot_dimension_numbers<[1], [0], [0], [1], [0, 0, 1, 1], [], []>} : vector<16x64xf32>, vector<64x32xf32>, vector<16x32xf32> -> vector<16x32xf32>
    %237 = arith.maximumf %233, %236 : vector<16x32xf32>
    %c2_187 = arith.constant 2 : index
    %c0_188 = arith.constant 0 : index
    %c0_189 = arith.constant 0 : index
    %238 = vector.load %arg7[%c2_187, %c0_188, %c0_189] : memref<4x16x64xf32, #tpu.memory_space<vmem>>, vector<1x16x64xf32>
    %239 = vector.shape_cast %238 : vector<1x16x64xf32> to vector<16x64xf32>
    %cst_190 = arith.constant dense<0.000000e+00> : vector<16x32xf32>
    %240 = tpu.matmul %239, %230, %cst_190 {dimension_numbers = #tpu.dot_dimension_numbers<[1], [0], [0], [1], [0, 0, 1, 1], [], []>} : vector<16x64xf32>, vector<64x32xf32>, vector<16x32xf32> -> vector<16x32xf32>
    %241 = arith.maximumf %237, %240 : vector<16x32xf32>
    %c3_191 = arith.constant 3 : index
    %c0_192 = arith.constant 0 : index
    %c0_193 = arith.constant 0 : index
    %242 = vector.load %arg7[%c3_191, %c0_192, %c0_193] : memref<4x16x64xf32, #tpu.memory_space<vmem>>, vector<1x16x64xf32>
    %243 = vector.shape_cast %242 : vector<1x16x64xf32> to vector<16x64xf32>
    %cst_194 = arith.constant dense<0.000000e+00> : vector<16x32xf32>
    %244 = tpu.matmul %243, %230, %cst_194 {dimension_numbers = #tpu.dot_dimension_numbers<[1], [0], [0], [1], [0, 0, 1, 1], [], []>} : vector<16x64xf32>, vector<64x32xf32>, vector<16x32xf32> -> vector<16x32xf32>
    %245 = arith.maximumf %241, %244 : vector<16x32xf32>
    %cst_195 = arith.constant 0.000000e+00 : f32
    %246 = vector.broadcast %cst_195 : f32 to vector<26x32xf32>
    %c0_196 = arith.constant 0 : index
    %c0_197 = arith.constant 0 : index
    %247 = vector.load %arg16[%c0_196, %c0_197] : memref<26x32xf32, #tpu.memory_space<vmem>>, vector<26x32xf32>
    tpu.vector_store %arg16[%c0_196, %c0_197], %246 {strides = array<i32>} : memref<26x32xf32, #tpu.memory_space<vmem>>, vector<26x32xf32>,
    %c5 = arith.constant 5 : index
    %c0_198 = arith.constant 0 : index
    %248 = vector.load %arg16[%c5, %c0_198] : memref<26x32xf32, #tpu.memory_space<vmem>>, vector<16x32xf32>
    tpu.vector_store %arg16[%c5, %c0_198], %245 {strides = array<i32>} : memref<26x32xf32, #tpu.memory_space<vmem>>, vector<16x32xf32>,
    %249 = tpu.iota {dimensions = array<i32: 0>} : vector<16x1xi32>
    %c4_i32 = arith.constant 4 : i32
    %c0_i32_199 = arith.constant 0 : i32
    %250 = arith.cmpi eq, %c4_i32, %c0_i32_199 : i32
    %c1_i32_200 = arith.constant 1 : i32
    %251 = arith.select %250, %c1_i32_200, %c4_i32 : i32
    %252 = vector.broadcast %251 : i32 to vector<16x1xi32>
    %253 = arith.remsi %249, %252 : vector<16x1xi32>
    %c0_i32_201 = arith.constant 0 : i32
    %254 = vector.broadcast %c0_i32_201 : i32 to vector<16x1xi32>
    %255 = arith.cmpi ne, %253, %254 : vector<16x1xi32>
    %c0_i32_202 = arith.constant 0 : i32
    %256 = vector.broadcast %c0_i32_202 : i32 to vector<16x1xi32>
    %257 = arith.cmpi slt, %253, %256 : vector<16x1xi32>
    %c0_i32_203 = arith.constant 0 : i32
    %258 = arith.cmpi slt, %251, %c0_i32_203 : i32
    %259 = vector.broadcast %258 : i1 to vector<16x1xi1>
    %260 = vector.broadcast %259 : vector<16x1xi1> to vector<16x1xi1>
    %261 = arith.xori %257, %260 : vector<16x1xi1>
    %262 = arith.andi %261, %255 : vector<16x1xi1>
    %263 = vector.broadcast %251 : i32 to vector<16x1xi32>
    %264 = arith.addi %253, %263 : vector<16x1xi32>
    %265 = arith.select %262, %264, %253 : vector<16x1xi1>, vector<16x1xi32>
    %cst_204 = arith.constant 0.000000e+00 : f32
    %266 = vector.broadcast %cst_204 : f32 to vector<16x64xf32>
    %c0_205 = arith.constant 0 : index
    %c0_206 = arith.constant 0 : index
    %267 = vector.load %arg16[%c0_205, %c0_206] : memref<26x32xf32, #tpu.memory_space<vmem>>, vector<16x32xf32>
    %c1_i32_207 = arith.constant 1 : i32
    %268 = vector.broadcast %c1_i32_207 : i32 to vector<16x1xi32>
    %269 = arith.cmpi sge, %265, %268 : vector<16x1xi32>
    %cst_208 = arith.constant 0.000000e+00 : f32
    %270 = vector.shape_cast %269 : vector<16x1xi1> to vector<16x1xi1>
    %271 = vector.broadcast %270 : vector<16x1xi1> to vector<16x32xi1>
    %272 = vector.broadcast %cst_208 : f32 to vector<16x32xf32>
    %273 = arith.select %271, %267, %272 : vector<16x32xi1>, vector<16x32xf32>
    %c0_209 = arith.constant 0 : index
    %c0_210 = arith.constant 0 : index
    %c0_211 = arith.constant 0 : index
    %c0_212 = arith.constant 0 : index
    %274 = vector.load %arg8[%c0_209, %c0_210, %c0_211, %c0_212] : memref<3x3x32x64xf32, #tpu.memory_space<vmem>>, vector<1x1x32x64xf32>
    %275 = vector.shape_cast %274 : vector<1x1x32x64xf32> to vector<32x64xf32>
    %cst_213 = arith.constant dense<0.000000e+00> : vector<16x64xf32>
    %276 = tpu.matmul %273, %275, %cst_213 {dimension_numbers = #tpu.dot_dimension_numbers<[1], [0], [0], [1], [0, 0, 1, 1], [], []>} : vector<16x32xf32>, vector<32x64xf32>, vector<16x64xf32> -> vector<16x64xf32>
    %277 = arith.addf %266, %276 : vector<16x64xf32>
    %c1_214 = arith.constant 1 : index
    %c0_215 = arith.constant 0 : index
    %278 = vector.load %arg16[%c1_214, %c0_215] : memref<26x32xf32, #tpu.memory_space<vmem>>, vector<16x32xf32>
    %c0_216 = arith.constant 0 : index
    %c1_217 = arith.constant 1 : index
    %c0_218 = arith.constant 0 : index
    %c0_219 = arith.constant 0 : index
    %279 = vector.load %arg8[%c0_216, %c1_217, %c0_218, %c0_219] : memref<3x3x32x64xf32, #tpu.memory_space<vmem>>, vector<1x1x32x64xf32>
    %280 = vector.shape_cast %279 : vector<1x1x32x64xf32> to vector<32x64xf32>
    %cst_220 = arith.constant dense<0.000000e+00> : vector<16x64xf32>
    %281 = tpu.matmul %278, %280, %cst_220 {dimension_numbers = #tpu.dot_dimension_numbers<[1], [0], [0], [1], [0, 0, 1, 1], [], []>} : vector<16x32xf32>, vector<32x64xf32>, vector<16x64xf32> -> vector<16x64xf32>
    %282 = arith.addf %277, %281 : vector<16x64xf32>
    %c2_221 = arith.constant 2 : index
    %c0_222 = arith.constant 0 : index
    %283 = vector.load %arg16[%c2_221, %c0_222] : memref<26x32xf32, #tpu.memory_space<vmem>>, vector<16x32xf32>
    %c2_i32 = arith.constant 2 : i32
    %284 = vector.broadcast %c2_i32 : i32 to vector<16x1xi32>
    %285 = arith.cmpi sle, %265, %284 : vector<16x1xi32>
    %cst_223 = arith.constant 0.000000e+00 : f32
    %286 = vector.shape_cast %285 : vector<16x1xi1> to vector<16x1xi1>
    %287 = vector.broadcast %286 : vector<16x1xi1> to vector<16x32xi1>
    %288 = vector.broadcast %cst_223 : f32 to vector<16x32xf32>
    %289 = arith.select %287, %283, %288 : vector<16x32xi1>, vector<16x32xf32>
    %c0_224 = arith.constant 0 : index
    %c2_225 = arith.constant 2 : index
    %c0_226 = arith.constant 0 : index
    %c0_227 = arith.constant 0 : index
    %290 = vector.load %arg8[%c0_224, %c2_225, %c0_226, %c0_227] : memref<3x3x32x64xf32, #tpu.memory_space<vmem>>, vector<1x1x32x64xf32>
    %291 = vector.shape_cast %290 : vector<1x1x32x64xf32> to vector<32x64xf32>
    %cst_228 = arith.constant dense<0.000000e+00> : vector<16x64xf32>
    %292 = tpu.matmul %289, %291, %cst_228 {dimension_numbers = #tpu.dot_dimension_numbers<[1], [0], [0], [1], [0, 0, 1, 1], [], []>} : vector<16x32xf32>, vector<32x64xf32>, vector<16x64xf32> -> vector<16x64xf32>
    %293 = arith.addf %282, %292 : vector<16x64xf32>
    %c4 = arith.constant 4 : index
    %c0_229 = arith.constant 0 : index
    %294 = vector.load %arg16[%c4, %c0_229] : memref<26x32xf32, #tpu.memory_space<vmem>>, vector<16x32xf32>
    %c1_i32_230 = arith.constant 1 : i32
    %295 = vector.broadcast %c1_i32_230 : i32 to vector<16x1xi32>
    %296 = arith.cmpi sge, %265, %295 : vector<16x1xi32>
    %cst_231 = arith.constant 0.000000e+00 : f32
    %297 = vector.shape_cast %296 : vector<16x1xi1> to vector<16x1xi1>
    %298 = vector.broadcast %297 : vector<16x1xi1> to vector<16x32xi1>
    %299 = vector.broadcast %cst_231 : f32 to vector<16x32xf32>
    %300 = arith.select %298, %294, %299 : vector<16x32xi1>, vector<16x32xf32>
    %c1_232 = arith.constant 1 : index
    %c0_233 = arith.constant 0 : index
    %c0_234 = arith.constant 0 : index
    %c0_235 = arith.constant 0 : index
    %301 = vector.load %arg8[%c1_232, %c0_233, %c0_234, %c0_235] : memref<3x3x32x64xf32, #tpu.memory_space<vmem>>, vector<1x1x32x64xf32>
    %302 = vector.shape_cast %301 : vector<1x1x32x64xf32> to vector<32x64xf32>
    %cst_236 = arith.constant dense<0.000000e+00> : vector<16x64xf32>
    %303 = tpu.matmul %300, %302, %cst_236 {dimension_numbers = #tpu.dot_dimension_numbers<[1], [0], [0], [1], [0, 0, 1, 1], [], []>} : vector<16x32xf32>, vector<32x64xf32>, vector<16x64xf32> -> vector<16x64xf32>
    %304 = arith.addf %293, %303 : vector<16x64xf32>
    %c5_237 = arith.constant 5 : index
    %c0_238 = arith.constant 0 : index
    %305 = vector.load %arg16[%c5_237, %c0_238] : memref<26x32xf32, #tpu.memory_space<vmem>>, vector<16x32xf32>
    %c1_239 = arith.constant 1 : index
    %c1_240 = arith.constant 1 : index
    %c0_241 = arith.constant 0 : index
    %c0_242 = arith.constant 0 : index
    %306 = vector.load %arg8[%c1_239, %c1_240, %c0_241, %c0_242] : memref<3x3x32x64xf32, #tpu.memory_space<vmem>>, vector<1x1x32x64xf32>
    %307 = vector.shape_cast %306 : vector<1x1x32x64xf32> to vector<32x64xf32>
    %cst_243 = arith.constant dense<0.000000e+00> : vector<16x64xf32>
    %308 = tpu.matmul %305, %307, %cst_243 {dimension_numbers = #tpu.dot_dimension_numbers<[1], [0], [0], [1], [0, 0, 1, 1], [], []>} : vector<16x32xf32>, vector<32x64xf32>, vector<16x64xf32> -> vector<16x64xf32>
    %309 = arith.addf %304, %308 : vector<16x64xf32>
    %c6 = arith.constant 6 : index
    %c0_244 = arith.constant 0 : index
    %310 = vector.load %arg16[%c6, %c0_244] : memref<26x32xf32, #tpu.memory_space<vmem>>, vector<16x32xf32>
    %c2_i32_245 = arith.constant 2 : i32
    %311 = vector.broadcast %c2_i32_245 : i32 to vector<16x1xi32>
    %312 = arith.cmpi sle, %265, %311 : vector<16x1xi32>
    %cst_246 = arith.constant 0.000000e+00 : f32
    %313 = vector.shape_cast %312 : vector<16x1xi1> to vector<16x1xi1>
    %314 = vector.broadcast %313 : vector<16x1xi1> to vector<16x32xi1>
    %315 = vector.broadcast %cst_246 : f32 to vector<16x32xf32>
    %316 = arith.select %314, %310, %315 : vector<16x32xi1>, vector<16x32xf32>
    %c1_247 = arith.constant 1 : index
    %c2_248 = arith.constant 2 : index
    %c0_249 = arith.constant 0 : index
    %c0_250 = arith.constant 0 : index
    %317 = vector.load %arg8[%c1_247, %c2_248, %c0_249, %c0_250] : memref<3x3x32x64xf32, #tpu.memory_space<vmem>>, vector<1x1x32x64xf32>
    %318 = vector.shape_cast %317 : vector<1x1x32x64xf32> to vector<32x64xf32>
    %cst_251 = arith.constant dense<0.000000e+00> : vector<16x64xf32>
    %319 = tpu.matmul %316, %318, %cst_251 {dimension_numbers = #tpu.dot_dimension_numbers<[1], [0], [0], [1], [0, 0, 1, 1], [], []>} : vector<16x32xf32>, vector<32x64xf32>, vector<16x64xf32> -> vector<16x64xf32>
    %320 = arith.addf %309, %319 : vector<16x64xf32>
    %c8_252 = arith.constant 8 : index
    %c0_253 = arith.constant 0 : index
    %321 = vector.load %arg16[%c8_252, %c0_253] : memref<26x32xf32, #tpu.memory_space<vmem>>, vector<16x32xf32>
    %c1_i32_254 = arith.constant 1 : i32
    %322 = vector.broadcast %c1_i32_254 : i32 to vector<16x1xi32>
    %323 = arith.cmpi sge, %265, %322 : vector<16x1xi32>
    %cst_255 = arith.constant 0.000000e+00 : f32
    %324 = vector.shape_cast %323 : vector<16x1xi1> to vector<16x1xi1>
    %325 = vector.broadcast %324 : vector<16x1xi1> to vector<16x32xi1>
    %326 = vector.broadcast %cst_255 : f32 to vector<16x32xf32>
    %327 = arith.select %325, %321, %326 : vector<16x32xi1>, vector<16x32xf32>
    %c2_256 = arith.constant 2 : index
    %c0_257 = arith.constant 0 : index
    %c0_258 = arith.constant 0 : index
    %c0_259 = arith.constant 0 : index
    %328 = vector.load %arg8[%c2_256, %c0_257, %c0_258, %c0_259] : memref<3x3x32x64xf32, #tpu.memory_space<vmem>>, vector<1x1x32x64xf32>
    %329 = vector.shape_cast %328 : vector<1x1x32x64xf32> to vector<32x64xf32>
    %cst_260 = arith.constant dense<0.000000e+00> : vector<16x64xf32>
    %330 = tpu.matmul %327, %329, %cst_260 {dimension_numbers = #tpu.dot_dimension_numbers<[1], [0], [0], [1], [0, 0, 1, 1], [], []>} : vector<16x32xf32>, vector<32x64xf32>, vector<16x64xf32> -> vector<16x64xf32>
    %331 = arith.addf %320, %330 : vector<16x64xf32>
    %c9_261 = arith.constant 9 : index
    %c0_262 = arith.constant 0 : index
    %332 = vector.load %arg16[%c9_261, %c0_262] : memref<26x32xf32, #tpu.memory_space<vmem>>, vector<16x32xf32>
    %c2_263 = arith.constant 2 : index
    %c1_264 = arith.constant 1 : index
    %c0_265 = arith.constant 0 : index
    %c0_266 = arith.constant 0 : index
    %333 = vector.load %arg8[%c2_263, %c1_264, %c0_265, %c0_266] : memref<3x3x32x64xf32, #tpu.memory_space<vmem>>, vector<1x1x32x64xf32>
    %334 = vector.shape_cast %333 : vector<1x1x32x64xf32> to vector<32x64xf32>
    %cst_267 = arith.constant dense<0.000000e+00> : vector<16x64xf32>
    %335 = tpu.matmul %332, %334, %cst_267 {dimension_numbers = #tpu.dot_dimension_numbers<[1], [0], [0], [1], [0, 0, 1, 1], [], []>} : vector<16x32xf32>, vector<32x64xf32>, vector<16x64xf32> -> vector<16x64xf32>
    %336 = arith.addf %331, %335 : vector<16x64xf32>
    %c10_268 = arith.constant 10 : index
    %c0_269 = arith.constant 0 : index
    %337 = vector.load %arg16[%c10_268, %c0_269] : memref<26x32xf32, #tpu.memory_space<vmem>>, vector<16x32xf32>
    %c2_i32_270 = arith.constant 2 : i32
    %338 = vector.broadcast %c2_i32_270 : i32 to vector<16x1xi32>
    %339 = arith.cmpi sle, %265, %338 : vector<16x1xi32>
    %cst_271 = arith.constant 0.000000e+00 : f32
    %340 = vector.shape_cast %339 : vector<16x1xi1> to vector<16x1xi1>
    %341 = vector.broadcast %340 : vector<16x1xi1> to vector<16x32xi1>
    %342 = vector.broadcast %cst_271 : f32 to vector<16x32xf32>
    %343 = arith.select %341, %337, %342 : vector<16x32xi1>, vector<16x32xf32>
    %c2_272 = arith.constant 2 : index
    %c2_273 = arith.constant 2 : index
    %c0_274 = arith.constant 0 : index
    %c0_275 = arith.constant 0 : index
    %344 = vector.load %arg8[%c2_272, %c2_273, %c0_274, %c0_275] : memref<3x3x32x64xf32, #tpu.memory_space<vmem>>, vector<1x1x32x64xf32>
    %345 = vector.shape_cast %344 : vector<1x1x32x64xf32> to vector<32x64xf32>
    %cst_276 = arith.constant dense<0.000000e+00> : vector<16x64xf32>
    %346 = tpu.matmul %343, %345, %cst_276 {dimension_numbers = #tpu.dot_dimension_numbers<[1], [0], [0], [1], [0, 0, 1, 1], [], []>} : vector<16x32xf32>, vector<32x64xf32>, vector<16x64xf32> -> vector<16x64xf32>
    %347 = arith.addf %336, %346 : vector<16x64xf32>
    %c0_277 = arith.constant 0 : index
    %c0_278 = arith.constant 0 : index
    %348 = vector.load %arg9[%c0_277, %c0_278] : memref<1x64xf32, #tpu.memory_space<vmem>>, vector<1x64xf32>
    %349 = vector.broadcast %348 : vector<1x64xf32> to vector<16x64xf32>
    %350 = arith.addf %347, %349 : vector<16x64xf32>
    %cst_279 = arith.constant 0.000000e+00 : f32
    %351 = vector.broadcast %cst_279 : f32 to vector<16x64xf32>
    %352 = arith.maximumf %350, %351 : vector<16x64xf32>
    %c0_280 = arith.constant 0 : index
    %c0_281 = arith.constant 0 : index
    %c0_282 = arith.constant 0 : index
    %353 = vector.load %arg10[%c0_280, %c0_281, %c0_282] : memref<4x4x16xf32, #tpu.memory_space<vmem>>, vector<1x4x16xf32>
    %354 = vector.shape_cast %353 : vector<1x4x16xf32> to vector<4x16xf32>
    %cst_283 = arith.constant dense<0.000000e+00> : vector<4x64xf32>
    %355 = tpu.matmul %354, %352, %cst_283 {dimension_numbers = #tpu.dot_dimension_numbers<[1], [0], [0], [1], [0, 0, 1, 1], [], []>} : vector<4x16xf32>, vector<16x64xf32>, vector<4x64xf32> -> vector<4x64xf32>
    %c1_284 = arith.constant 1 : index
    %c0_285 = arith.constant 0 : index
    %c0_286 = arith.constant 0 : index
    %356 = vector.load %arg10[%c1_284, %c0_285, %c0_286] : memref<4x4x16xf32, #tpu.memory_space<vmem>>, vector<1x4x16xf32>
    %357 = vector.shape_cast %356 : vector<1x4x16xf32> to vector<4x16xf32>
    %cst_287 = arith.constant dense<0.000000e+00> : vector<4x64xf32>
    %358 = tpu.matmul %357, %352, %cst_287 {dimension_numbers = #tpu.dot_dimension_numbers<[1], [0], [0], [1], [0, 0, 1, 1], [], []>} : vector<4x16xf32>, vector<16x64xf32>, vector<4x64xf32> -> vector<4x64xf32>
    %359 = arith.maximumf %355, %358 : vector<4x64xf32>
    %c2_288 = arith.constant 2 : index
    %c0_289 = arith.constant 0 : index
    %c0_290 = arith.constant 0 : index
    %360 = vector.load %arg10[%c2_288, %c0_289, %c0_290] : memref<4x4x16xf32, #tpu.memory_space<vmem>>, vector<1x4x16xf32>
    %361 = vector.shape_cast %360 : vector<1x4x16xf32> to vector<4x16xf32>
    %cst_291 = arith.constant dense<0.000000e+00> : vector<4x64xf32>
    %362 = tpu.matmul %361, %352, %cst_291 {dimension_numbers = #tpu.dot_dimension_numbers<[1], [0], [0], [1], [0, 0, 1, 1], [], []>} : vector<4x16xf32>, vector<16x64xf32>, vector<4x64xf32> -> vector<4x64xf32>
    %363 = arith.maximumf %359, %362 : vector<4x64xf32>
    %c3_292 = arith.constant 3 : index
    %c0_293 = arith.constant 0 : index
    %c0_294 = arith.constant 0 : index
    %364 = vector.load %arg10[%c3_292, %c0_293, %c0_294] : memref<4x4x16xf32, #tpu.memory_space<vmem>>, vector<1x4x16xf32>
    %365 = vector.shape_cast %364 : vector<1x4x16xf32> to vector<4x16xf32>
    %cst_295 = arith.constant dense<0.000000e+00> : vector<4x64xf32>
    %366 = tpu.matmul %365, %352, %cst_295 {dimension_numbers = #tpu.dot_dimension_numbers<[1], [0], [0], [1], [0, 0, 1, 1], [], []>} : vector<4x16xf32>, vector<16x64xf32>, vector<4x64xf32> -> vector<4x64xf32>
    %367 = arith.maximumf %363, %366 : vector<4x64xf32>
    %c0_296 = arith.constant 0 : index
    %c0_297 = arith.constant 0 : index
    %368 = vector.load %arg12[%c0_296, %c0_297] : memref<1x2xf32, #tpu.memory_space<vmem>>, vector<1x2xf32>
    %369 = vector.extract_strided_slice %367 {offsets = [0, 0], sizes = [1, 64], strides = [1, 1]} : vector<4x64xf32> to vector<1x64xf32>
    %c0_298 = arith.constant 0 : index
    %c0_299 = arith.constant 0 : index
    %c0_300 = arith.constant 0 : index
    %370 = vector.load %arg11[%c0_298, %c0_299, %c0_300] : memref<4x64x2xf32, #tpu.memory_space<vmem>>, vector<1x64x2xf32>
    %371 = vector.shape_cast %370 : vector<1x64x2xf32> to vector<64x2xf32>
    %cst_301 = arith.constant dense<0.000000e+00> : vector<1x2xf32>
    %372 = tpu.matmul %369, %371, %cst_301 {dimension_numbers = #tpu.dot_dimension_numbers<[1], [0], [0], [1], [0, 0, 1, 1], [], []>} : vector<1x64xf32>, vector<64x2xf32>, vector<1x2xf32> -> vector<1x2xf32>
    %373 = arith.addf %368, %372 : vector<1x2xf32>
    %374 = vector.extract_strided_slice %367 {offsets = [1, 0], sizes = [1, 64], strides = [1, 1]} : vector<4x64xf32> to vector<1x64xf32>
    %c1_302 = arith.constant 1 : index
    %c0_303 = arith.constant 0 : index
    %c0_304 = arith.constant 0 : index
    %375 = vector.load %arg11[%c1_302, %c0_303, %c0_304] : memref<4x64x2xf32, #tpu.memory_space<vmem>>, vector<1x64x2xf32>
    %376 = vector.shape_cast %375 : vector<1x64x2xf32> to vector<64x2xf32>
    %cst_305 = arith.constant dense<0.000000e+00> : vector<1x2xf32>
    %377 = tpu.matmul %374, %376, %cst_305 {dimension_numbers = #tpu.dot_dimension_numbers<[1], [0], [0], [1], [0, 0, 1, 1], [], []>} : vector<1x64xf32>, vector<64x2xf32>, vector<1x2xf32> -> vector<1x2xf32>
    %378 = arith.addf %373, %377 : vector<1x2xf32>
    %379 = vector.extract_strided_slice %367 {offsets = [2, 0], sizes = [1, 64], strides = [1, 1]} : vector<4x64xf32> to vector<1x64xf32>
    %c2_306 = arith.constant 2 : index
    %c0_307 = arith.constant 0 : index
    %c0_308 = arith.constant 0 : index
    %380 = vector.load %arg11[%c2_306, %c0_307, %c0_308] : memref<4x64x2xf32, #tpu.memory_space<vmem>>, vector<1x64x2xf32>
    %381 = vector.shape_cast %380 : vector<1x64x2xf32> to vector<64x2xf32>
    %cst_309 = arith.constant dense<0.000000e+00> : vector<1x2xf32>
    %382 = tpu.matmul %379, %381, %cst_309 {dimension_numbers = #tpu.dot_dimension_numbers<[1], [0], [0], [1], [0, 0, 1, 1], [], []>} : vector<1x64xf32>, vector<64x2xf32>, vector<1x2xf32> -> vector<1x2xf32>
    %383 = arith.addf %378, %382 : vector<1x2xf32>
    %384 = vector.extract_strided_slice %367 {offsets = [3, 0], sizes = [1, 64], strides = [1, 1]} : vector<4x64xf32> to vector<1x64xf32>
    %c3_310 = arith.constant 3 : index
    %c0_311 = arith.constant 0 : index
    %c0_312 = arith.constant 0 : index
    %385 = vector.load %arg11[%c3_310, %c0_311, %c0_312] : memref<4x64x2xf32, #tpu.memory_space<vmem>>, vector<1x64x2xf32>
    %386 = vector.shape_cast %385 : vector<1x64x2xf32> to vector<64x2xf32>
    %cst_313 = arith.constant dense<0.000000e+00> : vector<1x2xf32>
    %387 = tpu.matmul %384, %386, %cst_313 {dimension_numbers = #tpu.dot_dimension_numbers<[1], [0], [0], [1], [0, 0, 1, 1], [], []>} : vector<1x64xf32>, vector<64x2xf32>, vector<1x2xf32> -> vector<1x2xf32>
    %388 = arith.addf %383, %387 : vector<1x2xf32>
    %c0_314 = arith.constant 0 : index
    %c0_315 = arith.constant 0 : index
    %c0_316 = arith.constant 0 : index
    %389 = vector.load %arg13[%c0_314, %c0_315, %c0_316] : memref<1x1x2xf32, #tpu.memory_space<vmem>>, vector<1x1x2xf32>
    %390 = vector.shape_cast %389 : vector<1x1x2xf32> to vector<1x2xf32>
    %391 = vector.shape_cast %388 : vector<1x2xf32> to vector<1x1x2xf32>
    tpu.vector_store %arg13[%c0_314, %c0_315, %c0_316], %391 {strides = array<i32>} : memref<1x1x2xf32, #tpu.memory_space<vmem>>, vector<1x1x2xf32>,
    return
  }
  func.func @transform_0(%arg0: i32) -> (i32, i32, i32) {
    %c0_i32 = arith.constant 0 : i32
    %c0_i32_0 = arith.constant 0 : i32
    %c0_i32_1 = arith.constant 0 : i32
    return %arg0, %c0_i32, %c0_i32_0 : i32, i32, i32
  }
  func.func @transform_1(%arg0: i32) -> (i32, i32, i32, i32) {
    %c0_i32 = arith.constant 0 : i32
    %c0_i32_0 = arith.constant 0 : i32
    %c0_i32_1 = arith.constant 0 : i32
    %c0_i32_2 = arith.constant 0 : i32
    %c0_i32_3 = arith.constant 0 : i32
    return %c0_i32, %c0_i32_0, %c0_i32_1, %c0_i32_2 : i32, i32, i32, i32
  }
  func.func @transform_2(%arg0: i32) -> (i32, i32) {
    %c0_i32 = arith.constant 0 : i32
    %c0_i32_0 = arith.constant 0 : i32
    %c0_i32_1 = arith.constant 0 : i32
    return %c0_i32, %c0_i32_0 : i32, i32
  }
  func.func @transform_3(%arg0: i32) -> (i32, i32, i32) {
    %c0_i32 = arith.constant 0 : i32
    %c0_i32_0 = arith.constant 0 : i32
    %c0_i32_1 = arith.constant 0 : i32
    %c0_i32_2 = arith.constant 0 : i32
    return %c0_i32, %c0_i32_0, %c0_i32_1 : i32, i32, i32
  }
  func.func @transform_4(%arg0: i32) -> (i32, i32, i32, i32) {
    %c0_i32 = arith.constant 0 : i32
    %c0_i32_0 = arith.constant 0 : i32
    %c0_i32_1 = arith.constant 0 : i32
    %c0_i32_2 = arith.constant 0 : i32
    %c0_i32_3 = arith.constant 0 : i32
    return %c0_i32, %c0_i32_0, %c0_i32_1, %c0_i32_2 : i32, i32, i32, i32
  }
  func.func @transform_5(%arg0: i32) -> (i32, i32) {
    %c0_i32 = arith.constant 0 : i32
    %c0_i32_0 = arith.constant 0 : i32
    %c0_i32_1 = arith.constant 0 : i32
    return %c0_i32, %c0_i32_0 : i32, i32
  }
  func.func @transform_6(%arg0: i32) -> (i32, i32, i32) {
    %c0_i32 = arith.constant 0 : i32
    %c0_i32_0 = arith.constant 0 : i32
    %c0_i32_1 = arith.constant 0 : i32
    %c0_i32_2 = arith.constant 0 : i32
    return %c0_i32, %c0_i32_0, %c0_i32_1 : i32, i32, i32
  }
  func.func @transform_7(%arg0: i32) -> (i32, i32, i32, i32) {
    %c0_i32 = arith.constant 0 : i32
    %c0_i32_0 = arith.constant 0 : i32
    %c0_i32_1 = arith.constant 0 : i32
    %c0_i32_2 = arith.constant 0 : i32
    %c0_i32_3 = arith.constant 0 : i32
    return %c0_i32, %c0_i32_0, %c0_i32_1, %c0_i32_2 : i32, i32, i32, i32
  }
  func.func @transform_8(%arg0: i32) -> (i32, i32) {
    %c0_i32 = arith.constant 0 : i32
    %c0_i32_0 = arith.constant 0 : i32
    %c0_i32_1 = arith.constant 0 : i32
    return %c0_i32, %c0_i32_0 : i32, i32
  }
  func.func @transform_9(%arg0: i32) -> (i32, i32, i32) {
    %c0_i32 = arith.constant 0 : i32
    %c0_i32_0 = arith.constant 0 : i32
    %c0_i32_1 = arith.constant 0 : i32
    %c0_i32_2 = arith.constant 0 : i32
    return %c0_i32, %c0_i32_0, %c0_i32_1 : i32, i32, i32
  }
  func.func @transform_10(%arg0: i32) -> (i32, i32, i32) {
    %c0_i32 = arith.constant 0 : i32
    %c0_i32_0 = arith.constant 0 : i32
    %c0_i32_1 = arith.constant 0 : i32
    %c0_i32_2 = arith.constant 0 : i32
    return %c0_i32, %c0_i32_0, %c0_i32_1 : i32, i32, i32
  }
  func.func @transform_11(%arg0: i32) -> (i32, i32) {
    %c0_i32 = arith.constant 0 : i32
    %c0_i32_0 = arith.constant 0 : i32
    %c0_i32_1 = arith.constant 0 : i32
    return %c0_i32, %c0_i32_0 : i32, i32
  }
  func.func @transform_12(%arg0: i32) -> (i32, i32, i32) {
    %c0_i32 = arith.constant 0 : i32
    %c0_i32_0 = arith.constant 0 : i32
    %c0_i32_1 = arith.constant 0 : i32
    return %arg0, %c0_i32, %c0_i32_0 : i32, i32, i32
  }
}

</mosaic_0001>

<llo_original>
// kernel: forward.1
$region0: #{forward.1}
  #allocation0 [shape = 'u32[]', space=smem, size = 0x4, offset = 0x4, fixed_abs, tag = 'smem constant byte address 0x4 - core index']
  #allocation1 [shape = 'u32[144,128]{1,0:T(1,128)}', space=vmem, size = 0x12000, scoped, tag = 'internal scratch']
  #allocation2 [shape = 'f32[290,3]{1,0:T(8,128)}', space=vmem, size = 0x25000, scoped, tag = 'scratch operand']
  #allocation3 [shape = 'f32[82,16]{1,0:T(8,128)}', space=vmem, size = 0xb000, scoped, tag = 'scratch operand']
  #allocation4 [shape = 'f32[26,32]{1,0:T(8,128)}', space=vmem, size = 0x4000, scoped, tag = 'scratch operand']
  %s0 = inlined_call_operand.vmem [shape: f32[2,256,3], index: 0, kind: input, shape index: {}]
  %s1 = inlined_call_operand.vmem [shape: f32[3,3,3,16], index: 1, kind: input, shape index: {}]
  %s2 = inlined_call_operand.vmem [shape: f32[1,16], index: 2, kind: input, shape index: {}]
  %s3 = inlined_call_operand.vmem [shape: f32[4,64,256], index: 3, kind: input, shape index: {}]
  %s4 = inlined_call_operand.vmem [shape: f32[3,3,16,32], index: 4, kind: input, shape index: {}]
  %s5 = inlined_call_operand.vmem [shape: f32[1,32], index: 5, kind: input, shape index: {}]
  %s6 = inlined_call_operand.vmem [shape: f32[4,16,64], index: 6, kind: input, shape index: {}]
  %s7 = inlined_call_operand.vmem [shape: f32[3,3,32,64], index: 7, kind: input, shape index: {}]
  %s8 = inlined_call_operand.vmem [shape: f32[1,64], index: 8, kind: input, shape index: {}]
  %s9 = inlined_call_operand.vmem [shape: f32[4,4,16], index: 9, kind: input, shape index: {}]
  %s10 = inlined_call_operand.vmem [shape: f32[4,64,2], index: 10, kind: input, shape index: {}]
  %s11 = inlined_call_operand.vmem [shape: f32[1,2], index: 11, kind: input, shape index: {}]
  %s12 = inlined_call_operand.hbm [shape: f32[2,1,2], index: 12, kind: output, shape index: {}]
  %s13 = sld [smem:[#allocation0]]
  $region81: #{forward.1} parent=0
    _
  %s15 = ssub.s32 1, %s13
  %s16 = scalar_select 0, %s15, %s13
  $region1: #{forward.1} parent=0
    #allocation5 [shape = 'u8[1024]{0}', space=vmem, size = 0x400, scoped, tag = 'output window, operand 0']
    #allocation6 [shape = 's32[2]{0}', space=sflag, size = 0x8, scoped, tag = 'scoped memory for forward.1']
    %17 = vsyncpa [#allocation6], 0
    %s18 = scalar_lea.sflag [#allocation6], 1
    %19 = vsyncpa %s18, 0
    loop: start=0, step=1, limit=4
    $region2: #{forward.1} parent=1 // loop_pre_header
      _
    $region3: #{forward.1} parent=1 // loop_header
      %s21 = sphi 0, %s25
      %p22 = scmp.ge.s32.totalorder %s21, 4
      %s31 = sphi 0, %s33
      %s34 = sphi 0, %s31
      %s35 = sphi 0, %s34
      %s51 = sphi 0, %s35
      %s55 = sphi 0, %s55
      %s57 = sphi 0, %s55
      %s58 = sphi 0, %s57
      %s72 = sphi 0, %s58
      %s76 = sphi 0, %s76
      %s78 = sphi 0, %s76
      %s79 = sphi 0, %s78
      %s93 = sphi 0, %s79
      %s97 = sphi 0, %s97
      %s99 = sphi 0, %s97
      %s100 = sphi 0, %s99
      %s114 = sphi 0, %s100
      %s118 = sphi 0, %s118
      %s120 = sphi 0, %s118
      %s121 = sphi 0, %s120
      %s135 = sphi 0, %s121
      %s139 = sphi 0, %s139
      %s141 = sphi 0, %s139
      %s142 = sphi 0, %s141
      %s156 = sphi 0, %s142
      %s160 = sphi 0, %s160
      %s162 = sphi 0, %s160
      %s163 = sphi 0, %s162
      %s177 = sphi 0, %s163
      %s181 = sphi 0, %s181
      %s183 = sphi 0, %s181
      %s184 = sphi 0, %s183
      %s198 = sphi 0, %s184
      %s202 = sphi 0, %s202
      %s204 = sphi 0, %s202
      %s205 = sphi 0, %s204
      %s219 = sphi 0, %s205
      %s223 = sphi 0, %s223
      %s225 = sphi 0, %s223
      %s226 = sphi 0, %s225
      %s240 = sphi 0, %s226
      %s244 = sphi 0, %s244
      %s246 = sphi 0, %s244
      %s247 = sphi 0, %s246
      %s261 = sphi 0, %s247
      %s265 = sphi 0, %s265
      %s267 = sphi 0, %s265
      %s268 = sphi 0, %s267
      %s282 = sphi 0, %s268
      %s288 = sphi 0, %s290
      %s291 = sphi 0, %s288
      %s292 = sphi 0, %s291
      %s308 = sphi 0, %s292
    $region4: #{forward.1} parent=1 // loop_header_branch
      %24 = sbr.rel (%p22) target = $region8
    $region5: #{forward.1} parent=1 // loop_body
      %s26 = ssub.s32 %s21, 1
      %s27 = ssub.s32 %s21, 2
      %s28 = sadd.s32 %s21, 1
      %s29 = ssub.s32 %s21, %s28
      %p30 = scmp.eq.s32.totalorder %s29, 0
      %s32 = sadd.s32 %s31, 1
      %s33 = scalar_select %p30, %s31, %s32
      %p36 = pneg %p30
      %p37 = scmp.eq.s32.totalorder %s21, 1
      %p38 = por %p36, %p37
      %p39 = scmp.ne.s32.totalorder %s31, %s34
      %p40 = scmp.eq.s32.totalorder %s21, 0
      %p41 = por %p39, %p40
      %p42 = scmp.ne.s32.totalorder %s31, %s34
      %p43 = scmp.eq.s32.totalorder %s26, 1
      %p44 = por %p42, %p43
      %p45 = scmp.ne.s32.totalorder %s34, %s35
      %p46 = scmp.eq.s32.totalorder %s26, 0
      %p47 = por %p45, %p46
      %p48 = scmp.ne.s32.totalorder %s34, %s35
      %p49 = scmp.eq.s32.totalorder %s27, 1
      %p50 = por %p48, %p49
      %p52 = scmp.ne.s32.totalorder %s35, %s51
      %p53 = scmp.eq.s32.totalorder %s27, 0
      %p54 = por %p52, %p53
      %s56 = sadd.s32 %s55, 1
      %p59 = scmp.eq.s32.totalorder %s21, 1
      %p60 = scmp.ne.s32.totalorder %s55, %s57
      %p61 = scmp.eq.s32.totalorder %s21, 0
      %p62 = por %p60, %p61
      %p63 = scmp.ne.s32.totalorder %s55, %s57
      %p64 = scmp.eq.s32.totalorder %s26, 1
      %p65 = por %p63, %p64
      %p66 = scmp.ne.s32.totalorder %s57, %s58
      %p67 = scmp.eq.s32.totalorder %s26, 0
      %p68 = por %p66, %p67
      %p69 = scmp.ne.s32.totalorder %s57, %s58
      %p70 = scmp.eq.s32.totalorder %s27, 1
      %p71 = por %p69, %p70
      %p73 = scmp.ne.s32.totalorder %s58, %s72
      %p74 = scmp.eq.s32.totalorder %s27, 0
      %p75 = por %p73, %p74
      %s77 = sadd.s32 %s76, 1
      %p80 = scmp.eq.s32.totalorder %s21, 1
      %p81 = scmp.ne.s32.totalorder %s76, %s78
      %p82 = scmp.eq.s32.totalorder %s21, 0
      %p83 = por %p81, %p82
      %p84 = scmp.ne.s32.totalorder %s76, %s78
      %p85 = scmp.eq.s32.totalorder %s26, 1
      %p86 = por %p84, %p85
      %p87 = scmp.ne.s32.totalorder %s78, %s79
      %p88 = scmp.eq.s32.totalorder %s26, 0
      %p89 = por %p87, %p88
      %p90 = scmp.ne.s32.totalorder %s78, %s79
      %p91 = scmp.eq.s32.totalorder %s27, 1
      %p92 = por %p90, %p91
      %p94 = scmp.ne.s32.totalorder %s79, %s93
      %p95 = scmp.eq.s32.totalorder %s27, 0
      %p96 = por %p94, %p95
      %s98 = sadd.s32 %s97, 1
      %p101 = scmp.eq.s32.totalorder %s21, 1
      %p102 = scmp.ne.s32.totalorder %s97, %s99
      %p103 = scmp.eq.s32.totalorder %s21, 0
      %p104 = por %p102, %p103
      %p105 = scmp.ne.s32.totalorder %s97, %s99
      %p106 = scmp.eq.s32.totalorder %s26, 1
      %p107 = por %p105, %p106
      %p108 = scmp.ne.s32.totalorder %s99, %s100
      %p109 = scmp.eq.s32.totalorder %s26, 0
      %p110 = por %p108, %p109
      %p111 = scmp.ne.s32.totalorder %s99, %s100
      %p112 = scmp.eq.s32.totalorder %s27, 1
      %p113 = por %p111, %p112
      %p115 = scmp.ne.s32.totalorder %s100, %s114
      %p116 = scmp.eq.s32.totalorder %s27, 0
      %p117 = por %p115, %p116
      %s119 = sadd.s32 %s118, 1
      %p122 = scmp.eq.s32.totalorder %s21, 1
      %p123 = scmp.ne.s32.totalorder %s118, %s120
      %p124 = scmp.eq.s32.totalorder %s21, 0
      %p125 = por %p123, %p124
      %p126 = scmp.ne.s32.totalorder %s118, %s120
      %p127 = scmp.eq.s32.totalorder %s26, 1
      %p128 = por %p126, %p127
      %p129 = scmp.ne.s32.totalorder %s120, %s121
      %p130 = scmp.eq.s32.totalorder %s26, 0
      %p131 = por %p129, %p130
      %p132 = scmp.ne.s32.totalorder %s120, %s121
      %p133 = scmp.eq.s32.totalorder %s27, 1
      %p134 = por %p132, %p133
      %p136 = scmp.ne.s32.totalorder %s121, %s135
      %p137 = scmp.eq.s32.totalorder %s27, 0
      %p138 = por %p136, %p137
      %s140 = sadd.s32 %s139, 1
      %p143 = scmp.eq.s32.totalorder %s21, 1
      %p144 = scmp.ne.s32.totalorder %s139, %s141
      %p145 = scmp.eq.s32.totalorder %s21, 0
      %p146 = por %p144, %p145
      %p147 = scmp.ne.s32.totalorder %s139, %s141
      %p148 = scmp.eq.s32.totalorder %s26, 1
      %p149 = por %p147, %p148
      %p150 = scmp.ne.s32.totalorder %s141, %s142
      %p151 = scmp.eq.s32.totalorder %s26, 0
      %p152 = por %p150, %p151
      %p153 = scmp.ne.s32.totalorder %s141, %s142
      %p154 = scmp.eq.s32.totalorder %s27, 1
      %p155 = por %p153, %p154
      %p157 = scmp.ne.s32.totalorder %s142, %s156
      %p158 = scmp.eq.s32.totalorder %s27, 0
      %p159 = por %p157, %p158
      %s161 = sadd.s32 %s160, 1
      %p164 = scmp.eq.s32.totalorder %s21, 1
      %p165 = scmp.ne.s32.totalorder %s160, %s162
      %p166 = scmp.eq.s32.totalorder %s21, 0
      %p167 = por %p165, %p166
      %p168 = scmp.ne.s32.totalorder %s160, %s162
      %p169 = scmp.eq.s32.totalorder %s26, 1
      %p170 = por %p168, %p169
      %p171 = scmp.ne.s32.totalorder %s162, %s163
      %p172 = scmp.eq.s32.totalorder %s26, 0
      %p173 = por %p171, %p172
      %p174 = scmp.ne.s32.totalorder %s162, %s163
      %p175 = scmp.eq.s32.totalorder %s27, 1
      %p176 = por %p174, %p175
      %p178 = scmp.ne.s32.totalorder %s163, %s177
      %p179 = scmp.eq.s32.totalorder %s27, 0
      %p180 = por %p178, %p179
      %s182 = sadd.s32 %s181, 1
      %p185 = scmp.eq.s32.totalorder %s21, 1
      %p186 = scmp.ne.s32.totalorder %s181, %s183
      %p187 = scmp.eq.s32.totalorder %s21, 0
      %p188 = por %p186, %p187
      %p189 = scmp.ne.s32.totalorder %s181, %s183
      %p190 = scmp.eq.s32.totalorder %s26, 1
      %p191 = por %p189, %p190
      %p192 = scmp.ne.s32.totalorder %s183, %s184
      %p193 = scmp.eq.s32.totalorder %s26, 0
      %p194 = por %p192, %p193
      %p195 = scmp.ne.s32.totalorder %s183, %s184
      %p196 = scmp.eq.s32.totalorder %s27, 1
      %p197 = por %p195, %p196
      %p199 = scmp.ne.s32.totalorder %s184, %s198
      %p200 = scmp.eq.s32.totalorder %s27, 0
      %p201 = por %p199, %p200
      %s203 = sadd.s32 %s202, 1
      %p206 = scmp.eq.s32.totalorder %s21, 1
      %p207 = scmp.ne.s32.totalorder %s202, %s204
      %p208 = scmp.eq.s32.totalorder %s21, 0
      %p209 = por %p207, %p208
      %p210 = scmp.ne.s32.totalorder %s202, %s204
      %p211 = scmp.eq.s32.totalorder %s26, 1
      %p212 = por %p210, %p211
      %p213 = scmp.ne.s32.totalorder %s204, %s205
      %p214 = scmp.eq.s32.totalorder %s26, 0
      %p215 = por %p213, %p214
      %p216 = scmp.ne.s32.totalorder %s204, %s205
      %p217 = scmp.eq.s32.totalorder %s27, 1
      %p218 = por %p216, %p217
      %p220 = scmp.ne.s32.totalorder %s205, %s219
      %p221 = scmp.eq.s32.totalorder %s27, 0
      %p222 = por %p220, %p221
      %s224 = sadd.s32 %s223, 1
      %p227 = scmp.eq.s32.totalorder %s21, 1
      %p228 = scmp.ne.s32.totalorder %s223, %s225
      %p229 = scmp.eq.s32.totalorder %s21, 0
      %p230 = por %p228, %p229
      %p231 = scmp.ne.s32.totalorder %s223, %s225
      %p232 = scmp.eq.s32.totalorder %s26, 1
      %p233 = por %p231, %p232
      %p234 = scmp.ne.s32.totalorder %s225, %s226
      %p235 = scmp.eq.s32.totalorder %s26, 0
      %p236 = por %p234, %p235
      %p237 = scmp.ne.s32.totalorder %s225, %s226
      %p238 = scmp.eq.s32.totalorder %s27, 1
      %p239 = por %p237, %p238
      %p241 = scmp.ne.s32.totalorder %s226, %s240
      %p242 = scmp.eq.s32.totalorder %s27, 0
      %p243 = por %p241, %p242
      %s245 = sadd.s32 %s244, 1
      %p248 = scmp.eq.s32.totalorder %s21, 1
      %p249 = scmp.ne.s32.totalorder %s244, %s246
      %p250 = scmp.eq.s32.totalorder %s21, 0
      %p251 = por %p249, %p250
      %p252 = scmp.ne.s32.totalorder %s244, %s246
      %p253 = scmp.eq.s32.totalorder %s26, 1
      %p254 = por %p252, %p253
      %p255 = scmp.ne.s32.totalorder %s246, %s247
      %p256 = scmp.eq.s32.totalorder %s26, 0
      %p257 = por %p255, %p256
      %p258 = scmp.ne.s32.totalorder %s246, %s247
      %p259 = scmp.eq.s32.totalorder %s27, 1
      %p260 = por %p258, %p259
      %p262 = scmp.ne.s32.totalorder %s247, %s261
      %p263 = scmp.eq.s32.totalorder %s27, 0
      %p264 = por %p262, %p263
      %s266 = sadd.s32 %s265, 1
      %p269 = scmp.eq.s32.totalorder %s21, 1
      %p270 = scmp.ne.s32.totalorder %s265, %s267
      %p271 = scmp.eq.s32.totalorder %s21, 0
      %p272 = por %p270, %p271
      %p273 = scmp.ne.s32.totalorder %s265, %s267
      %p274 = scmp.eq.s32.totalorder %s26, 1
      %p275 = por %p273, %p274
      %p276 = scmp.ne.s32.totalorder %s267, %s268
      %p277 = scmp.eq.s32.totalorder %s26, 0
      %p278 = por %p276, %p277
      %p279 = scmp.ne.s32.totalorder %s267, %s268
      %p280 = scmp.eq.s32.totalorder %s27, 1
      %p281 = por %p279, %p280
      %p283 = scmp.ne.s32.totalorder %s268, %s282
      %p284 = scmp.eq.s32.totalorder %s27, 0
      %p285 = por %p283, %p284
      %s286 = ssub.s32 %s21, %s28
      %p287 = scmp.eq.s32.totalorder %s286, 0
      %s289 = sadd.s32 %s288, 1
      %s290 = scalar_select %p287, %s288, %s289
      %p293 = pneg %p287
      %p294 = scmp.eq.s32.totalorder %s21, 1
      %p295 = por %p293, %p294
      %p296 = scmp.ne.s32.totalorder %s288, %s291
      %p297 = scmp.eq.s32.totalorder %s21, 0
      %p298 = por %p296, %p297
      %p299 = scmp.ne.s32.totalorder %s288, %s291
      %p300 = scmp.eq.s32.totalorder %s26, 1
      %p301 = por %p299, %p300
      %p302 = scmp.ne.s32.totalorder %s291, %s292
      %p303 = scmp.eq.s32.totalorder %s26, 0
      %p304 = por %p302, %p303
      %p305 = scmp.ne.s32.totalorder %s291, %s292
      %p306 = scmp.eq.s32.totalorder %s27, 1
      %p307 = por %p305, %p306
      %p309 = scmp.ne.s32.totalorder %s292, %s308
      %p310 = scmp.eq.s32.totalorder %s27, 0
      %p311 = por %p309, %p310
      %p312 = scmp.le.s32.totalorder 1, %s21
      %p313 = scmp.lt.s32.totalorder %s21, 3
      %p314 = pnand %p312, %p313
      %p315 = pneg %p314
      // Predicated region
      $region9: #{forward.1} parent=5 // pred_check
        _
      $region10: #{forward.1} parent=5 // pred_check_branch
        %317 = sbr.rel (%p314) target = $region12
      $region11: #{forward.1} parent=5 // pred_region
        %s318 = ssub.s32 %s21, 1
        // Predicated region
        $region13: #{forward.1} parent=11 // pred_check
          %p319 = pneg %p68
        $region14: #{forward.1} parent=11 // pred_check_branch
          %321 = sbr.rel (%p319) target = $region16
        $region15: #{forward.1} parent=11 // pred_region
          _
        $region16: #{forward.1} parent=11 // pred_fallthru
          _
        // Predicated region
        $region17: #{forward.1} parent=11 // pred_check
          %p322 = pneg %p89
        $region18: #{forward.1} parent=11 // pred_check_branch
          %324 = sbr.rel (%p322) target = $region20
        $region19: #{forward.1} parent=11 // pred_region
          _
        $region20: #{forward.1} parent=11 // pred_fallthru
          _
        // Predicated region
        $region21: #{forward.1} parent=11 // pred_check
          %p325 = pneg %p110
        $region22: #{forward.1} parent=11 // pred_check_branch
          %327 = sbr.rel (%p325) target = $region24
        $region23: #{forward.1} parent=11 // pred_region
          _
        $region24: #{forward.1} parent=11 // pred_fallthru
          _
        // Predicated region
        $region25: #{forward.1} parent=11 // pred_check
          %p328 = pneg %p131
        $region26: #{forward.1} parent=11 // pred_check_branch
          %330 = sbr.rel (%p328) target = $region28
        $region27: #{forward.1} parent=11 // pred_region
          _
        $region28: #{forward.1} parent=11 // pred_fallthru
          _
        // Predicated region
        $region29: #{forward.1} parent=11 // pred_check
          %p331 = pneg %p152
        $region30: #{forward.1} parent=11 // pred_check_branch
          %333 = sbr.rel (%p331) target = $region32
        $region31: #{forward.1} parent=11 // pred_region
          _
        $region32: #{forward.1} parent=11 // pred_fallthru
          _
        // Predicated region
        $region33: #{forward.1} parent=11 // pred_check
          %p334 = pneg %p173
        $region34: #{forward.1} parent=11 // pred_check_branch
          %336 = sbr.rel (%p334) target = $region36
        $region35: #{forward.1} parent=11 // pred_region
          _
        $region36: #{forward.1} parent=11 // pred_fallthru
          _
        // Predicated region
        $region37: #{forward.1} parent=11 // pred_check
          %p337 = pneg %p194
        $region38: #{forward.1} parent=11 // pred_check_branch
          %339 = sbr.rel (%p337) target = $region40
        $region39: #{forward.1} parent=11 // pred_region
          _
        $region40: #{forward.1} parent=11 // pred_fallthru
          _
        // Predicated region
        $region41: #{forward.1} parent=11 // pred_check
          %p340 = pneg %p215
        $region42: #{forward.1} parent=11 // pred_check_branch
          %342 = sbr.rel (%p340) target = $region44
        $region43: #{forward.1} parent=11 // pred_region
          _
        $region44: #{forward.1} parent=11 // pred_fallthru
          _
        // Predicated region
        $region45: #{forward.1} parent=11 // pred_check
          %p343 = pneg %p236
        $region46: #{forward.1} parent=11 // pred_check_branch
          %345 = sbr.rel (%p343) target = $region48
        $region47: #{forward.1} parent=11 // pred_region
          _
        $region48: #{forward.1} parent=11 // pred_fallthru
          _
        // Predicated region
        $region49: #{forward.1} parent=11 // pred_check
          %p346 = pneg %p257
        $region50: #{forward.1} parent=11 // pred_check_branch
          %348 = sbr.rel (%p346) target = $region52
        $region51: #{forward.1} parent=11 // pred_region
          _
        $region52: #{forward.1} parent=11 // pred_fallthru
          _
        // Predicated region
        $region53: #{forward.1} parent=11 // pred_check
          %p349 = pneg %p278
        $region54: #{forward.1} parent=11 // pred_check_branch
          %351 = sbr.rel (%p349) target = $region56
        $region55: #{forward.1} parent=11 // pred_region
          _
        $region56: #{forward.1} parent=11 // pred_fallthru
          _
      $region12: #{forward.1} parent=5 // pred_fallthru
        _
      %p352 = scmp.lt.s32.totalorder %s21, 2
      // Predicated region
      $region57: #{forward.1} parent=5 // pred_check
        %p353 = pneg %p352
      $region58: #{forward.1} parent=5 // pred_check_branch
        %355 = sbr.rel (%p353) target = $region60
      $region59: #{forward.1} parent=5 // pred_region
        // Predicated region
        $region61: #{forward.1} parent=59 // pred_check
          %p356 = pneg %p41
        $region62: #{forward.1} parent=59 // pred_check_branch
          %358 = sbr.rel (%p356) target = $region64
        $region63: #{forward.1} parent=59 // pred_region
          %p359 = scmp.lt.s32.totalorder %s21, 1
          %s360 = scalar_select %p359, %s21, 1
          %s361 = smul.addr %s360, 32
          %s362 = smul.addr %s361, 8
          %s363 = scalar_lea.vmem %s0, %s362
        $region64: #{forward.1} parent=59 // pred_fallthru
          _
      $region60: #{forward.1} parent=5 // pred_fallthru
        _
      %p364 = scmp.le.s32.totalorder 1, %s21
      %p365 = scmp.lt.s32.totalorder %s21, 3
      %p366 = pnand %p364, %p365
      %p367 = pneg %p366
      // Predicated region
      $region65: #{forward.1} parent=5 // pred_check
        _
      $region66: #{forward.1} parent=5 // pred_check_branch
        %369 = sbr.rel (%p366) target = $region68
      $region67: #{forward.1} parent=5 // pred_region
        %s370 = ssub.s32 %s21, 1
        %p371 = scmp.lt.s32.totalorder %s26, 1
        %s372 = scalar_select %p371, %s26, 1
        %s373 = smul.addr %s372, 32
        %s374 = smul.addr %s373, 8
        %s375 = scalar_lea.vmem %s0, %s374
        %p376 = pneg %p47
        %p377 = pneg %p44
        %p378 = pneg %p68
        %p379 = pneg %p65
        %p380 = pneg %p89
        %p381 = pneg %p86
        %p382 = pneg %p110
        %p383 = pneg %p107
        %p384 = pneg %p131
        %p385 = pneg %p128
        %p386 = pneg %p152
        %p387 = pneg %p149
        %p388 = pneg %p173
        %p389 = pneg %p170
        %p390 = pneg %p194
        %p391 = pneg %p191
        %p392 = pneg %p215
        %p393 = pneg %p212
        %p394 = pneg %p236
        %p395 = pneg %p233
        %p396 = pneg %p257
        %p397 = pneg %p254
        %p398 = pneg %p278
        %p399 = pneg %p275
        %p400 = pneg %p304
        %p401 = pneg %p301
        %s402 = sand.u32 %s291, 1
        %s403 = scalar_lea.sflag [#allocation6], %s402
        %s404 = sand.u32 %s291, 1
        %s405 = scalar_lea.vmem [#allocation5], %s404
        %p406 = scmp.lt.s32.totalorder %s26, 1
        %s407 = scalar_select %p406, %s26, 1
        %s408 = smul.addr %s407, 32
        %s409 = smul.addr %s408, 8
        %s410 = scalar_lea.vmem %s0, %s409
        %v411 = vld [vmem:[%s410] sm:$0xff]
        %v412 = vld [vmem:[%s410 + $0x8] sm:$0xff]
        %v413 = vld [vmem:[%s410 + $0x10] sm:$0xff]
        %v414 = vld [vmem:[%s410 + $0x18] sm:$0xff]
        %v415 = vld [vmem:[%s410 + $0x20] sm:$0xff]
        %v416 = vld [vmem:[%s410 + $0x28] sm:$0xff]
        %v417 = vld [vmem:[%s410 + $0x30] sm:$0xff]
        %v418 = vld [vmem:[%s410 + $0x38] sm:$0xff]
        %v419 = vld [vmem:[%s410 + $0x40] sm:$0xff]
        %v420 = vld [vmem:[%s410 + $0x48] sm:$0xff]
        %v421 = vld [vmem:[%s410 + $0x50] sm:$0xff]
        %v422 = vld [vmem:[%s410 + $0x58] sm:$0xff]
        %v423 = vld [vmem:[%s410 + $0x60] sm:$0xff]
        %v424 = vld [vmem:[%s410 + $0x68] sm:$0xff]
        %v425 = vld [vmem:[%s410 + $0x70] sm:$0xff]
        %v426 = vld [vmem:[%s410 + $0x78] sm:$0xff]
        %v427 = vld [vmem:[%s410 + $0x80] sm:$0xff]
        %v428 = vld [vmem:[%s410 + $0x88] sm:$0xff]
        %v429 = vld [vmem:[%s410 + $0x90] sm:$0xff]
        %v430 = vld [vmem:[%s410 + $0x98] sm:$0xff]
        %v431 = vld [vmem:[%s410 + $0xa0] sm:$0xff]
        %v432 = vld [vmem:[%s410 + $0xa8] sm:$0xff]
        %v433 = vld [vmem:[%s410 + $0xb0] sm:$0xff]
        %v434 = vld [vmem:[%s410 + $0xb8] sm:$0xff]
        %v435 = vld [vmem:[%s410 + $0xc0] sm:$0xff]
        %v436 = vld [vmem:[%s410 + $0xc8] sm:$0xff]
        %v437 = vld [vmem:[%s410 + $0xd0] sm:$0xff]
        %v438 = vld [vmem:[%s410 + $0xd8] sm:$0xff]
        %v439 = vld [vmem:[%s410 + $0xe0] sm:$0xff]
        %v440 = vld [vmem:[%s410 + $0xe8] sm:$0xff]
        %v441 = vld [vmem:[%s410 + $0xf0] sm:$0xff]
        %v442 = vld [vmem:[%s410 + $0xf8] sm:$0xff]
        %vm443 = vcmask 23552
        %444 = vst.msk [vmem:[#allocation2] sm:$0xff] %vm443, 0.0
        %445 = vst.msk [vmem:[#allocation2 + $0x8] sm:$0xff] %vm443, 0.0
        %446 = vst.msk [vmem:[#allocation2 + $0x10] sm:$0xff] %vm443, 0.0
        %447 = vst.msk [vmem:[#allocation2 + $0x18] sm:$0xff] %vm443, 0.0
        %448 = vst.msk [vmem:[#allocation2 + $0x20] sm:$0xff] %vm443, 0.0
        %449 = vst.msk [vmem:[#allocation2 + $0x28] sm:$0xff] %vm443, 0.0
        %450 = vst.msk [vmem:[#allocation2 + $0x30] sm:$0xff] %vm443, 0.0
        %451 = vst.msk [vmem:[#allocation2 + $0x38] sm:$0xff] %vm443, 0.0
        %452 = vst.msk [vmem:[#allocation2 + $0x40] sm:$0xff] %vm443, 0.0
        %453 = vst.msk [vmem:[#allocation2 + $0x48] sm:$0xff] %vm443, 0.0
        %454 = vst.msk [vmem:[#allocation2 + $0x50] sm:$0xff] %vm443, 0.0
        %455 = vst.msk [vmem:[#allocation2 + $0x58] sm:$0xff] %vm443, 0.0
        %456 = vst.msk [vmem:[#allocation2 + $0x60] sm:$0xff] %vm443, 0.0
        %457 = vst.msk [vmem:[#allocation2 + $0x68] sm:$0xff] %vm443, 0.0
        %458 = vst.msk [vmem:[#allocation2 + $0x70] sm:$0xff] %vm443, 0.0
        %459 = vst.msk [vmem:[#allocation2 + $0x78] sm:$0xff] %vm443, 0.0
        %460 = vst.msk [vmem:[#allocation2 + $0x80] sm:$0xff] %vm443, 0.0
        %461 = vst.msk [vmem:[#allocation2 + $0x88] sm:$0xff] %vm443, 0.0
        %462 = vst.msk [vmem:[#allocation2 + $0x90] sm:$0xff] %vm443, 0.0
        %463 = vst.msk [vmem:[#allocation2 + $0x98] sm:$0xff] %vm443, 0.0
        %464 = vst.msk [vmem:[#allocation2 + $0xa0] sm:$0xff] %vm443, 0.0
        %465 = vst.msk [vmem:[#allocation2 + $0xa8] sm:$0xff] %vm443, 0.0
        %466 = vst.msk [vmem:[#allocation2 + $0xb0] sm:$0xff] %vm443, 0.0
        %467 = vst.msk [vmem:[#allocation2 + $0xb8] sm:$0xff] %vm443, 0.0
        %468 = vst.msk [vmem:[#allocation2 + $0xc0] sm:$0xff] %vm443, 0.0
        %469 = vst.msk [vmem:[#allocation2 + $0xc8] sm:$0xff] %vm443, 0.0
        %470 = vst.msk [vmem:[#allocation2 + $0xd0] sm:$0xff] %vm443, 0.0
        %471 = vst.msk [vmem:[#allocation2 + $0xd8] sm:$0xff] %vm443, 0.0
        %472 = vst.msk [vmem:[#allocation2 + $0xe0] sm:$0xff] %vm443, 0.0
        %473 = vst.msk [vmem:[#allocation2 + $0xe8] sm:$0xff] %vm443, 0.0
        %474 = vst.msk [vmem:[#allocation2 + $0xf0] sm:$0xff] %vm443, 0.0
        %475 = vst.msk [vmem:[#allocation2 + $0xf8] sm:$0xff] %vm443, 0.0
        %476 = vst.msk [vmem:[#allocation2 + $0x100] sm:$0xff] %vm443, 0.0
        %477 = vst.msk [vmem:[#allocation2 + $0x108] sm:$0xff] %vm443, 0.0
        %478 = vst.msk [vmem:[#allocation2 + $0x110] sm:$0xff] %vm443, 0.0
        %479 = vst.msk [vmem:[#allocation2 + $0x118] sm:$0xff] %vm443, 0.0
        %vm480 = vcmask 17408
        %481 = vst.msk [vmem:[#allocation2 + $0x120] sm:$0x3] %vm480, 0.0
        %482 = vst.msk [vmem:[#allocation2 + $0x11] sm:$0xff] %vm443, %v411
        %483 = vst.msk [vmem:[#allocation2 + $0x19] sm:$0xff] %vm443, %v412
        %484 = vst.msk [vmem:[#allocation2 + $0x21] sm:$0xff] %vm443, %v413
        %485 = vst.msk [vmem:[#allocation2 + $0x29] sm:$0xff] %vm443, %v414
        %486 = vst.msk [vmem:[#allocation2 + $0x31] sm:$0xff] %vm443, %v415
        %487 = vst.msk [vmem:[#allocation2 + $0x39] sm:$0xff] %vm443, %v416
        %488 = vst.msk [vmem:[#allocation2 + $0x41] sm:$0xff] %vm443, %v417
        %489 = vst.msk [vmem:[#allocation2 + $0x49] sm:$0xff] %vm443, %v418
        %490 = vst.msk [vmem:[#allocation2 + $0x51] sm:$0xff] %vm443, %v419
        %491 = vst.msk [vmem:[#allocation2 + $0x59] sm:$0xff] %vm443, %v420
        %492 = vst.msk [vmem:[#allocation2 + $0x61] sm:$0xff] %vm443, %v421
        %493 = vst.msk [vmem:[#allocation2 + $0x69] sm:$0xff] %vm443, %v422
        %494 = vst.msk [vmem:[#allocation2 + $0x71] sm:$0xff] %vm443, %v423
        %495 = vst.msk [vmem:[#allocation2 + $0x79] sm:$0xff] %vm443, %v424
        %496 = vst.msk [vmem:[#allocation2 + $0x81] sm:$0xff] %vm443, %v425
        %497 = vst.msk [vmem:[#allocation2 + $0x89] sm:$0xff] %vm443, %v426
        %498 = vst.msk [vmem:[#allocation2 + $0x91] sm:$0xff] %vm443, %v427
        %499 = vst.msk [vmem:[#allocation2 + $0x99] sm:$0xff] %vm443, %v428
        %500 = vst.msk [vmem:[#allocation2 + $0xa1] sm:$0xff] %vm443, %v429
        %501 = vst.msk [vmem:[#allocation2 + $0xa9] sm:$0xff] %vm443, %v430
        %502 = vst.msk [vmem:[#allocation2 + $0xb1] sm:$0xff] %vm443, %v431
        %503 = vst.msk [vmem:[#allocation2 + $0xb9] sm:$0xff] %vm443, %v432
        %504 = vst.msk [vmem:[#allocation2 + $0xc1] sm:$0xff] %vm443, %v433
        %505 = vst.msk [vmem:[#allocation2 + $0xc9] sm:$0xff] %vm443, %v434
        %506 = vst.msk [vmem:[#allocation2 + $0xd1] sm:$0xff] %vm443, %v435
        %507 = vst.msk [vmem:[#allocation2 + $0xd9] sm:$0xff] %vm443, %v436
        %508 = vst.msk [vmem:[#allocation2 + $0xe1] sm:$0xff] %vm443, %v437
        %509 = vst.msk [vmem:[#allocation2 + $0xe9] sm:$0xff] %vm443, %v438
        %510 = vst.msk [vmem:[#allocation2 + $0xf1] sm:$0xff] %vm443, %v439
        %511 = vst.msk [vmem:[#allocation2 + $0xf9] sm:$0xff] %vm443, %v440
        %512 = vst.msk [vmem:[#allocation2 + $0x101] sm:$0xff] %vm443, %v441
        %513 = vst.msk [vmem:[#allocation2 + $0x109] sm:$0xff] %vm443, %v442
        %v514 = vlaneseq
        %v515 = vshrl.u32 %v514, 7
        %v516 = vadd.s32 %v515, 8
        %v517 = vadd.s32 %v515, 16
        %v518 = vadd.s32 %v515, 24
        %v519 = vadd.s32 %v515, 32
        %v520 = vadd.s32 %v515, 40
        %v521 = vadd.s32 %v515, 48
        %v522 = vadd.s32 %v515, 56
        %v523 = vadd.s32 %v515, 64
        %v524 = vadd.s32 %v515, 72
        %v525 = vadd.s32 %v515, 80
        %v526 = vadd.s32 %v515, 88
        %v527 = vadd.s32 %v515, 96
        %v528 = vadd.s32 %v515, 104
        %v529 = vadd.s32 %v515, 112
        %v530 = vadd.s32 %v515, 120
        %v531 = vadd.s32 %v515, 128
        %v532 = vadd.s32 %v515, 136
        %v533 = vadd.s32 %v515, 144
        %v534 = vadd.s32 %v515, 152
        %v535 = vadd.s32 %v515, 160
        %v536 = vadd.s32 %v515, 168
        %v537 = vadd.s32 %v515, 176
        %v538 = vadd.s32 %v515, 184
        %v539 = vadd.s32 %v515, 192
        %v540 = vadd.s32 %v515, 200
        %v541 = vadd.s32 %v515, 208
        %v542 = vadd.s32 %v515, 216
        %v543 = vadd.s32 %v515, 224
        %v544 = vadd.s32 %v515, 232
        %v545 = vadd.s32 %v515, 240
        %v546 = vadd.s32 %v515, 248
        %vm547 = vcmp.lt.s32.totalorder %v515, 0
        %v548 = vsub.s32 0, %v515
        %v549 = vsel %vm547, %v548, %v515
        %v550 = vshrl.u32 %v549, 4
        %v551 = vand.u32 %v549, 15
        %v552 = vsub.s32 0, %v551
        %v553 = vsel %vm547, %v552, %v551
        %vm554 = vcmp.lt.s32.totalorder %v516, 0
        %v555 = vsub.s32 0, %v516
        %v556 = vsel %vm554, %v555, %v516
        %v557 = vshrl.u32 %v556, 4
        %v558 = vand.u32 %v556, 15
        %v559 = vsub.s32 0, %v558
        %v560 = vsel %vm554, %v559, %v558
        %vm561 = vcmp.lt.s32.totalorder %v517, 0
        %v562 = vsub.s32 0, %v517
        %v563 = vsel %vm561, %v562, %v517
        %v564 = vshrl.u32 %v563, 4
        %v565 = vand.u32 %v563, 15
        %v566 = vsub.s32 0, %v565
        %v567 = vsel %vm561, %v566, %v565
        %vm568 = vcmp.lt.s32.totalorder %v518, 0
        %v569 = vsub.s32 0, %v518
        %v570 = vsel %vm568, %v569, %v518
        %v571 = vshrl.u32 %v570, 4
        %v572 = vand.u32 %v570, 15
        %v573 = vsub.s32 0, %v572
        %v574 = vsel %vm568, %v573, %v572
        %vm575 = vcmp.lt.s32.totalorder %v519, 0
        %v576 = vsub.s32 0, %v519
        %v577 = vsel %vm575, %v576, %v519
        %v578 = vshrl.u32 %v577, 4
        %v579 = vand.u32 %v577, 15
        %v580 = vsub.s32 0, %v579
        %v581 = vsel %vm575, %v580, %v579
        %vm582 = vcmp.lt.s32.totalorder %v520, 0
        %v583 = vsub.s32 0, %v520
        %v584 = vsel %vm582, %v583, %v520
        %v585 = vshrl.u32 %v584, 4
        %v586 = vand.u32 %v584, 15
        %v587 = vsub.s32 0, %v586
        %v588 = vsel %vm582, %v587, %v586
        %vm589 = vcmp.lt.s32.totalorder %v521, 0
        %v590 = vsub.s32 0, %v521
        %v591 = vsel %vm589, %v590, %v521
        %v592 = vshrl.u32 %v591, 4
        %v593 = vand.u32 %v591, 15
        %v594 = vsub.s32 0, %v593
        %v595 = vsel %vm589, %v594, %v593
        %vm596 = vcmp.lt.s32.totalorder %v522, 0
        %v597 = vsub.s32 0, %v522
        %v598 = vsel %vm596, %v597, %v522
        %v599 = vshrl.u32 %v598, 4
        %v600 = vand.u32 %v598, 15
        %v601 = vsub.s32 0, %v600
        %v602 = vsel %vm596, %v601, %v600
        %vm603 = vcmp.lt.s32.totalorder %v523, 0
        %v604 = vsub.s32 0, %v523
        %v605 = vsel %vm603, %v604, %v523
        %v606 = vshrl.u32 %v605, 4
        %v607 = vand.u32 %v605, 15
        %v608 = vsub.s32 0, %v607
        %v609 = vsel %vm603, %v608, %v607
        %vm610 = vcmp.lt.s32.totalorder %v524, 0
        %v611 = vsub.s32 0, %v524
        %v612 = vsel %vm610, %v611, %v524
        %v613 = vshrl.u32 %v612, 4
        %v614 = vand.u32 %v612, 15
        %v615 = vsub.s32 0, %v614
        %v616 = vsel %vm610, %v615, %v614
        %vm617 = vcmp.lt.s32.totalorder %v525, 0
        %v618 = vsub.s32 0, %v525
        %v619 = vsel %vm617, %v618, %v525
        %v620 = vshrl.u32 %v619, 4
        %v621 = vand.u32 %v619, 15
        %v622 = vsub.s32 0, %v621
        %v623 = vsel %vm617, %v622, %v621
        %vm624 = vcmp.lt.s32.totalorder %v526, 0
        %v625 = vsub.s32 0, %v526
        %v626 = vsel %vm624, %v625, %v526
        %v627 = vshrl.u32 %v626, 4
        %v628 = vand.u32 %v626, 15
        %v629 = vsub.s32 0, %v628
        %v630 = vsel %vm624, %v629, %v628
        %vm631 = vcmp.lt.s32.totalorder %v527, 0
        %v632 = vsub.s32 0, %v527
        %v633 = vsel %vm631, %v632, %v527
        %v634 = vshrl.u32 %v633, 4
        %v635 = vand.u32 %v633, 15
        %v636 = vsub.s32 0, %v635
        %v637 = vsel %vm631, %v636, %v635
        %vm638 = vcmp.lt.s32.totalorder %v528, 0
        %v639 = vsub.s32 0, %v528
        %v640 = vsel %vm638, %v639, %v528
        %v641 = vshrl.u32 %v640, 4
        %v642 = vand.u32 %v640, 15
        %v643 = vsub.s32 0, %v642
        %v644 = vsel %vm638, %v643, %v642
        %vm645 = vcmp.lt.s32.totalorder %v529, 0
        %v646 = vsub.s32 0, %v529
        %v647 = vsel %vm645, %v646, %v529
        %v648 = vshrl.u32 %v647, 4
        %v649 = vand.u32 %v647, 15
        %v650 = vsub.s32 0, %v649
        %v651 = vsel %vm645, %v650, %v649
        %vm652 = vcmp.lt.s32.totalorder %v530, 0
        %v653 = vsub.s32 0, %v530
        %v654 = vsel %vm652, %v653, %v530
        %v655 = vshrl.u32 %v654, 4
        %v656 = vand.u32 %v654, 15
        %v657 = vsub.s32 0, %v656
        %v658 = vsel %vm652, %v657, %v656
        %vm659 = vcmp.lt.s32.totalorder %v531, 0
        %v660 = vsub.s32 0, %v531
        %v661 = vsel %vm659, %v660, %v531
        %v662 = vshrl.u32 %v661, 4
        %v663 = vand.u32 %v661, 15
        %v664 = vsub.s32 0, %v663
        %v665 = vsel %vm659, %v664, %v663
        %vm666 = vcmp.lt.s32.totalorder %v532, 0
        %v667 = vsub.s32 0, %v532
        %v668 = vsel %vm666, %v667, %v532
        %v669 = vshrl.u32 %v668, 4
        %v670 = vand.u32 %v668, 15
        %v671 = vsub.s32 0, %v670
        %v672 = vsel %vm666, %v671, %v670
        %vm673 = vcmp.lt.s32.totalorder %v533, 0
        %v674 = vsub.s32 0, %v533
        %v675 = vsel %vm673, %v674, %v533
        %v676 = vshrl.u32 %v675, 4
        %v677 = vand.u32 %v675, 15
        %v678 = vsub.s32 0, %v677
        %v679 = vsel %vm673, %v678, %v677
        %vm680 = vcmp.lt.s32.totalorder %v534, 0
        %v681 = vsub.s32 0, %v534
        %v682 = vsel %vm680, %v681, %v534
        %v683 = vshrl.u32 %v682, 4
        %v684 = vand.u32 %v682, 15
        %v685 = vsub.s32 0, %v684
        %v686 = vsel %vm680, %v685, %v684
        %vm687 = vcmp.lt.s32.totalorder %v535, 0
        %v688 = vsub.s32 0, %v535
        %v689 = vsel %vm687, %v688, %v535
        %v690 = vshrl.u32 %v689, 4
        %v691 = vand.u32 %v689, 15
        %v692 = vsub.s32 0, %v691
        %v693 = vsel %vm687, %v692, %v691
        %vm694 = vcmp.lt.s32.totalorder %v536, 0
        %v695 = vsub.s32 0, %v536
        %v696 = vsel %vm694, %v695, %v536
        %v697 = vshrl.u32 %v696, 4
        %v698 = vand.u32 %v696, 15
        %v699 = vsub.s32 0, %v698
        %v700 = vsel %vm694, %v699, %v698
        %vm701 = vcmp.lt.s32.totalorder %v537, 0
        %v702 = vsub.s32 0, %v537
        %v703 = vsel %vm701, %v702, %v537
        %v704 = vshrl.u32 %v703, 4
        %v705 = vand.u32 %v703, 15
        %v706 = vsub.s32 0, %v705
        %v707 = vsel %vm701, %v706, %v705
        %vm708 = vcmp.lt.s32.totalorder %v538, 0
        %v709 = vsub.s32 0, %v538
        %v710 = vsel %vm708, %v709, %v538
        %v711 = vshrl.u32 %v710, 4
        %v712 = vand.u32 %v710, 15
        %v713 = vsub.s32 0, %v712
        %v714 = vsel %vm708, %v713, %v712
        %vm715 = vcmp.lt.s32.totalorder %v539, 0
        %v716 = vsub.s32 0, %v539
        %v717 = vsel %vm715, %v716, %v539
        %v718 = vshrl.u32 %v717, 4
        %v719 = vand.u32 %v717, 15
        %v720 = vsub.s32 0, %v719
        %v721 = vsel %vm715, %v720, %v719
        %vm722 = vcmp.lt.s32.totalorder %v540, 0
        %v723 = vsub.s32 0, %v540
        %v724 = vsel %vm722, %v723, %v540
        %v725 = vshrl.u32 %v724, 4
        %v726 = vand.u32 %v724, 15
        %v727 = vsub.s32 0, %v726
        %v728 = vsel %vm722, %v727, %v726
        %vm729 = vcmp.lt.s32.totalorder %v541, 0
        %v730 = vsub.s32 0, %v541
        %v731 = vsel %vm729, %v730, %v541
        %v732 = vshrl.u32 %v731, 4
        %v733 = vand.u32 %v731, 15
        %v734 = vsub.s32 0, %v733
        %v735 = vsel %vm729, %v734, %v733
        %vm736 = vcmp.lt.s32.totalorder %v542, 0
        %v737 = vsub.s32 0, %v542
        %v738 = vsel %vm736, %v737, %v542
        %v739 = vshrl.u32 %v738, 4
        %v740 = vand.u32 %v738, 15
        %v741 = vsub.s32 0, %v740
        %v742 = vsel %vm736, %v741, %v740
        %vm743 = vcmp.lt.s32.totalorder %v543, 0
        %v744 = vsub.s32 0, %v543
        %v745 = vsel %vm743, %v744, %v543
        %v746 = vshrl.u32 %v745, 4
        %v747 = vand.u32 %v745, 15
        %v748 = vsub.s32 0, %v747
        %v749 = vsel %vm743, %v748, %v747
        %vm750 = vcmp.lt.s32.totalorder %v544, 0
        %v751 = vsub.s32 0, %v544
        %v752 = vsel %vm750, %v751, %v544
        %v753 = vshrl.u32 %v752, 4
        %v754 = vand.u32 %v752, 15
        %v755 = vsub.s32 0, %v754
        %v756 = vsel %vm750, %v755, %v754
        %vm757 = vcmp.lt.s32.totalorder %v545, 0
        %v758 = vsub.s32 0, %v545
        %v759 = vsel %vm757, %v758, %v545
        %v760 = vshrl.u32 %v759, 4
        %v761 = vand.u32 %v759, 15
        %v762 = vsub.s32 0, %v761
        %v763 = vsel %vm757, %v762, %v761
        %vm764 = vcmp.lt.s32.totalorder %v546, 0
        %v765 = vsub.s32 0, %v546
        %v766 = vsel %vm764, %v765, %v546
        %v767 = vshrl.u32 %v766, 4
        %v768 = vand.u32 %v766, 15
        %v769 = vsub.s32 0, %v768
        %v770 = vsel %vm764, %v769, %v768
        %vm771 = vcmp.ne.s32.totalorder %v553, 0
        %vm772 = vcmp.ne.s32.totalorder %v560, 0
        %vm773 = vcmp.ne.s32.totalorder %v567, 0
        %vm774 = vcmp.ne.s32.totalorder %v574, 0
        %vm775 = vcmp.ne.s32.totalorder %v581, 0
        %vm776 = vcmp.ne.s32.totalorder %v588, 0
        %vm777 = vcmp.ne.s32.totalorder %v595, 0
        %vm778 = vcmp.ne.s32.totalorder %v602, 0
        %vm779 = vcmp.ne.s32.totalorder %v609, 0
        %vm780 = vcmp.ne.s32.totalorder %v616, 0
        %vm781 = vcmp.ne.s32.totalorder %v623, 0
        %vm782 = vcmp.ne.s32.totalorder %v630, 0
        %vm783 = vcmp.ne.s32.totalorder %v637, 0
        %vm784 = vcmp.ne.s32.totalorder %v644, 0
        %vm785 = vcmp.ne.s32.totalorder %v651, 0
        %vm786 = vcmp.ne.s32.totalorder %v658, 0
        %vm787 = vcmp.ne.s32.totalorder %v665, 0
        %vm788 = vcmp.ne.s32.totalorder %v672, 0
        %vm789 = vcmp.ne.s32.totalorder %v679, 0
        %vm790 = vcmp.ne.s32.totalorder %v686, 0
        %vm791 = vcmp.ne.s32.totalorder %v693, 0
        %vm792 = vcmp.ne.s32.totalorder %v700, 0
        %vm793 = vcmp.ne.s32.totalorder %v707, 0
        %vm794 = vcmp.ne.s32.totalorder %v714, 0
        %vm795 = vcmp.ne.s32.totalorder %v721, 0
        %vm796 = vcmp.ne.s32.totalorder %v728, 0
        %vm797 = vcmp.ne.s32.totalorder %v735, 0
        %vm798 = vcmp.ne.s32.totalorder %v742, 0
        %vm799 = vcmp.ne.s32.totalorder %v749, 0
        %vm800 = vcmp.ne.s32.totalorder %v756, 0
        %vm801 = vcmp.ne.s32.totalorder %v763, 0
        %vm802 = vcmp.ne.s32.totalorder %v770, 0
        %vm803 = vcmp.lt.s32.totalorder %v553, 0
        %vm804 = vcmp.lt.s32.totalorder %v560, 0
        %vm805 = vcmp.lt.s32.totalorder %v567, 0
        %vm806 = vcmp.lt.s32.totalorder %v574, 0
        %vm807 = vcmp.lt.s32.totalorder %v581, 0
        %vm808 = vcmp.lt.s32.totalorder %v588, 0
        %vm809 = vcmp.lt.s32.totalorder %v595, 0
        %vm810 = vcmp.lt.s32.totalorder %v602, 0
        %vm811 = vcmp.lt.s32.totalorder %v609, 0
        %vm812 = vcmp.lt.s32.totalorder %v616, 0
        %vm813 = vcmp.lt.s32.totalorder %v623, 0
        %vm814 = vcmp.lt.s32.totalorder %v630, 0
        %vm815 = vcmp.lt.s32.totalorder %v637, 0
        %vm816 = vcmp.lt.s32.totalorder %v644, 0
        %vm817 = vcmp.lt.s32.totalorder %v651, 0
        %vm818 = vcmp.lt.s32.totalorder %v658, 0
        %vm819 = vcmp.lt.s32.totalorder %v665, 0
        %vm820 = vcmp.lt.s32.totalorder %v672, 0
        %vm821 = vcmp.lt.s32.totalorder %v679, 0
        %vm822 = vcmp.lt.s32.totalorder %v686, 0
        %vm823 = vcmp.lt.s32.totalorder %v693, 0
        %vm824 = vcmp.lt.s32.totalorder %v700, 0
        %vm825 = vcmp.lt.s32.totalorder %v707, 0
        %vm826 = vcmp.lt.s32.totalorder %v714, 0
        %vm827 = vcmp.lt.s32.totalorder %v721, 0
        %vm828 = vcmp.lt.s32.totalorder %v728, 0
        %vm829 = vcmp.lt.s32.totalorder %v735, 0
        %vm830 = vcmp.lt.s32.totalorder %v742, 0
        %vm831 = vcmp.lt.s32.totalorder %v749, 0
        %vm832 = vcmp.lt.s32.totalorder %v756, 0
        %vm833 = vcmp.lt.s32.totalorder %v763, 0
        %vm834 = vcmp.lt.s32.totalorder %v770, 0
        %vm835 = vmand %vm803, %vm771
        %vm836 = vmand %vm804, %vm772
        %vm837 = vmand %vm805, %vm773
        %vm838 = vmand %vm806, %vm774
        %vm839 = vmand %vm807, %vm775
        %vm840 = vmand %vm808, %vm776
        %vm841 = vmand %vm809, %vm777
        %vm842 = vmand %vm810, %vm778
        %vm843 = vmand %vm811, %vm779
        %vm844 = vmand %vm812, %vm780
        %vm845 = vmand %vm813, %vm781
        %vm846 = vmand %vm814, %vm782
        %vm847 = vmand %vm815, %vm783
        %vm848 = vmand %vm816, %vm784
        %vm849 = vmand %vm817, %vm785
        %vm850 = vmand %vm818, %vm786
        %vm851 = vmand %vm819, %vm787
        %vm852 = vmand %vm820, %vm788
        %vm853 = vmand %vm821, %vm789
        %vm854 = vmand %vm822, %vm790
        %vm855 = vmand %vm823, %vm791
        %vm856 = vmand %vm824, %vm792
        %vm857 = vmand %vm825, %vm793
        %vm858 = vmand %vm826, %vm794
        %vm859 = vmand %vm827, %vm795
        %vm860 = vmand %vm828, %vm796
        %vm861 = vmand %vm829, %vm797
        %vm862 = vmand %vm830, %vm798
        %vm863 = vmand %vm831, %vm799
        %vm864 = vmand %vm832, %vm800
        %vm865 = vmand %vm833, %vm801
        %vm866 = vmand %vm834, %vm802
        %v867 = vadd.s32 %v553, 16
        %v868 = vadd.s32 %v560, 16
        %v869 = vadd.s32 %v567, 16
        %v870 = vadd.s32 %v574, 16
        %v871 = vadd.s32 %v581, 16
        %v872 = vadd.s32 %v588, 16
        %v873 = vadd.s32 %v595, 16
        %v874 = vadd.s32 %v602, 16
        %v875 = vadd.s32 %v609, 16
        %v876 = vadd.s32 %v616, 16
        %v877 = vadd.s32 %v623, 16
        %v878 = vadd.s32 %v630, 16
        %v879 = vadd.s32 %v637, 16
        %v880 = vadd.s32 %v644, 16
        %v881 = vadd.s32 %v651, 16
        %v882 = vadd.s32 %v658, 16
        %v883 = vadd.s32 %v665, 16
        %v884 = vadd.s32 %v672, 16
        %v885 = vadd.s32 %v679, 16
        %v886 = vadd.s32 %v686, 16
        %v887 = vadd.s32 %v693, 16
        %v888 = vadd.s32 %v700, 16
        %v889 = vadd.s32 %v707, 16
        %v890 = vadd.s32 %v714, 16
        %v891 = vadd.s32 %v721, 16
        %v892 = vadd.s32 %v728, 16
        %v893 = vadd.s32 %v735, 16
        %v894 = vadd.s32 %v742, 16
        %v895 = vadd.s32 %v749, 16
        %v896 = vadd.s32 %v756, 16
        %v897 = vadd.s32 %v763, 16
        %v898 = vadd.s32 %v770, 16
        %v899 = vsel %vm835, %v867, %v553
        %v900 = vsel %vm836, %v868, %v560
        %v901 = vsel %vm837, %v869, %v567
        %v902 = vsel %vm838, %v870, %v574
        %v903 = vsel %vm839, %v871, %v581
        %v904 = vsel %vm840, %v872, %v588
        %v905 = vsel %vm841, %v873, %v595
        %v906 = vsel %vm842, %v874, %v602
        %v907 = vsel %vm843, %v875, %v609
        %v908 = vsel %vm844, %v876, %v616
        %v909 = vsel %vm845, %v877, %v623
        %v910 = vsel %vm846, %v878, %v630
        %v911 = vsel %vm847, %v879, %v637
        %v912 = vsel %vm848, %v880, %v644
        %v913 = vsel %vm849, %v881, %v651
        %v914 = vsel %vm850, %v882, %v658
        %v915 = vsel %vm851, %v883, %v665
        %v916 = vsel %vm852, %v884, %v672
        %v917 = vsel %vm853, %v885, %v679
        %v918 = vsel %vm854, %v886, %v686
        %v919 = vsel %vm855, %v887, %v693
        %v920 = vsel %vm856, %v888, %v700
        %v921 = vsel %vm857, %v889, %v707
        %v922 = vsel %vm858, %v890, %v714
        %v923 = vsel %vm859, %v891, %v721
        %v924 = vsel %vm860, %v892, %v728
        %v925 = vsel %vm861, %v893, %v735
        %v926 = vsel %vm862, %v894, %v742
        %v927 = vsel %vm863, %v895, %v749
        %v928 = vsel %vm864, %v896, %v756
        %v929 = vsel %vm865, %v897, %v763
        %v930 = vsel %vm866, %v898, %v770
        %v931 = vld [vmem:[#allocation2] sm:$0xff]
        %v932 = vld [vmem:[#allocation2 + $0x8] sm:$0xff]
        %v933 = vld [vmem:[#allocation2 + $0x10] sm:$0xff]
        %v934 = vld [vmem:[#allocation2 + $0x18] sm:$0xff]
        %v935 = vld [vmem:[#allocation2 + $0x20] sm:$0xff]
        %v936 = vld [vmem:[#allocation2 + $0x28] sm:$0xff]
        %v937 = vld [vmem:[#allocation2 + $0x30] sm:$0xff]
        %v938 = vld [vmem:[#allocation2 + $0x38] sm:$0xff]
        %v939 = vld [vmem:[#allocation2 + $0x40] sm:$0xff]
        %v940 = vld [vmem:[#allocation2 + $0x48] sm:$0xff]
        %v941 = vld [vmem:[#allocation2 + $0x50] sm:$0xff]
        %v942 = vld [vmem:[#allocation2 + $0x58] sm:$0xff]
        %v943 = vld [vmem:[#allocation2 + $0x60] sm:$0xff]
        %v944 = vld [vmem:[#allocation2 + $0x68] sm:$0xff]
        %v945 = vld [vmem:[#allocation2 + $0x70] sm:$0xff]
        %v946 = vld [vmem:[#allocation2 + $0x78] sm:$0xff]
        %v947 = vld [vmem:[#allocation2 + $0x80] sm:$0xff]
        %v948 = vld [vmem:[#allocation2 + $0x88] sm:$0xff]
        %v949 = vld [vmem:[#allocation2 + $0x90] sm:$0xff]
        %v950 = vld [vmem:[#allocation2 + $0x98] sm:$0xff]
        %v951 = vld [vmem:[#allocation2 + $0xa0] sm:$0xff]
        %v952 = vld [vmem:[#allocation2 + $0xa8] sm:$0xff]
        %v953 = vld [vmem:[#allocation2 + $0xb0] sm:$0xff]
        %v954 = vld [vmem:[#allocation2 + $0xb8] sm:$0xff]
        %v955 = vld [vmem:[#allocation2 + $0xc0] sm:$0xff]
        %v956 = vld [vmem:[#allocation2 + $0xc8] sm:$0xff]
        %v957 = vld [vmem:[#allocation2 + $0xd0] sm:$0xff]
        %v958 = vld [vmem:[#allocation2 + $0xd8] sm:$0xff]
        %v959 = vld [vmem:[#allocation2 + $0xe0] sm:$0xff]
        %v960 = vld [vmem:[#allocation2 + $0xe8] sm:$0xff]
        %v961 = vld [vmem:[#allocation2 + $0xf0] sm:$0xff]
        %v962 = vld [vmem:[#allocation2 + $0xf8] sm:$0xff]
        %vm963 = vcmp.ge.s32.totalorder %v899, 1
        %vm964 = vcmp.ge.s32.totalorder %v900, 1
        %vm965 = vcmp.ge.s32.totalorder %v901, 1
        %vm966 = vcmp.ge.s32.totalorder %v902, 1
        %vm967 = vcmp.ge.s32.totalorder %v903, 1
        %vm968 = vcmp.ge.s32.totalorder %v904, 1
        %vm969 = vcmp.ge.s32.totalorder %v905, 1
        %vm970 = vcmp.ge.s32.totalorder %v906, 1
        %vm971 = vcmp.ge.s32.totalorder %v907, 1
        %vm972 = vcmp.ge.s32.totalorder %v908, 1
        %vm973 = vcmp.ge.s32.totalorder %v909, 1
        %vm974 = vcmp.ge.s32.totalorder %v910, 1
        %vm975 = vcmp.ge.s32.totalorder %v911, 1
        %vm976 = vcmp.ge.s32.totalorder %v912, 1
        %vm977 = vcmp.ge.s32.totalorder %v913, 1
        %vm978 = vcmp.ge.s32.totalorder %v914, 1
        %vm979 = vcmp.ge.s32.totalorder %v915, 1
        %vm980 = vcmp.ge.s32.totalorder %v916, 1
        %vm981 = vcmp.ge.s32.totalorder %v917, 1
        %vm982 = vcmp.ge.s32.totalorder %v918, 1
        %vm983 = vcmp.ge.s32.totalorder %v919, 1
        %vm984 = vcmp.ge.s32.totalorder %v920, 1
        %vm985 = vcmp.ge.s32.totalorder %v921, 1
        %vm986 = vcmp.ge.s32.totalorder %v922, 1
        %vm987 = vcmp.ge.s32.totalorder %v923, 1
        %vm988 = vcmp.ge.s32.totalorder %v924, 1
        %vm989 = vcmp.ge.s32.totalorder %v925, 1
        %vm990 = vcmp.ge.s32.totalorder %v926, 1
        %vm991 = vcmp.ge.s32.totalorder %v927, 1
        %vm992 = vcmp.ge.s32.totalorder %v928, 1
        %vm993 = vcmp.ge.s32.totalorder %v929, 1
        %vm994 = vcmp.ge.s32.totalorder %v930, 1
        %v995 = vsel %vm963, 1, 0
        %v996 = vsel %vm964, 1, 0
        %v997 = vsel %vm965, 1, 0
        %v998 = vsel %vm966, 1, 0
        %v999 = vsel %vm967, 1, 0
        %v1000 = vsel %vm968, 1, 0
        %v1001 = vsel %vm969, 1, 0
        %v1002 = vsel %vm970, 1, 0
        %v1003 = vsel %vm971, 1, 0
        %v1004 = vsel %vm972, 1, 0
        %v1005 = vsel %vm973, 1, 0
        %v1006 = vsel %vm974, 1, 0
        %v1007 = vsel %vm975, 1, 0
        %v1008 = vsel %vm976, 1, 0
        %v1009 = vsel %vm977, 1, 0
        %v1010 = vsel %vm978, 1, 0
        %v1011 = vsel %vm979, 1, 0
        %v1012 = vsel %vm980, 1, 0
        %v1013 = vsel %vm981, 1, 0
        %v1014 = vsel %vm982, 1, 0
        %v1015 = vsel %vm983, 1, 0
        %v1016 = vsel %vm984, 1, 0
        %v1017 = vsel %vm985, 1, 0
        %v1018 = vsel %vm986, 1, 0
        %v1019 = vsel %vm987, 1, 0
        %v1020 = vsel %vm988, 1, 0
        %v1021 = vsel %vm989, 1, 0
        %v1022 = vsel %vm990, 1, 0
        %v1023 = vsel %vm991, 1, 0
        %v1024 = vsel %vm992, 1, 0
        %v1025 = vsel %vm993, 1, 0
        %v1026 = vsel %vm994, 1, 0
        %vm1027 = vcmp.eq.s32.totalorder %v995, 1
        %vm1028 = vcmp.eq.s32.totalorder %v996, 1
        %vm1029 = vcmp.eq.s32.totalorder %v997, 1
        %vm1030 = vcmp.eq.s32.totalorder %v998, 1
        %vm1031 = vcmp.eq.s32.totalorder %v999, 1
        %vm1032 = vcmp.eq.s32.totalorder %v1000, 1
        %vm1033 = vcmp.eq.s32.totalorder %v1001, 1
        %vm1034 = vcmp.eq.s32.totalorder %v1002, 1
        %vm1035 = vcmp.eq.s32.totalorder %v1003, 1
        %vm1036 = vcmp.eq.s32.totalorder %v1004, 1
        %vm1037 = vcmp.eq.s32.totalorder %v1005, 1
        %vm1038 = vcmp.eq.s32.totalorder %v1006, 1
        %vm1039 = vcmp.eq.s32.totalorder %v1007, 1
        %vm1040 = vcmp.eq.s32.totalorder %v1008, 1
        %vm1041 = vcmp.eq.s32.totalorder %v1009, 1
        %vm1042 = vcmp.eq.s32.totalorder %v1010, 1
        %vm1043 = vcmp.eq.s32.totalorder %v1011, 1
        %vm1044 = vcmp.eq.s32.totalorder %v1012, 1
        %vm1045 = vcmp.eq.s32.totalorder %v1013, 1
        %vm1046 = vcmp.eq.s32.totalorder %v1014, 1
        %vm1047 = vcmp.eq.s32.totalorder %v1015, 1
        %vm1048 = vcmp.eq.s32.totalorder %v1016, 1
        %vm1049 = vcmp.eq.s32.totalorder %v1017, 1
        %vm1050 = vcmp.eq.s32.totalorder %v1018, 1
        %vm1051 = vcmp.eq.s32.totalorder %v1019, 1
        %vm1052 = vcmp.eq.s32.totalorder %v1020, 1
        %vm1053 = vcmp.eq.s32.totalorder %v1021, 1
        %vm1054 = vcmp.eq.s32.totalorder %v1022, 1
        %vm1055 = vcmp.eq.s32.totalorder %v1023, 1
        %vm1056 = vcmp.eq.s32.totalorder %v1024, 1
        %vm1057 = vcmp.eq.s32.totalorder %v1025, 1
        %vm1058 = vcmp.eq.s32.totalorder %v1026, 1
        %v1059 = vsel %vm1027, %v931, 0.0
        %v1060 = vsel %vm1028, %v932, 0.0
        %v1061 = vsel %vm1029, %v933, 0.0
        %v1062 = vsel %vm1030, %v934, 0.0
        %v1063 = vsel %vm1031, %v935, 0.0
        %v1064 = vsel %vm1032, %v936, 0.0
        %v1065 = vsel %vm1033, %v937, 0.0
        %v1066 = vsel %vm1034, %v938, 0.0
        %v1067 = vsel %vm1035, %v939, 0.0
        %v1068 = vsel %vm1036, %v940, 0.0
        %v1069 = vsel %vm1037, %v941, 0.0
        %v1070 = vsel %vm1038, %v942, 0.0
        %v1071 = vsel %vm1039, %v943, 0.0
        %v1072 = vsel %vm1040, %v944, 0.0
        %v1073 = vsel %vm1041, %v945, 0.0
        %v1074 = vsel %vm1042, %v946, 0.0
        %v1075 = vsel %vm1043, %v947, 0.0
        %v1076 = vsel %vm1044, %v948, 0.0
        %v1077 = vsel %vm1045, %v949, 0.0
        %v1078 = vsel %vm1046, %v950, 0.0
        %v1079 = vsel %vm1047, %v951, 0.0
        %v1080 = vsel %vm1048, %v952, 0.0
        %v1081 = vsel %vm1049, %v953, 0.0
        %v1082 = vsel %vm1050, %v954, 0.0
        %v1083 = vsel %vm1051, %v955, 0.0
        %v1084 = vsel %vm1052, %v956, 0.0
        %v1085 = vsel %vm1053, %v957, 0.0
        %v1086 = vsel %vm1054, %v958, 0.0
        %v1087 = vsel %vm1055, %v959, 0.0
        %v1088 = vsel %vm1056, %v960, 0.0
        %v1089 = vsel %vm1057, %v961, 0.0
        %v1090 = vsel %vm1058, %v962, 0.0
        %v1091 = vld [vmem:[%s1] sm:$0x7]
        %v1092 = vld [vmem:[#allocation2 + $0x1] sm:$0xff]
        %v1093 = vld [vmem:[#allocation2 + $0x9] sm:$0xff]
        %v1094 = vld [vmem:[#allocation2 + $0x11] sm:$0xff]
        %v1095 = vld [vmem:[#allocation2 + $0x19] sm:$0xff]
        %v1096 = vld [vmem:[#allocation2 + $0x21] sm:$0xff]
        %v1097 = vld [vmem:[#allocation2 + $0x29] sm:$0xff]
        %v1098 = vld [vmem:[#allocation2 + $0x31] sm:$0xff]
        %v1099 = vld [vmem:[#allocation2 + $0x39] sm:$0xff]
        %v1100 = vld [vmem:[#allocation2 + $0x41] sm:$0xff]
        %v1101 = vld [vmem:[#allocation2 + $0x49] sm:$0xff]
        %v1102 = vld [vmem:[#allocation2 + $0x51] sm:$0xff]
        %v1103 = vld [vmem:[#allocation2 + $0x59] sm:$0xff]
        %v1104 = vld [vmem:[#allocation2 + $0x61] sm:$0xff]
        %v1105 = vld [vmem:[#allocation2 + $0x69] sm:$0xff]
        %v1106 = vld [vmem:[#allocation2 + $0x71] sm:$0xff]
        %v1107 = vld [vmem:[#allocation2 + $0x79] sm:$0xff]
        %v1108 = vld [vmem:[#allocation2 + $0x81] sm:$0xff]
        %v1109 = vld [vmem:[#allocation2 + $0x89] sm:$0xff]
        %v1110 = vld [vmem:[#allocation2 + $0x91] sm:$0xff]
        %v1111 = vld [vmem:[#allocation2 + $0x99] sm:$0xff]
        %v1112 = vld [vmem:[#allocation2 + $0xa1] sm:$0xff]
        %v1113 = vld [vmem:[#allocation2 + $0xa9] sm:$0xff]
        %v1114 = vld [vmem:[#allocation2 + $0xb1] sm:$0xff]
        %v1115 = vld [vmem:[#allocation2 + $0xb9] sm:$0xff]
        %v1116 = vld [vmem:[#allocation2 + $0xc1] sm:$0xff]
        %v1117 = vld [vmem:[#allocation2 + $0xc9] sm:$0xff]
        %v1118 = vld [vmem:[#allocation2 + $0xd1] sm:$0xff]
        %v1119 = vld [vmem:[#allocation2 + $0xd9] sm:$0xff]
        %v1120 = vld [vmem:[#allocation2 + $0xe1] sm:$0xff]
        %v1121 = vld [vmem:[#allocation2 + $0xe9] sm:$0xff]
        %v1122 = vld [vmem:[#allocation2 + $0xf1] sm:$0xff]
        %v1123 = vld [vmem:[#allocation2 + $0xf9] sm:$0xff]
        %s1124 = scalar_lea.vmem %s1, 4
        %v1125 = vld [vmem:[%s1124] sm:$0x7]
        %v1127 = vsel %vm443, %v1092, 0
        %v1130 = vsel %vm443, %v1093, 0
        %v1133 = vsel %vm443, %v1094, 0
        %v1136 = vsel %vm443, %v1095, 0
        %v1139 = vsel %vm443, %v1096, 0
        %v1142 = vsel %vm443, %v1097, 0
        %v1145 = vsel %vm443, %v1098, 0
        %v1148 = vsel %vm443, %v1099, 0
        %v1151 = vsel %vm443, %v1100, 0
        %v1154 = vsel %vm443, %v1101, 0
        %v1157 = vsel %vm443, %v1102, 0
        %v1160 = vsel %vm443, %v1103, 0
        %v1163 = vsel %vm443, %v1104, 0
        %v1166 = vsel %vm443, %v1105, 0
        %v1169 = vsel %vm443, %v1106, 0
        %v1172 = vsel %vm443, %v1107, 0
        %v1175 = vsel %vm443, %v1108, 0
        %v1178 = vsel %vm443, %v1109, 0
        %v1181 = vsel %vm443, %v1110, 0
        %v1184 = vsel %vm443, %v1111, 0
        %v1187 = vsel %vm443, %v1112, 0
        %v1190 = vsel %vm443, %v1113, 0
        %v1193 = vsel %vm443, %v1114, 0
        %v1196 = vsel %vm443, %v1115, 0
        %v1199 = vsel %vm443, %v1116, 0
        %v1202 = vsel %vm443, %v1117, 0
        %v1205 = vsel %vm443, %v1118, 0
        %v1208 = vsel %vm443, %v1119, 0
        %v1211 = vsel %vm443, %v1120, 0
        %v1214 = vsel %vm443, %v1121, 0
        %v1217 = vsel %vm443, %v1122, 0
        %v1220 = vsel %vm443, %v1123, 0
        %vm1222 = vcmask 1042432
        %v1224 = vsel %vm1222, %v1125, 0
        %1226 = vmatprep.subr.mxu0 0.0
        %1227 = vmatpush1.msra.mxu0 0.0
        %1228 = vmatprep.subr.mxu0 0.0
        %1229 = vmatpush1.msra.mxu0 0.0
        %1230 = vmatprep.subr.mxu0 0.0
        %1231 = vmatpush1.msra.mxu0 0.0
        %1232 = vmatprep.subr.mxu0 0.0
        %1233 = vmatpush1.msra.mxu0 0.0
        %1234 = vmatprep.subr.mxu0 0.0
        %1235 = vmatpush1.msra.mxu0 0.0
        %1236 = vmatprep.subr.mxu0 0.0
        %1237 = vmatpush1.msra.mxu0 0.0
        %1238 = vmatprep.subr.mxu0 0.0
        %1239 = vmatpush1.msra.mxu0 0.0
        %1240 = vmatprep.subr.mxu0 0.0
        %1241 = vmatpush1.msra.mxu0 0.0
        %1242 = vmatprep.subr.mxu0 0.0
        %1243 = vmatpush1.msra.mxu0 0.0
        %1244 = vmatprep.subr.mxu0 0.0
        %1245 = vmatpush1.msra.mxu0 0.0
        %1246 = vmatprep.subr.mxu0 0.0
        %1247 = vmatpush1.msra.mxu0 0.0
        %1248 = vmatprep.subr.mxu0 0.0
        %1249 = vmatpush1.msra.mxu0 0.0
        %1250 = vmatprep.subr.mxu0 0.0
        %1251 = vmatpush1.msra.mxu0 0.0
        %1252 = vmatprep.subr.mxu0 0.0
        %1253 = vmatpush1.msra.mxu0 0.0
        %1254 = vmatprep.subr.mxu0 0.0
        %1255 = vmatpush1.msra.mxu0 0.0
        %1256 = vmatprep.subr.mxu0 0.0
        %1257 = vmatpush1.msra.mxu0 %v1224
        %1258 = vmatprep.subr.mxu0 0.0
        %1259 = vmatpush2.msra.mxu0 0.0
        %1260 = vmatprep.subr.mxu0 0.0
        %1261 = vmatpush2.msra.mxu0 0.0
        %1262 = vmatprep.subr.mxu0 0.0
        %1263 = vmatpush2.msra.mxu0 0.0
        %1264 = vmatprep.subr.mxu0 0.0
        %1265 = vmatpush2.msra.mxu0 0.0
        %1266 = vmatprep.subr.mxu0 0.0
        %1267 = vmatpush2.msra.mxu0 0.0
        %1268 = vmatprep.subr.mxu0 0.0
        %1269 = vmatpush2.msra.mxu0 0.0
        %1270 = vmatprep.subr.mxu0 0.0
        %1271 = vmatpush2.msra.mxu0 0.0
        %1272 = vmatprep.subr.mxu0 0.0
        %1273 = vmatpush2.msra.mxu0 0.0
        %1274 = vmatprep.subr.mxu0 0.0
        %1275 = vmatpush2.msra.mxu0 0.0
        %1276 = vmatprep.subr.mxu0 0.0
        %1277 = vmatpush2.msra.mxu0 0.0
        %1278 = vmatprep.subr.mxu0 0.0
        %1279 = vmatpush2.msra.mxu0 0.0
        %1280 = vmatprep.subr.mxu0 0.0
        %1281 = vmatpush2.msra.mxu0 0.0
        %1282 = vmatprep.subr.mxu0 0.0
        %1283 = vmatpush2.msra.mxu0 0.0
        %1284 = vmatprep.subr.mxu0 0.0
        %1285 = vmatpush2.msra.mxu0 0.0
        %1286 = vmatprep.subr.mxu0 0.0
        %1287 = vmatpush2.msra.mxu0 0.0
        %1288 = vmatprep.subr.mxu0 0.0
        %1289 = vmatpush2.msra.mxu0 0.0
        %1290 = vmatprep.mubr.f32.mxu0 0.0
        %1291 = vmatmul.mubr.f32.gmra.mxu0 %v1127
        %v1292 = vpop.f32.mrf.mxu0
        %v1293 = vadd.f32 0.0, %v1292
        %v1294 = vpop.f32.mrf.mxu0
        %1295 = vmatprep.mubr.f32.mxu0 0.0
        %1296 = vmatmul.mubr.f32.gmra.mxu0 %v1130
        %v1297 = vpop.f32.mrf.mxu0
        %v1298 = vadd.f32 0.0, %v1297
        %v1299 = vpop.f32.mrf.mxu0
        %1300 = vmatprep.mubr.f32.mxu0 0.0
        %1301 = vmatmul.mubr.f32.gmra.mxu0 %v1133
        %v1302 = vpop.f32.mrf.mxu0
        %v1303 = vadd.f32 0.0, %v1302
        %v1304 = vpop.f32.mrf.mxu0
        %1305 = vmatprep.mubr.f32.mxu0 0.0
        %1306 = vmatmul.mubr.f32.gmra.mxu0 %v1136
        %v1307 = vpop.f32.mrf.mxu0
        %v1308 = vadd.f32 0.0, %v1307
        %v1309 = vpop.f32.mrf.mxu0
        %1310 = vmatprep.mubr.f32.mxu0 0.0
        %1311 = vmatmul.mubr.f32.gmra.mxu0 %v1139
        %v1312 = vpop.f32.mrf.mxu0
        %v1313 = vadd.f32 0.0, %v1312
        %v1314 = vpop.f32.mrf.mxu0
        %1315 = vmatprep.mubr.f32.mxu0 0.0
        %1316 = vmatmul.mubr.f32.gmra.mxu0 %v1142
        %v1317 = vpop.f32.mrf.mxu0
        %v1318 = vadd.f32 0.0, %v1317
        %v1319 = vpop.f32.mrf.mxu0
        %1320 = vmatprep.mubr.f32.mxu0 0.0
        %1321 = vmatmul.mubr.f32.gmra.mxu0 %v1145
        %v1322 = vpop.f32.mrf.mxu0
        %v1323 = vadd.f32 0.0, %v1322
        %v1324 = vpop.f32.mrf.mxu0
        %1325 = vmatprep.mubr.f32.mxu0 0.0
        %1326 = vmatmul.mubr.f32.gmra.mxu0 %v1148
        %v1327 = vpop.f32.mrf.mxu0
        %v1328 = vadd.f32 0.0, %v1327
        %v1329 = vpop.f32.mrf.mxu0
        %1330 = vmatprep.mubr.f32.mxu0 0.0
        %1331 = vmatmul.mubr.f32.gmra.mxu0 %v1151
        %v1332 = vpop.f32.mrf.mxu0
        %v1333 = vadd.f32 0.0, %v1332
        %v1334 = vpop.f32.mrf.mxu0
        %1335 = vmatprep.mubr.f32.mxu0 0.0
        %1336 = vmatmul.mubr.f32.gmra.mxu0 %v1154
        %v1337 = vpop.f32.mrf.mxu0
        %v1338 = vadd.f32 0.0, %v1337
        %v1339 = vpop.f32.mrf.mxu0
        %1340 = vmatprep.mubr.f32.mxu0 0.0
        %1341 = vmatmul.mubr.f32.gmra.mxu0 %v1157
        %v1342 = vpop.f32.mrf.mxu0
        %v1343 = vadd.f32 0.0, %v1342
        %v1344 = vpop.f32.mrf.mxu0
        %1345 = vmatprep.mubr.f32.mxu0 0.0
        %1346 = vmatmul.mubr.f32.gmra.mxu0 %v1160
        %v1347 = vpop.f32.mrf.mxu0
        %v1348 = vadd.f32 0.0, %v1347
        %v1349 = vpop.f32.mrf.mxu0
        %1350 = vmatprep.mubr.f32.mxu0 0.0
        %1351 = vmatmul.mubr.f32.gmra.mxu0 %v1163
        %v1352 = vpop.f32.mrf.mxu0
        %v1353 = vadd.f32 0.0, %v1352
        %v1354 = vpop.f32.mrf.mxu0
        %1355 = vmatprep.mubr.f32.mxu0 0.0
        %1356 = vmatmul.mubr.f32.gmra.mxu0 %v1166
        %v1357 = vpop.f32.mrf.mxu0
        %v1358 = vadd.f32 0.0, %v1357
        %v1359 = vpop.f32.mrf.mxu0
        %1360 = vmatprep.mubr.f32.mxu0 0.0
        %1361 = vmatmul.mubr.f32.gmra.mxu0 %v1169
        %v1362 = vpop.f32.mrf.mxu0
        %v1363 = vadd.f32 0.0, %v1362
        %v1364 = vpop.f32.mrf.mxu0
        %1365 = vmatprep.mubr.f32.mxu0 0.0
        %1366 = vmatmul.mubr.f32.gmra.mxu0 %v1172
        %v1367 = vpop.f32.mrf.mxu0
        %v1368 = vadd.f32 0.0, %v1367
        %v1369 = vpop.f32.mrf.mxu0
        %1370 = vmatprep.mubr.f32.mxu0 0.0
        %1371 = vmatmul.mubr.f32.gmra.mxu0 %v1175
        %v1372 = vpop.f32.mrf.mxu0
        %v1373 = vadd.f32 0.0, %v1372
        %v1374 = vpop.f32.mrf.mxu0
        %1375 = vmatprep.mubr.f32.mxu0 0.0
        %1376 = vmatmul.mubr.f32.gmra.mxu0 %v1178
        %v1377 = vpop.f32.mrf.mxu0
        %v1378 = vadd.f32 0.0, %v1377
        %v1379 = vpop.f32.mrf.mxu0
        %1380 = vmatprep.mubr.f32.mxu0 0.0
        %1381 = vmatmul.mubr.f32.gmra.mxu0 %v1181
        %v1382 = vpop.f32.mrf.mxu0
        %v1383 = vadd.f32 0.0, %v1382
        %v1384 = vpop.f32.mrf.mxu0
        %1385 = vmatprep.mubr.f32.mxu0 0.0
        %1386 = vmatmul.mubr.f32.gmra.mxu0 %v1184
        %v1387 = vpop.f32.mrf.mxu0
        %v1388 = vadd.f32 0.0, %v1387
        %v1389 = vpop.f32.mrf.mxu0
        %1390 = vmatprep.mubr.f32.mxu0 0.0
        %1391 = vmatmul.mubr.f32.gmra.mxu0 %v1187
        %v1392 = vpop.f32.mrf.mxu0
        %v1393 = vadd.f32 0.0, %v1392
        %v1394 = vpop.f32.mrf.mxu0
        %1395 = vmatprep.mubr.f32.mxu0 0.0
        %1396 = vmatmul.mubr.f32.gmra.mxu0 %v1190
        %v1397 = vpop.f32.mrf.mxu0
        %v1398 = vadd.f32 0.0, %v1397
        %v1399 = vpop.f32.mrf.mxu0
        %1400 = vmatprep.mubr.f32.mxu0 0.0
        %1401 = vmatmul.mubr.f32.gmra.mxu0 %v1193
        %v1402 = vpop.f32.mrf.mxu0
        %v1403 = vadd.f32 0.0, %v1402
        %v1404 = vpop.f32.mrf.mxu0
        %1405 = vmatprep.mubr.f32.mxu0 0.0
        %1406 = vmatmul.mubr.f32.gmra.mxu0 %v1196
        %v1407 = vpop.f32.mrf.mxu0
        %v1408 = vadd.f32 0.0, %v1407
        %v1409 = vpop.f32.mrf.mxu0
        %1410 = vmatprep.mubr.f32.mxu0 0.0
        %1411 = vmatmul.mubr.f32.gmra.mxu0 %v1199
        %v1412 = vpop.f32.mrf.mxu0
        %v1413 = vadd.f32 0.0, %v1412
        %v1414 = vpop.f32.mrf.mxu0
        %1415 = vmatprep.mubr.f32.mxu0 0.0
        %1416 = vmatmul.mubr.f32.gmra.mxu0 %v1202
        %v1417 = vpop.f32.mrf.mxu0
        %v1418 = vadd.f32 0.0, %v1417
        %v1419 = vpop.f32.mrf.mxu0
        %1420 = vmatprep.mubr.f32.mxu0 0.0
        %1421 = vmatmul.mubr.f32.gmra.mxu0 %v1205
        %v1422 = vpop.f32.mrf.mxu0
        %v1423 = vadd.f32 0.0, %v1422
        %v1424 = vpop.f32.mrf.mxu0
        %1425 = vmatprep.mubr.f32.mxu0 0.0
        %1426 = vmatmul.mubr.f32.gmra.mxu0 %v1208
        %v1427 = vpop.f32.mrf.mxu0
        %v1428 = vadd.f32 0.0, %v1427
        %v1429 = vpop.f32.mrf.mxu0
        %1430 = vmatprep.mubr.f32.mxu0 0.0
        %1431 = vmatmul.mubr.f32.gmra.mxu0 %v1211
        %v1432 = vpop.f32.mrf.mxu0
        %v1433 = vadd.f32 0.0, %v1432
        %v1434 = vpop.f32.mrf.mxu0
        %1435 = vmatprep.mubr.f32.mxu0 0.0
        %1436 = vmatmul.mubr.f32.gmra.mxu0 %v1214
        %v1437 = vpop.f32.mrf.mxu0
        %v1438 = vadd.f32 0.0, %v1437
        %v1439 = vpop.f32.mrf.mxu0
        %1440 = vmatprep.mubr.f32.mxu0 0.0
        %1441 = vmatmul.mubr.f32.gmra.mxu0 %v1217
        %v1442 = vpop.f32.mrf.mxu0
        %v1443 = vadd.f32 0.0, %v1442
        %v1444 = vpop.f32.mrf.mxu0
        %1445 = vmatprep.mubr.f32.mxu0 0.0
        %1446 = vmatmul.mubr.f32.gmra.mxu0 %v1220
        %v1447 = vpop.f32.mrf.mxu0
        %v1448 = vadd.f32 0.0, %v1447
        %v1449 = vpop.f32.mrf.mxu0
        %1450 = vdwg.mxu0
        %v1452 = vsel %vm443, %v1059, 0
        %v1455 = vsel %vm443, %v1060, 0
        %v1458 = vsel %vm443, %v1061, 0
        %v1461 = vsel %vm443, %v1062, 0
        %v1464 = vsel %vm443, %v1063, 0
        %v1467 = vsel %vm443, %v1064, 0
        %v1470 = vsel %vm443, %v1065, 0
        %v1473 = vsel %vm443, %v1066, 0
        %v1476 = vsel %vm443, %v1067, 0
        %v1479 = vsel %vm443, %v1068, 0
        %v1482 = vsel %vm443, %v1069, 0
        %v1485 = vsel %vm443, %v1070, 0
        %v1488 = vsel %vm443, %v1071, 0
        %v1491 = vsel %vm443, %v1072, 0
        %v1494 = vsel %vm443, %v1073, 0
        %v1497 = vsel %vm443, %v1074, 0
        %v1500 = vsel %vm443, %v1075, 0
        %v1503 = vsel %vm443, %v1076, 0
        %v1506 = vsel %vm443, %v1077, 0
        %v1509 = vsel %vm443, %v1078, 0
        %v1512 = vsel %vm443, %v1079, 0
        %v1515 = vsel %vm443, %v1080, 0
        %v1518 = vsel %vm443, %v1081, 0
        %v1521 = vsel %vm443, %v1082, 0
        %v1524 = vsel %vm443, %v1083, 0
        %v1527 = vsel %vm443, %v1084, 0
        %v1530 = vsel %vm443, %v1085, 0
        %v1533 = vsel %vm443, %v1086, 0
        %v1536 = vsel %vm443, %v1087, 0
        %v1539 = vsel %vm443, %v1088, 0
        %v1542 = vsel %vm443, %v1089, 0
        %v1545 = vsel %vm443, %v1090, 0
        %v1548 = vsel %vm1222, %v1091, 0
        %1550 = vmatprep.subr.mxu0 0.0
        %1551 = vmatpush1.msra.mxu0 0.0
        %1552 = vmatprep.subr.mxu0 0.0
        %1553 = vmatpush1.msra.mxu0 0.0
        %1554 = vmatprep.subr.mxu0 0.0
        %1555 = vmatpush1.msra.mxu0 0.0
        %1556 = vmatprep.subr.mxu0 0.0
        %1557 = vmatpush1.msra.mxu0 0.0
        %1558 = vmatprep.subr.mxu0 0.0
        %1559 = vmatpush1.msra.mxu0 0.0
        %1560 = vmatprep.subr.mxu0 0.0
        %1561 = vmatpush1.msra.mxu0 0.0
        %1562 = vmatprep.subr.mxu0 0.0
        %1563 = vmatpush1.msra.mxu0 0.0
        %1564 = vmatprep.subr.mxu0 0.0
        %1565 = vmatpush1.msra.mxu0 0.0
        %1566 = vmatprep.subr.mxu0 0.0
        %1567 = vmatpush1.msra.mxu0 0.0
        %1568 = vmatprep.subr.mxu0 0.0
        %1569 = vmatpush1.msra.mxu0 0.0
        %1570 = vmatprep.subr.mxu0 0.0
        %1571 = vmatpush1.msra.mxu0 0.0
        %1572 = vmatprep.subr.mxu0 0.0
        %1573 = vmatpush1.msra.mxu0 0.0
        %1574 = vmatprep.subr.mxu0 0.0
        %1575 = vmatpush1.msra.mxu0 0.0
        %1576 = vmatprep.subr.mxu0 0.0
        %1577 = vmatpush1.msra.mxu0 0.0
        %1578 = vmatprep.subr.mxu0 0.0
        %1579 = vmatpush1.msra.mxu0 0.0
        %1580 = vmatprep.subr.mxu0 0.0
        %1581 = vmatpush1.msra.mxu0 %v1548
        %1582 = vmatprep.subr.mxu0 0.0
        %1583 = vmatpush2.msra.mxu0 0.0
        %1584 = vmatprep.subr.mxu0 0.0
        %1585 = vmatpush2.msra.mxu0 0.0
        %1586 = vmatprep.subr.mxu0 0.0
        %1587 = vmatpush2.msra.mxu0 0.0
        %1588 = vmatprep.subr.mxu0 0.0
        %1589 = vmatpush2.msra.mxu0 0.0
        %1590 = vmatprep.subr.mxu0 0.0
        %1591 = vmatpush2.msra.mxu0 0.0
        %1592 = vmatprep.subr.mxu0 0.0
        %1593 = vmatpush2.msra.mxu0 0.0
        %1594 = vmatprep.subr.mxu0 0.0
        %1595 = vmatpush2.msra.mxu0 0.0
        %1596 = vmatprep.subr.mxu0 0.0
        %1597 = vmatpush2.msra.mxu0 0.0
        %1598 = vmatprep.subr.mxu0 0.0
        %1599 = vmatpush2.msra.mxu0 0.0
        %1600 = vmatprep.subr.mxu0 0.0
        %1601 = vmatpush2.msra.mxu0 0.0
        %1602 = vmatprep.subr.mxu0 0.0
        %1603 = vmatpush2.msra.mxu0 0.0
        %1604 = vmatprep.subr.mxu0 0.0
        %1605 = vmatpush2.msra.mxu0 0.0
        %1606 = vmatprep.subr.mxu0 0.0
        %1607 = vmatpush2.msra.mxu0 0.0
        %1608 = vmatprep.subr.mxu0 0.0
        %1609 = vmatpush2.msra.mxu0 0.0
        %1610 = vmatprep.subr.mxu0 0.0
        %1611 = vmatpush2.msra.mxu0 0.0
        %1612 = vmatprep.subr.mxu0 0.0
        %1613 = vmatpush2.msra.mxu0 0.0
        %1614 = vmatprep.mubr.f32.mxu0 0.0
        %1615 = vmatmul.mubr.f32.gmra.mxu0 %v1452
        %v1616 = vpop.f32.mrf.mxu0
        %v1617 = vadd.f32 %v1293, %v1616
        %v1618 = vpop.f32.mrf.mxu0
        %1619 = vmatprep.mubr.f32.mxu0 0.0
        %1620 = vmatmul.mubr.f32.gmra.mxu0 %v1455
        %v1621 = vpop.f32.mrf.mxu0
        %v1622 = vadd.f32 %v1298, %v1621
        %v1623 = vpop.f32.mrf.mxu0
        %1624 = vmatprep.mubr.f32.mxu0 0.0
        %1625 = vmatmul.mubr.f32.gmra.mxu0 %v1458
        %v1626 = vpop.f32.mrf.mxu0
        %v1627 = vadd.f32 %v1303, %v1626
        %v1628 = vpop.f32.mrf.mxu0
        %1629 = vmatprep.mubr.f32.mxu0 0.0
        %1630 = vmatmul.mubr.f32.gmra.mxu0 %v1461
        %v1631 = vpop.f32.mrf.mxu0
        %v1632 = vadd.f32 %v1308, %v1631
        %v1633 = vpop.f32.mrf.mxu0
        %1634 = vmatprep.mubr.f32.mxu0 0.0
        %1635 = vmatmul.mubr.f32.gmra.mxu0 %v1464
        %v1636 = vpop.f32.mrf.mxu0
        %v1637 = vadd.f32 %v1313, %v1636
        %v1638 = vpop.f32.mrf.mxu0
        %1639 = vmatprep.mubr.f32.mxu0 0.0
        %1640 = vmatmul.mubr.f32.gmra.mxu0 %v1467
        %v1641 = vpop.f32.mrf.mxu0
        %v1642 = vadd.f32 %v1318, %v1641
        %v1643 = vpop.f32.mrf.mxu0
        %1644 = vmatprep.mubr.f32.mxu0 0.0
        %1645 = vmatmul.mubr.f32.gmra.mxu0 %v1470
        %v1646 = vpop.f32.mrf.mxu0
        %v1647 = vadd.f32 %v1323, %v1646
        %v1648 = vpop.f32.mrf.mxu0
        %1649 = vmatprep.mubr.f32.mxu0 0.0
        %1650 = vmatmul.mubr.f32.gmra.mxu0 %v1473
        %v1651 = vpop.f32.mrf.mxu0
        %v1652 = vadd.f32 %v1328, %v1651
        %v1653 = vpop.f32.mrf.mxu0
        %1654 = vmatprep.mubr.f32.mxu0 0.0
        %1655 = vmatmul.mubr.f32.gmra.mxu0 %v1476
        %v1656 = vpop.f32.mrf.mxu0
        %v1657 = vadd.f32 %v1333, %v1656
        %v1658 = vpop.f32.mrf.mxu0
        %1659 = vmatprep.mubr.f32.mxu0 0.0
        %1660 = vmatmul.mubr.f32.gmra.mxu0 %v1479
        %v1661 = vpop.f32.mrf.mxu0
        %v1662 = vadd.f32 %v1338, %v1661
        %v1663 = vpop.f32.mrf.mxu0
        %1664 = vmatprep.mubr.f32.mxu0 0.0
        %1665 = vmatmul.mubr.f32.gmra.mxu0 %v1482
        %v1666 = vpop.f32.mrf.mxu0
        %v1667 = vadd.f32 %v1343, %v1666
        %v1668 = vpop.f32.mrf.mxu0
        %1669 = vmatprep.mubr.f32.mxu0 0.0
        %1670 = vmatmul.mubr.f32.gmra.mxu0 %v1485
        %v1671 = vpop.f32.mrf.mxu0
        %v1672 = vadd.f32 %v1348, %v1671
        %v1673 = vpop.f32.mrf.mxu0
        %1674 = vmatprep.mubr.f32.mxu0 0.0
        %1675 = vmatmul.mubr.f32.gmra.mxu0 %v1488
        %v1676 = vpop.f32.mrf.mxu0
        %v1677 = vadd.f32 %v1353, %v1676
        %v1678 = vpop.f32.mrf.mxu0
        %1679 = vmatprep.mubr.f32.mxu0 0.0
        %1680 = vmatmul.mubr.f32.gmra.mxu0 %v1491
        %v1681 = vpop.f32.mrf.mxu0
        %v1682 = vadd.f32 %v1358, %v1681
        %v1683 = vpop.f32.mrf.mxu0
        %1684 = vmatprep.mubr.f32.mxu0 0.0
        %1685 = vmatmul.mubr.f32.gmra.mxu0 %v1494
        %v1686 = vpop.f32.mrf.mxu0
        %v1687 = vadd.f32 %v1363, %v1686
        %v1688 = vpop.f32.mrf.mxu0
        %1689 = vmatprep.mubr.f32.mxu0 0.0
        %1690 = vmatmul.mubr.f32.gmra.mxu0 %v1497
        %v1691 = vpop.f32.mrf.mxu0
        %v1692 = vadd.f32 %v1368, %v1691
        %v1693 = vpop.f32.mrf.mxu0
        %1694 = vmatprep.mubr.f32.mxu0 0.0
        %1695 = vmatmul.mubr.f32.gmra.mxu0 %v1500
        %v1696 = vpop.f32.mrf.mxu0
        %v1697 = vadd.f32 %v1373, %v1696
        %v1698 = vpop.f32.mrf.mxu0
        %1699 = vmatprep.mubr.f32.mxu0 0.0
        %1700 = vmatmul.mubr.f32.gmra.mxu0 %v1503
        %v1701 = vpop.f32.mrf.mxu0
        %v1702 = vadd.f32 %v1378, %v1701
        %v1703 = vpop.f32.mrf.mxu0
        %1704 = vmatprep.mubr.f32.mxu0 0.0
        %1705 = vmatmul.mubr.f32.gmra.mxu0 %v1506
        %v1706 = vpop.f32.mrf.mxu0
        %v1707 = vadd.f32 %v1383, %v1706
        %v1708 = vpop.f32.mrf.mxu0
        %1709 = vmatprep.mubr.f32.mxu0 0.0
        %1710 = vmatmul.mubr.f32.gmra.mxu0 %v1509
        %v1711 = vpop.f32.mrf.mxu0
        %v1712 = vadd.f32 %v1388, %v1711
        %v1713 = vpop.f32.mrf.mxu0
        %1714 = vmatprep.mubr.f32.mxu0 0.0
        %1715 = vmatmul.mubr.f32.gmra.mxu0 %v1512
        %v1716 = vpop.f32.mrf.mxu0
        %v1717 = vadd.f32 %v1393, %v1716
        %v1718 = vpop.f32.mrf.mxu0
        %1719 = vmatprep.mubr.f32.mxu0 0.0
        %1720 = vmatmul.mubr.f32.gmra.mxu0 %v1515
        %v1721 = vpop.f32.mrf.mxu0
        %v1722 = vadd.f32 %v1398, %v1721
        %v1723 = vpop.f32.mrf.mxu0
        %1724 = vmatprep.mubr.f32.mxu0 0.0
        %1725 = vmatmul.mubr.f32.gmra.mxu0 %v1518
        %v1726 = vpop.f32.mrf.mxu0
        %v1727 = vadd.f32 %v1403, %v1726
        %v1728 = vpop.f32.mrf.mxu0
        %1729 = vmatprep.mubr.f32.mxu0 0.0
        %1730 = vmatmul.mubr.f32.gmra.mxu0 %v1521
        %v1731 = vpop.f32.mrf.mxu0
        %v1732 = vadd.f32 %v1408, %v1731
        %v1733 = vpop.f32.mrf.mxu0
        %1734 = vmatprep.mubr.f32.mxu0 0.0
        %1735 = vmatmul.mubr.f32.gmra.mxu0 %v1524
        %v1736 = vpop.f32.mrf.mxu0
        %v1737 = vadd.f32 %v1413, %v1736
        %v1738 = vpop.f32.mrf.mxu0
        %1739 = vmatprep.mubr.f32.mxu0 0.0
        %1740 = vmatmul.mubr.f32.gmra.mxu0 %v1527
        %v1741 = vpop.f32.mrf.mxu0
        %v1742 = vadd.f32 %v1418, %v1741
        %v1743 = vpop.f32.mrf.mxu0
        %1744 = vmatprep.mubr.f32.mxu0 0.0
        %1745 = vmatmul.mubr.f32.gmra.mxu0 %v1530
        %v1746 = vpop.f32.mrf.mxu0
        %v1747 = vadd.f32 %v1423, %v1746
        %v1748 = vpop.f32.mrf.mxu0
        %1749 = vmatprep.mubr.f32.mxu0 0.0
        %1750 = vmatmul.mubr.f32.gmra.mxu0 %v1533
        %v1751 = vpop.f32.mrf.mxu0
        %v1752 = vadd.f32 %v1428, %v1751
        %v1753 = vpop.f32.mrf.mxu0
        %1754 = vmatprep.mubr.f32.mxu0 0.0
        %1755 = vmatmul.mubr.f32.gmra.mxu0 %v1536
        %v1756 = vpop.f32.mrf.mxu0
        %v1757 = vadd.f32 %v1433, %v1756
        %v1758 = vpop.f32.mrf.mxu0
        %1759 = vmatprep.mubr.f32.mxu0 0.0
        %1760 = vmatmul.mubr.f32.gmra.mxu0 %v1539
        %v1761 = vpop.f32.mrf.mxu0
        %v1762 = vadd.f32 %v1438, %v1761
        %v1763 = vpop.f32.mrf.mxu0
        %1764 = vmatprep.mubr.f32.mxu0 0.0
        %1765 = vmatmul.mubr.f32.gmra.mxu0 %v1542
        %v1766 = vpop.f32.mrf.mxu0
        %v1767 = vadd.f32 %v1443, %v1766
        %v1768 = vpop.f32.mrf.mxu0
        %1769 = vmatprep.mubr.f32.mxu0 0.0
        %1770 = vmatmul.mubr.f32.gmra.mxu0 %v1545
        %v1771 = vpop.f32.mrf.mxu0
        %v1772 = vadd.f32 %v1448, %v1771
        %v1773 = vpop.f32.mrf.mxu0
        %1774 = vdwg.mxu0
        %v1775 = vld [vmem:[#allocation2 + $0x2] sm:$0xff]
        %v1776 = vld [vmem:[#allocation2 + $0xa] sm:$0xff]
        %v1777 = vld [vmem:[#allocation2 + $0x12] sm:$0xff]
        %v1778 = vld [vmem:[#allocation2 + $0x1a] sm:$0xff]
        %v1779 = vld [vmem:[#allocation2 + $0x22] sm:$0xff]
        %v1780 = vld [vmem:[#allocation2 + $0x2a] sm:$0xff]
        %v1781 = vld [vmem:[#allocation2 + $0x32] sm:$0xff]
        %v1782 = vld [vmem:[#allocation2 + $0x3a] sm:$0xff]
        %v1783 = vld [vmem:[#allocation2 + $0x42] sm:$0xff]
        %v1784 = vld [vmem:[#allocation2 + $0x4a] sm:$0xff]
        %v1785 = vld [vmem:[#allocation2 + $0x52] sm:$0xff]
        %v1786 = vld [vmem:[#allocation2 + $0x5a] sm:$0xff]
        %v1787 = vld [vmem:[#allocation2 + $0x62] sm:$0xff]
        %v1788 = vld [vmem:[#allocation2 + $0x6a] sm:$0xff]
        %v1789 = vld [vmem:[#allocation2 + $0x72] sm:$0xff]
        %v1790 = vld [vmem:[#allocation2 + $0x7a] sm:$0xff]
        %v1791 = vld [vmem:[#allocation2 + $0x82] sm:$0xff]
        %v1792 = vld [vmem:[#allocation2 + $0x8a] sm:$0xff]
        %v1793 = vld [vmem:[#allocation2 + $0x92] sm:$0xff]
        %v1794 = vld [vmem:[#allocation2 + $0x9a] sm:$0xff]
        %v1795 = vld [vmem:[#allocation2 + $0xa2] sm:$0xff]
        %v1796 = vld [vmem:[#allocation2 + $0xaa] sm:$0xff]
        %v1797 = vld [vmem:[#allocation2 + $0xb2] sm:$0xff]
        %v1798 = vld [vmem:[#allocation2 + $0xba] sm:$0xff]
        %v1799 = vld [vmem:[#allocation2 + $0xc2] sm:$0xff]
        %v1800 = vld [vmem:[#allocation2 + $0xca] sm:$0xff]
        %v1801 = vld [vmem:[#allocation2 + $0xd2] sm:$0xff]
        %v1802 = vld [vmem:[#allocation2 + $0xda] sm:$0xff]
        %v1803 = vld [vmem:[#allocation2 + $0xe2] sm:$0xff]
        %v1804 = vld [vmem:[#allocation2 + $0xea] sm:$0xff]
        %v1805 = vld [vmem:[#allocation2 + $0xf2] sm:$0xff]
        %v1806 = vld [vmem:[#allocation2 + $0xfa] sm:$0xff]
        %vm1807 = vcmp.le.s32.totalorder %v899, 14
        %vm1808 = vcmp.le.s32.totalorder %v900, 14
        %vm1809 = vcmp.le.s32.totalorder %v901, 14
        %vm1810 = vcmp.le.s32.totalorder %v902, 14
        %vm1811 = vcmp.le.s32.totalorder %v903, 14
        %vm1812 = vcmp.le.s32.totalorder %v904, 14
        %vm1813 = vcmp.le.s32.totalorder %v905, 14
        %vm1814 = vcmp.le.s32.totalorder %v906, 14
        %vm1815 = vcmp.le.s32.totalorder %v907, 14
        %vm1816 = vcmp.le.s32.totalorder %v908, 14
        %vm1817 = vcmp.le.s32.totalorder %v909, 14
        %vm1818 = vcmp.le.s32.totalorder %v910, 14
        %vm1819 = vcmp.le.s32.totalorder %v911, 14
        %vm1820 = vcmp.le.s32.totalorder %v912, 14
        %vm1821 = vcmp.le.s32.totalorder %v913, 14
        %vm1822 = vcmp.le.s32.totalorder %v914, 14
        %vm1823 = vcmp.le.s32.totalorder %v915, 14
        %vm1824 = vcmp.le.s32.totalorder %v916, 14
        %vm1825 = vcmp.le.s32.totalorder %v917, 14
        %vm1826 = vcmp.le.s32.totalorder %v918, 14
        %vm1827 = vcmp.le.s32.totalorder %v919, 14
        %vm1828 = vcmp.le.s32.totalorder %v920, 14
        %vm1829 = vcmp.le.s32.totalorder %v921, 14
        %vm1830 = vcmp.le.s32.totalorder %v922, 14
        %vm1831 = vcmp.le.s32.totalorder %v923, 14
        %vm1832 = vcmp.le.s32.totalorder %v924, 14
        %vm1833 = vcmp.le.s32.totalorder %v925, 14
        %vm1834 = vcmp.le.s32.totalorder %v926, 14
        %vm1835 = vcmp.le.s32.totalorder %v927, 14
        %vm1836 = vcmp.le.s32.totalorder %v928, 14
        %vm1837 = vcmp.le.s32.totalorder %v929, 14
        %vm1838 = vcmp.le.s32.totalorder %v930, 14
        %v1839 = vsel %vm1807, 1, 0
        %v1840 = vsel %vm1808, 1, 0
        %v1841 = vsel %vm1809, 1, 0
        %v1842 = vsel %vm1810, 1, 0
        %v1843 = vsel %vm1811, 1, 0
        %v1844 = vsel %vm1812, 1, 0
        %v1845 = vsel %vm1813, 1, 0
        %v1846 = vsel %vm1814, 1, 0
        %v1847 = vsel %vm1815, 1, 0
        %v1848 = vsel %vm1816, 1, 0
        %v1849 = vsel %vm1817, 1, 0
        %v1850 = vsel %vm1818, 1, 0
        %v1851 = vsel %vm1819, 1, 0
        %v1852 = vsel %vm1820, 1, 0
        %v1853 = vsel %vm1821, 1, 0
        %v1854 = vsel %vm1822, 1, 0
        %v1855 = vsel %vm1823, 1, 0
        %v1856 = vsel %vm1824, 1, 0
        %v1857 = vsel %vm1825, 1, 0
        %v1858 = vsel %vm1826, 1, 0
        %v1859 = vsel %vm1827, 1, 0
        %v1860 = vsel %vm1828, 1, 0
        %v1861 = vsel %vm1829, 1, 0
        %v1862 = vsel %vm1830, 1, 0
        %v1863 = vsel %vm1831, 1, 0
        %v1864 = vsel %vm1832, 1, 0
        %v1865 = vsel %vm1833, 1, 0
        %v1866 = vsel %vm1834, 1, 0
        %v1867 = vsel %vm1835, 1, 0
        %v1868 = vsel %vm1836, 1, 0
        %v1869 = vsel %vm1837, 1, 0
        %v1870 = vsel %vm1838, 1, 0
        %vm1871 = vcmp.eq.s32.totalorder %v1839, 1
        %vm1872 = vcmp.eq.s32.totalorder %v1840, 1
        %vm1873 = vcmp.eq.s32.totalorder %v1841, 1
        %vm1874 = vcmp.eq.s32.totalorder %v1842, 1
        %vm1875 = vcmp.eq.s32.totalorder %v1843, 1
        %vm1876 = vcmp.eq.s32.totalorder %v1844, 1
        %vm1877 = vcmp.eq.s32.totalorder %v1845, 1
        %vm1878 = vcmp.eq.s32.totalorder %v1846, 1
        %vm1879 = vcmp.eq.s32.totalorder %v1847, 1
        %vm1880 = vcmp.eq.s32.totalorder %v1848, 1
        %vm1881 = vcmp.eq.s32.totalorder %v1849, 1
        %vm1882 = vcmp.eq.s32.totalorder %v1850, 1
        %vm1883 = vcmp.eq.s32.totalorder %v1851, 1
        %vm1884 = vcmp.eq.s32.totalorder %v1852, 1
        %vm1885 = vcmp.eq.s32.totalorder %v1853, 1
        %vm1886 = vcmp.eq.s32.totalorder %v1854, 1
        %vm1887 = vcmp.eq.s32.totalorder %v1855, 1
        %vm1888 = vcmp.eq.s32.totalorder %v1856, 1
        %vm1889 = vcmp.eq.s32.totalorder %v1857, 1
        %vm1890 = vcmp.eq.s32.totalorder %v1858, 1
        %vm1891 = vcmp.eq.s32.totalorder %v1859, 1
        %vm1892 = vcmp.eq.s32.totalorder %v1860, 1
        %vm1893 = vcmp.eq.s32.totalorder %v1861, 1
        %vm1894 = vcmp.eq.s32.totalorder %v1862, 1
        %vm1895 = vcmp.eq.s32.totalorder %v1863, 1
        %vm1896 = vcmp.eq.s32.totalorder %v1864, 1
        %vm1897 = vcmp.eq.s32.totalorder %v1865, 1
        %vm1898 = vcmp.eq.s32.totalorder %v1866, 1
        %vm1899 = vcmp.eq.s32.totalorder %v1867, 1
        %vm1900 = vcmp.eq.s32.totalorder %v1868, 1
        %vm1901 = vcmp.eq.s32.totalorder %v1869, 1
        %vm1902 = vcmp.eq.s32.totalorder %v1870, 1
        %v1903 = vsel %vm1871, %v1775, 0.0
        %v1904 = vsel %vm1872, %v1776, 0.0
        %v1905 = vsel %vm1873, %v1777, 0.0
        %v1906 = vsel %vm1874, %v1778, 0.0
        %v1907 = vsel %vm1875, %v1779, 0.0
        %v1908 = vsel %vm1876, %v1780, 0.0
        %v1909 = vsel %vm1877, %v1781, 0.0
        %v1910 = vsel %vm1878, %v1782, 0.0
        %v1911 = vsel %vm1879, %v1783, 0.0
        %v1912 = vsel %vm1880, %v1784, 0.0
        %v1913 = vsel %vm1881, %v1785, 0.0
        %v1914 = vsel %vm1882, %v1786, 0.0
        %v1915 = vsel %vm1883, %v1787, 0.0
        %v1916 = vsel %vm1884, %v1788, 0.0
        %v1917 = vsel %vm1885, %v1789, 0.0
        %v1918 = vsel %vm1886, %v1790, 0.0
        %v1919 = vsel %vm1887, %v1791, 0.0
        %v1920 = vsel %vm1888, %v1792, 0.0
        %v1921 = vsel %vm1889, %v1793, 0.0
        %v1922 = vsel %vm1890, %v1794, 0.0
        %v1923 = vsel %vm1891, %v1795, 0.0
        %v1924 = vsel %vm1892, %v1796, 0.0
        %v1925 = vsel %vm1893, %v1797, 0.0
        %v1926 = vsel %vm1894, %v1798, 0.0
        %v1927 = vsel %vm1895, %v1799, 0.0
        %v1928 = vsel %vm1896, %v1800, 0.0
        %v1929 = vsel %vm1897, %v1801, 0.0
        %v1930 = vsel %vm1898, %v1802, 0.0
        %v1931 = vsel %vm1899, %v1803, 0.0
        %v1932 = vsel %vm1900, %v1804, 0.0
        %v1933 = vsel %vm1901, %v1805, 0.0
        %v1934 = vsel %vm1902, %v1806, 0.0
        %s1935 = scalar_lea.vmem %s1, 8
        %v1936 = vld [vmem:[%s1935] sm:$0x7]
        %v1938 = vsel %vm443, %v1903, 0
        %v1941 = vsel %vm443, %v1904, 0
        %v1944 = vsel %vm443, %v1905, 0
        %v1947 = vsel %vm443, %v1906, 0
        %v1950 = vsel %vm443, %v1907, 0
        %v1953 = vsel %vm443, %v1908, 0
        %v1956 = vsel %vm443, %v1909, 0
        %v1959 = vsel %vm443, %v1910, 0
        %v1962 = vsel %vm443, %v1911, 0
        %v1965 = vsel %vm443, %v1912, 0
        %v1968 = vsel %vm443, %v1913, 0
        %v1971 = vsel %vm443, %v1914, 0
        %v1974 = vsel %vm443, %v1915, 0
        %v1977 = vsel %vm443, %v1916, 0
        %v1980 = vsel %vm443, %v1917, 0
        %v1983 = vsel %vm443, %v1918, 0
        %v1986 = vsel %vm443, %v1919, 0
        %v1989 = vsel %vm443, %v1920, 0
        %v1992 = vsel %vm443, %v1921, 0
        %v1995 = vsel %vm443, %v1922, 0
        %v1998 = vsel %vm443, %v1923, 0
        %v2001 = vsel %vm443, %v1924, 0
        %v2004 = vsel %vm443, %v1925, 0
        %v2007 = vsel %vm443, %v1926, 0
        %v2010 = vsel %vm443, %v1927, 0
        %v2013 = vsel %vm443, %v1928, 0
        %v2016 = vsel %vm443, %v1929, 0
        %v2019 = vsel %vm443, %v1930, 0
        %v2022 = vsel %vm443, %v1931, 0
        %v2025 = vsel %vm443, %v1932, 0
        %v2028 = vsel %vm443, %v1933, 0
        %v2031 = vsel %vm443, %v1934, 0
        %v2034 = vsel %vm1222, %v1936, 0
        %2036 = vmatprep.subr.mxu0 0.0
        %2037 = vmatpush1.msra.mxu0 0.0
        %2038 = vmatprep.subr.mxu0 0.0
        %2039 = vmatpush1.msra.mxu0 0.0
        %2040 = vmatprep.subr.mxu0 0.0
        %2041 = vmatpush1.msra.mxu0 0.0
        %2042 = vmatprep.subr.mxu0 0.0
        %2043 = vmatpush1.msra.mxu0 0.0
        %2044 = vmatprep.subr.mxu0 0.0
        %2045 = vmatpush1.msra.mxu0 0.0
        %2046 = vmatprep.subr.mxu0 0.0
        %2047 = vmatpush1.msra.mxu0 0.0
        %2048 = vmatprep.subr.mxu0 0.0
        %2049 = vmatpush1.msra.mxu0 0.0
        %2050 = vmatprep.subr.mxu0 0.0
        %2051 = vmatpush1.msra.mxu0 0.0
        %2052 = vmatprep.subr.mxu0 0.0
        %2053 = vmatpush1.msra.mxu0 0.0
        %2054 = vmatprep.subr.mxu0 0.0
        %2055 = vmatpush1.msra.mxu0 0.0
        %2056 = vmatprep.subr.mxu0 0.0
        %2057 = vmatpush1.msra.mxu0 0.0
        %2058 = vmatprep.subr.mxu0 0.0
        %2059 = vmatpush1.msra.mxu0 0.0
        %2060 = vmatprep.subr.mxu0 0.0
        %2061 = vmatpush1.msra.mxu0 0.0
        %2062 = vmatprep.subr.mxu0 0.0
        %2063 = vmatpush1.msra.mxu0 0.0
        %2064 = vmatprep.subr.mxu0 0.0
        %2065 = vmatpush1.msra.mxu0 0.0
        %2066 = vmatprep.subr.mxu0 0.0
        %2067 = vmatpush1.msra.mxu0 %v2034
        %2068 = vmatprep.subr.mxu0 0.0
        %2069 = vmatpush2.msra.mxu0 0.0
        %2070 = vmatprep.subr.mxu0 0.0
        %2071 = vmatpush2.msra.mxu0 0.0
        %2072 = vmatprep.subr.mxu0 0.0
        %2073 = vmatpush2.msra.mxu0 0.0
        %2074 = vmatprep.subr.mxu0 0.0
        %2075 = vmatpush2.msra.mxu0 0.0
        %2076 = vmatprep.subr.mxu0 0.0
        %2077 = vmatpush2.msra.mxu0 0.0
        %2078 = vmatprep.subr.mxu0 0.0
        %2079 = vmatpush2.msra.mxu0 0.0
        %2080 = vmatprep.subr.mxu0 0.0
        %2081 = vmatpush2.msra.mxu0 0.0
        %2082 = vmatprep.subr.mxu0 0.0
        %2083 = vmatpush2.msra.mxu0 0.0
        %2084 = vmatprep.subr.mxu0 0.0
        %2085 = vmatpush2.msra.mxu0 0.0
        %2086 = vmatprep.subr.mxu0 0.0
        %2087 = vmatpush2.msra.mxu0 0.0
        %2088 = vmatprep.subr.mxu0 0.0
        %2089 = vmatpush2.msra.mxu0 0.0
        %2090 = vmatprep.subr.mxu0 0.0
        %2091 = vmatpush2.msra.mxu0 0.0
        %2092 = vmatprep.subr.mxu0 0.0
        %2093 = vmatpush2.msra.mxu0 0.0
        %2094 = vmatprep.subr.mxu0 0.0
        %2095 = vmatpush2.msra.mxu0 0.0
        %2096 = vmatprep.subr.mxu0 0.0
        %2097 = vmatpush2.msra.mxu0 0.0
        %2098 = vmatprep.subr.mxu0 0.0
        %2099 = vmatpush2.msra.mxu0 0.0
        %2100 = vmatprep.mubr.f32.mxu0 0.0
        %2101 = vmatmul.mubr.f32.gmra.mxu0 %v1938
        %v2102 = vpop.f32.mrf.mxu0
        %v2103 = vadd.f32 0.0, %v2102
        %v2104 = vpop.f32.mrf.mxu0
        %2105 = vmatprep.mubr.f32.mxu0 0.0
        %2106 = vmatmul.mubr.f32.gmra.mxu0 %v1941
        %v2107 = vpop.f32.mrf.mxu0
        %v2108 = vadd.f32 0.0, %v2107
        %v2109 = vpop.f32.mrf.mxu0
        %2110 = vmatprep.mubr.f32.mxu0 0.0
        %2111 = vmatmul.mubr.f32.gmra.mxu0 %v1944
        %v2112 = vpop.f32.mrf.mxu0
        %v2113 = vadd.f32 0.0, %v2112
        %v2114 = vpop.f32.mrf.mxu0
        %2115 = vmatprep.mubr.f32.mxu0 0.0
        %2116 = vmatmul.mubr.f32.gmra.mxu0 %v1947
        %v2117 = vpop.f32.mrf.mxu0
        %v2118 = vadd.f32 0.0, %v2117
        %v2119 = vpop.f32.mrf.mxu0
        %2120 = vmatprep.mubr.f32.mxu0 0.0
        %2121 = vmatmul.mubr.f32.gmra.mxu0 %v1950
        %v2122 = vpop.f32.mrf.mxu0
        %v2123 = vadd.f32 0.0, %v2122
        %v2124 = vpop.f32.mrf.mxu0
        %2125 = vmatprep.mubr.f32.mxu0 0.0
        %2126 = vmatmul.mubr.f32.gmra.mxu0 %v1953
        %v2127 = vpop.f32.mrf.mxu0
        %v2128 = vadd.f32 0.0, %v2127
        %v2129 = vpop.f32.mrf.mxu0
        %2130 = vmatprep.mubr.f32.mxu0 0.0
        %2131 = vmatmul.mubr.f32.gmra.mxu0 %v1956
        %v2132 = vpop.f32.mrf.mxu0
        %v2133 = vadd.f32 0.0, %v2132
        %v2134 = vpop.f32.mrf.mxu0
        %2135 = vmatprep.mubr.f32.mxu0 0.0
        %2136 = vmatmul.mubr.f32.gmra.mxu0 %v1959
        %v2137 = vpop.f32.mrf.mxu0
        %v2138 = vadd.f32 0.0, %v2137
        %v2139 = vpop.f32.mrf.mxu0
        %2140 = vmatprep.mubr.f32.mxu0 0.0
        %2141 = vmatmul.mubr.f32.gmra.mxu0 %v1962
        %v2142 = vpop.f32.mrf.mxu0
        %v2143 = vadd.f32 0.0, %v2142
        %v2144 = vpop.f32.mrf.mxu0
        %2145 = vmatprep.mubr.f32.mxu0 0.0
        %2146 = vmatmul.mubr.f32.gmra.mxu0 %v1965
        %v2147 = vpop.f32.mrf.mxu0
        %v2148 = vadd.f32 0.0, %v2147
        %v2149 = vpop.f32.mrf.mxu0
        %2150 = vmatprep.mubr.f32.mxu0 0.0
        %2151 = vmatmul.mubr.f32.gmra.mxu0 %v1968
        %v2152 = vpop.f32.mrf.mxu0
        %v2153 = vadd.f32 0.0, %v2152
        %v2154 = vpop.f32.mrf.mxu0
        %2155 = vmatprep.mubr.f32.mxu0 0.0
        %2156 = vmatmul.mubr.f32.gmra.mxu0 %v1971
        %v2157 = vpop.f32.mrf.mxu0
        %v2158 = vadd.f32 0.0, %v2157
        %v2159 = vpop.f32.mrf.mxu0
        %2160 = vmatprep.mubr.f32.mxu0 0.0
        %2161 = vmatmul.mubr.f32.gmra.mxu0 %v1974
        %v2162 = vpop.f32.mrf.mxu0
        %v2163 = vadd.f32 0.0, %v2162
        %v2164 = vpop.f32.mrf.mxu0
        %2165 = vmatprep.mubr.f32.mxu0 0.0
        %2166 = vmatmul.mubr.f32.gmra.mxu0 %v1977
        %v2167 = vpop.f32.mrf.mxu0
        %v2168 = vadd.f32 0.0, %v2167
        %v2169 = vpop.f32.mrf.mxu0
        %2170 = vmatprep.mubr.f32.mxu0 0.0
        %2171 = vmatmul.mubr.f32.gmra.mxu0 %v1980
        %v2172 = vpop.f32.mrf.mxu0
        %v2173 = vadd.f32 0.0, %v2172
        %v2174 = vpop.f32.mrf.mxu0
        %2175 = vmatprep.mubr.f32.mxu0 0.0
        %2176 = vmatmul.mubr.f32.gmra.mxu0 %v1983
        %v2177 = vpop.f32.mrf.mxu0
        %v2178 = vadd.f32 0.0, %v2177
        %v2179 = vpop.f32.mrf.mxu0
        %2180 = vmatprep.mubr.f32.mxu0 0.0
        %2181 = vmatmul.mubr.f32.gmra.mxu0 %v1986
        %v2182 = vpop.f32.mrf.mxu0
        %v2183 = vadd.f32 0.0, %v2182
        %v2184 = vpop.f32.mrf.mxu0
        %2185 = vmatprep.mubr.f32.mxu0 0.0
        %2186 = vmatmul.mubr.f32.gmra.mxu0 %v1989
        %v2187 = vpop.f32.mrf.mxu0
        %v2188 = vadd.f32 0.0, %v2187
        %v2189 = vpop.f32.mrf.mxu0
        %2190 = vmatprep.mubr.f32.mxu0 0.0
        %2191 = vmatmul.mubr.f32.gmra.mxu0 %v1992
        %v2192 = vpop.f32.mrf.mxu0
        %v2193 = vadd.f32 0.0, %v2192
        %v2194 = vpop.f32.mrf.mxu0
        %2195 = vmatprep.mubr.f32.mxu0 0.0
        %2196 = vmatmul.mubr.f32.gmra.mxu0 %v1995
        %v2197 = vpop.f32.mrf.mxu0
        %v2198 = vadd.f32 0.0, %v2197
        %v2199 = vpop.f32.mrf.mxu0
        %2200 = vmatprep.mubr.f32.mxu0 0.0
        %2201 = vmatmul.mubr.f32.gmra.mxu0 %v1998
        %v2202 = vpop.f32.mrf.mxu0
        %v2203 = vadd.f32 0.0, %v2202
        %v2204 = vpop.f32.mrf.mxu0
        %2205 = vmatprep.mubr.f32.mxu0 0.0
        %2206 = vmatmul.mubr.f32.gmra.mxu0 %v2001
        %v2207 = vpop.f32.mrf.mxu0
        %v2208 = vadd.f32 0.0, %v2207
        %v2209 = vpop.f32.mrf.mxu0
        %2210 = vmatprep.mubr.f32.mxu0 0.0
        %2211 = vmatmul.mubr.f32.gmra.mxu0 %v2004
        %v2212 = vpop.f32.mrf.mxu0
        %v2213 = vadd.f32 0.0, %v2212
        %v2214 = vpop.f32.mrf.mxu0
        %2215 = vmatprep.mubr.f32.mxu0 0.0
        %2216 = vmatmul.mubr.f32.gmra.mxu0 %v2007
        %v2217 = vpop.f32.mrf.mxu0
        %v2218 = vadd.f32 0.0, %v2217
        %v2219 = vpop.f32.mrf.mxu0
        %2220 = vmatprep.mubr.f32.mxu0 0.0
        %2221 = vmatmul.mubr.f32.gmra.mxu0 %v2010
        %v2222 = vpop.f32.mrf.mxu0
        %v2223 = vadd.f32 0.0, %v2222
        %v2224 = vpop.f32.mrf.mxu0
        %2225 = vmatprep.mubr.f32.mxu0 0.0
        %2226 = vmatmul.mubr.f32.gmra.mxu0 %v2013
        %v2227 = vpop.f32.mrf.mxu0
        %v2228 = vadd.f32 0.0, %v2227
        %v2229 = vpop.f32.mrf.mxu0
        %2230 = vmatprep.mubr.f32.mxu0 0.0
        %2231 = vmatmul.mubr.f32.gmra.mxu0 %v2016
        %v2232 = vpop.f32.mrf.mxu0
        %v2233 = vadd.f32 0.0, %v2232
        %v2234 = vpop.f32.mrf.mxu0
        %2235 = vmatprep.mubr.f32.mxu0 0.0
        %2236 = vmatmul.mubr.f32.gmra.mxu0 %v2019
        %v2237 = vpop.f32.mrf.mxu0
        %v2238 = vadd.f32 0.0, %v2237
        %v2239 = vpop.f32.mrf.mxu0
        %2240 = vmatprep.mubr.f32.mxu0 0.0
        %2241 = vmatmul.mubr.f32.gmra.mxu0 %v2022
        %v2242 = vpop.f32.mrf.mxu0
        %v2243 = vadd.f32 0.0, %v2242
        %v2244 = vpop.f32.mrf.mxu0
        %2245 = vmatprep.mubr.f32.mxu0 0.0
        %2246 = vmatmul.mubr.f32.gmra.mxu0 %v2025
        %v2247 = vpop.f32.mrf.mxu0
        %v2248 = vadd.f32 0.0, %v2247
        %v2249 = vpop.f32.mrf.mxu0
        %2250 = vmatprep.mubr.f32.mxu0 0.0
        %2251 = vmatmul.mubr.f32.gmra.mxu0 %v2028
        %v2252 = vpop.f32.mrf.mxu0
        %v2253 = vadd.f32 0.0, %v2252
        %v2254 = vpop.f32.mrf.mxu0
        %2255 = vmatprep.mubr.f32.mxu0 0.0
        %2256 = vmatmul.mubr.f32.gmra.mxu0 %v2031
        %v2257 = vpop.f32.mrf.mxu0
        %v2258 = vadd.f32 0.0, %v2257
        %v2259 = vpop.f32.mrf.mxu0
        %2260 = vdwg.mxu0
        %v2261 = vadd.f32 %v1617, %v2103
        %v2262 = vadd.f32 %v1622, %v2108
        %v2263 = vadd.f32 %v1627, %v2113
        %v2264 = vadd.f32 %v1632, %v2118
        %v2265 = vadd.f32 %v1637, %v2123
        %v2266 = vadd.f32 %v1642, %v2128
        %v2267 = vadd.f32 %v1647, %v2133
        %v2268 = vadd.f32 %v1652, %v2138
        %v2269 = vadd.f32 %v1657, %v2143
        %v2270 = vadd.f32 %v1662, %v2148
        %v2271 = vadd.f32 %v1667, %v2153
        %v2272 = vadd.f32 %v1672, %v2158
        %v2273 = vadd.f32 %v1677, %v2163
        %v2274 = vadd.f32 %v1682, %v2168
        %v2275 = vadd.f32 %v1687, %v2173
        %v2276 = vadd.f32 %v1692, %v2178
        %v2277 = vadd.f32 %v1697, %v2183
        %v2278 = vadd.f32 %v1702, %v2188
        %v2279 = vadd.f32 %v1707, %v2193
        %v2280 = vadd.f32 %v1712, %v2198
        %v2281 = vadd.f32 %v1717, %v2203
        %v2282 = vadd.f32 %v1722, %v2208
        %v2283 = vadd.f32 %v1727, %v2213
        %v2284 = vadd.f32 %v1732, %v2218
        %v2285 = vadd.f32 %v1737, %v2223
        %v2286 = vadd.f32 %v1742, %v2228
        %v2287 = vadd.f32 %v1747, %v2233
        %v2288 = vadd.f32 %v1752, %v2238
        %v2289 = vadd.f32 %v1757, %v2243
        %v2290 = vadd.f32 %v1762, %v2248
        %v2291 = vadd.f32 %v1767, %v2253
        %v2292 = vadd.f32 %v1772, %v2258
        %v2293 = vld [vmem:[#allocation2 + $0x10] sm:$0xff]
        %v2294 = vld [vmem:[#allocation2 + $0x18] sm:$0xff]
        %v2295 = vld [vmem:[#allocation2 + $0x20] sm:$0xff]
        %v2296 = vld [vmem:[#allocation2 + $0x28] sm:$0xff]
        %v2297 = vld [vmem:[#allocation2 + $0x30] sm:$0xff]
        %v2298 = vld [vmem:[#allocation2 + $0x38] sm:$0xff]
        %v2299 = vld [vmem:[#allocation2 + $0x40] sm:$0xff]
        %v2300 = vld [vmem:[#allocation2 + $0x48] sm:$0xff]
        %v2301 = vld [vmem:[#allocation2 + $0x50] sm:$0xff]
        %v2302 = vld [vmem:[#allocation2 + $0x58] sm:$0xff]
        %v2303 = vld [vmem:[#allocation2 + $0x60] sm:$0xff]
        %v2304 = vld [vmem:[#allocation2 + $0x68] sm:$0xff]
        %v2305 = vld [vmem:[#allocation2 + $0x70] sm:$0xff]
        %v2306 = vld [vmem:[#allocation2 + $0x78] sm:$0xff]
        %v2307 = vld [vmem:[#allocation2 + $0x80] sm:$0xff]
        %v2308 = vld [vmem:[#allocation2 + $0x88] sm:$0xff]
        %v2309 = vld [vmem:[#allocation2 + $0x90] sm:$0xff]
        %v2310 = vld [vmem:[#allocation2 + $0x98] sm:$0xff]
        %v2311 = vld [vmem:[#allocation2 + $0xa0] sm:$0xff]
        %v2312 = vld [vmem:[#allocation2 + $0xa8] sm:$0xff]
        %v2313 = vld [vmem:[#allocation2 + $0xb0] sm:$0xff]
        %v2314 = vld [vmem:[#allocation2 + $0xb8] sm:$0xff]
        %v2315 = vld [vmem:[#allocation2 + $0xc0] sm:$0xff]
        %v2316 = vld [vmem:[#allocation2 + $0xc8] sm:$0xff]
        %v2317 = vld [vmem:[#allocation2 + $0xd0] sm:$0xff]
        %v2318 = vld [vmem:[#allocation2 + $0xd8] sm:$0xff]
        %v2319 = vld [vmem:[#allocation2 + $0xe0] sm:$0xff]
        %v2320 = vld [vmem:[#allocation2 + $0xe8] sm:$0xff]
        %v2321 = vld [vmem:[#allocation2 + $0xf0] sm:$0xff]
        %v2322 = vld [vmem:[#allocation2 + $0xf8] sm:$0xff]
        %v2323 = vld [vmem:[#allocation2 + $0x100] sm:$0xff]
        %v2324 = vld [vmem:[#allocation2 + $0x108] sm:$0xff]
        %v2325 = vsel %vm1027, %v2293, 0.0
        %v2326 = vsel %vm1028, %v2294, 0.0
        %v2327 = vsel %vm1029, %v2295, 0.0
        %v2328 = vsel %vm1030, %v2296, 0.0
        %v2329 = vsel %vm1031, %v2297, 0.0
        %v2330 = vsel %vm1032, %v2298, 0.0
        %v2331 = vsel %vm1033, %v2299, 0.0
        %v2332 = vsel %vm1034, %v2300, 0.0
        %v2333 = vsel %vm1035, %v2301, 0.0
        %v2334 = vsel %vm1036, %v2302, 0.0
        %v2335 = vsel %vm1037, %v2303, 0.0
        %v2336 = vsel %vm1038, %v2304, 0.0
        %v2337 = vsel %vm1039, %v2305, 0.0
        %v2338 = vsel %vm1040, %v2306, 0.0
        %v2339 = vsel %vm1041, %v2307, 0.0
        %v2340 = vsel %vm1042, %v2308, 0.0
        %v2341 = vsel %vm1043, %v2309, 0.0
        %v2342 = vsel %vm1044, %v2310, 0.0
        %v2343 = vsel %vm1045, %v2311, 0.0
        %v2344 = vsel %vm1046, %v2312, 0.0
        %v2345 = vsel %vm1047, %v2313, 0.0
        %v2346 = vsel %vm1048, %v2314, 0.0
        %v2347 = vsel %vm1049, %v2315, 0.0
        %v2348 = vsel %vm1050, %v2316, 0.0
        %v2349 = vsel %vm1051, %v2317, 0.0
        %v2350 = vsel %vm1052, %v2318, 0.0
        %v2351 = vsel %vm1053, %v2319, 0.0
        %v2352 = vsel %vm1054, %v2320, 0.0
        %v2353 = vsel %vm1055, %v2321, 0.0
        %v2354 = vsel %vm1056, %v2322, 0.0
        %v2355 = vsel %vm1057, %v2323, 0.0
        %v2356 = vsel %vm1058, %v2324, 0.0
        %s2357 = scalar_lea.vmem %s1, 12
        %v2358 = vld [vmem:[%s2357] sm:$0x7]
        %v2360 = vsel %vm443, %v2325, 0
        %v2363 = vsel %vm443, %v2326, 0
        %v2366 = vsel %vm443, %v2327, 0
        %v2369 = vsel %vm443, %v2328, 0
        %v2372 = vsel %vm443, %v2329, 0
        %v2375 = vsel %vm443, %v2330, 0
        %v2378 = vsel %vm443, %v2331, 0
        %v2381 = vsel %vm443, %v2332, 0
        %v2384 = vsel %vm443, %v2333, 0
        %v2387 = vsel %vm443, %v2334, 0
        %v2390 = vsel %vm443, %v2335, 0
        %v2393 = vsel %vm443, %v2336, 0
        %v2396 = vsel %vm443, %v2337, 0
        %v2399 = vsel %vm443, %v2338, 0
        %v2402 = vsel %vm443, %v2339, 0
        %v2405 = vsel %vm443, %v2340, 0
        %v2408 = vsel %vm443, %v2341, 0
        %v2411 = vsel %vm443, %v2342, 0
        %v2414 = vsel %vm443, %v2343, 0
        %v2417 = vsel %vm443, %v2344, 0
        %v2420 = vsel %vm443, %v2345, 0
        %v2423 = vsel %vm443, %v2346, 0
        %v2426 = vsel %vm443, %v2347, 0
        %v2429 = vsel %vm443, %v2348, 0
        %v2432 = vsel %vm443, %v2349, 0
        %v2435 = vsel %vm443, %v2350, 0
        %v2438 = vsel %vm443, %v2351, 0
        %v2441 = vsel %vm443, %v2352, 0
        %v2444 = vsel %vm443, %v2353, 0
        %v2447 = vsel %vm443, %v2354, 0
        %v2450 = vsel %vm443, %v2355, 0
        %v2453 = vsel %vm443, %v2356, 0
        %v2456 = vsel %vm1222, %v2358, 0
        %2458 = vmatprep.subr.mxu0 0.0
        %2459 = vmatpush1.msra.mxu0 0.0
        %2460 = vmatprep.subr.mxu0 0.0
        %2461 = vmatpush1.msra.mxu0 0.0
        %2462 = vmatprep.subr.mxu0 0.0
        %2463 = vmatpush1.msra.mxu0 0.0
        %2464 = vmatprep.subr.mxu0 0.0
        %2465 = vmatpush1.msra.mxu0 0.0
        %2466 = vmatprep.subr.mxu0 0.0
        %2467 = vmatpush1.msra.mxu0 0.0
        %2468 = vmatprep.subr.mxu0 0.0
        %2469 = vmatpush1.msra.mxu0 0.0
        %2470 = vmatprep.subr.mxu0 0.0
        %2471 = vmatpush1.msra.mxu0 0.0
        %2472 = vmatprep.subr.mxu0 0.0
        %2473 = vmatpush1.msra.mxu0 0.0
        %2474 = vmatprep.subr.mxu0 0.0
        %2475 = vmatpush1.msra.mxu0 0.0
        %2476 = vmatprep.subr.mxu0 0.0
        %2477 = vmatpush1.msra.mxu0 0.0
        %2478 = vmatprep.subr.mxu0 0.0
        %2479 = vmatpush1.msra.mxu0 0.0
        %2480 = vmatprep.subr.mxu0 0.0
        %2481 = vmatpush1.msra.mxu0 0.0
        %2482 = vmatprep.subr.mxu0 0.0
        %2483 = vmatpush1.msra.mxu0 0.0
        %2484 = vmatprep.subr.mxu0 0.0
        %2485 = vmatpush1.msra.mxu0 0.0
        %2486 = vmatprep.subr.mxu0 0.0
        %2487 = vmatpush1.msra.mxu0 0.0
        %2488 = vmatprep.subr.mxu0 0.0
        %2489 = vmatpush1.msra.mxu0 %v2456
        %2490 = vmatprep.subr.mxu0 0.0
        %2491 = vmatpush2.msra.mxu0 0.0
        %2492 = vmatprep.subr.mxu0 0.0
        %2493 = vmatpush2.msra.mxu0 0.0
        %2494 = vmatprep.subr.mxu0 0.0
        %2495 = vmatpush2.msra.mxu0 0.0
        %2496 = vmatprep.subr.mxu0 0.0
        %2497 = vmatpush2.msra.mxu0 0.0
        %2498 = vmatprep.subr.mxu0 0.0
        %2499 = vmatpush2.msra.mxu0 0.0
        %2500 = vmatprep.subr.mxu0 0.0
        %2501 = vmatpush2.msra.mxu0 0.0
        %2502 = vmatprep.subr.mxu0 0.0
        %2503 = vmatpush2.msra.mxu0 0.0
        %2504 = vmatprep.subr.mxu0 0.0
        %2505 = vmatpush2.msra.mxu0 0.0
        %2506 = vmatprep.subr.mxu0 0.0
        %2507 = vmatpush2.msra.mxu0 0.0
        %2508 = vmatprep.subr.mxu0 0.0
        %2509 = vmatpush2.msra.mxu0 0.0
        %2510 = vmatprep.subr.mxu0 0.0
        %2511 = vmatpush2.msra.mxu0 0.0
        %2512 = vmatprep.subr.mxu0 0.0
        %2513 = vmatpush2.msra.mxu0 0.0
        %2514 = vmatprep.subr.mxu0 0.0
        %2515 = vmatpush2.msra.mxu0 0.0
        %2516 = vmatprep.subr.mxu0 0.0
        %2517 = vmatpush2.msra.mxu0 0.0
        %2518 = vmatprep.subr.mxu0 0.0
        %2519 = vmatpush2.msra.mxu0 0.0
        %2520 = vmatprep.subr.mxu0 0.0
        %2521 = vmatpush2.msra.mxu0 0.0
        %2522 = vmatprep.mubr.f32.mxu0 0.0
        %2523 = vmatmul.mubr.f32.gmra.mxu0 %v2360
        %v2524 = vpop.f32.mrf.mxu0
        %v2525 = vadd.f32 0.0, %v2524
        %v2526 = vpop.f32.mrf.mxu0
        %2527 = vmatprep.mubr.f32.mxu0 0.0
        %2528 = vmatmul.mubr.f32.gmra.mxu0 %v2363
        %v2529 = vpop.f32.mrf.mxu0
        %v2530 = vadd.f32 0.0, %v2529
        %v2531 = vpop.f32.mrf.mxu0
        %2532 = vmatprep.mubr.f32.mxu0 0.0
        %2533 = vmatmul.mubr.f32.gmra.mxu0 %v2366
        %v2534 = vpop.f32.mrf.mxu0
        %v2535 = vadd.f32 0.0, %v2534
        %v2536 = vpop.f32.mrf.mxu0
        %2537 = vmatprep.mubr.f32.mxu0 0.0
        %2538 = vmatmul.mubr.f32.gmra.mxu0 %v2369
        %v2539 = vpop.f32.mrf.mxu0
        %v2540 = vadd.f32 0.0, %v2539
        %v2541 = vpop.f32.mrf.mxu0
        %2542 = vmatprep.mubr.f32.mxu0 0.0
        %2543 = vmatmul.mubr.f32.gmra.mxu0 %v2372
        %v2544 = vpop.f32.mrf.mxu0
        %v2545 = vadd.f32 0.0, %v2544
        %v2546 = vpop.f32.mrf.mxu0
        %2547 = vmatprep.mubr.f32.mxu0 0.0
        %2548 = vmatmul.mubr.f32.gmra.mxu0 %v2375
        %v2549 = vpop.f32.mrf.mxu0
        %v2550 = vadd.f32 0.0, %v2549
        %v2551 = vpop.f32.mrf.mxu0
        %2552 = vmatprep.mubr.f32.mxu0 0.0
        %2553 = vmatmul.mubr.f32.gmra.mxu0 %v2378
        %v2554 = vpop.f32.mrf.mxu0
        %v2555 = vadd.f32 0.0, %v2554
        %v2556 = vpop.f32.mrf.mxu0
        %2557 = vmatprep.mubr.f32.mxu0 0.0
        %2558 = vmatmul.mubr.f32.gmra.mxu0 %v2381
        %v2559 = vpop.f32.mrf.mxu0
        %v2560 = vadd.f32 0.0, %v2559
        %v2561 = vpop.f32.mrf.mxu0
        %2562 = vmatprep.mubr.f32.mxu0 0.0
        %2563 = vmatmul.mubr.f32.gmra.mxu0 %v2384
        %v2564 = vpop.f32.mrf.mxu0
        %v2565 = vadd.f32 0.0, %v2564
        %v2566 = vpop.f32.mrf.mxu0
        %2567 = vmatprep.mubr.f32.mxu0 0.0
        %2568 = vmatmul.mubr.f32.gmra.mxu0 %v2387
        %v2569 = vpop.f32.mrf.mxu0
        %v2570 = vadd.f32 0.0, %v2569
        %v2571 = vpop.f32.mrf.mxu0
        %2572 = vmatprep.mubr.f32.mxu0 0.0
        %2573 = vmatmul.mubr.f32.gmra.mxu0 %v2390
        %v2574 = vpop.f32.mrf.mxu0
        %v2575 = vadd.f32 0.0, %v2574
        %v2576 = vpop.f32.mrf.mxu0
        %2577 = vmatprep.mubr.f32.mxu0 0.0
        %2578 = vmatmul.mubr.f32.gmra.mxu0 %v2393
        %v2579 = vpop.f32.mrf.mxu0
        %v2580 = vadd.f32 0.0, %v2579
        %v2581 = vpop.f32.mrf.mxu0
        %2582 = vmatprep.mubr.f32.mxu0 0.0
        %2583 = vmatmul.mubr.f32.gmra.mxu0 %v2396
        %v2584 = vpop.f32.mrf.mxu0
        %v2585 = vadd.f32 0.0, %v2584
        %v2586 = vpop.f32.mrf.mxu0
        %2587 = vmatprep.mubr.f32.mxu0 0.0
        %2588 = vmatmul.mubr.f32.gmra.mxu0 %v2399
        %v2589 = vpop.f32.mrf.mxu0
        %v2590 = vadd.f32 0.0, %v2589
        %v2591 = vpop.f32.mrf.mxu0
        %2592 = vmatprep.mubr.f32.mxu0 0.0
        %2593 = vmatmul.mubr.f32.gmra.mxu0 %v2402
        %v2594 = vpop.f32.mrf.mxu0
        %v2595 = vadd.f32 0.0, %v2594
        %v2596 = vpop.f32.mrf.mxu0
        %2597 = vmatprep.mubr.f32.mxu0 0.0
        %2598 = vmatmul.mubr.f32.gmra.mxu0 %v2405
        %v2599 = vpop.f32.mrf.mxu0
        %v2600 = vadd.f32 0.0, %v2599
        %v2601 = vpop.f32.mrf.mxu0
        %2602 = vmatprep.mubr.f32.mxu0 0.0
        %2603 = vmatmul.mubr.f32.gmra.mxu0 %v2408
        %v2604 = vpop.f32.mrf.mxu0
        %v2605 = vadd.f32 0.0, %v2604
        %v2606 = vpop.f32.mrf.mxu0
        %2607 = vmatprep.mubr.f32.mxu0 0.0
        %2608 = vmatmul.mubr.f32.gmra.mxu0 %v2411
        %v2609 = vpop.f32.mrf.mxu0
        %v2610 = vadd.f32 0.0, %v2609
        %v2611 = vpop.f32.mrf.mxu0
        %2612 = vmatprep.mubr.f32.mxu0 0.0
        %2613 = vmatmul.mubr.f32.gmra.mxu0 %v2414
        %v2614 = vpop.f32.mrf.mxu0
        %v2615 = vadd.f32 0.0, %v2614
        %v2616 = vpop.f32.mrf.mxu0
        %2617 = vmatprep.mubr.f32.mxu0 0.0
        %2618 = vmatmul.mubr.f32.gmra.mxu0 %v2417
        %v2619 = vpop.f32.mrf.mxu0
        %v2620 = vadd.f32 0.0, %v2619
        %v2621 = vpop.f32.mrf.mxu0
        %2622 = vmatprep.mubr.f32.mxu0 0.0
        %2623 = vmatmul.mubr.f32.gmra.mxu0 %v2420
        %v2624 = vpop.f32.mrf.mxu0
        %v2625 = vadd.f32 0.0, %v2624
        %v2626 = vpop.f32.mrf.mxu0
        %2627 = vmatprep.mubr.f32.mxu0 0.0
        %2628 = vmatmul.mubr.f32.gmra.mxu0 %v2423
        %v2629 = vpop.f32.mrf.mxu0
        %v2630 = vadd.f32 0.0, %v2629
        %v2631 = vpop.f32.mrf.mxu0
        %2632 = vmatprep.mubr.f32.mxu0 0.0
        %2633 = vmatmul.mubr.f32.gmra.mxu0 %v2426
        %v2634 = vpop.f32.mrf.mxu0
        %v2635 = vadd.f32 0.0, %v2634
        %v2636 = vpop.f32.mrf.mxu0
        %2637 = vmatprep.mubr.f32.mxu0 0.0
        %2638 = vmatmul.mubr.f32.gmra.mxu0 %v2429
        %v2639 = vpop.f32.mrf.mxu0
        %v2640 = vadd.f32 0.0, %v2639
        %v2641 = vpop.f32.mrf.mxu0
        %2642 = vmatprep.mubr.f32.mxu0 0.0
        %2643 = vmatmul.mubr.f32.gmra.mxu0 %v2432
        %v2644 = vpop.f32.mrf.mxu0
        %v2645 = vadd.f32 0.0, %v2644
        %v2646 = vpop.f32.mrf.mxu0
        %2647 = vmatprep.mubr.f32.mxu0 0.0
        %2648 = vmatmul.mubr.f32.gmra.mxu0 %v2435
        %v2649 = vpop.f32.mrf.mxu0
        %v2650 = vadd.f32 0.0, %v2649
        %v2651 = vpop.f32.mrf.mxu0
        %2652 = vmatprep.mubr.f32.mxu0 0.0
        %2653 = vmatmul.mubr.f32.gmra.mxu0 %v2438
        %v2654 = vpop.f32.mrf.mxu0
        %v2655 = vadd.f32 0.0, %v2654
        %v2656 = vpop.f32.mrf.mxu0
        %2657 = vmatprep.mubr.f32.mxu0 0.0
        %2658 = vmatmul.mubr.f32.gmra.mxu0 %v2441
        %v2659 = vpop.f32.mrf.mxu0
        %v2660 = vadd.f32 0.0, %v2659
        %v2661 = vpop.f32.mrf.mxu0
        %2662 = vmatprep.mubr.f32.mxu0 0.0
        %2663 = vmatmul.mubr.f32.gmra.mxu0 %v2444
        %v2664 = vpop.f32.mrf.mxu0
        %v2665 = vadd.f32 0.0, %v2664
        %v2666 = vpop.f32.mrf.mxu0
        %2667 = vmatprep.mubr.f32.mxu0 0.0
        %2668 = vmatmul.mubr.f32.gmra.mxu0 %v2447
        %v2669 = vpop.f32.mrf.mxu0
        %v2670 = vadd.f32 0.0, %v2669
        %v2671 = vpop.f32.mrf.mxu0
        %2672 = vmatprep.mubr.f32.mxu0 0.0
        %2673 = vmatmul.mubr.f32.gmra.mxu0 %v2450
        %v2674 = vpop.f32.mrf.mxu0
        %v2675 = vadd.f32 0.0, %v2674
        %v2676 = vpop.f32.mrf.mxu0
        %2677 = vmatprep.mubr.f32.mxu0 0.0
        %2678 = vmatmul.mubr.f32.gmra.mxu0 %v2453
        %v2679 = vpop.f32.mrf.mxu0
        %v2680 = vadd.f32 0.0, %v2679
        %v2681 = vpop.f32.mrf.mxu0
        %2682 = vdwg.mxu0
        %v2683 = vadd.f32 %v2261, %v2525
        %v2684 = vadd.f32 %v2262, %v2530
        %v2685 = vadd.f32 %v2263, %v2535
        %v2686 = vadd.f32 %v2264, %v2540
        %v2687 = vadd.f32 %v2265, %v2545
        %v2688 = vadd.f32 %v2266, %v2550
        %v2689 = vadd.f32 %v2267, %v2555
        %v2690 = vadd.f32 %v2268, %v2560
        %v2691 = vadd.f32 %v2269, %v2565
        %v2692 = vadd.f32 %v2270, %v2570
        %v2693 = vadd.f32 %v2271, %v2575
        %v2694 = vadd.f32 %v2272, %v2580
        %v2695 = vadd.f32 %v2273, %v2585
        %v2696 = vadd.f32 %v2274, %v2590
        %v2697 = vadd.f32 %v2275, %v2595
        %v2698 = vadd.f32 %v2276, %v2600
        %v2699 = vadd.f32 %v2277, %v2605
        %v2700 = vadd.f32 %v2278, %v2610
        %v2701 = vadd.f32 %v2279, %v2615
        %v2702 = vadd.f32 %v2280, %v2620
        %v2703 = vadd.f32 %v2281, %v2625
        %v2704 = vadd.f32 %v2282, %v2630
        %v2705 = vadd.f32 %v2283, %v2635
        %v2706 = vadd.f32 %v2284, %v2640
        %v2707 = vadd.f32 %v2285, %v2645
        %v2708 = vadd.f32 %v2286, %v2650
        %v2709 = vadd.f32 %v2287, %v2655
        %v2710 = vadd.f32 %v2288, %v2660
        %v2711 = vadd.f32 %v2289, %v2665
        %v2712 = vadd.f32 %v2290, %v2670
        %v2713 = vadd.f32 %v2291, %v2675
        %v2714 = vadd.f32 %v2292, %v2680
        %v2715 = vld [vmem:[#allocation2 + $0x11] sm:$0xff]
        %v2716 = vld [vmem:[#allocation2 + $0x19] sm:$0xff]
        %v2717 = vld [vmem:[#allocation2 + $0x21] sm:$0xff]
        %v2718 = vld [vmem:[#allocation2 + $0x29] sm:$0xff]
        %v2719 = vld [vmem:[#allocation2 + $0x31] sm:$0xff]
        %v2720 = vld [vmem:[#allocation2 + $0x39] sm:$0xff]
        %v2721 = vld [vmem:[#allocation2 + $0x41] sm:$0xff]
        %v2722 = vld [vmem:[#allocation2 + $0x49] sm:$0xff]
        %v2723 = vld [vmem:[#allocation2 + $0x51] sm:$0xff]
        %v2724 = vld [vmem:[#allocation2 + $0x59] sm:$0xff]
        %v2725 = vld [vmem:[#allocation2 + $0x61] sm:$0xff]
        %v2726 = vld [vmem:[#allocation2 + $0x69] sm:$0xff]
        %v2727 = vld [vmem:[#allocation2 + $0x71] sm:$0xff]
        %v2728 = vld [vmem:[#allocation2 + $0x79] sm:$0xff]
        %v2729 = vld [vmem:[#allocation2 + $0x81] sm:$0xff]
        %v2730 = vld [vmem:[#allocation2 + $0x89] sm:$0xff]
        %v2731 = vld [vmem:[#allocation2 + $0x91] sm:$0xff]
        %v2732 = vld [vmem:[#allocation2 + $0x99] sm:$0xff]
        %v2733 = vld [vmem:[#allocation2 + $0xa1] sm:$0xff]
        %v2734 = vld [vmem:[#allocation2 + $0xa9] sm:$0xff]
        %v2735 = vld [vmem:[#allocation2 + $0xb1] sm:$0xff]
        %v2736 = vld [vmem:[#allocation2 + $0xb9] sm:$0xff]
        %v2737 = vld [vmem:[#allocation2 + $0xc1] sm:$0xff]
        %v2738 = vld [vmem:[#allocation2 + $0xc9] sm:$0xff]
        %v2739 = vld [vmem:[#allocation2 + $0xd1] sm:$0xff]
        %v2740 = vld [vmem:[#allocation2 + $0xd9] sm:$0xff]
        %v2741 = vld [vmem:[#allocation2 + $0xe1] sm:$0xff]
        %v2742 = vld [vmem:[#allocation2 + $0xe9] sm:$0xff]
        %v2743 = vld [vmem:[#allocation2 + $0xf1] sm:$0xff]
        %v2744 = vld [vmem:[#allocation2 + $0xf9] sm:$0xff]
        %v2745 = vld [vmem:[#allocation2 + $0x101] sm:$0xff]
        %v2746 = vld [vmem:[#allocation2 + $0x109] sm:$0xff]
        %s2747 = scalar_lea.vmem %s1, 16
        %v2748 = vld [vmem:[%s2747] sm:$0x7]
        %v2750 = vsel %vm443, %v2715, 0
        %v2753 = vsel %vm443, %v2716, 0
        %v2756 = vsel %vm443, %v2717, 0
        %v2759 = vsel %vm443, %v2718, 0
        %v2762 = vsel %vm443, %v2719, 0
        %v2765 = vsel %vm443, %v2720, 0
        %v2768 = vsel %vm443, %v2721, 0
        %v2771 = vsel %vm443, %v2722, 0
        %v2774 = vsel %vm443, %v2723, 0
        %v2777 = vsel %vm443, %v2724, 0
        %v2780 = vsel %vm443, %v2725, 0
        %v2783 = vsel %vm443, %v2726, 0
        %v2786 = vsel %vm443, %v2727, 0
        %v2789 = vsel %vm443, %v2728, 0
        %v2792 = vsel %vm443, %v2729, 0
        %v2795 = vsel %vm443, %v2730, 0
        %v2798 = vsel %vm443, %v2731, 0
        %v2801 = vsel %vm443, %v2732, 0
        %v2804 = vsel %vm443, %v2733, 0
        %v2807 = vsel %vm443, %v2734, 0
        %v2810 = vsel %vm443, %v2735, 0
        %v2813 = vsel %vm443, %v2736, 0
        %v2816 = vsel %vm443, %v2737, 0
        %v2819 = vsel %vm443, %v2738, 0
        %v2822 = vsel %vm443, %v2739, 0
        %v2825 = vsel %vm443, %v2740, 0
        %v2828 = vsel %vm443, %v2741, 0
        %v2831 = vsel %vm443, %v2742, 0
        %v2834 = vsel %vm443, %v2743, 0
        %v2837 = vsel %vm443, %v2744, 0
        %v2840 = vsel %vm443, %v2745, 0
        %v2843 = vsel %vm443, %v2746, 0
        %v2846 = vsel %vm1222, %v2748, 0
        %2848 = vmatprep.subr.mxu0 0.0
        %2849 = vmatpush1.msra.mxu0 0.0
        %2850 = vmatprep.subr.mxu0 0.0
        %2851 = vmatpush1.msra.mxu0 0.0
        %2852 = vmatprep.subr.mxu0 0.0
        %2853 = vmatpush1.msra.mxu0 0.0
        %2854 = vmatprep.subr.mxu0 0.0
        %2855 = vmatpush1.msra.mxu0 0.0
        %2856 = vmatprep.subr.mxu0 0.0
        %2857 = vmatpush1.msra.mxu0 0.0
        %2858 = vmatprep.subr.mxu0 0.0
        %2859 = vmatpush1.msra.mxu0 0.0
        %2860 = vmatprep.subr.mxu0 0.0
        %2861 = vmatpush1.msra.mxu0 0.0
        %2862 = vmatprep.subr.mxu0 0.0
        %2863 = vmatpush1.msra.mxu0 0.0
        %2864 = vmatprep.subr.mxu0 0.0
        %2865 = vmatpush1.msra.mxu0 0.0
        %2866 = vmatprep.subr.mxu0 0.0
        %2867 = vmatpush1.msra.mxu0 0.0
        %2868 = vmatprep.subr.mxu0 0.0
        %2869 = vmatpush1.msra.mxu0 0.0
        %2870 = vmatprep.subr.mxu0 0.0
        %2871 = vmatpush1.msra.mxu0 0.0
        %2872 = vmatprep.subr.mxu0 0.0
        %2873 = vmatpush1.msra.mxu0 0.0
        %2874 = vmatprep.subr.mxu0 0.0
        %2875 = vmatpush1.msra.mxu0 0.0
        %2876 = vmatprep.subr.mxu0 0.0
        %2877 = vmatpush1.msra.mxu0 0.0
        %2878 = vmatprep.subr.mxu0 0.0
        %2879 = vmatpush1.msra.mxu0 %v2846
        %2880 = vmatprep.subr.mxu0 0.0
        %2881 = vmatpush2.msra.mxu0 0.0
        %2882 = vmatprep.subr.mxu0 0.0
        %2883 = vmatpush2.msra.mxu0 0.0
        %2884 = vmatprep.subr.mxu0 0.0
        %2885 = vmatpush2.msra.mxu0 0.0
        %2886 = vmatprep.subr.mxu0 0.0
        %2887 = vmatpush2.msra.mxu0 0.0
        %2888 = vmatprep.subr.mxu0 0.0
        %2889 = vmatpush2.msra.mxu0 0.0
        %2890 = vmatprep.subr.mxu0 0.0
        %2891 = vmatpush2.msra.mxu0 0.0
        %2892 = vmatprep.subr.mxu0 0.0
        %2893 = vmatpush2.msra.mxu0 0.0
        %2894 = vmatprep.subr.mxu0 0.0
        %2895 = vmatpush2.msra.mxu0 0.0
        %2896 = vmatprep.subr.mxu0 0.0
        %2897 = vmatpush2.msra.mxu0 0.0
        %2898 = vmatprep.subr.mxu0 0.0
        %2899 = vmatpush2.msra.mxu0 0.0
        %2900 = vmatprep.subr.mxu0 0.0
        %2901 = vmatpush2.msra.mxu0 0.0
        %2902 = vmatprep.subr.mxu0 0.0
        %2903 = vmatpush2.msra.mxu0 0.0
        %2904 = vmatprep.subr.mxu0 0.0
        %2905 = vmatpush2.msra.mxu0 0.0
        %2906 = vmatprep.subr.mxu0 0.0
        %2907 = vmatpush2.msra.mxu0 0.0
        %2908 = vmatprep.subr.mxu0 0.0
        %2909 = vmatpush2.msra.mxu0 0.0
        %2910 = vmatprep.subr.mxu0 0.0
        %2911 = vmatpush2.msra.mxu0 0.0
        %2912 = vmatprep.mubr.f32.mxu0 0.0
        %2913 = vmatmul.mubr.f32.gmra.mxu0 %v2750
        %v2914 = vpop.f32.mrf.mxu0
        %v2915 = vadd.f32 0.0, %v2914
        %v2916 = vpop.f32.mrf.mxu0
        %2917 = vmatprep.mubr.f32.mxu0 0.0
        %2918 = vmatmul.mubr.f32.gmra.mxu0 %v2753
        %v2919 = vpop.f32.mrf.mxu0
        %v2920 = vadd.f32 0.0, %v2919
        %v2921 = vpop.f32.mrf.mxu0
        %2922 = vmatprep.mubr.f32.mxu0 0.0
        %2923 = vmatmul.mubr.f32.gmra.mxu0 %v2756
        %v2924 = vpop.f32.mrf.mxu0
        %v2925 = vadd.f32 0.0, %v2924
        %v2926 = vpop.f32.mrf.mxu0
        %2927 = vmatprep.mubr.f32.mxu0 0.0
        %2928 = vmatmul.mubr.f32.gmra.mxu0 %v2759
        %v2929 = vpop.f32.mrf.mxu0
        %v2930 = vadd.f32 0.0, %v2929
        %v2931 = vpop.f32.mrf.mxu0
        %2932 = vmatprep.mubr.f32.mxu0 0.0
        %2933 = vmatmul.mubr.f32.gmra.mxu0 %v2762
        %v2934 = vpop.f32.mrf.mxu0
        %v2935 = vadd.f32 0.0, %v2934
        %v2936 = vpop.f32.mrf.mxu0
        %2937 = vmatprep.mubr.f32.mxu0 0.0
        %2938 = vmatmul.mubr.f32.gmra.mxu0 %v2765
        %v2939 = vpop.f32.mrf.mxu0
        %v2940 = vadd.f32 0.0, %v2939
        %v2941 = vpop.f32.mrf.mxu0
        %2942 = vmatprep.mubr.f32.mxu0 0.0
        %2943 = vmatmul.mubr.f32.gmra.mxu0 %v2768
        %v2944 = vpop.f32.mrf.mxu0
        %v2945 = vadd.f32 0.0, %v2944
        %v2946 = vpop.f32.mrf.mxu0
        %2947 = vmatprep.mubr.f32.mxu0 0.0
        %2948 = vmatmul.mubr.f32.gmra.mxu0 %v2771
        %v2949 = vpop.f32.mrf.mxu0
        %v2950 = vadd.f32 0.0, %v2949
        %v2951 = vpop.f32.mrf.mxu0
        %2952 = vmatprep.mubr.f32.mxu0 0.0
        %2953 = vmatmul.mubr.f32.gmra.mxu0 %v2774
        %v2954 = vpop.f32.mrf.mxu0
        %v2955 = vadd.f32 0.0, %v2954
        %v2956 = vpop.f32.mrf.mxu0
        %2957 = vmatprep.mubr.f32.mxu0 0.0
        %2958 = vmatmul.mubr.f32.gmra.mxu0 %v2777
        %v2959 = vpop.f32.mrf.mxu0
        %v2960 = vadd.f32 0.0, %v2959
        %v2961 = vpop.f32.mrf.mxu0
        %2962 = vmatprep.mubr.f32.mxu0 0.0
        %2963 = vmatmul.mubr.f32.gmra.mxu0 %v2780
        %v2964 = vpop.f32.mrf.mxu0
        %v2965 = vadd.f32 0.0, %v2964
        %v2966 = vpop.f32.mrf.mxu0
        %2967 = vmatprep.mubr.f32.mxu0 0.0
        %2968 = vmatmul.mubr.f32.gmra.mxu0 %v2783
        %v2969 = vpop.f32.mrf.mxu0
        %v2970 = vadd.f32 0.0, %v2969
        %v2971 = vpop.f32.mrf.mxu0
        %2972 = vmatprep.mubr.f32.mxu0 0.0
        %2973 = vmatmul.mubr.f32.gmra.mxu0 %v2786
        %v2974 = vpop.f32.mrf.mxu0
        %v2975 = vadd.f32 0.0, %v2974
        %v2976 = vpop.f32.mrf.mxu0
        %2977 = vmatprep.mubr.f32.mxu0 0.0
        %2978 = vmatmul.mubr.f32.gmra.mxu0 %v2789
        %v2979 = vpop.f32.mrf.mxu0
        %v2980 = vadd.f32 0.0, %v2979
        %v2981 = vpop.f32.mrf.mxu0
        %2982 = vmatprep.mubr.f32.mxu0 0.0
        %2983 = vmatmul.mubr.f32.gmra.mxu0 %v2792
        %v2984 = vpop.f32.mrf.mxu0
        %v2985 = vadd.f32 0.0, %v2984
        %v2986 = vpop.f32.mrf.mxu0
        %2987 = vmatprep.mubr.f32.mxu0 0.0
        %2988 = vmatmul.mubr.f32.gmra.mxu0 %v2795
        %v2989 = vpop.f32.mrf.mxu0
        %v2990 = vadd.f32 0.0, %v2989
        %v2991 = vpop.f32.mrf.mxu0
        %2992 = vmatprep.mubr.f32.mxu0 0.0
        %2993 = vmatmul.mubr.f32.gmra.mxu0 %v2798
        %v2994 = vpop.f32.mrf.mxu0
        %v2995 = vadd.f32 0.0, %v2994
        %v2996 = vpop.f32.mrf.mxu0
        %2997 = vmatprep.mubr.f32.mxu0 0.0
        %2998 = vmatmul.mubr.f32.gmra.mxu0 %v2801
        %v2999 = vpop.f32.mrf.mxu0
        %v3000 = vadd.f32 0.0, %v2999
        %v3001 = vpop.f32.mrf.mxu0
        %3002 = vmatprep.mubr.f32.mxu0 0.0
        %3003 = vmatmul.mubr.f32.gmra.mxu0 %v2804
        %v3004 = vpop.f32.mrf.mxu0
        %v3005 = vadd.f32 0.0, %v3004
        %v3006 = vpop.f32.mrf.mxu0
        %3007 = vmatprep.mubr.f32.mxu0 0.0
        %3008 = vmatmul.mubr.f32.gmra.mxu0 %v2807
        %v3009 = vpop.f32.mrf.mxu0
        %v3010 = vadd.f32 0.0, %v3009
        %v3011 = vpop.f32.mrf.mxu0
        %3012 = vmatprep.mubr.f32.mxu0 0.0
        %3013 = vmatmul.mubr.f32.gmra.mxu0 %v2810
        %v3014 = vpop.f32.mrf.mxu0
        %v3015 = vadd.f32 0.0, %v3014
        %v3016 = vpop.f32.mrf.mxu0
        %3017 = vmatprep.mubr.f32.mxu0 0.0
        %3018 = vmatmul.mubr.f32.gmra.mxu0 %v2813
        %v3019 = vpop.f32.mrf.mxu0
        %v3020 = vadd.f32 0.0, %v3019
        %v3021 = vpop.f32.mrf.mxu0
        %3022 = vmatprep.mubr.f32.mxu0 0.0
        %3023 = vmatmul.mubr.f32.gmra.mxu0 %v2816
        %v3024 = vpop.f32.mrf.mxu0
        %v3025 = vadd.f32 0.0, %v3024
        %v3026 = vpop.f32.mrf.mxu0
        %3027 = vmatprep.mubr.f32.mxu0 0.0
        %3028 = vmatmul.mubr.f32.gmra.mxu0 %v2819
        %v3029 = vpop.f32.mrf.mxu0
        %v3030 = vadd.f32 0.0, %v3029
        %v3031 = vpop.f32.mrf.mxu0
        %3032 = vmatprep.mubr.f32.mxu0 0.0
        %3033 = vmatmul.mubr.f32.gmra.mxu0 %v2822
        %v3034 = vpop.f32.mrf.mxu0
        %v3035 = vadd.f32 0.0, %v3034
        %v3036 = vpop.f32.mrf.mxu0
        %3037 = vmatprep.mubr.f32.mxu0 0.0
        %3038 = vmatmul.mubr.f32.gmra.mxu0 %v2825
        %v3039 = vpop.f32.mrf.mxu0
        %v3040 = vadd.f32 0.0, %v3039
        %v3041 = vpop.f32.mrf.mxu0
        %3042 = vmatprep.mubr.f32.mxu0 0.0
        %3043 = vmatmul.mubr.f32.gmra.mxu0 %v2828
        %v3044 = vpop.f32.mrf.mxu0
        %v3045 = vadd.f32 0.0, %v3044
        %v3046 = vpop.f32.mrf.mxu0
        %3047 = vmatprep.mubr.f32.mxu0 0.0
        %3048 = vmatmul.mubr.f32.gmra.mxu0 %v2831
        %v3049 = vpop.f32.mrf.mxu0
        %v3050 = vadd.f32 0.0, %v3049
        %v3051 = vpop.f32.mrf.mxu0
        %3052 = vmatprep.mubr.f32.mxu0 0.0
        %3053 = vmatmul.mubr.f32.gmra.mxu0 %v2834
        %v3054 = vpop.f32.mrf.mxu0
        %v3055 = vadd.f32 0.0, %v3054
        %v3056 = vpop.f32.mrf.mxu0
        %3057 = vmatprep.mubr.f32.mxu0 0.0
        %3058 = vmatmul.mubr.f32.gmra.mxu0 %v2837
        %v3059 = vpop.f32.mrf.mxu0
        %v3060 = vadd.f32 0.0, %v3059
        %v3061 = vpop.f32.mrf.mxu0
        %3062 = vmatprep.mubr.f32.mxu0 0.0
        %3063 = vmatmul.mubr.f32.gmra.mxu0 %v2840
        %v3064 = vpop.f32.mrf.mxu0
        %v3065 = vadd.f32 0.0, %v3064
        %v3066 = vpop.f32.mrf.mxu0
        %3067 = vmatprep.mubr.f32.mxu0 0.0
        %3068 = vmatmul.mubr.f32.gmra.mxu0 %v2843
        %v3069 = vpop.f32.mrf.mxu0
        %v3070 = vadd.f32 0.0, %v3069
        %v3071 = vpop.f32.mrf.mxu0
        %3072 = vdwg.mxu0
        %v3073 = vadd.f32 %v2683, %v2915
        %v3074 = vadd.f32 %v2684, %v2920
        %v3075 = vadd.f32 %v2685, %v2925
        %v3076 = vadd.f32 %v2686, %v2930
        %v3077 = vadd.f32 %v2687, %v2935
        %v3078 = vadd.f32 %v2688, %v2940
        %v3079 = vadd.f32 %v2689, %v2945
        %v3080 = vadd.f32 %v2690, %v2950
        %v3081 = vadd.f32 %v2691, %v2955
        %v3082 = vadd.f32 %v2692, %v2960
        %v3083 = vadd.f32 %v2693, %v2965
        %v3084 = vadd.f32 %v2694, %v2970
        %v3085 = vadd.f32 %v2695, %v2975
        %v3086 = vadd.f32 %v2696, %v2980
        %v3087 = vadd.f32 %v2697, %v2985
        %v3088 = vadd.f32 %v2698, %v2990
        %v3089 = vadd.f32 %v2699, %v2995
        %v3090 = vadd.f32 %v2700, %v3000
        %v3091 = vadd.f32 %v2701, %v3005
        %v3092 = vadd.f32 %v2702, %v3010
        %v3093 = vadd.f32 %v2703, %v3015
        %v3094 = vadd.f32 %v2704, %v3020
        %v3095 = vadd.f32 %v2705, %v3025
        %v3096 = vadd.f32 %v2706, %v3030
        %v3097 = vadd.f32 %v2707, %v3035
        %v3098 = vadd.f32 %v2708, %v3040
        %v3099 = vadd.f32 %v2709, %v3045
        %v3100 = vadd.f32 %v2710, %v3050
        %v3101 = vadd.f32 %v2711, %v3055
        %v3102 = vadd.f32 %v2712, %v3060
        %v3103 = vadd.f32 %v2713, %v3065
        %v3104 = vadd.f32 %v2714, %v3070
        %v3105 = vld [vmem:[#allocation2 + $0x12] sm:$0xff]
        %v3106 = vld [vmem:[#allocation2 + $0x1a] sm:$0xff]
        %v3107 = vld [vmem:[#allocation2 + $0x22] sm:$0xff]
        %v3108 = vld [vmem:[#allocation2 + $0x2a] sm:$0xff]
        %v3109 = vld [vmem:[#allocation2 + $0x32] sm:$0xff]
        %v3110 = vld [vmem:[#allocation2 + $0x3a] sm:$0xff]
        %v3111 = vld [vmem:[#allocation2 + $0x42] sm:$0xff]
        %v3112 = vld [vmem:[#allocation2 + $0x4a] sm:$0xff]
        %v3113 = vld [vmem:[#allocation2 + $0x52] sm:$0xff]
        %v3114 = vld [vmem:[#allocation2 + $0x5a] sm:$0xff]
        %v3115 = vld [vmem:[#allocation2 + $0x62] sm:$0xff]
        %v3116 = vld [vmem:[#allocation2 + $0x6a] sm:$0xff]
        %v3117 = vld [vmem:[#allocation2 + $0x72] sm:$0xff]
        %v3118 = vld [vmem:[#allocation2 + $0x7a] sm:$0xff]
        %v3119 = vld [vmem:[#allocation2 + $0x82] sm:$0xff]
        %v3120 = vld [vmem:[#allocation2 + $0x8a] sm:$0xff]
        %v3121 = vld [vmem:[#allocation2 + $0x92] sm:$0xff]
        %v3122 = vld [vmem:[#allocation2 + $0x9a] sm:$0xff]
        %v3123 = vld [vmem:[#allocation2 + $0xa2] sm:$0xff]
        %v3124 = vld [vmem:[#allocation2 + $0xaa] sm:$0xff]
        %v3125 = vld [vmem:[#allocation2 + $0xb2] sm:$0xff]
        %v3126 = vld [vmem:[#allocation2 + $0xba] sm:$0xff]
        %v3127 = vld [vmem:[#allocation2 + $0xc2] sm:$0xff]
        %v3128 = vld [vmem:[#allocation2 + $0xca] sm:$0xff]
        %v3129 = vld [vmem:[#allocation2 + $0xd2] sm:$0xff]
        %v3130 = vld [vmem:[#allocation2 + $0xda] sm:$0xff]
        %v3131 = vld [vmem:[#allocation2 + $0xe2] sm:$0xff]
        %v3132 = vld [vmem:[#allocation2 + $0xea] sm:$0xff]
        %v3133 = vld [vmem:[#allocation2 + $0xf2] sm:$0xff]
        %v3134 = vld [vmem:[#allocation2 + $0xfa] sm:$0xff]
        %v3135 = vld [vmem:[#allocation2 + $0x102] sm:$0xff]
        %v3136 = vld [vmem:[#allocation2 + $0x10a] sm:$0xff]
        %v3137 = vsel %vm1871, %v3105, 0.0
        %v3138 = vsel %vm1872, %v3106, 0.0
        %v3139 = vsel %vm1873, %v3107, 0.0
        %v3140 = vsel %vm1874, %v3108, 0.0
        %v3141 = vsel %vm1875, %v3109, 0.0
        %v3142 = vsel %vm1876, %v3110, 0.0
        %v3143 = vsel %vm1877, %v3111, 0.0
        %v3144 = vsel %vm1878, %v3112, 0.0
        %v3145 = vsel %vm1879, %v3113, 0.0
        %v3146 = vsel %vm1880, %v3114, 0.0
        %v3147 = vsel %vm1881, %v3115, 0.0
        %v3148 = vsel %vm1882, %v3116, 0.0
        %v3149 = vsel %vm1883, %v3117, 0.0
        %v3150 = vsel %vm1884, %v3118, 0.0
        %v3151 = vsel %vm1885, %v3119, 0.0
        %v3152 = vsel %vm1886, %v3120, 0.0
        %v3153 = vsel %vm1887, %v3121, 0.0
        %v3154 = vsel %vm1888, %v3122, 0.0
        %v3155 = vsel %vm1889, %v3123, 0.0
        %v3156 = vsel %vm1890, %v3124, 0.0
        %v3157 = vsel %vm1891, %v3125, 0.0
        %v3158 = vsel %vm1892, %v3126, 0.0
        %v3159 = vsel %vm1893, %v3127, 0.0
        %v3160 = vsel %vm1894, %v3128, 0.0
        %v3161 = vsel %vm1895, %v3129, 0.0
        %v3162 = vsel %vm1896, %v3130, 0.0
        %v3163 = vsel %vm1897, %v3131, 0.0
        %v3164 = vsel %vm1898, %v3132, 0.0
        %v3165 = vsel %vm1899, %v3133, 0.0
        %v3166 = vsel %vm1900, %v3134, 0.0
        %v3167 = vsel %vm1901, %v3135, 0.0
        %v3168 = vsel %vm1902, %v3136, 0.0
        %s3169 = scalar_lea.vmem %s1, 20
        %v3170 = vld [vmem:[%s3169] sm:$0x7]
        %v3172 = vsel %vm443, %v3137, 0
        %v3175 = vsel %vm443, %v3138, 0
        %v3178 = vsel %vm443, %v3139, 0
        %v3181 = vsel %vm443, %v3140, 0
        %v3184 = vsel %vm443, %v3141, 0
        %v3187 = vsel %vm443, %v3142, 0
        %v3190 = vsel %vm443, %v3143, 0
        %v3193 = vsel %vm443, %v3144, 0
        %v3196 = vsel %vm443, %v3145, 0
        %v3199 = vsel %vm443, %v3146, 0
        %v3202 = vsel %vm443, %v3147, 0
        %v3205 = vsel %vm443, %v3148, 0
        %v3208 = vsel %vm443, %v3149, 0
        %v3211 = vsel %vm443, %v3150, 0
        %v3214 = vsel %vm443, %v3151, 0
        %v3217 = vsel %vm443, %v3152, 0
        %v3220 = vsel %vm443, %v3153, 0
        %v3223 = vsel %vm443, %v3154, 0
        %v3226 = vsel %vm443, %v3155, 0
        %v3229 = vsel %vm443, %v3156, 0
        %v3232 = vsel %vm443, %v3157, 0
        %v3235 = vsel %vm443, %v3158, 0
        %v3238 = vsel %vm443, %v3159, 0
        %v3241 = vsel %vm443, %v3160, 0
        %v3244 = vsel %vm443, %v3161, 0
        %v3247 = vsel %vm443, %v3162, 0
        %v3250 = vsel %vm443, %v3163, 0
        %v3253 = vsel %vm443, %v3164, 0
        %v3256 = vsel %vm443, %v3165, 0
        %v3259 = vsel %vm443, %v3166, 0
        %v3262 = vsel %vm443, %v3167, 0
        %v3265 = vsel %vm443, %v3168, 0
        %v3268 = vsel %vm1222, %v3170, 0
        %3270 = vmatprep.subr.mxu0 0.0
        %3271 = vmatpush1.msra.mxu0 0.0
        %3272 = vmatprep.subr.mxu0 0.0
        %3273 = vmatpush1.msra.mxu0 0.0
        %3274 = vmatprep.subr.mxu0 0.0
        %3275 = vmatpush1.msra.mxu0 0.0
        %3276 = vmatprep.subr.mxu0 0.0
        %3277 = vmatpush1.msra.mxu0 0.0
        %3278 = vmatprep.subr.mxu0 0.0
        %3279 = vmatpush1.msra.mxu0 0.0
        %3280 = vmatprep.subr.mxu0 0.0
        %3281 = vmatpush1.msra.mxu0 0.0
        %3282 = vmatprep.subr.mxu0 0.0
        %3283 = vmatpush1.msra.mxu0 0.0
        %3284 = vmatprep.subr.mxu0 0.0
        %3285 = vmatpush1.msra.mxu0 0.0
        %3286 = vmatprep.subr.mxu0 0.0
        %3287 = vmatpush1.msra.mxu0 0.0
        %3288 = vmatprep.subr.mxu0 0.0
        %3289 = vmatpush1.msra.mxu0 0.0
        %3290 = vmatprep.subr.mxu0 0.0
        %3291 = vmatpush1.msra.mxu0 0.0
        %3292 = vmatprep.subr.mxu0 0.0
        %3293 = vmatpush1.msra.mxu0 0.0
        %3294 = vmatprep.subr.mxu0 0.0
        %3295 = vmatpush1.msra.mxu0 0.0
        %3296 = vmatprep.subr.mxu0 0.0
        %3297 = vmatpush1.msra.mxu0 0.0
        %3298 = vmatprep.subr.mxu0 0.0
        %3299 = vmatpush1.msra.mxu0 0.0
        %3300 = vmatprep.subr.mxu0 0.0
        %3301 = vmatpush1.msra.mxu0 %v3268
        %3302 = vmatprep.subr.mxu0 0.0
        %3303 = vmatpush2.msra.mxu0 0.0
        %3304 = vmatprep.subr.mxu0 0.0
        %3305 = vmatpush2.msra.mxu0 0.0
        %3306 = vmatprep.subr.mxu0 0.0
        %3307 = vmatpush2.msra.mxu0 0.0
        %3308 = vmatprep.subr.mxu0 0.0
        %3309 = vmatpush2.msra.mxu0 0.0
        %3310 = vmatprep.subr.mxu0 0.0
        %3311 = vmatpush2.msra.mxu0 0.0
        %3312 = vmatprep.subr.mxu0 0.0
        %3313 = vmatpush2.msra.mxu0 0.0
        %3314 = vmatprep.subr.mxu0 0.0
        %3315 = vmatpush2.msra.mxu0 0.0
        %3316 = vmatprep.subr.mxu0 0.0
        %3317 = vmatpush2.msra.mxu0 0.0
        %3318 = vmatprep.subr.mxu0 0.0
        %3319 = vmatpush2.msra.mxu0 0.0
        %3320 = vmatprep.subr.mxu0 0.0
        %3321 = vmatpush2.msra.mxu0 0.0
        %3322 = vmatprep.subr.mxu0 0.0
        %3323 = vmatpush2.msra.mxu0 0.0
        %3324 = vmatprep.subr.mxu0 0.0
        %3325 = vmatpush2.msra.mxu0 0.0
        %3326 = vmatprep.subr.mxu0 0.0
        %3327 = vmatpush2.msra.mxu0 0.0
        %3328 = vmatprep.subr.mxu0 0.0
        %3329 = vmatpush2.msra.mxu0 0.0
        %3330 = vmatprep.subr.mxu0 0.0
        %3331 = vmatpush2.msra.mxu0 0.0
        %3332 = vmatprep.subr.mxu0 0.0
        %3333 = vmatpush2.msra.mxu0 0.0
        %3334 = vmatprep.mubr.f32.mxu0 0.0
        %3335 = vmatmul.mubr.f32.gmra.mxu0 %v3172
        %v3336 = vpop.f32.mrf.mxu0
        %v3337 = vadd.f32 0.0, %v3336
        %v3338 = vpop.f32.mrf.mxu0
        %3339 = vmatprep.mubr.f32.mxu0 0.0
        %3340 = vmatmul.mubr.f32.gmra.mxu0 %v3175
        %v3341 = vpop.f32.mrf.mxu0
        %v3342 = vadd.f32 0.0, %v3341
        %v3343 = vpop.f32.mrf.mxu0
        %3344 = vmatprep.mubr.f32.mxu0 0.0
        %3345 = vmatmul.mubr.f32.gmra.mxu0 %v3178
        %v3346 = vpop.f32.mrf.mxu0
        %v3347 = vadd.f32 0.0, %v3346
        %v3348 = vpop.f32.mrf.mxu0
        %3349 = vmatprep.mubr.f32.mxu0 0.0
        %3350 = vmatmul.mubr.f32.gmra.mxu0 %v3181
        %v3351 = vpop.f32.mrf.mxu0
        %v3352 = vadd.f32 0.0, %v3351
        %v3353 = vpop.f32.mrf.mxu0
        %3354 = vmatprep.mubr.f32.mxu0 0.0
        %3355 = vmatmul.mubr.f32.gmra.mxu0 %v3184
        %v3356 = vpop.f32.mrf.mxu0
        %v3357 = vadd.f32 0.0, %v3356
        %v3358 = vpop.f32.mrf.mxu0
        %3359 = vmatprep.mubr.f32.mxu0 0.0
        %3360 = vmatmul.mubr.f32.gmra.mxu0 %v3187
        %v3361 = vpop.f32.mrf.mxu0
        %v3362 = vadd.f32 0.0, %v3361
        %v3363 = vpop.f32.mrf.mxu0
        %3364 = vmatprep.mubr.f32.mxu0 0.0
        %3365 = vmatmul.mubr.f32.gmra.mxu0 %v3190
        %v3366 = vpop.f32.mrf.mxu0
        %v3367 = vadd.f32 0.0, %v3366
        %v3368 = vpop.f32.mrf.mxu0
        %3369 = vmatprep.mubr.f32.mxu0 0.0
        %3370 = vmatmul.mubr.f32.gmra.mxu0 %v3193
        %v3371 = vpop.f32.mrf.mxu0
        %v3372 = vadd.f32 0.0, %v3371
        %v3373 = vpop.f32.mrf.mxu0
        %3374 = vmatprep.mubr.f32.mxu0 0.0
        %3375 = vmatmul.mubr.f32.gmra.mxu0 %v3196
        %v3376 = vpop.f32.mrf.mxu0
        %v3377 = vadd.f32 0.0, %v3376
        %v3378 = vpop.f32.mrf.mxu0
        %3379 = vmatprep.mubr.f32.mxu0 0.0
        %3380 = vmatmul.mubr.f32.gmra.mxu0 %v3199
        %v3381 = vpop.f32.mrf.mxu0
        %v3382 = vadd.f32 0.0, %v3381
        %v3383 = vpop.f32.mrf.mxu0
        %3384 = vmatprep.mubr.f32.mxu0 0.0
        %3385 = vmatmul.mubr.f32.gmra.mxu0 %v3202
        %v3386 = vpop.f32.mrf.mxu0
        %v3387 = vadd.f32 0.0, %v3386
        %v3388 = vpop.f32.mrf.mxu0
        %3389 = vmatprep.mubr.f32.mxu0 0.0
        %3390 = vmatmul.mubr.f32.gmra.mxu0 %v3205
        %v3391 = vpop.f32.mrf.mxu0
        %v3392 = vadd.f32 0.0, %v3391
        %v3393 = vpop.f32.mrf.mxu0
        %3394 = vmatprep.mubr.f32.mxu0 0.0
        %3395 = vmatmul.mubr.f32.gmra.mxu0 %v3208
        %v3396 = vpop.f32.mrf.mxu0
        %v3397 = vadd.f32 0.0, %v3396
        %v3398 = vpop.f32.mrf.mxu0
        %3399 = vmatprep.mubr.f32.mxu0 0.0
        %3400 = vmatmul.mubr.f32.gmra.mxu0 %v3211
        %v3401 = vpop.f32.mrf.mxu0
        %v3402 = vadd.f32 0.0, %v3401
        %v3403 = vpop.f32.mrf.mxu0
        %3404 = vmatprep.mubr.f32.mxu0 0.0
        %3405 = vmatmul.mubr.f32.gmra.mxu0 %v3214
        %v3406 = vpop.f32.mrf.mxu0
        %v3407 = vadd.f32 0.0, %v3406
        %v3408 = vpop.f32.mrf.mxu0
        %3409 = vmatprep.mubr.f32.mxu0 0.0
        %3410 = vmatmul.mubr.f32.gmra.mxu0 %v3217
        %v3411 = vpop.f32.mrf.mxu0
        %v3412 = vadd.f32 0.0, %v3411
        %v3413 = vpop.f32.mrf.mxu0
        %3414 = vmatprep.mubr.f32.mxu0 0.0
        %3415 = vmatmul.mubr.f32.gmra.mxu0 %v3220
        %v3416 = vpop.f32.mrf.mxu0
        %v3417 = vadd.f32 0.0, %v3416
        %v3418 = vpop.f32.mrf.mxu0
        %3419 = vmatprep.mubr.f32.mxu0 0.0
        %3420 = vmatmul.mubr.f32.gmra.mxu0 %v3223
        %v3421 = vpop.f32.mrf.mxu0
        %v3422 = vadd.f32 0.0, %v3421
        %v3423 = vpop.f32.mrf.mxu0
        %3424 = vmatprep.mubr.f32.mxu0 0.0
        %3425 = vmatmul.mubr.f32.gmra.mxu0 %v3226
        %v3426 = vpop.f32.mrf.mxu0
        %v3427 = vadd.f32 0.0, %v3426
        %v3428 = vpop.f32.mrf.mxu0
        %3429 = vmatprep.mubr.f32.mxu0 0.0
        %3430 = vmatmul.mubr.f32.gmra.mxu0 %v3229
        %v3431 = vpop.f32.mrf.mxu0
        %v3432 = vadd.f32 0.0, %v3431
        %v3433 = vpop.f32.mrf.mxu0
        %3434 = vmatprep.mubr.f32.mxu0 0.0
        %3435 = vmatmul.mubr.f32.gmra.mxu0 %v3232
        %v3436 = vpop.f32.mrf.mxu0
        %v3437 = vadd.f32 0.0, %v3436
        %v3438 = vpop.f32.mrf.mxu0
        %3439 = vmatprep.mubr.f32.mxu0 0.0
        %3440 = vmatmul.mubr.f32.gmra.mxu0 %v3235
        %v3441 = vpop.f32.mrf.mxu0
        %v3442 = vadd.f32 0.0, %v3441
        %v3443 = vpop.f32.mrf.mxu0
        %3444 = vmatprep.mubr.f32.mxu0 0.0
        %3445 = vmatmul.mubr.f32.gmra.mxu0 %v3238
        %v3446 = vpop.f32.mrf.mxu0
        %v3447 = vadd.f32 0.0, %v3446
        %v3448 = vpop.f32.mrf.mxu0
        %3449 = vmatprep.mubr.f32.mxu0 0.0
        %3450 = vmatmul.mubr.f32.gmra.mxu0 %v3241
        %v3451 = vpop.f32.mrf.mxu0
        %v3452 = vadd.f32 0.0, %v3451
        %v3453 = vpop.f32.mrf.mxu0
        %3454 = vmatprep.mubr.f32.mxu0 0.0
        %3455 = vmatmul.mubr.f32.gmra.mxu0 %v3244
        %v3456 = vpop.f32.mrf.mxu0
        %v3457 = vadd.f32 0.0, %v3456
        %v3458 = vpop.f32.mrf.mxu0
        %3459 = vmatprep.mubr.f32.mxu0 0.0
        %3460 = vmatmul.mubr.f32.gmra.mxu0 %v3247
        %v3461 = vpop.f32.mrf.mxu0
        %v3462 = vadd.f32 0.0, %v3461
        %v3463 = vpop.f32.mrf.mxu0
        %3464 = vmatprep.mubr.f32.mxu0 0.0
        %3465 = vmatmul.mubr.f32.gmra.mxu0 %v3250
        %v3466 = vpop.f32.mrf.mxu0
        %v3467 = vadd.f32 0.0, %v3466
        %v3468 = vpop.f32.mrf.mxu0
        %3469 = vmatprep.mubr.f32.mxu0 0.0
        %3470 = vmatmul.mubr.f32.gmra.mxu0 %v3253
        %v3471 = vpop.f32.mrf.mxu0
        %v3472 = vadd.f32 0.0, %v3471
        %v3473 = vpop.f32.mrf.mxu0
        %3474 = vmatprep.mubr.f32.mxu0 0.0
        %3475 = vmatmul.mubr.f32.gmra.mxu0 %v3256
        %v3476 = vpop.f32.mrf.mxu0
        %v3477 = vadd.f32 0.0, %v3476
        %v3478 = vpop.f32.mrf.mxu0
        %3479 = vmatprep.mubr.f32.mxu0 0.0
        %3480 = vmatmul.mubr.f32.gmra.mxu0 %v3259
        %v3481 = vpop.f32.mrf.mxu0
        %v3482 = vadd.f32 0.0, %v3481
        %v3483 = vpop.f32.mrf.mxu0
        %3484 = vmatprep.mubr.f32.mxu0 0.0
        %3485 = vmatmul.mubr.f32.gmra.mxu0 %v3262
        %v3486 = vpop.f32.mrf.mxu0
        %v3487 = vadd.f32 0.0, %v3486
        %v3488 = vpop.f32.mrf.mxu0
        %3489 = vmatprep.mubr.f32.mxu0 0.0
        %3490 = vmatmul.mubr.f32.gmra.mxu0 %v3265
        %v3491 = vpop.f32.mrf.mxu0
        %v3492 = vadd.f32 0.0, %v3491
        %v3493 = vpop.f32.mrf.mxu0
        %3494 = vdwg.mxu0
        %v3495 = vadd.f32 %v3073, %v3337
        %v3496 = vadd.f32 %v3074, %v3342
        %v3497 = vadd.f32 %v3075, %v3347
        %v3498 = vadd.f32 %v3076, %v3352
        %v3499 = vadd.f32 %v3077, %v3357
        %v3500 = vadd.f32 %v3078, %v3362
        %v3501 = vadd.f32 %v3079, %v3367
        %v3502 = vadd.f32 %v3080, %v3372
        %v3503 = vadd.f32 %v3081, %v3377
        %v3504 = vadd.f32 %v3082, %v3382
        %v3505 = vadd.f32 %v3083, %v3387
        %v3506 = vadd.f32 %v3084, %v3392
        %v3507 = vadd.f32 %v3085, %v3397
        %v3508 = vadd.f32 %v3086, %v3402
        %v3509 = vadd.f32 %v3087, %v3407
        %v3510 = vadd.f32 %v3088, %v3412
        %v3511 = vadd.f32 %v3089, %v3417
        %v3512 = vadd.f32 %v3090, %v3422
        %v3513 = vadd.f32 %v3091, %v3427
        %v3514 = vadd.f32 %v3092, %v3432
        %v3515 = vadd.f32 %v3093, %v3437
        %v3516 = vadd.f32 %v3094, %v3442
        %v3517 = vadd.f32 %v3095, %v3447
        %v3518 = vadd.f32 %v3096, %v3452
        %v3519 = vadd.f32 %v3097, %v3457
        %v3520 = vadd.f32 %v3098, %v3462
        %v3521 = vadd.f32 %v3099, %v3467
        %v3522 = vadd.f32 %v3100, %v3472
        %v3523 = vadd.f32 %v3101, %v3477
        %v3524 = vadd.f32 %v3102, %v3482
        %v3525 = vadd.f32 %v3103, %v3487
        %v3526 = vadd.f32 %v3104, %v3492
        %v3527 = vld [vmem:[#allocation2 + $0x20] sm:$0xff]
        %v3528 = vld [vmem:[#allocation2 + $0x28] sm:$0xff]
        %v3529 = vld [vmem:[#allocation2 + $0x30] sm:$0xff]
        %v3530 = vld [vmem:[#allocation2 + $0x38] sm:$0xff]
        %v3531 = vld [vmem:[#allocation2 + $0x40] sm:$0xff]
        %v3532 = vld [vmem:[#allocation2 + $0x48] sm:$0xff]
        %v3533 = vld [vmem:[#allocation2 + $0x50] sm:$0xff]
        %v3534 = vld [vmem:[#allocation2 + $0x58] sm:$0xff]
        %v3535 = vld [vmem:[#allocation2 + $0x60] sm:$0xff]
        %v3536 = vld [vmem:[#allocation2 + $0x68] sm:$0xff]
        %v3537 = vld [vmem:[#allocation2 + $0x70] sm:$0xff]
        %v3538 = vld [vmem:[#allocation2 + $0x78] sm:$0xff]
        %v3539 = vld [vmem:[#allocation2 + $0x80] sm:$0xff]
        %v3540 = vld [vmem:[#allocation2 + $0x88] sm:$0xff]
        %v3541 = vld [vmem:[#allocation2 + $0x90] sm:$0xff]
        %v3542 = vld [vmem:[#allocation2 + $0x98] sm:$0xff]
        %v3543 = vld [vmem:[#allocation2 + $0xa0] sm:$0xff]
        %v3544 = vld [vmem:[#allocation2 + $0xa8] sm:$0xff]
        %v3545 = vld [vmem:[#allocation2 + $0xb0] sm:$0xff]
        %v3546 = vld [vmem:[#allocation2 + $0xb8] sm:$0xff]
        %v3547 = vld [vmem:[#allocation2 + $0xc0] sm:$0xff]
        %v3548 = vld [vmem:[#allocation2 + $0xc8] sm:$0xff]
        %v3549 = vld [vmem:[#allocation2 + $0xd0] sm:$0xff]
        %v3550 = vld [vmem:[#allocation2 + $0xd8] sm:$0xff]
        %v3551 = vld [vmem:[#allocation2 + $0xe0] sm:$0xff]
        %v3552 = vld [vmem:[#allocation2 + $0xe8] sm:$0xff]
        %v3553 = vld [vmem:[#allocation2 + $0xf0] sm:$0xff]
        %v3554 = vld [vmem:[#allocation2 + $0xf8] sm:$0xff]
        %v3555 = vld [vmem:[#allocation2 + $0x100] sm:$0xff]
        %v3556 = vld [vmem:[#allocation2 + $0x108] sm:$0xff]
        %v3557 = vld [vmem:[#allocation2 + $0x110] sm:$0xff]
        %v3558 = vld [vmem:[#allocation2 + $0x118] sm:$0xff]
        %v3559 = vsel %vm1027, %v3527, 0.0
        %v3560 = vsel %vm1028, %v3528, 0.0
        %v3561 = vsel %vm1029, %v3529, 0.0
        %v3562 = vsel %vm1030, %v3530, 0.0
        %v3563 = vsel %vm1031, %v3531, 0.0
        %v3564 = vsel %vm1032, %v3532, 0.0
        %v3565 = vsel %vm1033, %v3533, 0.0
        %v3566 = vsel %vm1034, %v3534, 0.0
        %v3567 = vsel %vm1035, %v3535, 0.0
        %v3568 = vsel %vm1036, %v3536, 0.0
        %v3569 = vsel %vm1037, %v3537, 0.0
        %v3570 = vsel %vm1038, %v3538, 0.0
        %v3571 = vsel %vm1039, %v3539, 0.0
        %v3572 = vsel %vm1040, %v3540, 0.0
        %v3573 = vsel %vm1041, %v3541, 0.0
        %v3574 = vsel %vm1042, %v3542, 0.0
        %v3575 = vsel %vm1043, %v3543, 0.0
        %v3576 = vsel %vm1044, %v3544, 0.0
        %v3577 = vsel %vm1045, %v3545, 0.0
        %v3578 = vsel %vm1046, %v3546, 0.0
        %v3579 = vsel %vm1047, %v3547, 0.0
        %v3580 = vsel %vm1048, %v3548, 0.0
        %v3581 = vsel %vm1049, %v3549, 0.0
        %v3582 = vsel %vm1050, %v3550, 0.0
        %v3583 = vsel %vm1051, %v3551, 0.0
        %v3584 = vsel %vm1052, %v3552, 0.0
        %v3585 = vsel %vm1053, %v3553, 0.0
        %v3586 = vsel %vm1054, %v3554, 0.0
        %v3587 = vsel %vm1055, %v3555, 0.0
        %v3588 = vsel %vm1056, %v3556, 0.0
        %v3589 = vsel %vm1057, %v3557, 0.0
        %v3590 = vsel %vm1058, %v3558, 0.0
        %s3591 = scalar_lea.vmem %s1, 24
        %v3592 = vld [vmem:[%s3591] sm:$0x7]
        %v3594 = vsel %vm443, %v3559, 0
        %v3597 = vsel %vm443, %v3560, 0
        %v3600 = vsel %vm443, %v3561, 0
        %v3603 = vsel %vm443, %v3562, 0
        %v3606 = vsel %vm443, %v3563, 0
        %v3609 = vsel %vm443, %v3564, 0
        %v3612 = vsel %vm443, %v3565, 0
        %v3615 = vsel %vm443, %v3566, 0
        %v3618 = vsel %vm443, %v3567, 0
        %v3621 = vsel %vm443, %v3568, 0
        %v3624 = vsel %vm443, %v3569, 0
        %v3627 = vsel %vm443, %v3570, 0
        %v3630 = vsel %vm443, %v3571, 0
        %v3633 = vsel %vm443, %v3572, 0
        %v3636 = vsel %vm443, %v3573, 0
        %v3639 = vsel %vm443, %v3574, 0
        %v3642 = vsel %vm443, %v3575, 0
        %v3645 = vsel %vm443, %v3576, 0
        %v3648 = vsel %vm443, %v3577, 0
        %v3651 = vsel %vm443, %v3578, 0
        %v3654 = vsel %vm443, %v3579, 0
        %v3657 = vsel %vm443, %v3580, 0
        %v3660 = vsel %vm443, %v3581, 0
        %v3663 = vsel %vm443, %v3582, 0
        %v3666 = vsel %vm443, %v3583, 0
        %v3669 = vsel %vm443, %v3584, 0
        %v3672 = vsel %vm443, %v3585, 0
        %v3675 = vsel %vm443, %v3586, 0
        %v3678 = vsel %vm443, %v3587, 0
        %v3681 = vsel %vm443, %v3588, 0
        %v3684 = vsel %vm443, %v3589, 0
        %v3687 = vsel %vm443, %v3590, 0
        %v3690 = vsel %vm1222, %v3592, 0
        %3692 = vmatprep.subr.mxu0 0.0
        %3693 = vmatpush1.msra.mxu0 0.0
        %3694 = vmatprep.subr.mxu0 0.0
        %3695 = vmatpush1.msra.mxu0 0.0
        %3696 = vmatprep.subr.mxu0 0.0
        %3697 = vmatpush1.msra.mxu0 0.0
        %3698 = vmatprep.subr.mxu0 0.0
        %3699 = vmatpush1.msra.mxu0 0.0
        %3700 = vmatprep.subr.mxu0 0.0
        %3701 = vmatpush1.msra.mxu0 0.0
        %3702 = vmatprep.subr.mxu0 0.0
        %3703 = vmatpush1.msra.mxu0 0.0
        %3704 = vmatprep.subr.mxu0 0.0
        %3705 = vmatpush1.msra.mxu0 0.0
        %3706 = vmatprep.subr.mxu0 0.0
        %3707 = vmatpush1.msra.mxu0 0.0
        %3708 = vmatprep.subr.mxu0 0.0
        %3709 = vmatpush1.msra.mxu0 0.0
        %3710 = vmatprep.subr.mxu0 0.0
        %3711 = vmatpush1.msra.mxu0 0.0
        %3712 = vmatprep.subr.mxu0 0.0
        %3713 = vmatpush1.msra.mxu0 0.0
        %3714 = vmatprep.subr.mxu0 0.0
        %3715 = vmatpush1.msra.mxu0 0.0
        %3716 = vmatprep.subr.mxu0 0.0
        %3717 = vmatpush1.msra.mxu0 0.0
        %3718 = vmatprep.subr.mxu0 0.0
        %3719 = vmatpush1.msra.mxu0 0.0
        %3720 = vmatprep.subr.mxu0 0.0
        %3721 = vmatpush1.msra.mxu0 0.0
        %3722 = vmatprep.subr.mxu0 0.0
        %3723 = vmatpush1.msra.mxu0 %v3690
        %3724 = vmatprep.subr.mxu0 0.0
        %3725 = vmatpush2.msra.mxu0 0.0
        %3726 = vmatprep.subr.mxu0 0.0
        %3727 = vmatpush2.msra.mxu0 0.0
        %3728 = vmatprep.subr.mxu0 0.0
        %3729 = vmatpush2.msra.mxu0 0.0
        %3730 = vmatprep.subr.mxu0 0.0
        %3731 = vmatpush2.msra.mxu0 0.0
        %3732 = vmatprep.subr.mxu0 0.0
        %3733 = vmatpush2.msra.mxu0 0.0
        %3734 = vmatprep.subr.mxu0 0.0
        %3735 = vmatpush2.msra.mxu0 0.0
        %3736 = vmatprep.subr.mxu0 0.0
        %3737 = vmatpush2.msra.mxu0 0.0
        %3738 = vmatprep.subr.mxu0 0.0
        %3739 = vmatpush2.msra.mxu0 0.0
        %3740 = vmatprep.subr.mxu0 0.0
        %3741 = vmatpush2.msra.mxu0 0.0
        %3742 = vmatprep.subr.mxu0 0.0
        %3743 = vmatpush2.msra.mxu0 0.0
        %3744 = vmatprep.subr.mxu0 0.0
        %3745 = vmatpush2.msra.mxu0 0.0
        %3746 = vmatprep.subr.mxu0 0.0
        %3747 = vmatpush2.msra.mxu0 0.0
        %3748 = vmatprep.subr.mxu0 0.0
        %3749 = vmatpush2.msra.mxu0 0.0
        %3750 = vmatprep.subr.mxu0 0.0
        %3751 = vmatpush2.msra.mxu0 0.0
        %3752 = vmatprep.subr.mxu0 0.0
        %3753 = vmatpush2.msra.mxu0 0.0
        %3754 = vmatprep.subr.mxu0 0.0
        %3755 = vmatpush2.msra.mxu0 0.0
        %3756 = vmatprep.mubr.f32.mxu0 0.0
        %3757 = vmatmul.mubr.f32.gmra.mxu0 %v3594
        %v3758 = vpop.f32.mrf.mxu0
        %v3759 = vadd.f32 0.0, %v3758
        %v3760 = vpop.f32.mrf.mxu0
        %3761 = vmatprep.mubr.f32.mxu0 0.0
        %3762 = vmatmul.mubr.f32.gmra.mxu0 %v3597
        %v3763 = vpop.f32.mrf.mxu0
        %v3764 = vadd.f32 0.0, %v3763
        %v3765 = vpop.f32.mrf.mxu0
        %3766 = vmatprep.mubr.f32.mxu0 0.0
        %3767 = vmatmul.mubr.f32.gmra.mxu0 %v3600
        %v3768 = vpop.f32.mrf.mxu0
        %v3769 = vadd.f32 0.0, %v3768
        %v3770 = vpop.f32.mrf.mxu0
        %3771 = vmatprep.mubr.f32.mxu0 0.0
        %3772 = vmatmul.mubr.f32.gmra.mxu0 %v3603
        %v3773 = vpop.f32.mrf.mxu0
        %v3774 = vadd.f32 0.0, %v3773
        %v3775 = vpop.f32.mrf.mxu0
        %3776 = vmatprep.mubr.f32.mxu0 0.0
        %3777 = vmatmul.mubr.f32.gmra.mxu0 %v3606
        %v3778 = vpop.f32.mrf.mxu0
        %v3779 = vadd.f32 0.0, %v3778
        %v3780 = vpop.f32.mrf.mxu0
        %3781 = vmatprep.mubr.f32.mxu0 0.0
        %3782 = vmatmul.mubr.f32.gmra.mxu0 %v3609
        %v3783 = vpop.f32.mrf.mxu0
        %v3784 = vadd.f32 0.0, %v3783
        %v3785 = vpop.f32.mrf.mxu0
        %3786 = vmatprep.mubr.f32.mxu0 0.0
        %3787 = vmatmul.mubr.f32.gmra.mxu0 %v3612
        %v3788 = vpop.f32.mrf.mxu0
        %v3789 = vadd.f32 0.0, %v3788
        %v3790 = vpop.f32.mrf.mxu0
        %3791 = vmatprep.mubr.f32.mxu0 0.0
        %3792 = vmatmul.mubr.f32.gmra.mxu0 %v3615
        %v3793 = vpop.f32.mrf.mxu0
        %v3794 = vadd.f32 0.0, %v3793
        %v3795 = vpop.f32.mrf.mxu0
        %3796 = vmatprep.mubr.f32.mxu0 0.0
        %3797 = vmatmul.mubr.f32.gmra.mxu0 %v3618
        %v3798 = vpop.f32.mrf.mxu0
        %v3799 = vadd.f32 0.0, %v3798
        %v3800 = vpop.f32.mrf.mxu0
        %3801 = vmatprep.mubr.f32.mxu0 0.0
        %3802 = vmatmul.mubr.f32.gmra.mxu0 %v3621
        %v3803 = vpop.f32.mrf.mxu0
        %v3804 = vadd.f32 0.0, %v3803
        %v3805 = vpop.f32.mrf.mxu0
        %3806 = vmatprep.mubr.f32.mxu0 0.0
        %3807 = vmatmul.mubr.f32.gmra.mxu0 %v3624
        %v3808 = vpop.f32.mrf.mxu0
        %v3809 = vadd.f32 0.0, %v3808
        %v3810 = vpop.f32.mrf.mxu0
        %3811 = vmatprep.mubr.f32.mxu0 0.0
        %3812 = vmatmul.mubr.f32.gmra.mxu0 %v3627
        %v3813 = vpop.f32.mrf.mxu0
        %v3814 = vadd.f32 0.0, %v3813
        %v3815 = vpop.f32.mrf.mxu0
        %3816 = vmatprep.mubr.f32.mxu0 0.0
        %3817 = vmatmul.mubr.f32.gmra.mxu0 %v3630
        %v3818 = vpop.f32.mrf.mxu0
        %v3819 = vadd.f32 0.0, %v3818
        %v3820 = vpop.f32.mrf.mxu0
        %3821 = vmatprep.mubr.f32.mxu0 0.0
        %3822 = vmatmul.mubr.f32.gmra.mxu0 %v3633
        %v3823 = vpop.f32.mrf.mxu0
        %v3824 = vadd.f32 0.0, %v3823
        %v3825 = vpop.f32.mrf.mxu0
        %3826 = vmatprep.mubr.f32.mxu0 0.0
        %3827 = vmatmul.mubr.f32.gmra.mxu0 %v3636
        %v3828 = vpop.f32.mrf.mxu0
        %v3829 = vadd.f32 0.0, %v3828
        %v3830 = vpop.f32.mrf.mxu0
        %3831 = vmatprep.mubr.f32.mxu0 0.0
        %3832 = vmatmul.mubr.f32.gmra.mxu0 %v3639
        %v3833 = vpop.f32.mrf.mxu0
        %v3834 = vadd.f32 0.0, %v3833
        %v3835 = vpop.f32.mrf.mxu0
        %3836 = vmatprep.mubr.f32.mxu0 0.0
        %3837 = vmatmul.mubr.f32.gmra.mxu0 %v3642
        %v3838 = vpop.f32.mrf.mxu0
        %v3839 = vadd.f32 0.0, %v3838
        %v3840 = vpop.f32.mrf.mxu0
        %3841 = vmatprep.mubr.f32.mxu0 0.0
        %3842 = vmatmul.mubr.f32.gmra.mxu0 %v3645
        %v3843 = vpop.f32.mrf.mxu0
        %v3844 = vadd.f32 0.0, %v3843
        %v3845 = vpop.f32.mrf.mxu0
        %3846 = vmatprep.mubr.f32.mxu0 0.0
        %3847 = vmatmul.mubr.f32.gmra.mxu0 %v3648
        %v3848 = vpop.f32.mrf.mxu0
        %v3849 = vadd.f32 0.0, %v3848
        %v3850 = vpop.f32.mrf.mxu0
        %3851 = vmatprep.mubr.f32.mxu0 0.0
        %3852 = vmatmul.mubr.f32.gmra.mxu0 %v3651
        %v3853 = vpop.f32.mrf.mxu0
        %v3854 = vadd.f32 0.0, %v3853
        %v3855 = vpop.f32.mrf.mxu0
        %3856 = vmatprep.mubr.f32.mxu0 0.0
        %3857 = vmatmul.mubr.f32.gmra.mxu0 %v3654
        %v3858 = vpop.f32.mrf.mxu0
        %v3859 = vadd.f32 0.0, %v3858
        %v3860 = vpop.f32.mrf.mxu0
        %3861 = vmatprep.mubr.f32.mxu0 0.0
        %3862 = vmatmul.mubr.f32.gmra.mxu0 %v3657
        %v3863 = vpop.f32.mrf.mxu0
        %v3864 = vadd.f32 0.0, %v3863
        %v3865 = vpop.f32.mrf.mxu0
        %3866 = vmatprep.mubr.f32.mxu0 0.0
        %3867 = vmatmul.mubr.f32.gmra.mxu0 %v3660
        %v3868 = vpop.f32.mrf.mxu0
        %v3869 = vadd.f32 0.0, %v3868
        %v3870 = vpop.f32.mrf.mxu0
        %3871 = vmatprep.mubr.f32.mxu0 0.0
        %3872 = vmatmul.mubr.f32.gmra.mxu0 %v3663
        %v3873 = vpop.f32.mrf.mxu0
        %v3874 = vadd.f32 0.0, %v3873
        %v3875 = vpop.f32.mrf.mxu0
        %3876 = vmatprep.mubr.f32.mxu0 0.0
        %3877 = vmatmul.mubr.f32.gmra.mxu0 %v3666
        %v3878 = vpop.f32.mrf.mxu0
        %v3879 = vadd.f32 0.0, %v3878
        %v3880 = vpop.f32.mrf.mxu0
        %3881 = vmatprep.mubr.f32.mxu0 0.0
        %3882 = vmatmul.mubr.f32.gmra.mxu0 %v3669
        %v3883 = vpop.f32.mrf.mxu0
        %v3884 = vadd.f32 0.0, %v3883
        %v3885 = vpop.f32.mrf.mxu0
        %3886 = vmatprep.mubr.f32.mxu0 0.0
        %3887 = vmatmul.mubr.f32.gmra.mxu0 %v3672
        %v3888 = vpop.f32.mrf.mxu0
        %v3889 = vadd.f32 0.0, %v3888
        %v3890 = vpop.f32.mrf.mxu0
        %3891 = vmatprep.mubr.f32.mxu0 0.0
        %3892 = vmatmul.mubr.f32.gmra.mxu0 %v3675
        %v3893 = vpop.f32.mrf.mxu0
        %v3894 = vadd.f32 0.0, %v3893
        %v3895 = vpop.f32.mrf.mxu0
        %3896 = vmatprep.mubr.f32.mxu0 0.0
        %3897 = vmatmul.mubr.f32.gmra.mxu0 %v3678
        %v3898 = vpop.f32.mrf.mxu0
        %v3899 = vadd.f32 0.0, %v3898
        %v3900 = vpop.f32.mrf.mxu0
        %3901 = vmatprep.mubr.f32.mxu0 0.0
        %3902 = vmatmul.mubr.f32.gmra.mxu0 %v3681
        %v3903 = vpop.f32.mrf.mxu0
        %v3904 = vadd.f32 0.0, %v3903
        %v3905 = vpop.f32.mrf.mxu0
        %3906 = vmatprep.mubr.f32.mxu0 0.0
        %3907 = vmatmul.mubr.f32.gmra.mxu0 %v3684
        %v3908 = vpop.f32.mrf.mxu0
        %v3909 = vadd.f32 0.0, %v3908
        %v3910 = vpop.f32.mrf.mxu0
        %3911 = vmatprep.mubr.f32.mxu0 0.0
        %3912 = vmatmul.mubr.f32.gmra.mxu0 %v3687
        %v3913 = vpop.f32.mrf.mxu0
        %v3914 = vadd.f32 0.0, %v3913
        %v3915 = vpop.f32.mrf.mxu0
        %3916 = vdwg.mxu0
        %v3917 = vadd.f32 %v3495, %v3759
        %v3918 = vadd.f32 %v3496, %v3764
        %v3919 = vadd.f32 %v3497, %v3769
        %v3920 = vadd.f32 %v3498, %v3774
        %v3921 = vadd.f32 %v3499, %v3779
        %v3922 = vadd.f32 %v3500, %v3784
        %v3923 = vadd.f32 %v3501, %v3789
        %v3924 = vadd.f32 %v3502, %v3794
        %v3925 = vadd.f32 %v3503, %v3799
        %v3926 = vadd.f32 %v3504, %v3804
        %v3927 = vadd.f32 %v3505, %v3809
        %v3928 = vadd.f32 %v3506, %v3814
        %v3929 = vadd.f32 %v3507, %v3819
        %v3930 = vadd.f32 %v3508, %v3824
        %v3931 = vadd.f32 %v3509, %v3829
        %v3932 = vadd.f32 %v3510, %v3834
        %v3933 = vadd.f32 %v3511, %v3839
        %v3934 = vadd.f32 %v3512, %v3844
        %v3935 = vadd.f32 %v3513, %v3849
        %v3936 = vadd.f32 %v3514, %v3854
        %v3937 = vadd.f32 %v3515, %v3859
        %v3938 = vadd.f32 %v3516, %v3864
        %v3939 = vadd.f32 %v3517, %v3869
        %v3940 = vadd.f32 %v3518, %v3874
        %v3941 = vadd.f32 %v3519, %v3879
        %v3942 = vadd.f32 %v3520, %v3884
        %v3943 = vadd.f32 %v3521, %v3889
        %v3944 = vadd.f32 %v3522, %v3894
        %v3945 = vadd.f32 %v3523, %v3899
        %v3946 = vadd.f32 %v3524, %v3904
        %v3947 = vadd.f32 %v3525, %v3909
        %v3948 = vadd.f32 %v3526, %v3914
        %v3949 = vld [vmem:[#allocation2 + $0x21] sm:$0xff]
        %v3950 = vld [vmem:[#allocation2 + $0x29] sm:$0xff]
        %v3951 = vld [vmem:[#allocation2 + $0x31] sm:$0xff]
        %v3952 = vld [vmem:[#allocation2 + $0x39] sm:$0xff]
        %v3953 = vld [vmem:[#allocation2 + $0x41] sm:$0xff]
        %v3954 = vld [vmem:[#allocation2 + $0x49] sm:$0xff]
        %v3955 = vld [vmem:[#allocation2 + $0x51] sm:$0xff]
        %v3956 = vld [vmem:[#allocation2 + $0x59] sm:$0xff]
        %v3957 = vld [vmem:[#allocation2 + $0x61] sm:$0xff]
        %v3958 = vld [vmem:[#allocation2 + $0x69] sm:$0xff]
        %v3959 = vld [vmem:[#allocation2 + $0x71] sm:$0xff]
        %v3960 = vld [vmem:[#allocation2 + $0x79] sm:$0xff]
        %v3961 = vld [vmem:[#allocation2 + $0x81] sm:$0xff]
        %v3962 = vld [vmem:[#allocation2 + $0x89] sm:$0xff]
        %v3963 = vld [vmem:[#allocation2 + $0x91] sm:$0xff]
        %v3964 = vld [vmem:[#allocation2 + $0x99] sm:$0xff]
        %v3965 = vld [vmem:[#allocation2 + $0xa1] sm:$0xff]
        %v3966 = vld [vmem:[#allocation2 + $0xa9] sm:$0xff]
        %v3967 = vld [vmem:[#allocation2 + $0xb1] sm:$0xff]
        %v3968 = vld [vmem:[#allocation2 + $0xb9] sm:$0xff]
        %v3969 = vld [vmem:[#allocation2 + $0xc1] sm:$0xff]
        %v3970 = vld [vmem:[#allocation2 + $0xc9] sm:$0xff]
        %v3971 = vld [vmem:[#allocation2 + $0xd1] sm:$0xff]
        %v3972 = vld [vmem:[#allocation2 + $0xd9] sm:$0xff]
        %v3973 = vld [vmem:[#allocation2 + $0xe1] sm:$0xff]
        %v3974 = vld [vmem:[#allocation2 + $0xe9] sm:$0xff]
        %v3975 = vld [vmem:[#allocation2 + $0xf1] sm:$0xff]
        %v3976 = vld [vmem:[#allocation2 + $0xf9] sm:$0xff]
        %v3977 = vld [vmem:[#allocation2 + $0x101] sm:$0xff]
        %v3978 = vld [vmem:[#allocation2 + $0x109] sm:$0xff]
        %v3979 = vld [vmem:[#allocation2 + $0x111] sm:$0xff]
        %v3980 = vld [vmem:[#allocation2 + $0x119] sm:$0xff]
        %s3981 = scalar_lea.vmem %s1, 28
        %v3982 = vld [vmem:[%s3981] sm:$0x7]
        %v3984 = vsel %vm443, %v3949, 0
        %v3987 = vsel %vm443, %v3950, 0
        %v3990 = vsel %vm443, %v3951, 0
        %v3993 = vsel %vm443, %v3952, 0
        %v3996 = vsel %vm443, %v3953, 0
        %v3999 = vsel %vm443, %v3954, 0
        %v4002 = vsel %vm443, %v3955, 0
        %v4005 = vsel %vm443, %v3956, 0
        %v4008 = vsel %vm443, %v3957, 0
        %v4011 = vsel %vm443, %v3958, 0
        %v4014 = vsel %vm443, %v3959, 0
        %v4017 = vsel %vm443, %v3960, 0
        %v4020 = vsel %vm443, %v3961, 0
        %v4023 = vsel %vm443, %v3962, 0
        %v4026 = vsel %vm443, %v3963, 0
        %v4029 = vsel %vm443, %v3964, 0
        %v4032 = vsel %vm443, %v3965, 0
        %v4035 = vsel %vm443, %v3966, 0
        %v4038 = vsel %vm443, %v3967, 0
        %v4041 = vsel %vm443, %v3968, 0
        %v4044 = vsel %vm443, %v3969, 0
        %v4047 = vsel %vm443, %v3970, 0
        %v4050 = vsel %vm443, %v3971, 0
        %v4053 = vsel %vm443, %v3972, 0
        %v4056 = vsel %vm443, %v3973, 0
        %v4059 = vsel %vm443, %v3974, 0
        %v4062 = vsel %vm443, %v3975, 0
        %v4065 = vsel %vm443, %v3976, 0
        %v4068 = vsel %vm443, %v3977, 0
        %v4071 = vsel %vm443, %v3978, 0
        %v4074 = vsel %vm443, %v3979, 0
        %v4077 = vsel %vm443, %v3980, 0
        %v4080 = vsel %vm1222, %v3982, 0
        %4082 = vmatprep.subr.mxu0 0.0
        %4083 = vmatpush1.msra.mxu0 0.0
        %4084 = vmatprep.subr.mxu0 0.0
        %4085 = vmatpush1.msra.mxu0 0.0
        %4086 = vmatprep.subr.mxu0 0.0
        %4087 = vmatpush1.msra.mxu0 0.0
        %4088 = vmatprep.subr.mxu0 0.0
        %4089 = vmatpush1.msra.mxu0 0.0
        %4090 = vmatprep.subr.mxu0 0.0
        %4091 = vmatpush1.msra.mxu0 0.0
        %4092 = vmatprep.subr.mxu0 0.0
        %4093 = vmatpush1.msra.mxu0 0.0
        %4094 = vmatprep.subr.mxu0 0.0
        %4095 = vmatpush1.msra.mxu0 0.0
        %4096 = vmatprep.subr.mxu0 0.0
        %4097 = vmatpush1.msra.mxu0 0.0
        %4098 = vmatprep.subr.mxu0 0.0
        %4099 = vmatpush1.msra.mxu0 0.0
        %4100 = vmatprep.subr.mxu0 0.0
        %4101 = vmatpush1.msra.mxu0 0.0
        %4102 = vmatprep.subr.mxu0 0.0
        %4103 = vmatpush1.msra.mxu0 0.0
        %4104 = vmatprep.subr.mxu0 0.0
        %4105 = vmatpush1.msra.mxu0 0.0
        %4106 = vmatprep.subr.mxu0 0.0
        %4107 = vmatpush1.msra.mxu0 0.0
        %4108 = vmatprep.subr.mxu0 0.0
        %4109 = vmatpush1.msra.mxu0 0.0
        %4110 = vmatprep.subr.mxu0 0.0
        %4111 = vmatpush1.msra.mxu0 0.0
        %4112 = vmatprep.subr.mxu0 0.0
        %4113 = vmatpush1.msra.mxu0 %v4080
        %4114 = vmatprep.subr.mxu0 0.0
        %4115 = vmatpush2.msra.mxu0 0.0
        %4116 = vmatprep.subr.mxu0 0.0
        %4117 = vmatpush2.msra.mxu0 0.0
        %4118 = vmatprep.subr.mxu0 0.0
        %4119 = vmatpush2.msra.mxu0 0.0
        %4120 = vmatprep.subr.mxu0 0.0
        %4121 = vmatpush2.msra.mxu0 0.0
        %4122 = vmatprep.subr.mxu0 0.0
        %4123 = vmatpush2.msra.mxu0 0.0
        %4124 = vmatprep.subr.mxu0 0.0
        %4125 = vmatpush2.msra.mxu0 0.0
        %4126 = vmatprep.subr.mxu0 0.0
        %4127 = vmatpush2.msra.mxu0 0.0
        %4128 = vmatprep.subr.mxu0 0.0
        %4129 = vmatpush2.msra.mxu0 0.0
        %4130 = vmatprep.subr.mxu0 0.0
        %4131 = vmatpush2.msra.mxu0 0.0
        %4132 = vmatprep.subr.mxu0 0.0
        %4133 = vmatpush2.msra.mxu0 0.0
        %4134 = vmatprep.subr.mxu0 0.0
        %4135 = vmatpush2.msra.mxu0 0.0
        %4136 = vmatprep.subr.mxu0 0.0
        %4137 = vmatpush2.msra.mxu0 0.0
        %4138 = vmatprep.subr.mxu0 0.0
        %4139 = vmatpush2.msra.mxu0 0.0
        %4140 = vmatprep.subr.mxu0 0.0
        %4141 = vmatpush2.msra.mxu0 0.0
        %4142 = vmatprep.subr.mxu0 0.0
        %4143 = vmatpush2.msra.mxu0 0.0
        %4144 = vmatprep.subr.mxu0 0.0
        %4145 = vmatpush2.msra.mxu0 0.0
        %4146 = vmatprep.mubr.f32.mxu0 0.0
        %4147 = vmatmul.mubr.f32.gmra.mxu0 %v3984
        %v4148 = vpop.f32.mrf.mxu0
        %v4149 = vadd.f32 0.0, %v4148
        %v4150 = vpop.f32.mrf.mxu0
        %4151 = vmatprep.mubr.f32.mxu0 0.0
        %4152 = vmatmul.mubr.f32.gmra.mxu0 %v3987
        %v4153 = vpop.f32.mrf.mxu0
        %v4154 = vadd.f32 0.0, %v4153
        %v4155 = vpop.f32.mrf.mxu0
        %4156 = vmatprep.mubr.f32.mxu0 0.0
        %4157 = vmatmul.mubr.f32.gmra.mxu0 %v3990
        %v4158 = vpop.f32.mrf.mxu0
        %v4159 = vadd.f32 0.0, %v4158
        %v4160 = vpop.f32.mrf.mxu0
        %4161 = vmatprep.mubr.f32.mxu0 0.0
        %4162 = vmatmul.mubr.f32.gmra.mxu0 %v3993
        %v4163 = vpop.f32.mrf.mxu0
        %v4164 = vadd.f32 0.0, %v4163
        %v4165 = vpop.f32.mrf.mxu0
        %4166 = vmatprep.mubr.f32.mxu0 0.0
        %4167 = vmatmul.mubr.f32.gmra.mxu0 %v3996
        %v4168 = vpop.f32.mrf.mxu0
        %v4169 = vadd.f32 0.0, %v4168
        %v4170 = vpop.f32.mrf.mxu0
        %4171 = vmatprep.mubr.f32.mxu0 0.0
        %4172 = vmatmul.mubr.f32.gmra.mxu0 %v3999
        %v4173 = vpop.f32.mrf.mxu0
        %v4174 = vadd.f32 0.0, %v4173
        %v4175 = vpop.f32.mrf.mxu0
        %4176 = vmatprep.mubr.f32.mxu0 0.0
        %4177 = vmatmul.mubr.f32.gmra.mxu0 %v4002
        %v4178 = vpop.f32.mrf.mxu0
        %v4179 = vadd.f32 0.0, %v4178
        %v4180 = vpop.f32.mrf.mxu0
        %4181 = vmatprep.mubr.f32.mxu0 0.0
        %4182 = vmatmul.mubr.f32.gmra.mxu0 %v4005
        %v4183 = vpop.f32.mrf.mxu0
        %v4184 = vadd.f32 0.0, %v4183
        %v4185 = vpop.f32.mrf.mxu0
        %4186 = vmatprep.mubr.f32.mxu0 0.0
        %4187 = vmatmul.mubr.f32.gmra.mxu0 %v4008
        %v4188 = vpop.f32.mrf.mxu0
        %v4189 = vadd.f32 0.0, %v4188
        %v4190 = vpop.f32.mrf.mxu0
        %4191 = vmatprep.mubr.f32.mxu0 0.0
        %4192 = vmatmul.mubr.f32.gmra.mxu0 %v4011
        %v4193 = vpop.f32.mrf.mxu0
        %v4194 = vadd.f32 0.0, %v4193
        %v4195 = vpop.f32.mrf.mxu0
        %4196 = vmatprep.mubr.f32.mxu0 0.0
        %4197 = vmatmul.mubr.f32.gmra.mxu0 %v4014
        %v4198 = vpop.f32.mrf.mxu0
        %v4199 = vadd.f32 0.0, %v4198
        %v4200 = vpop.f32.mrf.mxu0
        %4201 = vmatprep.mubr.f32.mxu0 0.0
        %4202 = vmatmul.mubr.f32.gmra.mxu0 %v4017
        %v4203 = vpop.f32.mrf.mxu0
        %v4204 = vadd.f32 0.0, %v4203
        %v4205 = vpop.f32.mrf.mxu0
        %4206 = vmatprep.mubr.f32.mxu0 0.0
        %4207 = vmatmul.mubr.f32.gmra.mxu0 %v4020
        %v4208 = vpop.f32.mrf.mxu0
        %v4209 = vadd.f32 0.0, %v4208
        %v4210 = vpop.f32.mrf.mxu0
        %4211 = vmatprep.mubr.f32.mxu0 0.0
        %4212 = vmatmul.mubr.f32.gmra.mxu0 %v4023
        %v4213 = vpop.f32.mrf.mxu0
        %v4214 = vadd.f32 0.0, %v4213
        %v4215 = vpop.f32.mrf.mxu0
        %4216 = vmatprep.mubr.f32.mxu0 0.0
        %4217 = vmatmul.mubr.f32.gmra.mxu0 %v4026
        %v4218 = vpop.f32.mrf.mxu0
        %v4219 = vadd.f32 0.0, %v4218
        %v4220 = vpop.f32.mrf.mxu0
        %4221 = vmatprep.mubr.f32.mxu0 0.0
        %4222 = vmatmul.mubr.f32.gmra.mxu0 %v4029
        %v4223 = vpop.f32.mrf.mxu0
        %v4224 = vadd.f32 0.0, %v4223
        %v4225 = vpop.f32.mrf.mxu0
        %4226 = vmatprep.mubr.f32.mxu0 0.0
        %4227 = vmatmul.mubr.f32.gmra.mxu0 %v4032
        %v4228 = vpop.f32.mrf.mxu0
        %v4229 = vadd.f32 0.0, %v4228
        %v4230 = vpop.f32.mrf.mxu0
        %4231 = vmatprep.mubr.f32.mxu0 0.0
        %4232 = vmatmul.mubr.f32.gmra.mxu0 %v4035
        %v4233 = vpop.f32.mrf.mxu0
        %v4234 = vadd.f32 0.0, %v4233
        %v4235 = vpop.f32.mrf.mxu0
        %4236 = vmatprep.mubr.f32.mxu0 0.0
        %4237 = vmatmul.mubr.f32.gmra.mxu0 %v4038
        %v4238 = vpop.f32.mrf.mxu0
        %v4239 = vadd.f32 0.0, %v4238
        %v4240 = vpop.f32.mrf.mxu0
        %4241 = vmatprep.mubr.f32.mxu0 0.0
        %4242 = vmatmul.mubr.f32.gmra.mxu0 %v4041
        %v4243 = vpop.f32.mrf.mxu0
        %v4244 = vadd.f32 0.0, %v4243
        %v4245 = vpop.f32.mrf.mxu0
        %4246 = vmatprep.mubr.f32.mxu0 0.0
        %4247 = vmatmul.mubr.f32.gmra.mxu0 %v4044
        %v4248 = vpop.f32.mrf.mxu0
        %v4249 = vadd.f32 0.0, %v4248
        %v4250 = vpop.f32.mrf.mxu0
        %4251 = vmatprep.mubr.f32.mxu0 0.0
        %4252 = vmatmul.mubr.f32.gmra.mxu0 %v4047
        %v4253 = vpop.f32.mrf.mxu0
        %v4254 = vadd.f32 0.0, %v4253
        %v4255 = vpop.f32.mrf.mxu0
        %4256 = vmatprep.mubr.f32.mxu0 0.0
        %4257 = vmatmul.mubr.f32.gmra.mxu0 %v4050
        %v4258 = vpop.f32.mrf.mxu0
        %v4259 = vadd.f32 0.0, %v4258
        %v4260 = vpop.f32.mrf.mxu0
        %4261 = vmatprep.mubr.f32.mxu0 0.0
        %4262 = vmatmul.mubr.f32.gmra.mxu0 %v4053
        %v4263 = vpop.f32.mrf.mxu0
        %v4264 = vadd.f32 0.0, %v4263
        %v4265 = vpop.f32.mrf.mxu0
        %4266 = vmatprep.mubr.f32.mxu0 0.0
        %4267 = vmatmul.mubr.f32.gmra.mxu0 %v4056
        %v4268 = vpop.f32.mrf.mxu0
        %v4269 = vadd.f32 0.0, %v4268
        %v4270 = vpop.f32.mrf.mxu0
        %4271 = vmatprep.mubr.f32.mxu0 0.0
        %4272 = vmatmul.mubr.f32.gmra.mxu0 %v4059
        %v4273 = vpop.f32.mrf.mxu0
        %v4274 = vadd.f32 0.0, %v4273
        %v4275 = vpop.f32.mrf.mxu0
        %4276 = vmatprep.mubr.f32.mxu0 0.0
        %4277 = vmatmul.mubr.f32.gmra.mxu0 %v4062
        %v4278 = vpop.f32.mrf.mxu0
        %v4279 = vadd.f32 0.0, %v4278
        %v4280 = vpop.f32.mrf.mxu0
        %4281 = vmatprep.mubr.f32.mxu0 0.0
        %4282 = vmatmul.mubr.f32.gmra.mxu0 %v4065
        %v4283 = vpop.f32.mrf.mxu0
        %v4284 = vadd.f32 0.0, %v4283
        %v4285 = vpop.f32.mrf.mxu0
        %4286 = vmatprep.mubr.f32.mxu0 0.0
        %4287 = vmatmul.mubr.f32.gmra.mxu0 %v4068
        %v4288 = vpop.f32.mrf.mxu0
        %v4289 = vadd.f32 0.0, %v4288
        %v4290 = vpop.f32.mrf.mxu0
        %4291 = vmatprep.mubr.f32.mxu0 0.0
        %4292 = vmatmul.mubr.f32.gmra.mxu0 %v4071
        %v4293 = vpop.f32.mrf.mxu0
        %v4294 = vadd.f32 0.0, %v4293
        %v4295 = vpop.f32.mrf.mxu0
        %4296 = vmatprep.mubr.f32.mxu0 0.0
        %4297 = vmatmul.mubr.f32.gmra.mxu0 %v4074
        %v4298 = vpop.f32.mrf.mxu0
        %v4299 = vadd.f32 0.0, %v4298
        %v4300 = vpop.f32.mrf.mxu0
        %4301 = vmatprep.mubr.f32.mxu0 0.0
        %4302 = vmatmul.mubr.f32.gmra.mxu0 %v4077
        %v4303 = vpop.f32.mrf.mxu0
        %v4304 = vadd.f32 0.0, %v4303
        %v4305 = vpop.f32.mrf.mxu0
        %4306 = vdwg.mxu0
        %v4307 = vadd.f32 %v3917, %v4149
        %v4308 = vadd.f32 %v3918, %v4154
        %v4309 = vadd.f32 %v3919, %v4159
        %v4310 = vadd.f32 %v3920, %v4164
        %v4311 = vadd.f32 %v3921, %v4169
        %v4312 = vadd.f32 %v3922, %v4174
        %v4313 = vadd.f32 %v3923, %v4179
        %v4314 = vadd.f32 %v3924, %v4184
        %v4315 = vadd.f32 %v3925, %v4189
        %v4316 = vadd.f32 %v3926, %v4194
        %v4317 = vadd.f32 %v3927, %v4199
        %v4318 = vadd.f32 %v3928, %v4204
        %v4319 = vadd.f32 %v3929, %v4209
        %v4320 = vadd.f32 %v3930, %v4214
        %v4321 = vadd.f32 %v3931, %v4219
        %v4322 = vadd.f32 %v3932, %v4224
        %v4323 = vadd.f32 %v3933, %v4229
        %v4324 = vadd.f32 %v3934, %v4234
        %v4325 = vadd.f32 %v3935, %v4239
        %v4326 = vadd.f32 %v3936, %v4244
        %v4327 = vadd.f32 %v3937, %v4249
        %v4328 = vadd.f32 %v3938, %v4254
        %v4329 = vadd.f32 %v3939, %v4259
        %v4330 = vadd.f32 %v3940, %v4264
        %v4331 = vadd.f32 %v3941, %v4269
        %v4332 = vadd.f32 %v3942, %v4274
        %v4333 = vadd.f32 %v3943, %v4279
        %v4334 = vadd.f32 %v3944, %v4284
        %v4335 = vadd.f32 %v3945, %v4289
        %v4336 = vadd.f32 %v3946, %v4294
        %v4337 = vadd.f32 %v3947, %v4299
        %v4338 = vadd.f32 %v3948, %v4304
        %v4339 = vld [vmem:[#allocation2 + $0x22] sm:$0xff]
        %v4340 = vld [vmem:[#allocation2 + $0x2a] sm:$0xff]
        %v4341 = vld [vmem:[#allocation2 + $0x32] sm:$0xff]
        %v4342 = vld [vmem:[#allocation2 + $0x3a] sm:$0xff]
        %v4343 = vld [vmem:[#allocation2 + $0x42] sm:$0xff]
        %v4344 = vld [vmem:[#allocation2 + $0x4a] sm:$0xff]
        %v4345 = vld [vmem:[#allocation2 + $0x52] sm:$0xff]
        %v4346 = vld [vmem:[#allocation2 + $0x5a] sm:$0xff]
        %v4347 = vld [vmem:[#allocation2 + $0x62] sm:$0xff]
        %v4348 = vld [vmem:[#allocation2 + $0x6a] sm:$0xff]
        %v4349 = vld [vmem:[#allocation2 + $0x72] sm:$0xff]
        %v4350 = vld [vmem:[#allocation2 + $0x7a] sm:$0xff]
        %v4351 = vld [vmem:[#allocation2 + $0x82] sm:$0xff]
        %v4352 = vld [vmem:[#allocation2 + $0x8a] sm:$0xff]
        %v4353 = vld [vmem:[#allocation2 + $0x92] sm:$0xff]
        %v4354 = vld [vmem:[#allocation2 + $0x9a] sm:$0xff]
        %v4355 = vld [vmem:[#allocation2 + $0xa2] sm:$0xff]
        %v4356 = vld [vmem:[#allocation2 + $0xaa] sm:$0xff]
        %v4357 = vld [vmem:[#allocation2 + $0xb2] sm:$0xff]
        %v4358 = vld [vmem:[#allocation2 + $0xba] sm:$0xff]
        %v4359 = vld [vmem:[#allocation2 + $0xc2] sm:$0xff]
        %v4360 = vld [vmem:[#allocation2 + $0xca] sm:$0xff]
        %v4361 = vld [vmem:[#allocation2 + $0xd2] sm:$0xff]
        %v4362 = vld [vmem:[#allocation2 + $0xda] sm:$0xff]
        %v4363 = vld [vmem:[#allocation2 + $0xe2] sm:$0xff]
        %v4364 = vld [vmem:[#allocation2 + $0xea] sm:$0xff]
        %v4365 = vld [vmem:[#allocation2 + $0xf2] sm:$0xff]
        %v4366 = vld [vmem:[#allocation2 + $0xfa] sm:$0xff]
        %v4367 = vld [vmem:[#allocation2 + $0x102] sm:$0xff]
        %v4368 = vld [vmem:[#allocation2 + $0x10a] sm:$0xff]
        %v4369 = vld [vmem:[#allocation2 + $0x112] sm:$0xff]
        %v4370 = vld [vmem:[#allocation2 + $0x11a] sm:$0xff]
        %v4371 = vsel %vm1871, %v4339, 0.0
        %v4372 = vsel %vm1872, %v4340, 0.0
        %v4373 = vsel %vm1873, %v4341, 0.0
        %v4374 = vsel %vm1874, %v4342, 0.0
        %v4375 = vsel %vm1875, %v4343, 0.0
        %v4376 = vsel %vm1876, %v4344, 0.0
        %v4377 = vsel %vm1877, %v4345, 0.0
        %v4378 = vsel %vm1878, %v4346, 0.0
        %v4379 = vsel %vm1879, %v4347, 0.0
        %v4380 = vsel %vm1880, %v4348, 0.0
        %v4381 = vsel %vm1881, %v4349, 0.0
        %v4382 = vsel %vm1882, %v4350, 0.0
        %v4383 = vsel %vm1883, %v4351, 0.0
        %v4384 = vsel %vm1884, %v4352, 0.0
        %v4385 = vsel %vm1885, %v4353, 0.0
        %v4386 = vsel %vm1886, %v4354, 0.0
        %v4387 = vsel %vm1887, %v4355, 0.0
        %v4388 = vsel %vm1888, %v4356, 0.0
        %v4389 = vsel %vm1889, %v4357, 0.0
        %v4390 = vsel %vm1890, %v4358, 0.0
        %v4391 = vsel %vm1891, %v4359, 0.0
        %v4392 = vsel %vm1892, %v4360, 0.0
        %v4393 = vsel %vm1893, %v4361, 0.0
        %v4394 = vsel %vm1894, %v4362, 0.0
        %v4395 = vsel %vm1895, %v4363, 0.0
        %v4396 = vsel %vm1896, %v4364, 0.0
        %v4397 = vsel %vm1897, %v4365, 0.0
        %v4398 = vsel %vm1898, %v4366, 0.0
        %v4399 = vsel %vm1899, %v4367, 0.0
        %v4400 = vsel %vm1900, %v4368, 0.0
        %v4401 = vsel %vm1901, %v4369, 0.0
        %v4402 = vsel %vm1902, %v4370, 0.0
        %s4403 = scalar_lea.vmem %s1, 32
        %v4404 = vld [vmem:[%s4403] sm:$0x7]
        %v4406 = vsel %vm443, %v4371, 0
        %v4409 = vsel %vm443, %v4372, 0
        %v4412 = vsel %vm443, %v4373, 0
        %v4415 = vsel %vm443, %v4374, 0
        %v4418 = vsel %vm443, %v4375, 0
        %v4421 = vsel %vm443, %v4376, 0
        %v4424 = vsel %vm443, %v4377, 0
        %v4427 = vsel %vm443, %v4378, 0
        %v4430 = vsel %vm443, %v4379, 0
        %v4433 = vsel %vm443, %v4380, 0
        %v4436 = vsel %vm443, %v4381, 0
        %v4439 = vsel %vm443, %v4382, 0
        %v4442 = vsel %vm443, %v4383, 0
        %v4445 = vsel %vm443, %v4384, 0
        %v4448 = vsel %vm443, %v4385, 0
        %v4451 = vsel %vm443, %v4386, 0
        %v4454 = vsel %vm443, %v4387, 0
        %v4457 = vsel %vm443, %v4388, 0
        %v4460 = vsel %vm443, %v4389, 0
        %v4463 = vsel %vm443, %v4390, 0
        %v4466 = vsel %vm443, %v4391, 0
        %v4469 = vsel %vm443, %v4392, 0
        %v4472 = vsel %vm443, %v4393, 0
        %v4475 = vsel %vm443, %v4394, 0
        %v4478 = vsel %vm443, %v4395, 0
        %v4481 = vsel %vm443, %v4396, 0
        %v4484 = vsel %vm443, %v4397, 0
        %v4487 = vsel %vm443, %v4398, 0
        %v4490 = vsel %vm443, %v4399, 0
        %v4493 = vsel %vm443, %v4400, 0
        %v4496 = vsel %vm443, %v4401, 0
        %v4499 = vsel %vm443, %v4402, 0
        %v4502 = vsel %vm1222, %v4404, 0
        %4504 = vmatprep.subr.mxu0 0.0
        %4505 = vmatpush1.msra.mxu0 0.0
        %4506 = vmatprep.subr.mxu0 0.0
        %4507 = vmatpush1.msra.mxu0 0.0
        %4508 = vmatprep.subr.mxu0 0.0
        %4509 = vmatpush1.msra.mxu0 0.0
        %4510 = vmatprep.subr.mxu0 0.0
        %4511 = vmatpush1.msra.mxu0 0.0
        %4512 = vmatprep.subr.mxu0 0.0
        %4513 = vmatpush1.msra.mxu0 0.0
        %4514 = vmatprep.subr.mxu0 0.0
        %4515 = vmatpush1.msra.mxu0 0.0
        %4516 = vmatprep.subr.mxu0 0.0
        %4517 = vmatpush1.msra.mxu0 0.0
        %4518 = vmatprep.subr.mxu0 0.0
        %4519 = vmatpush1.msra.mxu0 0.0
        %4520 = vmatprep.subr.mxu0 0.0
        %4521 = vmatpush1.msra.mxu0 0.0
        %4522 = vmatprep.subr.mxu0 0.0
        %4523 = vmatpush1.msra.mxu0 0.0
        %4524 = vmatprep.subr.mxu0 0.0
        %4525 = vmatpush1.msra.mxu0 0.0
        %4526 = vmatprep.subr.mxu0 0.0
        %4527 = vmatpush1.msra.mxu0 0.0
        %4528 = vmatprep.subr.mxu0 0.0
        %4529 = vmatpush1.msra.mxu0 0.0
        %4530 = vmatprep.subr.mxu0 0.0
        %4531 = vmatpush1.msra.mxu0 0.0
        %4532 = vmatprep.subr.mxu0 0.0
        %4533 = vmatpush1.msra.mxu0 0.0
        %4534 = vmatprep.subr.mxu0 0.0
        %4535 = vmatpush1.msra.mxu0 %v4502
        %4536 = vmatprep.subr.mxu0 0.0
        %4537 = vmatpush2.msra.mxu0 0.0
        %4538 = vmatprep.subr.mxu0 0.0
        %4539 = vmatpush2.msra.mxu0 0.0
        %4540 = vmatprep.subr.mxu0 0.0
        %4541 = vmatpush2.msra.mxu0 0.0
        %4542 = vmatprep.subr.mxu0 0.0
        %4543 = vmatpush2.msra.mxu0 0.0
        %4544 = vmatprep.subr.mxu0 0.0
        %4545 = vmatpush2.msra.mxu0 0.0
        %4546 = vmatprep.subr.mxu0 0.0
        %4547 = vmatpush2.msra.mxu0 0.0
        %4548 = vmatprep.subr.mxu0 0.0
        %4549 = vmatpush2.msra.mxu0 0.0
        %4550 = vmatprep.subr.mxu0 0.0
        %4551 = vmatpush2.msra.mxu0 0.0
        %4552 = vmatprep.subr.mxu0 0.0
        %4553 = vmatpush2.msra.mxu0 0.0
        %4554 = vmatprep.subr.mxu0 0.0
        %4555 = vmatpush2.msra.mxu0 0.0
        %4556 = vmatprep.subr.mxu0 0.0
        %4557 = vmatpush2.msra.mxu0 0.0
        %4558 = vmatprep.subr.mxu0 0.0
        %4559 = vmatpush2.msra.mxu0 0.0
        %4560 = vmatprep.subr.mxu0 0.0
        %4561 = vmatpush2.msra.mxu0 0.0
        %4562 = vmatprep.subr.mxu0 0.0
        %4563 = vmatpush2.msra.mxu0 0.0
        %4564 = vmatprep.subr.mxu0 0.0
        %4565 = vmatpush2.msra.mxu0 0.0
        %4566 = vmatprep.subr.mxu0 0.0
        %4567 = vmatpush2.msra.mxu0 0.0
        %4568 = vmatprep.mubr.f32.mxu0 0.0
        %4569 = vmatmul.mubr.f32.gmra.mxu0 %v4406
        %v4570 = vpop.f32.mrf.mxu0
        %v4571 = vadd.f32 0.0, %v4570
        %v4572 = vpop.f32.mrf.mxu0
        %4573 = vmatprep.mubr.f32.mxu0 0.0
        %4574 = vmatmul.mubr.f32.gmra.mxu0 %v4409
        %v4575 = vpop.f32.mrf.mxu0
        %v4576 = vadd.f32 0.0, %v4575
        %v4577 = vpop.f32.mrf.mxu0
        %4578 = vmatprep.mubr.f32.mxu0 0.0
        %4579 = vmatmul.mubr.f32.gmra.mxu0 %v4412
        %v4580 = vpop.f32.mrf.mxu0
        %v4581 = vadd.f32 0.0, %v4580
        %v4582 = vpop.f32.mrf.mxu0
        %4583 = vmatprep.mubr.f32.mxu0 0.0
        %4584 = vmatmul.mubr.f32.gmra.mxu0 %v4415
        %v4585 = vpop.f32.mrf.mxu0
        %v4586 = vadd.f32 0.0, %v4585
        %v4587 = vpop.f32.mrf.mxu0
        %4588 = vmatprep.mubr.f32.mxu0 0.0
        %4589 = vmatmul.mubr.f32.gmra.mxu0 %v4418
        %v4590 = vpop.f32.mrf.mxu0
        %v4591 = vadd.f32 0.0, %v4590
        %v4592 = vpop.f32.mrf.mxu0
        %4593 = vmatprep.mubr.f32.mxu0 0.0
        %4594 = vmatmul.mubr.f32.gmra.mxu0 %v4421
        %v4595 = vpop.f32.mrf.mxu0
        %v4596 = vadd.f32 0.0, %v4595
        %v4597 = vpop.f32.mrf.mxu0
        %4598 = vmatprep.mubr.f32.mxu0 0.0
        %4599 = vmatmul.mubr.f32.gmra.mxu0 %v4424
        %v4600 = vpop.f32.mrf.mxu0
        %v4601 = vadd.f32 0.0, %v4600
        %v4602 = vpop.f32.mrf.mxu0
        %4603 = vmatprep.mubr.f32.mxu0 0.0
        %4604 = vmatmul.mubr.f32.gmra.mxu0 %v4427
        %v4605 = vpop.f32.mrf.mxu0
        %v4606 = vadd.f32 0.0, %v4605
        %v4607 = vpop.f32.mrf.mxu0
        %4608 = vmatprep.mubr.f32.mxu0 0.0
        %4609 = vmatmul.mubr.f32.gmra.mxu0 %v4430
        %v4610 = vpop.f32.mrf.mxu0
        %v4611 = vadd.f32 0.0, %v4610
        %v4612 = vpop.f32.mrf.mxu0
        %4613 = vmatprep.mubr.f32.mxu0 0.0
        %4614 = vmatmul.mubr.f32.gmra.mxu0 %v4433
        %v4615 = vpop.f32.mrf.mxu0
        %v4616 = vadd.f32 0.0, %v4615
        %v4617 = vpop.f32.mrf.mxu0
        %4618 = vmatprep.mubr.f32.mxu0 0.0
        %4619 = vmatmul.mubr.f32.gmra.mxu0 %v4436
        %v4620 = vpop.f32.mrf.mxu0
        %v4621 = vadd.f32 0.0, %v4620
        %v4622 = vpop.f32.mrf.mxu0
        %4623 = vmatprep.mubr.f32.mxu0 0.0
        %4624 = vmatmul.mubr.f32.gmra.mxu0 %v4439
        %v4625 = vpop.f32.mrf.mxu0
        %v4626 = vadd.f32 0.0, %v4625
        %v4627 = vpop.f32.mrf.mxu0
        %4628 = vmatprep.mubr.f32.mxu0 0.0
        %4629 = vmatmul.mubr.f32.gmra.mxu0 %v4442
        %v4630 = vpop.f32.mrf.mxu0
        %v4631 = vadd.f32 0.0, %v4630
        %v4632 = vpop.f32.mrf.mxu0
        %4633 = vmatprep.mubr.f32.mxu0 0.0
        %4634 = vmatmul.mubr.f32.gmra.mxu0 %v4445
        %v4635 = vpop.f32.mrf.mxu0
        %v4636 = vadd.f32 0.0, %v4635
        %v4637 = vpop.f32.mrf.mxu0
        %4638 = vmatprep.mubr.f32.mxu0 0.0
        %4639 = vmatmul.mubr.f32.gmra.mxu0 %v4448
        %v4640 = vpop.f32.mrf.mxu0
        %v4641 = vadd.f32 0.0, %v4640
        %v4642 = vpop.f32.mrf.mxu0
        %4643 = vmatprep.mubr.f32.mxu0 0.0
        %4644 = vmatmul.mubr.f32.gmra.mxu0 %v4451
        %v4645 = vpop.f32.mrf.mxu0
        %v4646 = vadd.f32 0.0, %v4645
        %v4647 = vpop.f32.mrf.mxu0
        %4648 = vmatprep.mubr.f32.mxu0 0.0
        %4649 = vmatmul.mubr.f32.gmra.mxu0 %v4454
        %v4650 = vpop.f32.mrf.mxu0
        %v4651 = vadd.f32 0.0, %v4650
        %v4652 = vpop.f32.mrf.mxu0
        %4653 = vmatprep.mubr.f32.mxu0 0.0
        %4654 = vmatmul.mubr.f32.gmra.mxu0 %v4457
        %v4655 = vpop.f32.mrf.mxu0
        %v4656 = vadd.f32 0.0, %v4655
        %v4657 = vpop.f32.mrf.mxu0
        %4658 = vmatprep.mubr.f32.mxu0 0.0
        %4659 = vmatmul.mubr.f32.gmra.mxu0 %v4460
        %v4660 = vpop.f32.mrf.mxu0
        %v4661 = vadd.f32 0.0, %v4660
        %v4662 = vpop.f32.mrf.mxu0
        %4663 = vmatprep.mubr.f32.mxu0 0.0
        %4664 = vmatmul.mubr.f32.gmra.mxu0 %v4463
        %v4665 = vpop.f32.mrf.mxu0
        %v4666 = vadd.f32 0.0, %v4665
        %v4667 = vpop.f32.mrf.mxu0
        %4668 = vmatprep.mubr.f32.mxu0 0.0
        %4669 = vmatmul.mubr.f32.gmra.mxu0 %v4466
        %v4670 = vpop.f32.mrf.mxu0
        %v4671 = vadd.f32 0.0, %v4670
        %v4672 = vpop.f32.mrf.mxu0
        %4673 = vmatprep.mubr.f32.mxu0 0.0
        %4674 = vmatmul.mubr.f32.gmra.mxu0 %v4469
        %v4675 = vpop.f32.mrf.mxu0
        %v4676 = vadd.f32 0.0, %v4675
        %v4677 = vpop.f32.mrf.mxu0
        %4678 = vmatprep.mubr.f32.mxu0 0.0
        %4679 = vmatmul.mubr.f32.gmra.mxu0 %v4472
        %v4680 = vpop.f32.mrf.mxu0
        %v4681 = vadd.f32 0.0, %v4680
        %v4682 = vpop.f32.mrf.mxu0
        %4683 = vmatprep.mubr.f32.mxu0 0.0
        %4684 = vmatmul.mubr.f32.gmra.mxu0 %v4475
        %v4685 = vpop.f32.mrf.mxu0
        %v4686 = vadd.f32 0.0, %v4685
        %v4687 = vpop.f32.mrf.mxu0
        %4688 = vmatprep.mubr.f32.mxu0 0.0
        %4689 = vmatmul.mubr.f32.gmra.mxu0 %v4478
        %v4690 = vpop.f32.mrf.mxu0
        %v4691 = vadd.f32 0.0, %v4690
        %v4692 = vpop.f32.mrf.mxu0
        %4693 = vmatprep.mubr.f32.mxu0 0.0
        %4694 = vmatmul.mubr.f32.gmra.mxu0 %v4481
        %v4695 = vpop.f32.mrf.mxu0
        %v4696 = vadd.f32 0.0, %v4695
        %v4697 = vpop.f32.mrf.mxu0
        %4698 = vmatprep.mubr.f32.mxu0 0.0
        %4699 = vmatmul.mubr.f32.gmra.mxu0 %v4484
        %v4700 = vpop.f32.mrf.mxu0
        %v4701 = vadd.f32 0.0, %v4700
        %v4702 = vpop.f32.mrf.mxu0
        %4703 = vmatprep.mubr.f32.mxu0 0.0
        %4704 = vmatmul.mubr.f32.gmra.mxu0 %v4487
        %v4705 = vpop.f32.mrf.mxu0
        %v4706 = vadd.f32 0.0, %v4705
        %v4707 = vpop.f32.mrf.mxu0
        %4708 = vmatprep.mubr.f32.mxu0 0.0
        %4709 = vmatmul.mubr.f32.gmra.mxu0 %v4490
        %v4710 = vpop.f32.mrf.mxu0
        %v4711 = vadd.f32 0.0, %v4710
        %v4712 = vpop.f32.mrf.mxu0
        %4713 = vmatprep.mubr.f32.mxu0 0.0
        %4714 = vmatmul.mubr.f32.gmra.mxu0 %v4493
        %v4715 = vpop.f32.mrf.mxu0
        %v4716 = vadd.f32 0.0, %v4715
        %v4717 = vpop.f32.mrf.mxu0
        %4718 = vmatprep.mubr.f32.mxu0 0.0
        %4719 = vmatmul.mubr.f32.gmra.mxu0 %v4496
        %v4720 = vpop.f32.mrf.mxu0
        %v4721 = vadd.f32 0.0, %v4720
        %v4722 = vpop.f32.mrf.mxu0
        %4723 = vmatprep.mubr.f32.mxu0 0.0
        %4724 = vmatmul.mubr.f32.gmra.mxu0 %v4499
        %v4725 = vpop.f32.mrf.mxu0
        %v4726 = vadd.f32 0.0, %v4725
        %v4727 = vpop.f32.mrf.mxu0
        %4728 = vdwg.mxu0
        %v4729 = vadd.f32 %v4307, %v4571
        %v4730 = vadd.f32 %v4308, %v4576
        %v4731 = vadd.f32 %v4309, %v4581
        %v4732 = vadd.f32 %v4310, %v4586
        %v4733 = vadd.f32 %v4311, %v4591
        %v4734 = vadd.f32 %v4312, %v4596
        %v4735 = vadd.f32 %v4313, %v4601
        %v4736 = vadd.f32 %v4314, %v4606
        %v4737 = vadd.f32 %v4315, %v4611
        %v4738 = vadd.f32 %v4316, %v4616
        %v4739 = vadd.f32 %v4317, %v4621
        %v4740 = vadd.f32 %v4318, %v4626
        %v4741 = vadd.f32 %v4319, %v4631
        %v4742 = vadd.f32 %v4320, %v4636
        %v4743 = vadd.f32 %v4321, %v4641
        %v4744 = vadd.f32 %v4322, %v4646
        %v4745 = vadd.f32 %v4323, %v4651
        %v4746 = vadd.f32 %v4324, %v4656
        %v4747 = vadd.f32 %v4325, %v4661
        %v4748 = vadd.f32 %v4326, %v4666
        %v4749 = vadd.f32 %v4327, %v4671
        %v4750 = vadd.f32 %v4328, %v4676
        %v4751 = vadd.f32 %v4329, %v4681
        %v4752 = vadd.f32 %v4330, %v4686
        %v4753 = vadd.f32 %v4331, %v4691
        %v4754 = vadd.f32 %v4332, %v4696
        %v4755 = vadd.f32 %v4333, %v4701
        %v4756 = vadd.f32 %v4334, %v4706
        %v4757 = vadd.f32 %v4335, %v4711
        %v4758 = vadd.f32 %v4336, %v4716
        %v4759 = vadd.f32 %v4337, %v4721
        %v4760 = vadd.f32 %v4338, %v4726
        %v4761 = vld [vmem:[%s2] sm:$0x1]
        %v4763 = vlaneseq
        %v4764 = vshrl.u32 %v4763, 7
        %v4765 = vsub.s32 0, %v4764
        %v4766 = vrot.slane %v4761, %v4765
        %v4768 = vadd.f32 %v4729, %v4766
        %v4769 = vadd.f32 %v4730, %v4766
        %v4770 = vadd.f32 %v4731, %v4766
        %v4771 = vadd.f32 %v4732, %v4766
        %v4772 = vadd.f32 %v4733, %v4766
        %v4773 = vadd.f32 %v4734, %v4766
        %v4774 = vadd.f32 %v4735, %v4766
        %v4775 = vadd.f32 %v4736, %v4766
        %v4776 = vadd.f32 %v4737, %v4766
        %v4777 = vadd.f32 %v4738, %v4766
        %v4778 = vadd.f32 %v4739, %v4766
        %v4779 = vadd.f32 %v4740, %v4766
        %v4780 = vadd.f32 %v4741, %v4766
        %v4781 = vadd.f32 %v4742, %v4766
        %v4782 = vadd.f32 %v4743, %v4766
        %v4783 = vadd.f32 %v4744, %v4766
        %v4784 = vadd.f32 %v4745, %v4766
        %v4785 = vadd.f32 %v4746, %v4766
        %v4786 = vadd.f32 %v4747, %v4766
        %v4787 = vadd.f32 %v4748, %v4766
        %v4788 = vadd.f32 %v4749, %v4766
        %v4789 = vadd.f32 %v4750, %v4766
        %v4790 = vadd.f32 %v4751, %v4766
        %v4791 = vadd.f32 %v4752, %v4766
        %v4792 = vadd.f32 %v4753, %v4766
        %v4793 = vadd.f32 %v4754, %v4766
        %v4794 = vadd.f32 %v4755, %v4766
        %v4795 = vadd.f32 %v4756, %v4766
        %v4796 = vadd.f32 %v4757, %v4766
        %v4797 = vadd.f32 %v4758, %v4766
        %v4798 = vadd.f32 %v4759, %v4766
        %v4799 = vadd.f32 %v4760, %v4766
        %v4800 = vmax.f32 %v4768, 0.0
        %v4801 = vmax.f32 %v4769, 0.0
        %v4802 = vmax.f32 %v4770, 0.0
        %v4803 = vmax.f32 %v4771, 0.0
        %v4804 = vmax.f32 %v4772, 0.0
        %v4805 = vmax.f32 %v4773, 0.0
        %v4806 = vmax.f32 %v4774, 0.0
        %v4807 = vmax.f32 %v4775, 0.0
        %v4808 = vmax.f32 %v4776, 0.0
        %v4809 = vmax.f32 %v4777, 0.0
        %v4810 = vmax.f32 %v4778, 0.0
        %v4811 = vmax.f32 %v4779, 0.0
        %v4812 = vmax.f32 %v4780, 0.0
        %v4813 = vmax.f32 %v4781, 0.0
        %v4814 = vmax.f32 %v4782, 0.0
        %v4815 = vmax.f32 %v4783, 0.0
        %v4816 = vmax.f32 %v4784, 0.0
        %v4817 = vmax.f32 %v4785, 0.0
        %v4818 = vmax.f32 %v4786, 0.0
        %v4819 = vmax.f32 %v4787, 0.0
        %v4820 = vmax.f32 %v4788, 0.0
        %v4821 = vmax.f32 %v4789, 0.0
        %v4822 = vmax.f32 %v4790, 0.0
        %v4823 = vmax.f32 %v4791, 0.0
        %v4824 = vmax.f32 %v4792, 0.0
        %v4825 = vmax.f32 %v4793, 0.0
        %v4826 = vmax.f32 %v4794, 0.0
        %v4827 = vmax.f32 %v4795, 0.0
        %v4828 = vmax.f32 %v4796, 0.0
        %v4829 = vmax.f32 %v4797, 0.0
        %v4830 = vmax.f32 %v4798, 0.0
        %v4831 = vmax.f32 %v4799, 0.0
        %v4832 = vld [vmem:[%s3] sm:$0xff]
        %v4833 = vld [vmem:[%s3 + $0x8] sm:$0xff]
        %v4834 = vld [vmem:[%s3 + $0x10] sm:$0xff]
        %v4835 = vld [vmem:[%s3 + $0x18] sm:$0xff]
        %v4836 = vld [vmem:[%s3 + $0x20] sm:$0xff]
        %v4837 = vld [vmem:[%s3 + $0x28] sm:$0xff]
        %v4838 = vld [vmem:[%s3 + $0x30] sm:$0xff]
        %v4839 = vld [vmem:[%s3 + $0x38] sm:$0xff]
        %v4840 = vld [vmem:[%s3 + $0x40] sm:$0xff]
        %v4841 = vld [vmem:[%s3 + $0x48] sm:$0xff]
        %v4842 = vld [vmem:[%s3 + $0x50] sm:$0xff]
        %v4843 = vld [vmem:[%s3 + $0x58] sm:$0xff]
        %v4844 = vld [vmem:[%s3 + $0x60] sm:$0xff]
        %v4845 = vld [vmem:[%s3 + $0x68] sm:$0xff]
        %v4846 = vld [vmem:[%s3 + $0x70] sm:$0xff]
        %v4847 = vld [vmem:[%s3 + $0x78] sm:$0xff]
        %4848 = vmatprep.subr.mxu0 0.0
        %4849 = vmatpush1.msra.mxu0 %v4815
        %4850 = vmatprep.subr.mxu0 0.0
        %4851 = vmatpush1.msra.mxu0 %v4814
        %4852 = vmatprep.subr.mxu0 0.0
        %4853 = vmatpush1.msra.mxu0 %v4813
        %4854 = vmatprep.subr.mxu0 0.0
        %4855 = vmatpush1.msra.mxu0 %v4812
        %4856 = vmatprep.subr.mxu0 0.0
        %4857 = vmatpush1.msra.mxu0 %v4811
        %4858 = vmatprep.subr.mxu0 0.0
        %4859 = vmatpush1.msra.mxu0 %v4810
        %4860 = vmatprep.subr.mxu0 0.0
        %4861 = vmatpush1.msra.mxu0 %v4809
        %4862 = vmatprep.subr.mxu0 0.0
        %4863 = vmatpush1.msra.mxu0 %v4808
        %4864 = vmatprep.subr.mxu0 0.0
        %4865 = vmatpush1.msra.mxu0 %v4807
        %4866 = vmatprep.subr.mxu0 0.0
        %4867 = vmatpush1.msra.mxu0 %v4806
        %4868 = vmatprep.subr.mxu0 0.0
        %4869 = vmatpush1.msra.mxu0 %v4805
        %4870 = vmatprep.subr.mxu0 0.0
        %4871 = vmatpush1.msra.mxu0 %v4804
        %4872 = vmatprep.subr.mxu0 0.0
        %4873 = vmatpush1.msra.mxu0 %v4803
        %4874 = vmatprep.subr.mxu0 0.0
        %4875 = vmatpush1.msra.mxu0 %v4802
        %4876 = vmatprep.subr.mxu0 0.0
        %4877 = vmatpush1.msra.mxu0 %v4801
        %4878 = vmatprep.subr.mxu0 0.0
        %4879 = vmatpush1.msra.mxu0 %v4800
        %4880 = vmatprep.subr.mxu0 0.0
        %4881 = vmatpush2.msra.mxu0 %v4831
        %4882 = vmatprep.subr.mxu0 0.0
        %4883 = vmatpush2.msra.mxu0 %v4830
        %4884 = vmatprep.subr.mxu0 0.0
        %4885 = vmatpush2.msra.mxu0 %v4829
        %4886 = vmatprep.subr.mxu0 0.0
        %4887 = vmatpush2.msra.mxu0 %v4828
        %4888 = vmatprep.subr.mxu0 0.0
        %4889 = vmatpush2.msra.mxu0 %v4827
        %4890 = vmatprep.subr.mxu0 0.0
        %4891 = vmatpush2.msra.mxu0 %v4826
        %4892 = vmatprep.subr.mxu0 0.0
        %4893 = vmatpush2.msra.mxu0 %v4825
        %4894 = vmatprep.subr.mxu0 0.0
        %4895 = vmatpush2.msra.mxu0 %v4824
        %4896 = vmatprep.subr.mxu0 0.0
        %4897 = vmatpush2.msra.mxu0 %v4823
        %4898 = vmatprep.subr.mxu0 0.0
        %4899 = vmatpush2.msra.mxu0 %v4822
        %4900 = vmatprep.subr.mxu0 0.0
        %4901 = vmatpush2.msra.mxu0 %v4821
        %4902 = vmatprep.subr.mxu0 0.0
        %4903 = vmatpush2.msra.mxu0 %v4820
        %4904 = vmatprep.subr.mxu0 0.0
        %4905 = vmatpush2.msra.mxu0 %v4819
        %4906 = vmatprep.subr.mxu0 0.0
        %4907 = vmatpush2.msra.mxu0 %v4818
        %4908 = vmatprep.subr.mxu0 0.0
        %4909 = vmatpush2.msra.mxu0 %v4817
        %4910 = vmatprep.subr.mxu0 0.0
        %4911 = vmatpush2.msra.mxu0 %v4816
        %4912 = vmatprep.mubr.f32.mxu0 %v4833
        %4913 = vmatmul.mubr.f32.gmra.mxu0 %v4832
        %v4914 = vpop.f32.mrf.mxu0
        %v4915 = vadd.f32 0.0, %v4914
        %v4916 = vpop.f32.mrf.mxu0
        %4917 = vmatprep.mubr.f32.mxu0 %v4835
        %4918 = vmatmul.mubr.f32.gmra.mxu0 %v4834
        %v4919 = vpop.f32.mrf.mxu0
        %v4920 = vadd.f32 0.0, %v4919
        %v4921 = vpop.f32.mrf.mxu0
        %4922 = vmatprep.mubr.f32.mxu0 %v4837
        %4923 = vmatmul.mubr.f32.gmra.mxu0 %v4836
        %v4924 = vpop.f32.mrf.mxu0
        %v4925 = vadd.f32 0.0, %v4924
        %v4926 = vpop.f32.mrf.mxu0
        %4927 = vmatprep.mubr.f32.mxu0 %v4839
        %4928 = vmatmul.mubr.f32.gmra.mxu0 %v4838
        %v4929 = vpop.f32.mrf.mxu0
        %v4930 = vadd.f32 0.0, %v4929
        %v4931 = vpop.f32.mrf.mxu0
        %4932 = vmatprep.mubr.f32.mxu0 %v4841
        %4933 = vmatmul.mubr.f32.gmra.mxu0 %v4840
        %v4934 = vpop.f32.mrf.mxu0
        %v4935 = vadd.f32 0.0, %v4934
        %v4936 = vpop.f32.mrf.mxu0
        %4937 = vmatprep.mubr.f32.mxu0 %v4843
        %4938 = vmatmul.mubr.f32.gmra.mxu0 %v4842
        %v4939 = vpop.f32.mrf.mxu0
        %v4940 = vadd.f32 0.0, %v4939
        %v4941 = vpop.f32.mrf.mxu0
        %4942 = vmatprep.mubr.f32.mxu0 %v4845
        %4943 = vmatmul.mubr.f32.gmra.mxu0 %v4844
        %v4944 = vpop.f32.mrf.mxu0
        %v4945 = vadd.f32 0.0, %v4944
        %v4946 = vpop.f32.mrf.mxu0
        %4947 = vmatprep.mubr.f32.mxu0 %v4847
        %4948 = vmatmul.mubr.f32.gmra.mxu0 %v4846
        %v4949 = vpop.f32.mrf.mxu0
        %v4950 = vadd.f32 0.0, %v4949
        %v4951 = vpop.f32.mrf.mxu0
        %4952 = vdwg.mxu0
        %s4953 = scalar_lea.vmem %s3, 128
        %v4954 = vld [vmem:[%s4953] sm:$0xff]
        %v4955 = vld [vmem:[%s4953 + $0x8] sm:$0xff]
        %v4956 = vld [vmem:[%s4953 + $0x10] sm:$0xff]
        %v4957 = vld [vmem:[%s4953 + $0x18] sm:$0xff]
        %v4958 = vld [vmem:[%s4953 + $0x20] sm:$0xff]
        %v4959 = vld [vmem:[%s4953 + $0x28] sm:$0xff]
        %v4960 = vld [vmem:[%s4953 + $0x30] sm:$0xff]
        %v4961 = vld [vmem:[%s4953 + $0x38] sm:$0xff]
        %v4962 = vld [vmem:[%s4953 + $0x40] sm:$0xff]
        %v4963 = vld [vmem:[%s4953 + $0x48] sm:$0xff]
        %v4964 = vld [vmem:[%s4953 + $0x50] sm:$0xff]
        %v4965 = vld [vmem:[%s4953 + $0x58] sm:$0xff]
        %v4966 = vld [vmem:[%s4953 + $0x60] sm:$0xff]
        %v4967 = vld [vmem:[%s4953 + $0x68] sm:$0xff]
        %v4968 = vld [vmem:[%s4953 + $0x70] sm:$0xff]
        %v4969 = vld [vmem:[%s4953 + $0x78] sm:$0xff]
        %4970 = vmatprep.subr.mxu0 0.0
        %4971 = vmatpush1.msra.mxu0 %v4815
        %4972 = vmatprep.subr.mxu0 0.0
        %4973 = vmatpush1.msra.mxu0 %v4814
        %4974 = vmatprep.subr.mxu0 0.0
        %4975 = vmatpush1.msra.mxu0 %v4813
        %4976 = vmatprep.subr.mxu0 0.0
        %4977 = vmatpush1.msra.mxu0 %v4812
        %4978 = vmatprep.subr.mxu0 0.0
        %4979 = vmatpush1.msra.mxu0 %v4811
        %4980 = vmatprep.subr.mxu0 0.0
        %4981 = vmatpush1.msra.mxu0 %v4810
        %4982 = vmatprep.subr.mxu0 0.0
        %4983 = vmatpush1.msra.mxu0 %v4809
        %4984 = vmatprep.subr.mxu0 0.0
        %4985 = vmatpush1.msra.mxu0 %v4808
        %4986 = vmatprep.subr.mxu0 0.0
        %4987 = vmatpush1.msra.mxu0 %v4807
        %4988 = vmatprep.subr.mxu0 0.0
        %4989 = vmatpush1.msra.mxu0 %v4806
        %4990 = vmatprep.subr.mxu0 0.0
        %4991 = vmatpush1.msra.mxu0 %v4805
        %4992 = vmatprep.subr.mxu0 0.0
        %4993 = vmatpush1.msra.mxu0 %v4804
        %4994 = vmatprep.subr.mxu0 0.0
        %4995 = vmatpush1.msra.mxu0 %v4803
        %4996 = vmatprep.subr.mxu0 0.0
        %4997 = vmatpush1.msra.mxu0 %v4802
        %4998 = vmatprep.subr.mxu0 0.0
        %4999 = vmatpush1.msra.mxu0 %v4801
        %5000 = vmatprep.subr.mxu0 0.0
        %5001 = vmatpush1.msra.mxu0 %v4800
        %5002 = vmatprep.subr.mxu0 0.0
        %5003 = vmatpush2.msra.mxu0 %v4831
        %5004 = vmatprep.subr.mxu0 0.0
        %5005 = vmatpush2.msra.mxu0 %v4830
        %5006 = vmatprep.subr.mxu0 0.0
        %5007 = vmatpush2.msra.mxu0 %v4829
        %5008 = vmatprep.subr.mxu0 0.0
        %5009 = vmatpush2.msra.mxu0 %v4828
        %5010 = vmatprep.subr.mxu0 0.0
        %5011 = vmatpush2.msra.mxu0 %v4827
        %5012 = vmatprep.subr.mxu0 0.0
        %5013 = vmatpush2.msra.mxu0 %v4826
        %5014 = vmatprep.subr.mxu0 0.0
        %5015 = vmatpush2.msra.mxu0 %v4825
        %5016 = vmatprep.subr.mxu0 0.0
        %5017 = vmatpush2.msra.mxu0 %v4824
        %5018 = vmatprep.subr.mxu0 0.0
        %5019 = vmatpush2.msra.mxu0 %v4823
        %5020 = vmatprep.subr.mxu0 0.0
        %5021 = vmatpush2.msra.mxu0 %v4822
        %5022 = vmatprep.subr.mxu0 0.0
        %5023 = vmatpush2.msra.mxu0 %v4821
        %5024 = vmatprep.subr.mxu0 0.0
        %5025 = vmatpush2.msra.mxu0 %v4820
        %5026 = vmatprep.subr.mxu0 0.0
        %5027 = vmatpush2.msra.mxu0 %v4819
        %5028 = vmatprep.subr.mxu0 0.0
        %5029 = vmatpush2.msra.mxu0 %v4818
        %5030 = vmatprep.subr.mxu0 0.0
        %5031 = vmatpush2.msra.mxu0 %v4817
        %5032 = vmatprep.subr.mxu0 0.0
        %5033 = vmatpush2.msra.mxu0 %v4816
        %5034 = vmatprep.mubr.f32.mxu0 %v4955
        %5035 = vmatmul.mubr.f32.gmra.mxu0 %v4954
        %v5036 = vpop.f32.mrf.mxu0
        %v5037 = vadd.f32 0.0, %v5036
        %v5038 = vpop.f32.mrf.mxu0
        %5039 = vmatprep.mubr.f32.mxu0 %v4957
        %5040 = vmatmul.mubr.f32.gmra.mxu0 %v4956
        %v5041 = vpop.f32.mrf.mxu0
        %v5042 = vadd.f32 0.0, %v5041
        %v5043 = vpop.f32.mrf.mxu0
        %5044 = vmatprep.mubr.f32.mxu0 %v4959
        %5045 = vmatmul.mubr.f32.gmra.mxu0 %v4958
        %v5046 = vpop.f32.mrf.mxu0
        %v5047 = vadd.f32 0.0, %v5046
        %v5048 = vpop.f32.mrf.mxu0
        %5049 = vmatprep.mubr.f32.mxu0 %v4961
        %5050 = vmatmul.mubr.f32.gmra.mxu0 %v4960
        %v5051 = vpop.f32.mrf.mxu0
        %v5052 = vadd.f32 0.0, %v5051
        %v5053 = vpop.f32.mrf.mxu0
        %5054 = vmatprep.mubr.f32.mxu0 %v4963
        %5055 = vmatmul.mubr.f32.gmra.mxu0 %v4962
        %v5056 = vpop.f32.mrf.mxu0
        %v5057 = vadd.f32 0.0, %v5056
        %v5058 = vpop.f32.mrf.mxu0
        %5059 = vmatprep.mubr.f32.mxu0 %v4965
        %5060 = vmatmul.mubr.f32.gmra.mxu0 %v4964
        %v5061 = vpop.f32.mrf.mxu0
        %v5062 = vadd.f32 0.0, %v5061
        %v5063 = vpop.f32.mrf.mxu0
        %5064 = vmatprep.mubr.f32.mxu0 %v4967
        %5065 = vmatmul.mubr.f32.gmra.mxu0 %v4966
        %v5066 = vpop.f32.mrf.mxu0
        %v5067 = vadd.f32 0.0, %v5066
        %v5068 = vpop.f32.mrf.mxu0
        %5069 = vmatprep.mubr.f32.mxu0 %v4969
        %5070 = vmatmul.mubr.f32.gmra.mxu0 %v4968
        %v5071 = vpop.f32.mrf.mxu0
        %v5072 = vadd.f32 0.0, %v5071
        %v5073 = vpop.f32.mrf.mxu0
        %5074 = vdwg.mxu0
        %v5075 = vmax.f32 %v4915, %v5037
        %v5076 = vmax.f32 %v4920, %v5042
        %v5077 = vmax.f32 %v4925, %v5047
        %v5078 = vmax.f32 %v4930, %v5052
        %v5079 = vmax.f32 %v4935, %v5057
        %v5080 = vmax.f32 %v4940, %v5062
        %v5081 = vmax.f32 %v4945, %v5067
        %v5082 = vmax.f32 %v4950, %v5072
        %s5083 = scalar_lea.vmem %s3, 256
        %v5084 = vld [vmem:[%s5083] sm:$0xff]
        %v5085 = vld [vmem:[%s5083 + $0x8] sm:$0xff]
        %v5086 = vld [vmem:[%s5083 + $0x10] sm:$0xff]
        %v5087 = vld [vmem:[%s5083 + $0x18] sm:$0xff]
        %v5088 = vld [vmem:[%s5083 + $0x20] sm:$0xff]
        %v5089 = vld [vmem:[%s5083 + $0x28] sm:$0xff]
        %v5090 = vld [vmem:[%s5083 + $0x30] sm:$0xff]
        %v5091 = vld [vmem:[%s5083 + $0x38] sm:$0xff]
        %v5092 = vld [vmem:[%s5083 + $0x40] sm:$0xff]
        %v5093 = vld [vmem:[%s5083 + $0x48] sm:$0xff]
        %v5094 = vld [vmem:[%s5083 + $0x50] sm:$0xff]
        %v5095 = vld [vmem:[%s5083 + $0x58] sm:$0xff]
        %v5096 = vld [vmem:[%s5083 + $0x60] sm:$0xff]
        %v5097 = vld [vmem:[%s5083 + $0x68] sm:$0xff]
        %v5098 = vld [vmem:[%s5083 + $0x70] sm:$0xff]
        %v5099 = vld [vmem:[%s5083 + $0x78] sm:$0xff]
        %5100 = vmatprep.subr.mxu0 0.0
        %5101 = vmatpush1.msra.mxu0 %v4815
        %5102 = vmatprep.subr.mxu0 0.0
        %5103 = vmatpush1.msra.mxu0 %v4814
        %5104 = vmatprep.subr.mxu0 0.0
        %5105 = vmatpush1.msra.mxu0 %v4813
        %5106 = vmatprep.subr.mxu0 0.0
        %5107 = vmatpush1.msra.mxu0 %v4812
        %5108 = vmatprep.subr.mxu0 0.0
        %5109 = vmatpush1.msra.mxu0 %v4811
        %5110 = vmatprep.subr.mxu0 0.0
        %5111 = vmatpush1.msra.mxu0 %v4810
        %5112 = vmatprep.subr.mxu0 0.0
        %5113 = vmatpush1.msra.mxu0 %v4809
        %5114 = vmatprep.subr.mxu0 0.0
        %5115 = vmatpush1.msra.mxu0 %v4808
        %5116 = vmatprep.subr.mxu0 0.0
        %5117 = vmatpush1.msra.mxu0 %v4807
        %5118 = vmatprep.subr.mxu0 0.0
        %5119 = vmatpush1.msra.mxu0 %v4806
        %5120 = vmatprep.subr.mxu0 0.0
        %5121 = vmatpush1.msra.mxu0 %v4805
        %5122 = vmatprep.subr.mxu0 0.0
        %5123 = vmatpush1.msra.mxu0 %v4804
        %5124 = vmatprep.subr.mxu0 0.0
        %5125 = vmatpush1.msra.mxu0 %v4803
        %5126 = vmatprep.subr.mxu0 0.0
        %5127 = vmatpush1.msra.mxu0 %v4802
        %5128 = vmatprep.subr.mxu0 0.0
        %5129 = vmatpush1.msra.mxu0 %v4801
        %5130 = vmatprep.subr.mxu0 0.0
        %5131 = vmatpush1.msra.mxu0 %v4800
        %5132 = vmatprep.subr.mxu0 0.0
        %5133 = vmatpush2.msra.mxu0 %v4831
        %5134 = vmatprep.subr.mxu0 0.0
        %5135 = vmatpush2.msra.mxu0 %v4830
        %5136 = vmatprep.subr.mxu0 0.0
        %5137 = vmatpush2.msra.mxu0 %v4829
        %5138 = vmatprep.subr.mxu0 0.0
        %5139 = vmatpush2.msra.mxu0 %v4828
        %5140 = vmatprep.subr.mxu0 0.0
        %5141 = vmatpush2.msra.mxu0 %v4827
        %5142 = vmatprep.subr.mxu0 0.0
        %5143 = vmatpush2.msra.mxu0 %v4826
        %5144 = vmatprep.subr.mxu0 0.0
        %5145 = vmatpush2.msra.mxu0 %v4825
        %5146 = vmatprep.subr.mxu0 0.0
        %5147 = vmatpush2.msra.mxu0 %v4824
        %5148 = vmatprep.subr.mxu0 0.0
        %5149 = vmatpush2.msra.mxu0 %v4823
        %5150 = vmatprep.subr.mxu0 0.0
        %5151 = vmatpush2.msra.mxu0 %v4822
        %5152 = vmatprep.subr.mxu0 0.0
        %5153 = vmatpush2.msra.mxu0 %v4821
        %5154 = vmatprep.subr.mxu0 0.0
        %5155 = vmatpush2.msra.mxu0 %v4820
        %5156 = vmatprep.subr.mxu0 0.0
        %5157 = vmatpush2.msra.mxu0 %v4819
        %5158 = vmatprep.subr.mxu0 0.0
        %5159 = vmatpush2.msra.mxu0 %v4818
        %5160 = vmatprep.subr.mxu0 0.0
        %5161 = vmatpush2.msra.mxu0 %v4817
        %5162 = vmatprep.subr.mxu0 0.0
        %5163 = vmatpush2.msra.mxu0 %v4816
        %5164 = vmatprep.mubr.f32.mxu0 %v5085
        %5165 = vmatmul.mubr.f32.gmra.mxu0 %v5084
        %v5166 = vpop.f32.mrf.mxu0
        %v5167 = vadd.f32 0.0, %v5166
        %v5168 = vpop.f32.mrf.mxu0
        %5169 = vmatprep.mubr.f32.mxu0 %v5087
        %5170 = vmatmul.mubr.f32.gmra.mxu0 %v5086
        %v5171 = vpop.f32.mrf.mxu0
        %v5172 = vadd.f32 0.0, %v5171
        %v5173 = vpop.f32.mrf.mxu0
        %5174 = vmatprep.mubr.f32.mxu0 %v5089
        %5175 = vmatmul.mubr.f32.gmra.mxu0 %v5088
        %v5176 = vpop.f32.mrf.mxu0
        %v5177 = vadd.f32 0.0, %v5176
        %v5178 = vpop.f32.mrf.mxu0
        %5179 = vmatprep.mubr.f32.mxu0 %v5091
        %5180 = vmatmul.mubr.f32.gmra.mxu0 %v5090
        %v5181 = vpop.f32.mrf.mxu0
        %v5182 = vadd.f32 0.0, %v5181
        %v5183 = vpop.f32.mrf.mxu0
        %5184 = vmatprep.mubr.f32.mxu0 %v5093
        %5185 = vmatmul.mubr.f32.gmra.mxu0 %v5092
        %v5186 = vpop.f32.mrf.mxu0
        %v5187 = vadd.f32 0.0, %v5186
        %v5188 = vpop.f32.mrf.mxu0
        %5189 = vmatprep.mubr.f32.mxu0 %v5095
        %5190 = vmatmul.mubr.f32.gmra.mxu0 %v5094
        %v5191 = vpop.f32.mrf.mxu0
        %v5192 = vadd.f32 0.0, %v5191
        %v5193 = vpop.f32.mrf.mxu0
        %5194 = vmatprep.mubr.f32.mxu0 %v5097
        %5195 = vmatmul.mubr.f32.gmra.mxu0 %v5096
        %v5196 = vpop.f32.mrf.mxu0
        %v5197 = vadd.f32 0.0, %v5196
        %v5198 = vpop.f32.mrf.mxu0
        %5199 = vmatprep.mubr.f32.mxu0 %v5099
        %5200 = vmatmul.mubr.f32.gmra.mxu0 %v5098
        %v5201 = vpop.f32.mrf.mxu0
        %v5202 = vadd.f32 0.0, %v5201
        %v5203 = vpop.f32.mrf.mxu0
        %5204 = vdwg.mxu0
        %v5205 = vmax.f32 %v5075, %v5167
        %v5206 = vmax.f32 %v5076, %v5172
        %v5207 = vmax.f32 %v5077, %v5177
        %v5208 = vmax.f32 %v5078, %v5182
        %v5209 = vmax.f32 %v5079, %v5187
        %v5210 = vmax.f32 %v5080, %v5192
        %v5211 = vmax.f32 %v5081, %v5197
        %v5212 = vmax.f32 %v5082, %v5202
        %s5213 = scalar_lea.vmem %s3, 384
        %v5214 = vld [vmem:[%s5213] sm:$0xff]
        %v5215 = vld [vmem:[%s5213 + $0x8] sm:$0xff]
        %v5216 = vld [vmem:[%s5213 + $0x10] sm:$0xff]
        %v5217 = vld [vmem:[%s5213 + $0x18] sm:$0xff]
        %v5218 = vld [vmem:[%s5213 + $0x20] sm:$0xff]
        %v5219 = vld [vmem:[%s5213 + $0x28] sm:$0xff]
        %v5220 = vld [vmem:[%s5213 + $0x30] sm:$0xff]
        %v5221 = vld [vmem:[%s5213 + $0x38] sm:$0xff]
        %v5222 = vld [vmem:[%s5213 + $0x40] sm:$0xff]
        %v5223 = vld [vmem:[%s5213 + $0x48] sm:$0xff]
        %v5224 = vld [vmem:[%s5213 + $0x50] sm:$0xff]
        %v5225 = vld [vmem:[%s5213 + $0x58] sm:$0xff]
        %v5226 = vld [vmem:[%s5213 + $0x60] sm:$0xff]
        %v5227 = vld [vmem:[%s5213 + $0x68] sm:$0xff]
        %v5228 = vld [vmem:[%s5213 + $0x70] sm:$0xff]
        %v5229 = vld [vmem:[%s5213 + $0x78] sm:$0xff]
        %5230 = vmatprep.subr.mxu0 0.0
        %5231 = vmatpush1.msra.mxu0 %v4815
        %5232 = vmatprep.subr.mxu0 0.0
        %5233 = vmatpush1.msra.mxu0 %v4814
        %5234 = vmatprep.subr.mxu0 0.0
        %5235 = vmatpush1.msra.mxu0 %v4813
        %5236 = vmatprep.subr.mxu0 0.0
        %5237 = vmatpush1.msra.mxu0 %v4812
        %5238 = vmatprep.subr.mxu0 0.0
        %5239 = vmatpush1.msra.mxu0 %v4811
        %5240 = vmatprep.subr.mxu0 0.0
        %5241 = vmatpush1.msra.mxu0 %v4810
        %5242 = vmatprep.subr.mxu0 0.0
        %5243 = vmatpush1.msra.mxu0 %v4809
        %5244 = vmatprep.subr.mxu0 0.0
        %5245 = vmatpush1.msra.mxu0 %v4808
        %5246 = vmatprep.subr.mxu0 0.0
        %5247 = vmatpush1.msra.mxu0 %v4807
        %5248 = vmatprep.subr.mxu0 0.0
        %5249 = vmatpush1.msra.mxu0 %v4806
        %5250 = vmatprep.subr.mxu0 0.0
        %5251 = vmatpush1.msra.mxu0 %v4805
        %5252 = vmatprep.subr.mxu0 0.0
        %5253 = vmatpush1.msra.mxu0 %v4804
        %5254 = vmatprep.subr.mxu0 0.0
        %5255 = vmatpush1.msra.mxu0 %v4803
        %5256 = vmatprep.subr.mxu0 0.0
        %5257 = vmatpush1.msra.mxu0 %v4802
        %5258 = vmatprep.subr.mxu0 0.0
        %5259 = vmatpush1.msra.mxu0 %v4801
        %5260 = vmatprep.subr.mxu0 0.0
        %5261 = vmatpush1.msra.mxu0 %v4800
        %5262 = vmatprep.subr.mxu0 0.0
        %5263 = vmatpush2.msra.mxu0 %v4831
        %5264 = vmatprep.subr.mxu0 0.0
        %5265 = vmatpush2.msra.mxu0 %v4830
        %5266 = vmatprep.subr.mxu0 0.0
        %5267 = vmatpush2.msra.mxu0 %v4829
        %5268 = vmatprep.subr.mxu0 0.0
        %5269 = vmatpush2.msra.mxu0 %v4828
        %5270 = vmatprep.subr.mxu0 0.0
        %5271 = vmatpush2.msra.mxu0 %v4827
        %5272 = vmatprep.subr.mxu0 0.0
        %5273 = vmatpush2.msra.mxu0 %v4826
        %5274 = vmatprep.subr.mxu0 0.0
        %5275 = vmatpush2.msra.mxu0 %v4825
        %5276 = vmatprep.subr.mxu0 0.0
        %5277 = vmatpush2.msra.mxu0 %v4824
        %5278 = vmatprep.subr.mxu0 0.0
        %5279 = vmatpush2.msra.mxu0 %v4823
        %5280 = vmatprep.subr.mxu0 0.0
        %5281 = vmatpush2.msra.mxu0 %v4822
        %5282 = vmatprep.subr.mxu0 0.0
        %5283 = vmatpush2.msra.mxu0 %v4821
        %5284 = vmatprep.subr.mxu0 0.0
        %5285 = vmatpush2.msra.mxu0 %v4820
        %5286 = vmatprep.subr.mxu0 0.0
        %5287 = vmatpush2.msra.mxu0 %v4819
        %5288 = vmatprep.subr.mxu0 0.0
        %5289 = vmatpush2.msra.mxu0 %v4818
        %5290 = vmatprep.subr.mxu0 0.0
        %5291 = vmatpush2.msra.mxu0 %v4817
        %5292 = vmatprep.subr.mxu0 0.0
        %5293 = vmatpush2.msra.mxu0 %v4816
        %5294 = vmatprep.mubr.f32.mxu0 %v5215
        %5295 = vmatmul.mubr.f32.gmra.mxu0 %v5214
        %v5296 = vpop.f32.mrf.mxu0
        %v5297 = vadd.f32 0.0, %v5296
        %v5298 = vpop.f32.mrf.mxu0
        %5299 = vmatprep.mubr.f32.mxu0 %v5217
        %5300 = vmatmul.mubr.f32.gmra.mxu0 %v5216
        %v5301 = vpop.f32.mrf.mxu0
        %v5302 = vadd.f32 0.0, %v5301
        %v5303 = vpop.f32.mrf.mxu0
        %5304 = vmatprep.mubr.f32.mxu0 %v5219
        %5305 = vmatmul.mubr.f32.gmra.mxu0 %v5218
        %v5306 = vpop.f32.mrf.mxu0
        %v5307 = vadd.f32 0.0, %v5306
        %v5308 = vpop.f32.mrf.mxu0
        %5309 = vmatprep.mubr.f32.mxu0 %v5221
        %5310 = vmatmul.mubr.f32.gmra.mxu0 %v5220
        %v5311 = vpop.f32.mrf.mxu0
        %v5312 = vadd.f32 0.0, %v5311
        %v5313 = vpop.f32.mrf.mxu0
        %5314 = vmatprep.mubr.f32.mxu0 %v5223
        %5315 = vmatmul.mubr.f32.gmra.mxu0 %v5222
        %v5316 = vpop.f32.mrf.mxu0
        %v5317 = vadd.f32 0.0, %v5316
        %v5318 = vpop.f32.mrf.mxu0
        %5319 = vmatprep.mubr.f32.mxu0 %v5225
        %5320 = vmatmul.mubr.f32.gmra.mxu0 %v5224
        %v5321 = vpop.f32.mrf.mxu0
        %v5322 = vadd.f32 0.0, %v5321
        %v5323 = vpop.f32.mrf.mxu0
        %5324 = vmatprep.mubr.f32.mxu0 %v5227
        %5325 = vmatmul.mubr.f32.gmra.mxu0 %v5226
        %v5326 = vpop.f32.mrf.mxu0
        %v5327 = vadd.f32 0.0, %v5326
        %v5328 = vpop.f32.mrf.mxu0
        %5329 = vmatprep.mubr.f32.mxu0 %v5229
        %5330 = vmatmul.mubr.f32.gmra.mxu0 %v5228
        %v5331 = vpop.f32.mrf.mxu0
        %v5332 = vadd.f32 0.0, %v5331
        %v5333 = vpop.f32.mrf.mxu0
        %5334 = vdwg.mxu0
        %v5335 = vmax.f32 %v5205, %v5297
        %v5336 = vmax.f32 %v5206, %v5302
        %v5337 = vmax.f32 %v5207, %v5307
        %v5338 = vmax.f32 %v5208, %v5312
        %v5339 = vmax.f32 %v5209, %v5317
        %v5340 = vmax.f32 %v5210, %v5322
        %v5341 = vmax.f32 %v5211, %v5327
        %v5342 = vmax.f32 %v5212, %v5332
        %vm5343 = vcmask 130048
        %5344 = vst.msk [vmem:[#allocation3] sm:$0xff] %vm5343, 0.0
        %5345 = vst.msk [vmem:[#allocation3 + $0x8] sm:$0xff] %vm5343, 0.0
        %5346 = vst.msk [vmem:[#allocation3 + $0x10] sm:$0xff] %vm5343, 0.0
        %5347 = vst.msk [vmem:[#allocation3 + $0x18] sm:$0xff] %vm5343, 0.0
        %5348 = vst.msk [vmem:[#allocation3 + $0x20] sm:$0xff] %vm5343, 0.0
        %5349 = vst.msk [vmem:[#allocation3 + $0x28] sm:$0xff] %vm5343, 0.0
        %5350 = vst.msk [vmem:[#allocation3 + $0x30] sm:$0xff] %vm5343, 0.0
        %5351 = vst.msk [vmem:[#allocation3 + $0x38] sm:$0xff] %vm5343, 0.0
        %5352 = vst.msk [vmem:[#allocation3 + $0x40] sm:$0xff] %vm5343, 0.0
        %5353 = vst.msk [vmem:[#allocation3 + $0x48] sm:$0xff] %vm5343, 0.0
        %vm5354 = vcmask 123904
        %5355 = vst.msk [vmem:[#allocation3 + $0x50] sm:$0x3] %vm5354, 0.0
        %5356 = vst.msk [vmem:[#allocation3 + $0x9] sm:$0xff] %vm5343, %v5335
        %5357 = vst.msk [vmem:[#allocation3 + $0x11] sm:$0xff] %vm5343, %v5336
        %5358 = vst.msk [vmem:[#allocation3 + $0x19] sm:$0xff] %vm5343, %v5337
        %5359 = vst.msk [vmem:[#allocation3 + $0x21] sm:$0xff] %vm5343, %v5338
        %5360 = vst.msk [vmem:[#allocation3 + $0x29] sm:$0xff] %vm5343, %v5339
        %5361 = vst.msk [vmem:[#allocation3 + $0x31] sm:$0xff] %vm5343, %v5340
        %5362 = vst.msk [vmem:[#allocation3 + $0x39] sm:$0xff] %vm5343, %v5341
        %5363 = vst.msk [vmem:[#allocation3 + $0x41] sm:$0xff] %vm5343, %v5342
        %vm5364 = vcmp.lt.s32.totalorder %v515, 0
        %v5365 = vsub.s32 0, %v515
        %v5366 = vsel %vm5364, %v5365, %v515
        %v5367 = vshrl.u32 %v5366, 3
        %v5368 = vand.u32 %v5366, 7
        %v5369 = vsub.s32 0, %v5368
        %v5370 = vsel %vm5364, %v5369, %v5368
        %vm5371 = vcmp.lt.s32.totalorder %v516, 0
        %v5372 = vsub.s32 0, %v516
        %v5373 = vsel %vm5371, %v5372, %v516
        %v5374 = vshrl.u32 %v5373, 3
        %v5375 = vand.u32 %v5373, 7
        %v5376 = vsub.s32 0, %v5375
        %v5377 = vsel %vm5371, %v5376, %v5375
        %vm5378 = vcmp.lt.s32.totalorder %v517, 0
        %v5379 = vsub.s32 0, %v517
        %v5380 = vsel %vm5378, %v5379, %v517
        %v5381 = vshrl.u32 %v5380, 3
        %v5382 = vand.u32 %v5380, 7
        %v5383 = vsub.s32 0, %v5382
        %v5384 = vsel %vm5378, %v5383, %v5382
        %vm5385 = vcmp.lt.s32.totalorder %v518, 0
        %v5386 = vsub.s32 0, %v518
        %v5387 = vsel %vm5385, %v5386, %v518
        %v5388 = vshrl.u32 %v5387, 3
        %v5389 = vand.u32 %v5387, 7
        %v5390 = vsub.s32 0, %v5389
        %v5391 = vsel %vm5385, %v5390, %v5389
        %vm5392 = vcmp.lt.s32.totalorder %v519, 0
        %v5393 = vsub.s32 0, %v519
        %v5394 = vsel %vm5392, %v5393, %v519
        %v5395 = vshrl.u32 %v5394, 3
        %v5396 = vand.u32 %v5394, 7
        %v5397 = vsub.s32 0, %v5396
        %v5398 = vsel %vm5392, %v5397, %v5396
        %vm5399 = vcmp.lt.s32.totalorder %v520, 0
        %v5400 = vsub.s32 0, %v520
        %v5401 = vsel %vm5399, %v5400, %v520
        %v5402 = vshrl.u32 %v5401, 3
        %v5403 = vand.u32 %v5401, 7
        %v5404 = vsub.s32 0, %v5403
        %v5405 = vsel %vm5399, %v5404, %v5403
        %vm5406 = vcmp.lt.s32.totalorder %v521, 0
        %v5407 = vsub.s32 0, %v521
        %v5408 = vsel %vm5406, %v5407, %v521
        %v5409 = vshrl.u32 %v5408, 3
        %v5410 = vand.u32 %v5408, 7
        %v5411 = vsub.s32 0, %v5410
        %v5412 = vsel %vm5406, %v5411, %v5410
        %vm5413 = vcmp.lt.s32.totalorder %v522, 0
        %v5414 = vsub.s32 0, %v522
        %v5415 = vsel %vm5413, %v5414, %v522
        %v5416 = vshrl.u32 %v5415, 3
        %v5417 = vand.u32 %v5415, 7
        %v5418 = vsub.s32 0, %v5417
        %v5419 = vsel %vm5413, %v5418, %v5417
        %vm5420 = vcmp.ne.s32.totalorder %v5370, 0
        %vm5421 = vcmp.ne.s32.totalorder %v5377, 0
        %vm5422 = vcmp.ne.s32.totalorder %v5384, 0
        %vm5423 = vcmp.ne.s32.totalorder %v5391, 0
        %vm5424 = vcmp.ne.s32.totalorder %v5398, 0
        %vm5425 = vcmp.ne.s32.totalorder %v5405, 0
        %vm5426 = vcmp.ne.s32.totalorder %v5412, 0
        %vm5427 = vcmp.ne.s32.totalorder %v5419, 0
        %vm5428 = vcmp.lt.s32.totalorder %v5370, 0
        %vm5429 = vcmp.lt.s32.totalorder %v5377, 0
        %vm5430 = vcmp.lt.s32.totalorder %v5384, 0
        %vm5431 = vcmp.lt.s32.totalorder %v5391, 0
        %vm5432 = vcmp.lt.s32.totalorder %v5398, 0
        %vm5433 = vcmp.lt.s32.totalorder %v5405, 0
        %vm5434 = vcmp.lt.s32.totalorder %v5412, 0
        %vm5435 = vcmp.lt.s32.totalorder %v5419, 0
        %vm5436 = vmand %vm5428, %vm5420
        %vm5437 = vmand %vm5429, %vm5421
        %vm5438 = vmand %vm5430, %vm5422
        %vm5439 = vmand %vm5431, %vm5423
        %vm5440 = vmand %vm5432, %vm5424
        %vm5441 = vmand %vm5433, %vm5425
        %vm5442 = vmand %vm5434, %vm5426
        %vm5443 = vmand %vm5435, %vm5427
        %v5444 = vadd.s32 %v5370, 8
        %v5445 = vadd.s32 %v5377, 8
        %v5446 = vadd.s32 %v5384, 8
        %v5447 = vadd.s32 %v5391, 8
        %v5448 = vadd.s32 %v5398, 8
        %v5449 = vadd.s32 %v5405, 8
        %v5450 = vadd.s32 %v5412, 8
        %v5451 = vadd.s32 %v5419, 8
        %v5452 = vsel %vm5436, %v5444, %v5370
        %v5453 = vsel %vm5437, %v5445, %v5377
        %v5454 = vsel %vm5438, %v5446, %v5384
        %v5455 = vsel %vm5439, %v5447, %v5391
        %v5456 = vsel %vm5440, %v5448, %v5398
        %v5457 = vsel %vm5441, %v5449, %v5405
        %v5458 = vsel %vm5442, %v5450, %v5412
        %v5459 = vsel %vm5443, %v5451, %v5419
        %v5460 = vld [vmem:[#allocation3] sm:$0xff]
        %v5461 = vld [vmem:[#allocation3 + $0x8] sm:$0xff]
        %v5462 = vld [vmem:[#allocation3 + $0x10] sm:$0xff]
        %v5463 = vld [vmem:[#allocation3 + $0x18] sm:$0xff]
        %v5464 = vld [vmem:[#allocation3 + $0x20] sm:$0xff]
        %v5465 = vld [vmem:[#allocation3 + $0x28] sm:$0xff]
        %v5466 = vld [vmem:[#allocation3 + $0x30] sm:$0xff]
        %v5467 = vld [vmem:[#allocation3 + $0x38] sm:$0xff]
        %vm5468 = vcmp.ge.s32.totalorder %v5452, 1
        %vm5469 = vcmp.ge.s32.totalorder %v5453, 1
        %vm5470 = vcmp.ge.s32.totalorder %v5454, 1
        %vm5471 = vcmp.ge.s32.totalorder %v5455, 1
        %vm5472 = vcmp.ge.s32.totalorder %v5456, 1
        %vm5473 = vcmp.ge.s32.totalorder %v5457, 1
        %vm5474 = vcmp.ge.s32.totalorder %v5458, 1
        %vm5475 = vcmp.ge.s32.totalorder %v5459, 1
        %v5476 = vsel %vm5468, 1, 0
        %v5477 = vsel %vm5469, 1, 0
        %v5478 = vsel %vm5470, 1, 0
        %v5479 = vsel %vm5471, 1, 0
        %v5480 = vsel %vm5472, 1, 0
        %v5481 = vsel %vm5473, 1, 0
        %v5482 = vsel %vm5474, 1, 0
        %v5483 = vsel %vm5475, 1, 0
        %vm5484 = vcmp.eq.s32.totalorder %v5476, 1
        %vm5485 = vcmp.eq.s32.totalorder %v5477, 1
        %vm5486 = vcmp.eq.s32.totalorder %v5478, 1
        %vm5487 = vcmp.eq.s32.totalorder %v5479, 1
        %vm5488 = vcmp.eq.s32.totalorder %v5480, 1
        %vm5489 = vcmp.eq.s32.totalorder %v5481, 1
        %vm5490 = vcmp.eq.s32.totalorder %v5482, 1
        %vm5491 = vcmp.eq.s32.totalorder %v5483, 1
        %v5492 = vsel %vm5484, %v5460, 0.0
        %v5493 = vsel %vm5485, %v5461, 0.0
        %v5494 = vsel %vm5486, %v5462, 0.0
        %v5495 = vsel %vm5487, %v5463, 0.0
        %v5496 = vsel %vm5488, %v5464, 0.0
        %v5497 = vsel %vm5489, %v5465, 0.0
        %v5498 = vsel %vm5490, %v5466, 0.0
        %v5499 = vsel %vm5491, %v5467, 0.0
        %v5500 = vld [vmem:[%s4] sm:$0xff]
        %v5501 = vld [vmem:[%s4 + $0x8] sm:$0xff]
        %v5502 = vld [vmem:[#allocation3 + $0x1] sm:$0xff]
        %v5503 = vld [vmem:[#allocation3 + $0x9] sm:$0xff]
        %v5504 = vld [vmem:[#allocation3 + $0x11] sm:$0xff]
        %v5505 = vld [vmem:[#allocation3 + $0x19] sm:$0xff]
        %v5506 = vld [vmem:[#allocation3 + $0x21] sm:$0xff]
        %v5507 = vld [vmem:[#allocation3 + $0x29] sm:$0xff]
        %v5508 = vld [vmem:[#allocation3 + $0x31] sm:$0xff]
        %v5509 = vld [vmem:[#allocation3 + $0x39] sm:$0xff]
        %s5510 = scalar_lea.vmem %s4, 16
        %v5511 = vld [vmem:[%s5510] sm:$0xff]
        %v5512 = vld [vmem:[%s5510 + $0x8] sm:$0xff]
        %v5514 = vsel %vm5343, %v5502, 0
        %v5517 = vsel %vm5343, %v5503, 0
        %v5520 = vsel %vm5343, %v5504, 0
        %v5523 = vsel %vm5343, %v5505, 0
        %v5526 = vsel %vm5343, %v5506, 0
        %v5529 = vsel %vm5343, %v5507, 0
        %v5532 = vsel %vm5343, %v5508, 0
        %v5535 = vsel %vm5343, %v5509, 0
        %5537 = vmatprep.subr.mxu0 0.0
        %5538 = vmatpush1.msra.mxu0 0.0
        %5539 = vmatprep.subr.mxu0 0.0
        %5540 = vmatpush1.msra.mxu0 0.0
        %5541 = vmatprep.subr.mxu0 0.0
        %5542 = vmatpush1.msra.mxu0 0.0
        %5543 = vmatprep.subr.mxu0 0.0
        %5544 = vmatpush1.msra.mxu0 0.0
        %5545 = vmatprep.subr.mxu0 0.0
        %5546 = vmatpush1.msra.mxu0 0.0
        %5547 = vmatprep.subr.mxu0 0.0
        %5548 = vmatpush1.msra.mxu0 0.0
        %5549 = vmatprep.subr.mxu0 0.0
        %5550 = vmatpush1.msra.mxu0 0.0
        %5551 = vmatprep.subr.mxu0 0.0
        %5552 = vmatpush1.msra.mxu0 0.0
        %5553 = vmatprep.subr.mxu0 0.0
        %5554 = vmatpush1.msra.mxu0 0.0
        %5555 = vmatprep.subr.mxu0 0.0
        %5556 = vmatpush1.msra.mxu0 0.0
        %5557 = vmatprep.subr.mxu0 0.0
        %5558 = vmatpush1.msra.mxu0 0.0
        %5559 = vmatprep.subr.mxu0 0.0
        %5560 = vmatpush1.msra.mxu0 0.0
        %5561 = vmatprep.subr.mxu0 0.0
        %5562 = vmatpush1.msra.mxu0 0.0
        %5563 = vmatprep.subr.mxu0 0.0
        %5564 = vmatpush1.msra.mxu0 0.0
        %5565 = vmatprep.subr.mxu0 0.0
        %5566 = vmatpush1.msra.mxu0 %v5512
        %5567 = vmatprep.subr.mxu0 0.0
        %5568 = vmatpush1.msra.mxu0 %v5511
        %5569 = vmatprep.subr.mxu0 0.0
        %5570 = vmatpush2.msra.mxu0 0.0
        %5571 = vmatprep.subr.mxu0 0.0
        %5572 = vmatpush2.msra.mxu0 0.0
        %5573 = vmatprep.subr.mxu0 0.0
        %5574 = vmatpush2.msra.mxu0 0.0
        %5575 = vmatprep.subr.mxu0 0.0
        %5576 = vmatpush2.msra.mxu0 0.0
        %5577 = vmatprep.subr.mxu0 0.0
        %5578 = vmatpush2.msra.mxu0 0.0
        %5579 = vmatprep.subr.mxu0 0.0
        %5580 = vmatpush2.msra.mxu0 0.0
        %5581 = vmatprep.subr.mxu0 0.0
        %5582 = vmatpush2.msra.mxu0 0.0
        %5583 = vmatprep.subr.mxu0 0.0
        %5584 = vmatpush2.msra.mxu0 0.0
        %5585 = vmatprep.subr.mxu0 0.0
        %5586 = vmatpush2.msra.mxu0 0.0
        %5587 = vmatprep.subr.mxu0 0.0
        %5588 = vmatpush2.msra.mxu0 0.0
        %5589 = vmatprep.subr.mxu0 0.0
        %5590 = vmatpush2.msra.mxu0 0.0
        %5591 = vmatprep.subr.mxu0 0.0
        %5592 = vmatpush2.msra.mxu0 0.0
        %5593 = vmatprep.subr.mxu0 0.0
        %5594 = vmatpush2.msra.mxu0 0.0
        %5595 = vmatprep.subr.mxu0 0.0
        %5596 = vmatpush2.msra.mxu0 0.0
        %5597 = vmatprep.subr.mxu0 0.0
        %5598 = vmatpush2.msra.mxu0 0.0
        %5599 = vmatprep.subr.mxu0 0.0
        %5600 = vmatpush2.msra.mxu0 0.0
        %5601 = vmatprep.mubr.f32.mxu0 0.0
        %5602 = vmatmul.mubr.f32.gmra.mxu0 %v5514
        %v5603 = vpop.f32.mrf.mxu0
        %v5604 = vadd.f32 0.0, %v5603
        %v5605 = vpop.f32.mrf.mxu0
        %5606 = vmatprep.mubr.f32.mxu0 0.0
        %5607 = vmatmul.mubr.f32.gmra.mxu0 %v5517
        %v5608 = vpop.f32.mrf.mxu0
        %v5609 = vadd.f32 0.0, %v5608
        %v5610 = vpop.f32.mrf.mxu0
        %5611 = vmatprep.mubr.f32.mxu0 0.0
        %5612 = vmatmul.mubr.f32.gmra.mxu0 %v5520
        %v5613 = vpop.f32.mrf.mxu0
        %v5614 = vadd.f32 0.0, %v5613
        %v5615 = vpop.f32.mrf.mxu0
        %5616 = vmatprep.mubr.f32.mxu0 0.0
        %5617 = vmatmul.mubr.f32.gmra.mxu0 %v5523
        %v5618 = vpop.f32.mrf.mxu0
        %v5619 = vadd.f32 0.0, %v5618
        %v5620 = vpop.f32.mrf.mxu0
        %5621 = vmatprep.mubr.f32.mxu0 0.0
        %5622 = vmatmul.mubr.f32.gmra.mxu0 %v5526
        %v5623 = vpop.f32.mrf.mxu0
        %v5624 = vadd.f32 0.0, %v5623
        %v5625 = vpop.f32.mrf.mxu0
        %5626 = vmatprep.mubr.f32.mxu0 0.0
        %5627 = vmatmul.mubr.f32.gmra.mxu0 %v5529
        %v5628 = vpop.f32.mrf.mxu0
        %v5629 = vadd.f32 0.0, %v5628
        %v5630 = vpop.f32.mrf.mxu0
        %5631 = vmatprep.mubr.f32.mxu0 0.0
        %5632 = vmatmul.mubr.f32.gmra.mxu0 %v5532
        %v5633 = vpop.f32.mrf.mxu0
        %v5634 = vadd.f32 0.0, %v5633
        %v5635 = vpop.f32.mrf.mxu0
        %5636 = vmatprep.mubr.f32.mxu0 0.0
        %5637 = vmatmul.mubr.f32.gmra.mxu0 %v5535
        %v5638 = vpop.f32.mrf.mxu0
        %v5639 = vadd.f32 0.0, %v5638
        %v5640 = vpop.f32.mrf.mxu0
        %5641 = vdwg.mxu0
        %v5643 = vsel %vm5343, %v5492, 0
        %v5646 = vsel %vm5343, %v5493, 0
        %v5649 = vsel %vm5343, %v5494, 0
        %v5652 = vsel %vm5343, %v5495, 0
        %v5655 = vsel %vm5343, %v5496, 0
        %v5658 = vsel %vm5343, %v5497, 0
        %v5661 = vsel %vm5343, %v5498, 0
        %v5664 = vsel %vm5343, %v5499, 0
        %5666 = vmatprep.subr.mxu0 0.0
        %5667 = vmatpush1.msra.mxu0 0.0
        %5668 = vmatprep.subr.mxu0 0.0
        %5669 = vmatpush1.msra.mxu0 0.0
        %5670 = vmatprep.subr.mxu0 0.0
        %5671 = vmatpush1.msra.mxu0 0.0
        %5672 = vmatprep.subr.mxu0 0.0
        %5673 = vmatpush1.msra.mxu0 0.0
        %5674 = vmatprep.subr.mxu0 0.0
        %5675 = vmatpush1.msra.mxu0 0.0
        %5676 = vmatprep.subr.mxu0 0.0
        %5677 = vmatpush1.msra.mxu0 0.0
        %5678 = vmatprep.subr.mxu0 0.0
        %5679 = vmatpush1.msra.mxu0 0.0
        %5680 = vmatprep.subr.mxu0 0.0
        %5681 = vmatpush1.msra.mxu0 0.0
        %5682 = vmatprep.subr.mxu0 0.0
        %5683 = vmatpush1.msra.mxu0 0.0
        %5684 = vmatprep.subr.mxu0 0.0
        %5685 = vmatpush1.msra.mxu0 0.0
        %5686 = vmatprep.subr.mxu0 0.0
        %5687 = vmatpush1.msra.mxu0 0.0
        %5688 = vmatprep.subr.mxu0 0.0
        %5689 = vmatpush1.msra.mxu0 0.0
        %5690 = vmatprep.subr.mxu0 0.0
        %5691 = vmatpush1.msra.mxu0 0.0
        %5692 = vmatprep.subr.mxu0 0.0
        %5693 = vmatpush1.msra.mxu0 0.0
        %5694 = vmatprep.subr.mxu0 0.0
        %5695 = vmatpush1.msra.mxu0 %v5501
        %5696 = vmatprep.subr.mxu0 0.0
        %5697 = vmatpush1.msra.mxu0 %v5500
        %5698 = vmatprep.subr.mxu0 0.0
        %5699 = vmatpush2.msra.mxu0 0.0
        %5700 = vmatprep.subr.mxu0 0.0
        %5701 = vmatpush2.msra.mxu0 0.0
        %5702 = vmatprep.subr.mxu0 0.0
        %5703 = vmatpush2.msra.mxu0 0.0
        %5704 = vmatprep.subr.mxu0 0.0
        %5705 = vmatpush2.msra.mxu0 0.0
        %5706 = vmatprep.subr.mxu0 0.0
        %5707 = vmatpush2.msra.mxu0 0.0
        %5708 = vmatprep.subr.mxu0 0.0
        %5709 = vmatpush2.msra.mxu0 0.0
        %5710 = vmatprep.subr.mxu0 0.0
        %5711 = vmatpush2.msra.mxu0 0.0
        %5712 = vmatprep.subr.mxu0 0.0
        %5713 = vmatpush2.msra.mxu0 0.0
        %5714 = vmatprep.subr.mxu0 0.0
        %5715 = vmatpush2.msra.mxu0 0.0
        %5716 = vmatprep.subr.mxu0 0.0
        %5717 = vmatpush2.msra.mxu0 0.0
        %5718 = vmatprep.subr.mxu0 0.0
        %5719 = vmatpush2.msra.mxu0 0.0
        %5720 = vmatprep.subr.mxu0 0.0
        %5721 = vmatpush2.msra.mxu0 0.0
        %5722 = vmatprep.subr.mxu0 0.0
        %5723 = vmatpush2.msra.mxu0 0.0
        %5724 = vmatprep.subr.mxu0 0.0
        %5725 = vmatpush2.msra.mxu0 0.0
        %5726 = vmatprep.subr.mxu0 0.0
        %5727 = vmatpush2.msra.mxu0 0.0
        %5728 = vmatprep.subr.mxu0 0.0
        %5729 = vmatpush2.msra.mxu0 0.0
        %5730 = vmatprep.mubr.f32.mxu0 0.0
        %5731 = vmatmul.mubr.f32.gmra.mxu0 %v5643
        %v5732 = vpop.f32.mrf.mxu0
        %v5733 = vadd.f32 %v5604, %v5732
        %v5734 = vpop.f32.mrf.mxu0
        %5735 = vmatprep.mubr.f32.mxu0 0.0
        %5736 = vmatmul.mubr.f32.gmra.mxu0 %v5646
        %v5737 = vpop.f32.mrf.mxu0
        %v5738 = vadd.f32 %v5609, %v5737
        %v5739 = vpop.f32.mrf.mxu0
        %5740 = vmatprep.mubr.f32.mxu0 0.0
        %5741 = vmatmul.mubr.f32.gmra.mxu0 %v5649
        %v5742 = vpop.f32.mrf.mxu0
        %v5743 = vadd.f32 %v5614, %v5742
        %v5744 = vpop.f32.mrf.mxu0
        %5745 = vmatprep.mubr.f32.mxu0 0.0
        %5746 = vmatmul.mubr.f32.gmra.mxu0 %v5652
        %v5747 = vpop.f32.mrf.mxu0
        %v5748 = vadd.f32 %v5619, %v5747
        %v5749 = vpop.f32.mrf.mxu0
        %5750 = vmatprep.mubr.f32.mxu0 0.0
        %5751 = vmatmul.mubr.f32.gmra.mxu0 %v5655
        %v5752 = vpop.f32.mrf.mxu0
        %v5753 = vadd.f32 %v5624, %v5752
        %v5754 = vpop.f32.mrf.mxu0
        %5755 = vmatprep.mubr.f32.mxu0 0.0
        %5756 = vmatmul.mubr.f32.gmra.mxu0 %v5658
        %v5757 = vpop.f32.mrf.mxu0
        %v5758 = vadd.f32 %v5629, %v5757
        %v5759 = vpop.f32.mrf.mxu0
        %5760 = vmatprep.mubr.f32.mxu0 0.0
        %5761 = vmatmul.mubr.f32.gmra.mxu0 %v5661
        %v5762 = vpop.f32.mrf.mxu0
        %v5763 = vadd.f32 %v5634, %v5762
        %v5764 = vpop.f32.mrf.mxu0
        %5765 = vmatprep.mubr.f32.mxu0 0.0
        %5766 = vmatmul.mubr.f32.gmra.mxu0 %v5664
        %v5767 = vpop.f32.mrf.mxu0
        %v5768 = vadd.f32 %v5639, %v5767
        %v5769 = vpop.f32.mrf.mxu0
        %5770 = vdwg.mxu0
        %v5771 = vld [vmem:[#allocation3 + $0x2] sm:$0xff]
        %v5772 = vld [vmem:[#allocation3 + $0xa] sm:$0xff]
        %v5773 = vld [vmem:[#allocation3 + $0x12] sm:$0xff]
        %v5774 = vld [vmem:[#allocation3 + $0x1a] sm:$0xff]
        %v5775 = vld [vmem:[#allocation3 + $0x22] sm:$0xff]
        %v5776 = vld [vmem:[#allocation3 + $0x2a] sm:$0xff]
        %v5777 = vld [vmem:[#allocation3 + $0x32] sm:$0xff]
        %v5778 = vld [vmem:[#allocation3 + $0x3a] sm:$0xff]
        %vm5779 = vcmp.le.s32.totalorder %v5452, 6
        %vm5780 = vcmp.le.s32.totalorder %v5453, 6
        %vm5781 = vcmp.le.s32.totalorder %v5454, 6
        %vm5782 = vcmp.le.s32.totalorder %v5455, 6
        %vm5783 = vcmp.le.s32.totalorder %v5456, 6
        %vm5784 = vcmp.le.s32.totalorder %v5457, 6
        %vm5785 = vcmp.le.s32.totalorder %v5458, 6
        %vm5786 = vcmp.le.s32.totalorder %v5459, 6
        %v5787 = vsel %vm5779, 1, 0
        %v5788 = vsel %vm5780, 1, 0
        %v5789 = vsel %vm5781, 1, 0
        %v5790 = vsel %vm5782, 1, 0
        %v5791 = vsel %vm5783, 1, 0
        %v5792 = vsel %vm5784, 1, 0
        %v5793 = vsel %vm5785, 1, 0
        %v5794 = vsel %vm5786, 1, 0
        %vm5795 = vcmp.eq.s32.totalorder %v5787, 1
        %vm5796 = vcmp.eq.s32.totalorder %v5788, 1
        %vm5797 = vcmp.eq.s32.totalorder %v5789, 1
        %vm5798 = vcmp.eq.s32.totalorder %v5790, 1
        %vm5799 = vcmp.eq.s32.totalorder %v5791, 1
        %vm5800 = vcmp.eq.s32.totalorder %v5792, 1
        %vm5801 = vcmp.eq.s32.totalorder %v5793, 1
        %vm5802 = vcmp.eq.s32.totalorder %v5794, 1
        %v5803 = vsel %vm5795, %v5771, 0.0
        %v5804 = vsel %vm5796, %v5772, 0.0
        %v5805 = vsel %vm5797, %v5773, 0.0
        %v5806 = vsel %vm5798, %v5774, 0.0
        %v5807 = vsel %vm5799, %v5775, 0.0
        %v5808 = vsel %vm5800, %v5776, 0.0
        %v5809 = vsel %vm5801, %v5777, 0.0
        %v5810 = vsel %vm5802, %v5778, 0.0
        %s5811 = scalar_lea.vmem %s4, 32
        %v5812 = vld [vmem:[%s5811] sm:$0xff]
        %v5813 = vld [vmem:[%s5811 + $0x8] sm:$0xff]
        %v5815 = vsel %vm5343, %v5803, 0
        %v5818 = vsel %vm5343, %v5804, 0
        %v5821 = vsel %vm5343, %v5805, 0
        %v5824 = vsel %vm5343, %v5806, 0
        %v5827 = vsel %vm5343, %v5807, 0
        %v5830 = vsel %vm5343, %v5808, 0
        %v5833 = vsel %vm5343, %v5809, 0
        %v5836 = vsel %vm5343, %v5810, 0
        %5838 = vmatprep.subr.mxu0 0.0
        %5839 = vmatpush1.msra.mxu0 0.0
        %5840 = vmatprep.subr.mxu0 0.0
        %5841 = vmatpush1.msra.mxu0 0.0
        %5842 = vmatprep.subr.mxu0 0.0
        %5843 = vmatpush1.msra.mxu0 0.0
        %5844 = vmatprep.subr.mxu0 0.0
        %5845 = vmatpush1.msra.mxu0 0.0
        %5846 = vmatprep.subr.mxu0 0.0
        %5847 = vmatpush1.msra.mxu0 0.0
        %5848 = vmatprep.subr.mxu0 0.0
        %5849 = vmatpush1.msra.mxu0 0.0
        %5850 = vmatprep.subr.mxu0 0.0
        %5851 = vmatpush1.msra.mxu0 0.0
        %5852 = vmatprep.subr.mxu0 0.0
        %5853 = vmatpush1.msra.mxu0 0.0
        %5854 = vmatprep.subr.mxu0 0.0
        %5855 = vmatpush1.msra.mxu0 0.0
        %5856 = vmatprep.subr.mxu0 0.0
        %5857 = vmatpush1.msra.mxu0 0.0
        %5858 = vmatprep.subr.mxu0 0.0
        %5859 = vmatpush1.msra.mxu0 0.0
        %5860 = vmatprep.subr.mxu0 0.0
        %5861 = vmatpush1.msra.mxu0 0.0
        %5862 = vmatprep.subr.mxu0 0.0
        %5863 = vmatpush1.msra.mxu0 0.0
        %5864 = vmatprep.subr.mxu0 0.0
        %5865 = vmatpush1.msra.mxu0 0.0
        %5866 = vmatprep.subr.mxu0 0.0
        %5867 = vmatpush1.msra.mxu0 %v5813
        %5868 = vmatprep.subr.mxu0 0.0
        %5869 = vmatpush1.msra.mxu0 %v5812
        %5870 = vmatprep.subr.mxu0 0.0
        %5871 = vmatpush2.msra.mxu0 0.0
        %5872 = vmatprep.subr.mxu0 0.0
        %5873 = vmatpush2.msra.mxu0 0.0
        %5874 = vmatprep.subr.mxu0 0.0
        %5875 = vmatpush2.msra.mxu0 0.0
        %5876 = vmatprep.subr.mxu0 0.0
        %5877 = vmatpush2.msra.mxu0 0.0
        %5878 = vmatprep.subr.mxu0 0.0
        %5879 = vmatpush2.msra.mxu0 0.0
        %5880 = vmatprep.subr.mxu0 0.0
        %5881 = vmatpush2.msra.mxu0 0.0
        %5882 = vmatprep.subr.mxu0 0.0
        %5883 = vmatpush2.msra.mxu0 0.0
        %5884 = vmatprep.subr.mxu0 0.0
        %5885 = vmatpush2.msra.mxu0 0.0
        %5886 = vmatprep.subr.mxu0 0.0
        %5887 = vmatpush2.msra.mxu0 0.0
        %5888 = vmatprep.subr.mxu0 0.0
        %5889 = vmatpush2.msra.mxu0 0.0
        %5890 = vmatprep.subr.mxu0 0.0
        %5891 = vmatpush2.msra.mxu0 0.0
        %5892 = vmatprep.subr.mxu0 0.0
        %5893 = vmatpush2.msra.mxu0 0.0
        %5894 = vmatprep.subr.mxu0 0.0
        %5895 = vmatpush2.msra.mxu0 0.0
        %5896 = vmatprep.subr.mxu0 0.0
        %5897 = vmatpush2.msra.mxu0 0.0
        %5898 = vmatprep.subr.mxu0 0.0
        %5899 = vmatpush2.msra.mxu0 0.0
        %5900 = vmatprep.subr.mxu0 0.0
        %5901 = vmatpush2.msra.mxu0 0.0
        %5902 = vmatprep.mubr.f32.mxu0 0.0
        %5903 = vmatmul.mubr.f32.gmra.mxu0 %v5815
        %v5904 = vpop.f32.mrf.mxu0
        %v5905 = vadd.f32 0.0, %v5904
        %v5906 = vpop.f32.mrf.mxu0
        %5907 = vmatprep.mubr.f32.mxu0 0.0
        %5908 = vmatmul.mubr.f32.gmra.mxu0 %v5818
        %v5909 = vpop.f32.mrf.mxu0
        %v5910 = vadd.f32 0.0, %v5909
        %v5911 = vpop.f32.mrf.mxu0
        %5912 = vmatprep.mubr.f32.mxu0 0.0
        %5913 = vmatmul.mubr.f32.gmra.mxu0 %v5821
        %v5914 = vpop.f32.mrf.mxu0
        %v5915 = vadd.f32 0.0, %v5914
        %v5916 = vpop.f32.mrf.mxu0
        %5917 = vmatprep.mubr.f32.mxu0 0.0
        %5918 = vmatmul.mubr.f32.gmra.mxu0 %v5824
        %v5919 = vpop.f32.mrf.mxu0
        %v5920 = vadd.f32 0.0, %v5919
        %v5921 = vpop.f32.mrf.mxu0
        %5922 = vmatprep.mubr.f32.mxu0 0.0
        %5923 = vmatmul.mubr.f32.gmra.mxu0 %v5827
        %v5924 = vpop.f32.mrf.mxu0
        %v5925 = vadd.f32 0.0, %v5924
        %v5926 = vpop.f32.mrf.mxu0
        %5927 = vmatprep.mubr.f32.mxu0 0.0
        %5928 = vmatmul.mubr.f32.gmra.mxu0 %v5830
        %v5929 = vpop.f32.mrf.mxu0
        %v5930 = vadd.f32 0.0, %v5929
        %v5931 = vpop.f32.mrf.mxu0
        %5932 = vmatprep.mubr.f32.mxu0 0.0
        %5933 = vmatmul.mubr.f32.gmra.mxu0 %v5833
        %v5934 = vpop.f32.mrf.mxu0
        %v5935 = vadd.f32 0.0, %v5934
        %v5936 = vpop.f32.mrf.mxu0
        %5937 = vmatprep.mubr.f32.mxu0 0.0
        %5938 = vmatmul.mubr.f32.gmra.mxu0 %v5836
        %v5939 = vpop.f32.mrf.mxu0
        %v5940 = vadd.f32 0.0, %v5939
        %v5941 = vpop.f32.mrf.mxu0
        %5942 = vdwg.mxu0
        %v5943 = vadd.f32 %v5733, %v5905
        %v5944 = vadd.f32 %v5738, %v5910
        %v5945 = vadd.f32 %v5743, %v5915
        %v5946 = vadd.f32 %v5748, %v5920
        %v5947 = vadd.f32 %v5753, %v5925
        %v5948 = vadd.f32 %v5758, %v5930
        %v5949 = vadd.f32 %v5763, %v5935
        %v5950 = vadd.f32 %v5768, %v5940
        %v5951 = vld [vmem:[#allocation3 + $0x8] sm:$0xff]
        %v5952 = vld [vmem:[#allocation3 + $0x10] sm:$0xff]
        %v5953 = vld [vmem:[#allocation3 + $0x18] sm:$0xff]
        %v5954 = vld [vmem:[#allocation3 + $0x20] sm:$0xff]
        %v5955 = vld [vmem:[#allocation3 + $0x28] sm:$0xff]
        %v5956 = vld [vmem:[#allocation3 + $0x30] sm:$0xff]
        %v5957 = vld [vmem:[#allocation3 + $0x38] sm:$0xff]
        %v5958 = vld [vmem:[#allocation3 + $0x40] sm:$0xff]
        %v5959 = vsel %vm5484, %v5951, 0.0
        %v5960 = vsel %vm5485, %v5952, 0.0
        %v5961 = vsel %vm5486, %v5953, 0.0
        %v5962 = vsel %vm5487, %v5954, 0.0
        %v5963 = vsel %vm5488, %v5955, 0.0
        %v5964 = vsel %vm5489, %v5956, 0.0
        %v5965 = vsel %vm5490, %v5957, 0.0
        %v5966 = vsel %vm5491, %v5958, 0.0
        %s5967 = scalar_lea.vmem %s4, 48
        %v5968 = vld [vmem:[%s5967] sm:$0xff]
        %v5969 = vld [vmem:[%s5967 + $0x8] sm:$0xff]
        %v5971 = vsel %vm5343, %v5959, 0
        %v5974 = vsel %vm5343, %v5960, 0
        %v5977 = vsel %vm5343, %v5961, 0
        %v5980 = vsel %vm5343, %v5962, 0
        %v5983 = vsel %vm5343, %v5963, 0
        %v5986 = vsel %vm5343, %v5964, 0
        %v5989 = vsel %vm5343, %v5965, 0
        %v5992 = vsel %vm5343, %v5966, 0
        %5994 = vmatprep.subr.mxu0 0.0
        %5995 = vmatpush1.msra.mxu0 0.0
        %5996 = vmatprep.subr.mxu0 0.0
        %5997 = vmatpush1.msra.mxu0 0.0
        %5998 = vmatprep.subr.mxu0 0.0
        %5999 = vmatpush1.msra.mxu0 0.0
        %6000 = vmatprep.subr.mxu0 0.0
        %6001 = vmatpush1.msra.mxu0 0.0
        %6002 = vmatprep.subr.mxu0 0.0
        %6003 = vmatpush1.msra.mxu0 0.0
        %6004 = vmatprep.subr.mxu0 0.0
        %6005 = vmatpush1.msra.mxu0 0.0
        %6006 = vmatprep.subr.mxu0 0.0
        %6007 = vmatpush1.msra.mxu0 0.0
        %6008 = vmatprep.subr.mxu0 0.0
        %6009 = vmatpush1.msra.mxu0 0.0
        %6010 = vmatprep.subr.mxu0 0.0
        %6011 = vmatpush1.msra.mxu0 0.0
        %6012 = vmatprep.subr.mxu0 0.0
        %6013 = vmatpush1.msra.mxu0 0.0
        %6014 = vmatprep.subr.mxu0 0.0
        %6015 = vmatpush1.msra.mxu0 0.0
        %6016 = vmatprep.subr.mxu0 0.0
        %6017 = vmatpush1.msra.mxu0 0.0
        %6018 = vmatprep.subr.mxu0 0.0
        %6019 = vmatpush1.msra.mxu0 0.0
        %6020 = vmatprep.subr.mxu0 0.0
        %6021 = vmatpush1.msra.mxu0 0.0
        %6022 = vmatprep.subr.mxu0 0.0
        %6023 = vmatpush1.msra.mxu0 %v5969
        %6024 = vmatprep.subr.mxu0 0.0
        %6025 = vmatpush1.msra.mxu0 %v5968
        %6026 = vmatprep.subr.mxu0 0.0
        %6027 = vmatpush2.msra.mxu0 0.0
        %6028 = vmatprep.subr.mxu0 0.0
        %6029 = vmatpush2.msra.mxu0 0.0
        %6030 = vmatprep.subr.mxu0 0.0
        %6031 = vmatpush2.msra.mxu0 0.0
        %6032 = vmatprep.subr.mxu0 0.0
        %6033 = vmatpush2.msra.mxu0 0.0
        %6034 = vmatprep.subr.mxu0 0.0
        %6035 = vmatpush2.msra.mxu0 0.0
        %6036 = vmatprep.subr.mxu0 0.0
        %6037 = vmatpush2.msra.mxu0 0.0
        %6038 = vmatprep.subr.mxu0 0.0
        %6039 = vmatpush2.msra.mxu0 0.0
        %6040 = vmatprep.subr.mxu0 0.0
        %6041 = vmatpush2.msra.mxu0 0.0
        %6042 = vmatprep.subr.mxu0 0.0
        %6043 = vmatpush2.msra.mxu0 0.0
        %6044 = vmatprep.subr.mxu0 0.0
        %6045 = vmatpush2.msra.mxu0 0.0
        %6046 = vmatprep.subr.mxu0 0.0
        %6047 = vmatpush2.msra.mxu0 0.0
        %6048 = vmatprep.subr.mxu0 0.0
        %6049 = vmatpush2.msra.mxu0 0.0
        %6050 = vmatprep.subr.mxu0 0.0
        %6051 = vmatpush2.msra.mxu0 0.0
        %6052 = vmatprep.subr.mxu0 0.0
        %6053 = vmatpush2.msra.mxu0 0.0
        %6054 = vmatprep.subr.mxu0 0.0
        %6055 = vmatpush2.msra.mxu0 0.0
        %6056 = vmatprep.subr.mxu0 0.0
        %6057 = vmatpush2.msra.mxu0 0.0
        %6058 = vmatprep.mubr.f32.mxu0 0.0
        %6059 = vmatmul.mubr.f32.gmra.mxu0 %v5971
        %v6060 = vpop.f32.mrf.mxu0
        %v6061 = vadd.f32 0.0, %v6060
        %v6062 = vpop.f32.mrf.mxu0
        %6063 = vmatprep.mubr.f32.mxu0 0.0
        %6064 = vmatmul.mubr.f32.gmra.mxu0 %v5974
        %v6065 = vpop.f32.mrf.mxu0
        %v6066 = vadd.f32 0.0, %v6065
        %v6067 = vpop.f32.mrf.mxu0
        %6068 = vmatprep.mubr.f32.mxu0 0.0
        %6069 = vmatmul.mubr.f32.gmra.mxu0 %v5977
        %v6070 = vpop.f32.mrf.mxu0
        %v6071 = vadd.f32 0.0, %v6070
        %v6072 = vpop.f32.mrf.mxu0
        %6073 = vmatprep.mubr.f32.mxu0 0.0
        %6074 = vmatmul.mubr.f32.gmra.mxu0 %v5980
        %v6075 = vpop.f32.mrf.mxu0
        %v6076 = vadd.f32 0.0, %v6075
        %v6077 = vpop.f32.mrf.mxu0
        %6078 = vmatprep.mubr.f32.mxu0 0.0
        %6079 = vmatmul.mubr.f32.gmra.mxu0 %v5983
        %v6080 = vpop.f32.mrf.mxu0
        %v6081 = vadd.f32 0.0, %v6080
        %v6082 = vpop.f32.mrf.mxu0
        %6083 = vmatprep.mubr.f32.mxu0 0.0
        %6084 = vmatmul.mubr.f32.gmra.mxu0 %v5986
        %v6085 = vpop.f32.mrf.mxu0
        %v6086 = vadd.f32 0.0, %v6085
        %v6087 = vpop.f32.mrf.mxu0
        %6088 = vmatprep.mubr.f32.mxu0 0.0
        %6089 = vmatmul.mubr.f32.gmra.mxu0 %v5989
        %v6090 = vpop.f32.mrf.mxu0
        %v6091 = vadd.f32 0.0, %v6090
        %v6092 = vpop.f32.mrf.mxu0
        %6093 = vmatprep.mubr.f32.mxu0 0.0
        %6094 = vmatmul.mubr.f32.gmra.mxu0 %v5992
        %v6095 = vpop.f32.mrf.mxu0
        %v6096 = vadd.f32 0.0, %v6095
        %v6097 = vpop.f32.mrf.mxu0
        %6098 = vdwg.mxu0
        %v6099 = vadd.f32 %v5943, %v6061
        %v6100 = vadd.f32 %v5944, %v6066
        %v6101 = vadd.f32 %v5945, %v6071
        %v6102 = vadd.f32 %v5946, %v6076
        %v6103 = vadd.f32 %v5947, %v6081
        %v6104 = vadd.f32 %v5948, %v6086
        %v6105 = vadd.f32 %v5949, %v6091
        %v6106 = vadd.f32 %v5950, %v6096
        %v6107 = vld [vmem:[#allocation3 + $0x9] sm:$0xff]
        %v6108 = vld [vmem:[#allocation3 + $0x11] sm:$0xff]
        %v6109 = vld [vmem:[#allocation3 + $0x19] sm:$0xff]
        %v6110 = vld [vmem:[#allocation3 + $0x21] sm:$0xff]
        %v6111 = vld [vmem:[#allocation3 + $0x29] sm:$0xff]
        %v6112 = vld [vmem:[#allocation3 + $0x31] sm:$0xff]
        %v6113 = vld [vmem:[#allocation3 + $0x39] sm:$0xff]
        %v6114 = vld [vmem:[#allocation3 + $0x41] sm:$0xff]
        %s6115 = scalar_lea.vmem %s4, 64
        %v6116 = vld [vmem:[%s6115] sm:$0xff]
        %v6117 = vld [vmem:[%s6115 + $0x8] sm:$0xff]
        %v6119 = vsel %vm5343, %v6107, 0
        %v6122 = vsel %vm5343, %v6108, 0
        %v6125 = vsel %vm5343, %v6109, 0
        %v6128 = vsel %vm5343, %v6110, 0
        %v6131 = vsel %vm5343, %v6111, 0
        %v6134 = vsel %vm5343, %v6112, 0
        %v6137 = vsel %vm5343, %v6113, 0
        %v6140 = vsel %vm5343, %v6114, 0
        %6142 = vmatprep.subr.mxu0 0.0
        %6143 = vmatpush1.msra.mxu0 0.0
        %6144 = vmatprep.subr.mxu0 0.0
        %6145 = vmatpush1.msra.mxu0 0.0
        %6146 = vmatprep.subr.mxu0 0.0
        %6147 = vmatpush1.msra.mxu0 0.0
        %6148 = vmatprep.subr.mxu0 0.0
        %6149 = vmatpush1.msra.mxu0 0.0
        %6150 = vmatprep.subr.mxu0 0.0
        %6151 = vmatpush1.msra.mxu0 0.0
        %6152 = vmatprep.subr.mxu0 0.0
        %6153 = vmatpush1.msra.mxu0 0.0
        %6154 = vmatprep.subr.mxu0 0.0
        %6155 = vmatpush1.msra.mxu0 0.0
        %6156 = vmatprep.subr.mxu0 0.0
        %6157 = vmatpush1.msra.mxu0 0.0
        %6158 = vmatprep.subr.mxu0 0.0
        %6159 = vmatpush1.msra.mxu0 0.0
        %6160 = vmatprep.subr.mxu0 0.0
        %6161 = vmatpush1.msra.mxu0 0.0
        %6162 = vmatprep.subr.mxu0 0.0
        %6163 = vmatpush1.msra.mxu0 0.0
        %6164 = vmatprep.subr.mxu0 0.0
        %6165 = vmatpush1.msra.mxu0 0.0
        %6166 = vmatprep.subr.mxu0 0.0
        %6167 = vmatpush1.msra.mxu0 0.0
        %6168 = vmatprep.subr.mxu0 0.0
        %6169 = vmatpush1.msra.mxu0 0.0
        %6170 = vmatprep.subr.mxu0 0.0
        %6171 = vmatpush1.msra.mxu0 %v6117
        %6172 = vmatprep.subr.mxu0 0.0
        %6173 = vmatpush1.msra.mxu0 %v6116
        %6174 = vmatprep.subr.mxu0 0.0
        %6175 = vmatpush2.msra.mxu0 0.0
        %6176 = vmatprep.subr.mxu0 0.0
        %6177 = vmatpush2.msra.mxu0 0.0
        %6178 = vmatprep.subr.mxu0 0.0
        %6179 = vmatpush2.msra.mxu0 0.0
        %6180 = vmatprep.subr.mxu0 0.0
        %6181 = vmatpush2.msra.mxu0 0.0
        %6182 = vmatprep.subr.mxu0 0.0
        %6183 = vmatpush2.msra.mxu0 0.0
        %6184 = vmatprep.subr.mxu0 0.0
        %6185 = vmatpush2.msra.mxu0 0.0
        %6186 = vmatprep.subr.mxu0 0.0
        %6187 = vmatpush2.msra.mxu0 0.0
        %6188 = vmatprep.subr.mxu0 0.0
        %6189 = vmatpush2.msra.mxu0 0.0
        %6190 = vmatprep.subr.mxu0 0.0
        %6191 = vmatpush2.msra.mxu0 0.0
        %6192 = vmatprep.subr.mxu0 0.0
        %6193 = vmatpush2.msra.mxu0 0.0
        %6194 = vmatprep.subr.mxu0 0.0
        %6195 = vmatpush2.msra.mxu0 0.0
        %6196 = vmatprep.subr.mxu0 0.0
        %6197 = vmatpush2.msra.mxu0 0.0
        %6198 = vmatprep.subr.mxu0 0.0
        %6199 = vmatpush2.msra.mxu0 0.0
        %6200 = vmatprep.subr.mxu0 0.0
        %6201 = vmatpush2.msra.mxu0 0.0
        %6202 = vmatprep.subr.mxu0 0.0
        %6203 = vmatpush2.msra.mxu0 0.0
        %6204 = vmatprep.subr.mxu0 0.0
        %6205 = vmatpush2.msra.mxu0 0.0
        %6206 = vmatprep.mubr.f32.mxu0 0.0
        %6207 = vmatmul.mubr.f32.gmra.mxu0 %v6119
        %v6208 = vpop.f32.mrf.mxu0
        %v6209 = vadd.f32 0.0, %v6208
        %v6210 = vpop.f32.mrf.mxu0
        %6211 = vmatprep.mubr.f32.mxu0 0.0
        %6212 = vmatmul.mubr.f32.gmra.mxu0 %v6122
        %v6213 = vpop.f32.mrf.mxu0
        %v6214 = vadd.f32 0.0, %v6213
        %v6215 = vpop.f32.mrf.mxu0
        %6216 = vmatprep.mubr.f32.mxu0 0.0
        %6217 = vmatmul.mubr.f32.gmra.mxu0 %v6125
        %v6218 = vpop.f32.mrf.mxu0
        %v6219 = vadd.f32 0.0, %v6218
        %v6220 = vpop.f32.mrf.mxu0
        %6221 = vmatprep.mubr.f32.mxu0 0.0
        %6222 = vmatmul.mubr.f32.gmra.mxu0 %v6128
        %v6223 = vpop.f32.mrf.mxu0
        %v6224 = vadd.f32 0.0, %v6223
        %v6225 = vpop.f32.mrf.mxu0
        %6226 = vmatprep.mubr.f32.mxu0 0.0
        %6227 = vmatmul.mubr.f32.gmra.mxu0 %v6131
        %v6228 = vpop.f32.mrf.mxu0
        %v6229 = vadd.f32 0.0, %v6228
        %v6230 = vpop.f32.mrf.mxu0
        %6231 = vmatprep.mubr.f32.mxu0 0.0
        %6232 = vmatmul.mubr.f32.gmra.mxu0 %v6134
        %v6233 = vpop.f32.mrf.mxu0
        %v6234 = vadd.f32 0.0, %v6233
        %v6235 = vpop.f32.mrf.mxu0
        %6236 = vmatprep.mubr.f32.mxu0 0.0
        %6237 = vmatmul.mubr.f32.gmra.mxu0 %v6137
        %v6238 = vpop.f32.mrf.mxu0
        %v6239 = vadd.f32 0.0, %v6238
        %v6240 = vpop.f32.mrf.mxu0
        %6241 = vmatprep.mubr.f32.mxu0 0.0
        %6242 = vmatmul.mubr.f32.gmra.mxu0 %v6140
        %v6243 = vpop.f32.mrf.mxu0
        %v6244 = vadd.f32 0.0, %v6243
        %v6245 = vpop.f32.mrf.mxu0
        %6246 = vdwg.mxu0
        %v6247 = vadd.f32 %v6099, %v6209
        %v6248 = vadd.f32 %v6100, %v6214
        %v6249 = vadd.f32 %v6101, %v6219
        %v6250 = vadd.f32 %v6102, %v6224
        %v6251 = vadd.f32 %v6103, %v6229
        %v6252 = vadd.f32 %v6104, %v6234
        %v6253 = vadd.f32 %v6105, %v6239
        %v6254 = vadd.f32 %v6106, %v6244
        %v6255 = vld [vmem:[#allocation3 + $0xa] sm:$0xff]
        %v6256 = vld [vmem:[#allocation3 + $0x12] sm:$0xff]
        %v6257 = vld [vmem:[#allocation3 + $0x1a] sm:$0xff]
        %v6258 = vld [vmem:[#allocation3 + $0x22] sm:$0xff]
        %v6259 = vld [vmem:[#allocation3 + $0x2a] sm:$0xff]
        %v6260 = vld [vmem:[#allocation3 + $0x32] sm:$0xff]
        %v6261 = vld [vmem:[#allocation3 + $0x3a] sm:$0xff]
        %v6262 = vld [vmem:[#allocation3 + $0x42] sm:$0xff]
        %v6263 = vsel %vm5795, %v6255, 0.0
        %v6264 = vsel %vm5796, %v6256, 0.0
        %v6265 = vsel %vm5797, %v6257, 0.0
        %v6266 = vsel %vm5798, %v6258, 0.0
        %v6267 = vsel %vm5799, %v6259, 0.0
        %v6268 = vsel %vm5800, %v6260, 0.0
        %v6269 = vsel %vm5801, %v6261, 0.0
        %v6270 = vsel %vm5802, %v6262, 0.0
        %s6271 = scalar_lea.vmem %s4, 80
        %v6272 = vld [vmem:[%s6271] sm:$0xff]
        %v6273 = vld [vmem:[%s6271 + $0x8] sm:$0xff]
        %v6275 = vsel %vm5343, %v6263, 0
        %v6278 = vsel %vm5343, %v6264, 0
        %v6281 = vsel %vm5343, %v6265, 0
        %v6284 = vsel %vm5343, %v6266, 0
        %v6287 = vsel %vm5343, %v6267, 0
        %v6290 = vsel %vm5343, %v6268, 0
        %v6293 = vsel %vm5343, %v6269, 0
        %v6296 = vsel %vm5343, %v6270, 0
        %6298 = vmatprep.subr.mxu0 0.0
        %6299 = vmatpush1.msra.mxu0 0.0
        %6300 = vmatprep.subr.mxu0 0.0
        %6301 = vmatpush1.msra.mxu0 0.0
        %6302 = vmatprep.subr.mxu0 0.0
        %6303 = vmatpush1.msra.mxu0 0.0
        %6304 = vmatprep.subr.mxu0 0.0
        %6305 = vmatpush1.msra.mxu0 0.0
        %6306 = vmatprep.subr.mxu0 0.0
        %6307 = vmatpush1.msra.mxu0 0.0
        %6308 = vmatprep.subr.mxu0 0.0
        %6309 = vmatpush1.msra.mxu0 0.0
        %6310 = vmatprep.subr.mxu0 0.0
        %6311 = vmatpush1.msra.mxu0 0.0
        %6312 = vmatprep.subr.mxu0 0.0
        %6313 = vmatpush1.msra.mxu0 0.0
        %6314 = vmatprep.subr.mxu0 0.0
        %6315 = vmatpush1.msra.mxu0 0.0
        %6316 = vmatprep.subr.mxu0 0.0
        %6317 = vmatpush1.msra.mxu0 0.0
        %6318 = vmatprep.subr.mxu0 0.0
        %6319 = vmatpush1.msra.mxu0 0.0
        %6320 = vmatprep.subr.mxu0 0.0
        %6321 = vmatpush1.msra.mxu0 0.0
        %6322 = vmatprep.subr.mxu0 0.0
        %6323 = vmatpush1.msra.mxu0 0.0
        %6324 = vmatprep.subr.mxu0 0.0
        %6325 = vmatpush1.msra.mxu0 0.0
        %6326 = vmatprep.subr.mxu0 0.0
        %6327 = vmatpush1.msra.mxu0 %v6273
        %6328 = vmatprep.subr.mxu0 0.0
        %6329 = vmatpush1.msra.mxu0 %v6272
        %6330 = vmatprep.subr.mxu0 0.0
        %6331 = vmatpush2.msra.mxu0 0.0
        %6332 = vmatprep.subr.mxu0 0.0
        %6333 = vmatpush2.msra.mxu0 0.0
        %6334 = vmatprep.subr.mxu0 0.0
        %6335 = vmatpush2.msra.mxu0 0.0
        %6336 = vmatprep.subr.mxu0 0.0
        %6337 = vmatpush2.msra.mxu0 0.0
        %6338 = vmatprep.subr.mxu0 0.0
        %6339 = vmatpush2.msra.mxu0 0.0
        %6340 = vmatprep.subr.mxu0 0.0
        %6341 = vmatpush2.msra.mxu0 0.0
        %6342 = vmatprep.subr.mxu0 0.0
        %6343 = vmatpush2.msra.mxu0 0.0
        %6344 = vmatprep.subr.mxu0 0.0
        %6345 = vmatpush2.msra.mxu0 0.0
        %6346 = vmatprep.subr.mxu0 0.0
        %6347 = vmatpush2.msra.mxu0 0.0
        %6348 = vmatprep.subr.mxu0 0.0
        %6349 = vmatpush2.msra.mxu0 0.0
        %6350 = vmatprep.subr.mxu0 0.0
        %6351 = vmatpush2.msra.mxu0 0.0
        %6352 = vmatprep.subr.mxu0 0.0
        %6353 = vmatpush2.msra.mxu0 0.0
        %6354 = vmatprep.subr.mxu0 0.0
        %6355 = vmatpush2.msra.mxu0 0.0
        %6356 = vmatprep.subr.mxu0 0.0
        %6357 = vmatpush2.msra.mxu0 0.0
        %6358 = vmatprep.subr.mxu0 0.0
        %6359 = vmatpush2.msra.mxu0 0.0
        %6360 = vmatprep.subr.mxu0 0.0
        %6361 = vmatpush2.msra.mxu0 0.0
        %6362 = vmatprep.mubr.f32.mxu0 0.0
        %6363 = vmatmul.mubr.f32.gmra.mxu0 %v6275
        %v6364 = vpop.f32.mrf.mxu0
        %v6365 = vadd.f32 0.0, %v6364
        %v6366 = vpop.f32.mrf.mxu0
        %6367 = vmatprep.mubr.f32.mxu0 0.0
        %6368 = vmatmul.mubr.f32.gmra.mxu0 %v6278
        %v6369 = vpop.f32.mrf.mxu0
        %v6370 = vadd.f32 0.0, %v6369
        %v6371 = vpop.f32.mrf.mxu0
        %6372 = vmatprep.mubr.f32.mxu0 0.0
        %6373 = vmatmul.mubr.f32.gmra.mxu0 %v6281
        %v6374 = vpop.f32.mrf.mxu0
        %v6375 = vadd.f32 0.0, %v6374
        %v6376 = vpop.f32.mrf.mxu0
        %6377 = vmatprep.mubr.f32.mxu0 0.0
        %6378 = vmatmul.mubr.f32.gmra.mxu0 %v6284
        %v6379 = vpop.f32.mrf.mxu0
        %v6380 = vadd.f32 0.0, %v6379
        %v6381 = vpop.f32.mrf.mxu0
        %6382 = vmatprep.mubr.f32.mxu0 0.0
        %6383 = vmatmul.mubr.f32.gmra.mxu0 %v6287
        %v6384 = vpop.f32.mrf.mxu0
        %v6385 = vadd.f32 0.0, %v6384
        %v6386 = vpop.f32.mrf.mxu0
        %6387 = vmatprep.mubr.f32.mxu0 0.0
        %6388 = vmatmul.mubr.f32.gmra.mxu0 %v6290
        %v6389 = vpop.f32.mrf.mxu0
        %v6390 = vadd.f32 0.0, %v6389
        %v6391 = vpop.f32.mrf.mxu0
        %6392 = vmatprep.mubr.f32.mxu0 0.0
        %6393 = vmatmul.mubr.f32.gmra.mxu0 %v6293
        %v6394 = vpop.f32.mrf.mxu0
        %v6395 = vadd.f32 0.0, %v6394
        %v6396 = vpop.f32.mrf.mxu0
        %6397 = vmatprep.mubr.f32.mxu0 0.0
        %6398 = vmatmul.mubr.f32.gmra.mxu0 %v6296
        %v6399 = vpop.f32.mrf.mxu0
        %v6400 = vadd.f32 0.0, %v6399
        %v6401 = vpop.f32.mrf.mxu0
        %6402 = vdwg.mxu0
        %v6403 = vadd.f32 %v6247, %v6365
        %v6404 = vadd.f32 %v6248, %v6370
        %v6405 = vadd.f32 %v6249, %v6375
        %v6406 = vadd.f32 %v6250, %v6380
        %v6407 = vadd.f32 %v6251, %v6385
        %v6408 = vadd.f32 %v6252, %v6390
        %v6409 = vadd.f32 %v6253, %v6395
        %v6410 = vadd.f32 %v6254, %v6400
        %v6411 = vld [vmem:[#allocation3 + $0x10] sm:$0xff]
        %v6412 = vld [vmem:[#allocation3 + $0x18] sm:$0xff]
        %v6413 = vld [vmem:[#allocation3 + $0x20] sm:$0xff]
        %v6414 = vld [vmem:[#allocation3 + $0x28] sm:$0xff]
        %v6415 = vld [vmem:[#allocation3 + $0x30] sm:$0xff]
        %v6416 = vld [vmem:[#allocation3 + $0x38] sm:$0xff]
        %v6417 = vld [vmem:[#allocation3 + $0x40] sm:$0xff]
        %v6418 = vld [vmem:[#allocation3 + $0x48] sm:$0xff]
        %v6419 = vsel %vm5484, %v6411, 0.0
        %v6420 = vsel %vm5485, %v6412, 0.0
        %v6421 = vsel %vm5486, %v6413, 0.0
        %v6422 = vsel %vm5487, %v6414, 0.0
        %v6423 = vsel %vm5488, %v6415, 0.0
        %v6424 = vsel %vm5489, %v6416, 0.0
        %v6425 = vsel %vm5490, %v6417, 0.0
        %v6426 = vsel %vm5491, %v6418, 0.0
        %s6427 = scalar_lea.vmem %s4, 96
        %v6428 = vld [vmem:[%s6427] sm:$0xff]
        %v6429 = vld [vmem:[%s6427 + $0x8] sm:$0xff]
        %v6431 = vsel %vm5343, %v6419, 0
        %v6434 = vsel %vm5343, %v6420, 0
        %v6437 = vsel %vm5343, %v6421, 0
        %v6440 = vsel %vm5343, %v6422, 0
        %v6443 = vsel %vm5343, %v6423, 0
        %v6446 = vsel %vm5343, %v6424, 0
        %v6449 = vsel %vm5343, %v6425, 0
        %v6452 = vsel %vm5343, %v6426, 0
        %6454 = vmatprep.subr.mxu0 0.0
        %6455 = vmatpush1.msra.mxu0 0.0
        %6456 = vmatprep.subr.mxu0 0.0
        %6457 = vmatpush1.msra.mxu0 0.0
        %6458 = vmatprep.subr.mxu0 0.0
        %6459 = vmatpush1.msra.mxu0 0.0
        %6460 = vmatprep.subr.mxu0 0.0
        %6461 = vmatpush1.msra.mxu0 0.0
        %6462 = vmatprep.subr.mxu0 0.0
        %6463 = vmatpush1.msra.mxu0 0.0
        %6464 = vmatprep.subr.mxu0 0.0
        %6465 = vmatpush1.msra.mxu0 0.0
        %6466 = vmatprep.subr.mxu0 0.0
        %6467 = vmatpush1.msra.mxu0 0.0
        %6468 = vmatprep.subr.mxu0 0.0
        %6469 = vmatpush1.msra.mxu0 0.0
        %6470 = vmatprep.subr.mxu0 0.0
        %6471 = vmatpush1.msra.mxu0 0.0
        %6472 = vmatprep.subr.mxu0 0.0
        %6473 = vmatpush1.msra.mxu0 0.0
        %6474 = vmatprep.subr.mxu0 0.0
        %6475 = vmatpush1.msra.mxu0 0.0
        %6476 = vmatprep.subr.mxu0 0.0
        %6477 = vmatpush1.msra.mxu0 0.0
        %6478 = vmatprep.subr.mxu0 0.0
        %6479 = vmatpush1.msra.mxu0 0.0
        %6480 = vmatprep.subr.mxu0 0.0
        %6481 = vmatpush1.msra.mxu0 0.0
        %6482 = vmatprep.subr.mxu0 0.0
        %6483 = vmatpush1.msra.mxu0 %v6429
        %6484 = vmatprep.subr.mxu0 0.0
        %6485 = vmatpush1.msra.mxu0 %v6428
        %6486 = vmatprep.subr.mxu0 0.0
        %6487 = vmatpush2.msra.mxu0 0.0
        %6488 = vmatprep.subr.mxu0 0.0
        %6489 = vmatpush2.msra.mxu0 0.0
        %6490 = vmatprep.subr.mxu0 0.0
        %6491 = vmatpush2.msra.mxu0 0.0
        %6492 = vmatprep.subr.mxu0 0.0
        %6493 = vmatpush2.msra.mxu0 0.0
        %6494 = vmatprep.subr.mxu0 0.0
        %6495 = vmatpush2.msra.mxu0 0.0
        %6496 = vmatprep.subr.mxu0 0.0
        %6497 = vmatpush2.msra.mxu0 0.0
        %6498 = vmatprep.subr.mxu0 0.0
        %6499 = vmatpush2.msra.mxu0 0.0
        %6500 = vmatprep.subr.mxu0 0.0
        %6501 = vmatpush2.msra.mxu0 0.0
        %6502 = vmatprep.subr.mxu0 0.0
        %6503 = vmatpush2.msra.mxu0 0.0
        %6504 = vmatprep.subr.mxu0 0.0
        %6505 = vmatpush2.msra.mxu0 0.0
        %6506 = vmatprep.subr.mxu0 0.0
        %6507 = vmatpush2.msra.mxu0 0.0
        %6508 = vmatprep.subr.mxu0 0.0
        %6509 = vmatpush2.msra.mxu0 0.0
        %6510 = vmatprep.subr.mxu0 0.0
        %6511 = vmatpush2.msra.mxu0 0.0
        %6512 = vmatprep.subr.mxu0 0.0
        %6513 = vmatpush2.msra.mxu0 0.0
        %6514 = vmatprep.subr.mxu0 0.0
        %6515 = vmatpush2.msra.mxu0 0.0
        %6516 = vmatprep.subr.mxu0 0.0
        %6517 = vmatpush2.msra.mxu0 0.0
        %6518 = vmatprep.mubr.f32.mxu0 0.0
        %6519 = vmatmul.mubr.f32.gmra.mxu0 %v6431
        %v6520 = vpop.f32.mrf.mxu0
        %v6521 = vadd.f32 0.0, %v6520
        %v6522 = vpop.f32.mrf.mxu0
        %6523 = vmatprep.mubr.f32.mxu0 0.0
        %6524 = vmatmul.mubr.f32.gmra.mxu0 %v6434
        %v6525 = vpop.f32.mrf.mxu0
        %v6526 = vadd.f32 0.0, %v6525
        %v6527 = vpop.f32.mrf.mxu0
        %6528 = vmatprep.mubr.f32.mxu0 0.0
        %6529 = vmatmul.mubr.f32.gmra.mxu0 %v6437
        %v6530 = vpop.f32.mrf.mxu0
        %v6531 = vadd.f32 0.0, %v6530
        %v6532 = vpop.f32.mrf.mxu0
        %6533 = vmatprep.mubr.f32.mxu0 0.0
        %6534 = vmatmul.mubr.f32.gmra.mxu0 %v6440
        %v6535 = vpop.f32.mrf.mxu0
        %v6536 = vadd.f32 0.0, %v6535
        %v6537 = vpop.f32.mrf.mxu0
        %6538 = vmatprep.mubr.f32.mxu0 0.0
        %6539 = vmatmul.mubr.f32.gmra.mxu0 %v6443
        %v6540 = vpop.f32.mrf.mxu0
        %v6541 = vadd.f32 0.0, %v6540
        %v6542 = vpop.f32.mrf.mxu0
        %6543 = vmatprep.mubr.f32.mxu0 0.0
        %6544 = vmatmul.mubr.f32.gmra.mxu0 %v6446
        %v6545 = vpop.f32.mrf.mxu0
        %v6546 = vadd.f32 0.0, %v6545
        %v6547 = vpop.f32.mrf.mxu0
        %6548 = vmatprep.mubr.f32.mxu0 0.0
        %6549 = vmatmul.mubr.f32.gmra.mxu0 %v6449
        %v6550 = vpop.f32.mrf.mxu0
        %v6551 = vadd.f32 0.0, %v6550
        %v6552 = vpop.f32.mrf.mxu0
        %6553 = vmatprep.mubr.f32.mxu0 0.0
        %6554 = vmatmul.mubr.f32.gmra.mxu0 %v6452
        %v6555 = vpop.f32.mrf.mxu0
        %v6556 = vadd.f32 0.0, %v6555
        %v6557 = vpop.f32.mrf.mxu0
        %6558 = vdwg.mxu0
        %v6559 = vadd.f32 %v6403, %v6521
        %v6560 = vadd.f32 %v6404, %v6526
        %v6561 = vadd.f32 %v6405, %v6531
        %v6562 = vadd.f32 %v6406, %v6536
        %v6563 = vadd.f32 %v6407, %v6541
        %v6564 = vadd.f32 %v6408, %v6546
        %v6565 = vadd.f32 %v6409, %v6551
        %v6566 = vadd.f32 %v6410, %v6556
        %v6567 = vld [vmem:[#allocation3 + $0x11] sm:$0xff]
        %v6568 = vld [vmem:[#allocation3 + $0x19] sm:$0xff]
        %v6569 = vld [vmem:[#allocation3 + $0x21] sm:$0xff]
        %v6570 = vld [vmem:[#allocation3 + $0x29] sm:$0xff]
        %v6571 = vld [vmem:[#allocation3 + $0x31] sm:$0xff]
        %v6572 = vld [vmem:[#allocation3 + $0x39] sm:$0xff]
        %v6573 = vld [vmem:[#allocation3 + $0x41] sm:$0xff]
        %v6574 = vld [vmem:[#allocation3 + $0x49] sm:$0xff]
        %s6575 = scalar_lea.vmem %s4, 112
        %v6576 = vld [vmem:[%s6575] sm:$0xff]
        %v6577 = vld [vmem:[%s6575 + $0x8] sm:$0xff]
        %v6579 = vsel %vm5343, %v6567, 0
        %v6582 = vsel %vm5343, %v6568, 0
        %v6585 = vsel %vm5343, %v6569, 0
        %v6588 = vsel %vm5343, %v6570, 0
        %v6591 = vsel %vm5343, %v6571, 0
        %v6594 = vsel %vm5343, %v6572, 0
        %v6597 = vsel %vm5343, %v6573, 0
        %v6600 = vsel %vm5343, %v6574, 0
        %6602 = vmatprep.subr.mxu0 0.0
        %6603 = vmatpush1.msra.mxu0 0.0
        %6604 = vmatprep.subr.mxu0 0.0
        %6605 = vmatpush1.msra.mxu0 0.0
        %6606 = vmatprep.subr.mxu0 0.0
        %6607 = vmatpush1.msra.mxu0 0.0
        %6608 = vmatprep.subr.mxu0 0.0
        %6609 = vmatpush1.msra.mxu0 0.0
        %6610 = vmatprep.subr.mxu0 0.0
        %6611 = vmatpush1.msra.mxu0 0.0
        %6612 = vmatprep.subr.mxu0 0.0
        %6613 = vmatpush1.msra.mxu0 0.0
        %6614 = vmatprep.subr.mxu0 0.0
        %6615 = vmatpush1.msra.mxu0 0.0
        %6616 = vmatprep.subr.mxu0 0.0
        %6617 = vmatpush1.msra.mxu0 0.0
        %6618 = vmatprep.subr.mxu0 0.0
        %6619 = vmatpush1.msra.mxu0 0.0
        %6620 = vmatprep.subr.mxu0 0.0
        %6621 = vmatpush1.msra.mxu0 0.0
        %6622 = vmatprep.subr.mxu0 0.0
        %6623 = vmatpush1.msra.mxu0 0.0
        %6624 = vmatprep.subr.mxu0 0.0
        %6625 = vmatpush1.msra.mxu0 0.0
        %6626 = vmatprep.subr.mxu0 0.0
        %6627 = vmatpush1.msra.mxu0 0.0
        %6628 = vmatprep.subr.mxu0 0.0
        %6629 = vmatpush1.msra.mxu0 0.0
        %6630 = vmatprep.subr.mxu0 0.0
        %6631 = vmatpush1.msra.mxu0 %v6577
        %6632 = vmatprep.subr.mxu0 0.0
        %6633 = vmatpush1.msra.mxu0 %v6576
        %6634 = vmatprep.subr.mxu0 0.0
        %6635 = vmatpush2.msra.mxu0 0.0
        %6636 = vmatprep.subr.mxu0 0.0
        %6637 = vmatpush2.msra.mxu0 0.0
        %6638 = vmatprep.subr.mxu0 0.0
        %6639 = vmatpush2.msra.mxu0 0.0
        %6640 = vmatprep.subr.mxu0 0.0
        %6641 = vmatpush2.msra.mxu0 0.0
        %6642 = vmatprep.subr.mxu0 0.0
        %6643 = vmatpush2.msra.mxu0 0.0
        %6644 = vmatprep.subr.mxu0 0.0
        %6645 = vmatpush2.msra.mxu0 0.0
        %6646 = vmatprep.subr.mxu0 0.0
        %6647 = vmatpush2.msra.mxu0 0.0
        %6648 = vmatprep.subr.mxu0 0.0
        %6649 = vmatpush2.msra.mxu0 0.0
        %6650 = vmatprep.subr.mxu0 0.0
        %6651 = vmatpush2.msra.mxu0 0.0
        %6652 = vmatprep.subr.mxu0 0.0
        %6653 = vmatpush2.msra.mxu0 0.0
        %6654 = vmatprep.subr.mxu0 0.0
        %6655 = vmatpush2.msra.mxu0 0.0
        %6656 = vmatprep.subr.mxu0 0.0
        %6657 = vmatpush2.msra.mxu0 0.0
        %6658 = vmatprep.subr.mxu0 0.0
        %6659 = vmatpush2.msra.mxu0 0.0
        %6660 = vmatprep.subr.mxu0 0.0
        %6661 = vmatpush2.msra.mxu0 0.0
        %6662 = vmatprep.subr.mxu0 0.0
        %6663 = vmatpush2.msra.mxu0 0.0
        %6664 = vmatprep.subr.mxu0 0.0
        %6665 = vmatpush2.msra.mxu0 0.0
        %6666 = vmatprep.mubr.f32.mxu0 0.0
        %6667 = vmatmul.mubr.f32.gmra.mxu0 %v6579
        %v6668 = vpop.f32.mrf.mxu0
        %v6669 = vadd.f32 0.0, %v6668
        %v6670 = vpop.f32.mrf.mxu0
        %6671 = vmatprep.mubr.f32.mxu0 0.0
        %6672 = vmatmul.mubr.f32.gmra.mxu0 %v6582
        %v6673 = vpop.f32.mrf.mxu0
        %v6674 = vadd.f32 0.0, %v6673
        %v6675 = vpop.f32.mrf.mxu0
        %6676 = vmatprep.mubr.f32.mxu0 0.0
        %6677 = vmatmul.mubr.f32.gmra.mxu0 %v6585
        %v6678 = vpop.f32.mrf.mxu0
        %v6679 = vadd.f32 0.0, %v6678
        %v6680 = vpop.f32.mrf.mxu0
        %6681 = vmatprep.mubr.f32.mxu0 0.0
        %6682 = vmatmul.mubr.f32.gmra.mxu0 %v6588
        %v6683 = vpop.f32.mrf.mxu0
        %v6684 = vadd.f32 0.0, %v6683
        %v6685 = vpop.f32.mrf.mxu0
        %6686 = vmatprep.mubr.f32.mxu0 0.0
        %6687 = vmatmul.mubr.f32.gmra.mxu0 %v6591
        %v6688 = vpop.f32.mrf.mxu0
        %v6689 = vadd.f32 0.0, %v6688
        %v6690 = vpop.f32.mrf.mxu0
        %6691 = vmatprep.mubr.f32.mxu0 0.0
        %6692 = vmatmul.mubr.f32.gmra.mxu0 %v6594
        %v6693 = vpop.f32.mrf.mxu0
        %v6694 = vadd.f32 0.0, %v6693
        %v6695 = vpop.f32.mrf.mxu0
        %6696 = vmatprep.mubr.f32.mxu0 0.0
        %6697 = vmatmul.mubr.f32.gmra.mxu0 %v6597
        %v6698 = vpop.f32.mrf.mxu0
        %v6699 = vadd.f32 0.0, %v6698
        %v6700 = vpop.f32.mrf.mxu0
        %6701 = vmatprep.mubr.f32.mxu0 0.0
        %6702 = vmatmul.mubr.f32.gmra.mxu0 %v6600
        %v6703 = vpop.f32.mrf.mxu0
        %v6704 = vadd.f32 0.0, %v6703
        %v6705 = vpop.f32.mrf.mxu0
        %6706 = vdwg.mxu0
        %v6707 = vadd.f32 %v6559, %v6669
        %v6708 = vadd.f32 %v6560, %v6674
        %v6709 = vadd.f32 %v6561, %v6679
        %v6710 = vadd.f32 %v6562, %v6684
        %v6711 = vadd.f32 %v6563, %v6689
        %v6712 = vadd.f32 %v6564, %v6694
        %v6713 = vadd.f32 %v6565, %v6699
        %v6714 = vadd.f32 %v6566, %v6704
        %v6715 = vld [vmem:[#allocation3 + $0x12] sm:$0xff]
        %v6716 = vld [vmem:[#allocation3 + $0x1a] sm:$0xff]
        %v6717 = vld [vmem:[#allocation3 + $0x22] sm:$0xff]
        %v6718 = vld [vmem:[#allocation3 + $0x2a] sm:$0xff]
        %v6719 = vld [vmem:[#allocation3 + $0x32] sm:$0xff]
        %v6720 = vld [vmem:[#allocation3 + $0x3a] sm:$0xff]
        %v6721 = vld [vmem:[#allocation3 + $0x42] sm:$0xff]
        %v6722 = vld [vmem:[#allocation3 + $0x4a] sm:$0xff]
        %v6723 = vsel %vm5795, %v6715, 0.0
        %v6724 = vsel %vm5796, %v6716, 0.0
        %v6725 = vsel %vm5797, %v6717, 0.0
        %v6726 = vsel %vm5798, %v6718, 0.0
        %v6727 = vsel %vm5799, %v6719, 0.0
        %v6728 = vsel %vm5800, %v6720, 0.0
        %v6729 = vsel %vm5801, %v6721, 0.0
        %v6730 = vsel %vm5802, %v6722, 0.0
        %s6731 = scalar_lea.vmem %s4, 128
        %v6732 = vld [vmem:[%s6731] sm:$0xff]
        %v6733 = vld [vmem:[%s6731 + $0x8] sm:$0xff]
        %v6735 = vsel %vm5343, %v6723, 0
        %v6738 = vsel %vm5343, %v6724, 0
        %v6741 = vsel %vm5343, %v6725, 0
        %v6744 = vsel %vm5343, %v6726, 0
        %v6747 = vsel %vm5343, %v6727, 0
        %v6750 = vsel %vm5343, %v6728, 0
        %v6753 = vsel %vm5343, %v6729, 0
        %v6756 = vsel %vm5343, %v6730, 0
        %6758 = vmatprep.subr.mxu0 0.0
        %6759 = vmatpush1.msra.mxu0 0.0
        %6760 = vmatprep.subr.mxu0 0.0
        %6761 = vmatpush1.msra.mxu0 0.0
        %6762 = vmatprep.subr.mxu0 0.0
        %6763 = vmatpush1.msra.mxu0 0.0
        %6764 = vmatprep.subr.mxu0 0.0
        %6765 = vmatpush1.msra.mxu0 0.0
        %6766 = vmatprep.subr.mxu0 0.0
        %6767 = vmatpush1.msra.mxu0 0.0
        %6768 = vmatprep.subr.mxu0 0.0
        %6769 = vmatpush1.msra.mxu0 0.0
        %6770 = vmatprep.subr.mxu0 0.0
        %6771 = vmatpush1.msra.mxu0 0.0
        %6772 = vmatprep.subr.mxu0 0.0
        %6773 = vmatpush1.msra.mxu0 0.0
        %6774 = vmatprep.subr.mxu0 0.0
        %6775 = vmatpush1.msra.mxu0 0.0
        %6776 = vmatprep.subr.mxu0 0.0
        %6777 = vmatpush1.msra.mxu0 0.0
        %6778 = vmatprep.subr.mxu0 0.0
        %6779 = vmatpush1.msra.mxu0 0.0
        %6780 = vmatprep.subr.mxu0 0.0
        %6781 = vmatpush1.msra.mxu0 0.0
        %6782 = vmatprep.subr.mxu0 0.0
        %6783 = vmatpush1.msra.mxu0 0.0
        %6784 = vmatprep.subr.mxu0 0.0
        %6785 = vmatpush1.msra.mxu0 0.0
        %6786 = vmatprep.subr.mxu0 0.0
        %6787 = vmatpush1.msra.mxu0 %v6733
        %6788 = vmatprep.subr.mxu0 0.0
        %6789 = vmatpush1.msra.mxu0 %v6732
        %6790 = vmatprep.subr.mxu0 0.0
        %6791 = vmatpush2.msra.mxu0 0.0
        %6792 = vmatprep.subr.mxu0 0.0
        %6793 = vmatpush2.msra.mxu0 0.0
        %6794 = vmatprep.subr.mxu0 0.0
        %6795 = vmatpush2.msra.mxu0 0.0
        %6796 = vmatprep.subr.mxu0 0.0
        %6797 = vmatpush2.msra.mxu0 0.0
        %6798 = vmatprep.subr.mxu0 0.0
        %6799 = vmatpush2.msra.mxu0 0.0
        %6800 = vmatprep.subr.mxu0 0.0
        %6801 = vmatpush2.msra.mxu0 0.0
        %6802 = vmatprep.subr.mxu0 0.0
        %6803 = vmatpush2.msra.mxu0 0.0
        %6804 = vmatprep.subr.mxu0 0.0
        %6805 = vmatpush2.msra.mxu0 0.0
        %6806 = vmatprep.subr.mxu0 0.0
        %6807 = vmatpush2.msra.mxu0 0.0
        %6808 = vmatprep.subr.mxu0 0.0
        %6809 = vmatpush2.msra.mxu0 0.0
        %6810 = vmatprep.subr.mxu0 0.0
        %6811 = vmatpush2.msra.mxu0 0.0
        %6812 = vmatprep.subr.mxu0 0.0
        %6813 = vmatpush2.msra.mxu0 0.0
        %6814 = vmatprep.subr.mxu0 0.0
        %6815 = vmatpush2.msra.mxu0 0.0
        %6816 = vmatprep.subr.mxu0 0.0
        %6817 = vmatpush2.msra.mxu0 0.0
        %6818 = vmatprep.subr.mxu0 0.0
        %6819 = vmatpush2.msra.mxu0 0.0
        %6820 = vmatprep.subr.mxu0 0.0
        %6821 = vmatpush2.msra.mxu0 0.0
        %6822 = vmatprep.mubr.f32.mxu0 0.0
        %6823 = vmatmul.mubr.f32.gmra.mxu0 %v6735
        %v6824 = vpop.f32.mrf.mxu0
        %v6825 = vadd.f32 0.0, %v6824
        %v6826 = vpop.f32.mrf.mxu0
        %6827 = vmatprep.mubr.f32.mxu0 0.0
        %6828 = vmatmul.mubr.f32.gmra.mxu0 %v6738
        %v6829 = vpop.f32.mrf.mxu0
        %v6830 = vadd.f32 0.0, %v6829
        %v6831 = vpop.f32.mrf.mxu0
        %6832 = vmatprep.mubr.f32.mxu0 0.0
        %6833 = vmatmul.mubr.f32.gmra.mxu0 %v6741
        %v6834 = vpop.f32.mrf.mxu0
        %v6835 = vadd.f32 0.0, %v6834
        %v6836 = vpop.f32.mrf.mxu0
        %6837 = vmatprep.mubr.f32.mxu0 0.0
        %6838 = vmatmul.mubr.f32.gmra.mxu0 %v6744
        %v6839 = vpop.f32.mrf.mxu0
        %v6840 = vadd.f32 0.0, %v6839
        %v6841 = vpop.f32.mrf.mxu0
        %6842 = vmatprep.mubr.f32.mxu0 0.0
        %6843 = vmatmul.mubr.f32.gmra.mxu0 %v6747
        %v6844 = vpop.f32.mrf.mxu0
        %v6845 = vadd.f32 0.0, %v6844
        %v6846 = vpop.f32.mrf.mxu0
        %6847 = vmatprep.mubr.f32.mxu0 0.0
        %6848 = vmatmul.mubr.f32.gmra.mxu0 %v6750
        %v6849 = vpop.f32.mrf.mxu0
        %v6850 = vadd.f32 0.0, %v6849
        %v6851 = vpop.f32.mrf.mxu0
        %6852 = vmatprep.mubr.f32.mxu0 0.0
        %6853 = vmatmul.mubr.f32.gmra.mxu0 %v6753
        %v6854 = vpop.f32.mrf.mxu0
        %v6855 = vadd.f32 0.0, %v6854
        %v6856 = vpop.f32.mrf.mxu0
        %6857 = vmatprep.mubr.f32.mxu0 0.0
        %6858 = vmatmul.mubr.f32.gmra.mxu0 %v6756
        %v6859 = vpop.f32.mrf.mxu0
        %v6860 = vadd.f32 0.0, %v6859
        %v6861 = vpop.f32.mrf.mxu0
        %6862 = vdwg.mxu0
        %v6863 = vadd.f32 %v6707, %v6825
        %v6864 = vadd.f32 %v6708, %v6830
        %v6865 = vadd.f32 %v6709, %v6835
        %v6866 = vadd.f32 %v6710, %v6840
        %v6867 = vadd.f32 %v6711, %v6845
        %v6868 = vadd.f32 %v6712, %v6850
        %v6869 = vadd.f32 %v6713, %v6855
        %v6870 = vadd.f32 %v6714, %v6860
        %v6871 = vld [vmem:[%s5] sm:$0x1]
        %v6873 = vlaneseq
        %v6874 = vshrl.u32 %v6873, 7
        %v6875 = vsub.s32 0, %v6874
        %v6876 = vrot.slane %v6871, %v6875
        %v6878 = vadd.f32 %v6863, %v6876
        %v6879 = vadd.f32 %v6864, %v6876
        %v6880 = vadd.f32 %v6865, %v6876
        %v6881 = vadd.f32 %v6866, %v6876
        %v6882 = vadd.f32 %v6867, %v6876
        %v6883 = vadd.f32 %v6868, %v6876
        %v6884 = vadd.f32 %v6869, %v6876
        %v6885 = vadd.f32 %v6870, %v6876
        %v6886 = vmax.f32 %v6878, 0.0
        %v6887 = vmax.f32 %v6879, 0.0
        %v6888 = vmax.f32 %v6880, 0.0
        %v6889 = vmax.f32 %v6881, 0.0
        %v6890 = vmax.f32 %v6882, 0.0
        %v6891 = vmax.f32 %v6883, 0.0
        %v6892 = vmax.f32 %v6884, 0.0
        %v6893 = vmax.f32 %v6885, 0.0
        %v6894 = vld [vmem:[%s6] sm:$0xff]
        %v6895 = vld [vmem:[%s6 + $0x8] sm:$0xff]
        %vm6896 = vcmask 523264
        %v6898 = vsel %vm6896, %v6894, 0
        %v6901 = vsel %vm6896, %v6895, 0
        %6903 = vmatprep.subr.mxu0 0.0
        %6904 = vmatpush1.msra.mxu0 0.0
        %6905 = vmatprep.subr.mxu0 0.0
        %6906 = vmatpush1.msra.mxu0 0.0
        %6907 = vmatprep.subr.mxu0 0.0
        %6908 = vmatpush1.msra.mxu0 0.0
        %6909 = vmatprep.subr.mxu0 0.0
        %6910 = vmatpush1.msra.mxu0 0.0
        %6911 = vmatprep.subr.mxu0 0.0
        %6912 = vmatpush1.msra.mxu0 0.0
        %6913 = vmatprep.subr.mxu0 0.0
        %6914 = vmatpush1.msra.mxu0 0.0
        %6915 = vmatprep.subr.mxu0 0.0
        %6916 = vmatpush1.msra.mxu0 0.0
        %6917 = vmatprep.subr.mxu0 0.0
        %6918 = vmatpush1.msra.mxu0 0.0
        %6919 = vmatprep.subr.mxu0 0.0
        %6920 = vmatpush1.msra.mxu0 %v6893
        %6921 = vmatprep.subr.mxu0 0.0
        %6922 = vmatpush1.msra.mxu0 %v6892
        %6923 = vmatprep.subr.mxu0 0.0
        %6924 = vmatpush1.msra.mxu0 %v6891
        %6925 = vmatprep.subr.mxu0 0.0
        %6926 = vmatpush1.msra.mxu0 %v6890
        %6927 = vmatprep.subr.mxu0 0.0
        %6928 = vmatpush1.msra.mxu0 %v6889
        %6929 = vmatprep.subr.mxu0 0.0
        %6930 = vmatpush1.msra.mxu0 %v6888
        %6931 = vmatprep.subr.mxu0 0.0
        %6932 = vmatpush1.msra.mxu0 %v6887
        %6933 = vmatprep.subr.mxu0 0.0
        %6934 = vmatpush1.msra.mxu0 %v6886
        %6935 = vmatprep.subr.mxu0 0.0
        %6936 = vmatpush2.msra.mxu0 0.0
        %6937 = vmatprep.subr.mxu0 0.0
        %6938 = vmatpush2.msra.mxu0 0.0
        %6939 = vmatprep.subr.mxu0 0.0
        %6940 = vmatpush2.msra.mxu0 0.0
        %6941 = vmatprep.subr.mxu0 0.0
        %6942 = vmatpush2.msra.mxu0 0.0
        %6943 = vmatprep.subr.mxu0 0.0
        %6944 = vmatpush2.msra.mxu0 0.0
        %6945 = vmatprep.subr.mxu0 0.0
        %6946 = vmatpush2.msra.mxu0 0.0
        %6947 = vmatprep.subr.mxu0 0.0
        %6948 = vmatpush2.msra.mxu0 0.0
        %6949 = vmatprep.subr.mxu0 0.0
        %6950 = vmatpush2.msra.mxu0 0.0
        %6951 = vmatprep.subr.mxu0 0.0
        %6952 = vmatpush2.msra.mxu0 0.0
        %6953 = vmatprep.subr.mxu0 0.0
        %6954 = vmatpush2.msra.mxu0 0.0
        %6955 = vmatprep.subr.mxu0 0.0
        %6956 = vmatpush2.msra.mxu0 0.0
        %6957 = vmatprep.subr.mxu0 0.0
        %6958 = vmatpush2.msra.mxu0 0.0
        %6959 = vmatprep.subr.mxu0 0.0
        %6960 = vmatpush2.msra.mxu0 0.0
        %6961 = vmatprep.subr.mxu0 0.0
        %6962 = vmatpush2.msra.mxu0 0.0
        %6963 = vmatprep.subr.mxu0 0.0
        %6964 = vmatpush2.msra.mxu0 0.0
        %6965 = vmatprep.subr.mxu0 0.0
        %6966 = vmatpush2.msra.mxu0 0.0
        %6967 = vmatprep.mubr.f32.mxu0 0.0
        %6968 = vmatmul.mubr.f32.gmra.mxu0 %v6898
        %v6969 = vpop.f32.mrf.mxu0
        %v6970 = vadd.f32 0.0, %v6969
        %v6971 = vpop.f32.mrf.mxu0
        %6972 = vmatprep.mubr.f32.mxu0 0.0
        %6973 = vmatmul.mubr.f32.gmra.mxu0 %v6901
        %v6974 = vpop.f32.mrf.mxu0
        %v6975 = vadd.f32 0.0, %v6974
        %v6976 = vpop.f32.mrf.mxu0
        %6977 = vdwg.mxu0
        %s6978 = scalar_lea.vmem %s6, 16
        %v6979 = vld [vmem:[%s6978] sm:$0xff]
        %v6980 = vld [vmem:[%s6978 + $0x8] sm:$0xff]
        %v6982 = vsel %vm6896, %v6979, 0
        %v6985 = vsel %vm6896, %v6980, 0
        %6987 = vmatprep.subr.mxu0 0.0
        %6988 = vmatpush1.msra.mxu0 0.0
        %6989 = vmatprep.subr.mxu0 0.0
        %6990 = vmatpush1.msra.mxu0 0.0
        %6991 = vmatprep.subr.mxu0 0.0
        %6992 = vmatpush1.msra.mxu0 0.0
        %6993 = vmatprep.subr.mxu0 0.0
        %6994 = vmatpush1.msra.mxu0 0.0
        %6995 = vmatprep.subr.mxu0 0.0
        %6996 = vmatpush1.msra.mxu0 0.0
        %6997 = vmatprep.subr.mxu0 0.0
        %6998 = vmatpush1.msra.mxu0 0.0
        %6999 = vmatprep.subr.mxu0 0.0
        %7000 = vmatpush1.msra.mxu0 0.0
        %7001 = vmatprep.subr.mxu0 0.0
        %7002 = vmatpush1.msra.mxu0 0.0
        %7003 = vmatprep.subr.mxu0 0.0
        %7004 = vmatpush1.msra.mxu0 %v6893
        %7005 = vmatprep.subr.mxu0 0.0
        %7006 = vmatpush1.msra.mxu0 %v6892
        %7007 = vmatprep.subr.mxu0 0.0
        %7008 = vmatpush1.msra.mxu0 %v6891
        %7009 = vmatprep.subr.mxu0 0.0
        %7010 = vmatpush1.msra.mxu0 %v6890
        %7011 = vmatprep.subr.mxu0 0.0
        %7012 = vmatpush1.msra.mxu0 %v6889
        %7013 = vmatprep.subr.mxu0 0.0
        %7014 = vmatpush1.msra.mxu0 %v6888
        %7015 = vmatprep.subr.mxu0 0.0
        %7016 = vmatpush1.msra.mxu0 %v6887
        %7017 = vmatprep.subr.mxu0 0.0
        %7018 = vmatpush1.msra.mxu0 %v6886
        %7019 = vmatprep.subr.mxu0 0.0
        %7020 = vmatpush2.msra.mxu0 0.0
        %7021 = vmatprep.subr.mxu0 0.0
        %7022 = vmatpush2.msra.mxu0 0.0
        %7023 = vmatprep.subr.mxu0 0.0
        %7024 = vmatpush2.msra.mxu0 0.0
        %7025 = vmatprep.subr.mxu0 0.0
        %7026 = vmatpush2.msra.mxu0 0.0
        %7027 = vmatprep.subr.mxu0 0.0
        %7028 = vmatpush2.msra.mxu0 0.0
        %7029 = vmatprep.subr.mxu0 0.0
        %7030 = vmatpush2.msra.mxu0 0.0
        %7031 = vmatprep.subr.mxu0 0.0
        %7032 = vmatpush2.msra.mxu0 0.0
        %7033 = vmatprep.subr.mxu0 0.0
        %7034 = vmatpush2.msra.mxu0 0.0
        %7035 = vmatprep.subr.mxu0 0.0
        %7036 = vmatpush2.msra.mxu0 0.0
        %7037 = vmatprep.subr.mxu0 0.0
        %7038 = vmatpush2.msra.mxu0 0.0
        %7039 = vmatprep.subr.mxu0 0.0
        %7040 = vmatpush2.msra.mxu0 0.0
        %7041 = vmatprep.subr.mxu0 0.0
        %7042 = vmatpush2.msra.mxu0 0.0
        %7043 = vmatprep.subr.mxu0 0.0
        %7044 = vmatpush2.msra.mxu0 0.0
        %7045 = vmatprep.subr.mxu0 0.0
        %7046 = vmatpush2.msra.mxu0 0.0
        %7047 = vmatprep.subr.mxu0 0.0
        %7048 = vmatpush2.msra.mxu0 0.0
        %7049 = vmatprep.subr.mxu0 0.0
        %7050 = vmatpush2.msra.mxu0 0.0
        %7051 = vmatprep.mubr.f32.mxu0 0.0
        %7052 = vmatmul.mubr.f32.gmra.mxu0 %v6982
        %v7053 = vpop.f32.mrf.mxu0
        %v7054 = vadd.f32 0.0, %v7053
        %v7055 = vpop.f32.mrf.mxu0
        %7056 = vmatprep.mubr.f32.mxu0 0.0
        %7057 = vmatmul.mubr.f32.gmra.mxu0 %v6985
        %v7058 = vpop.f32.mrf.mxu0
        %v7059 = vadd.f32 0.0, %v7058
        %v7060 = vpop.f32.mrf.mxu0
        %7061 = vdwg.mxu0
        %v7062 = vmax.f32 %v6970, %v7054
        %v7063 = vmax.f32 %v6975, %v7059
        %s7064 = scalar_lea.vmem %s6, 32
        %v7065 = vld [vmem:[%s7064] sm:$0xff]
        %v7066 = vld [vmem:[%s7064 + $0x8] sm:$0xff]
        %v7068 = vsel %vm6896, %v7065, 0
        %v7071 = vsel %vm6896, %v7066, 0
        %7073 = vmatprep.subr.mxu0 0.0
        %7074 = vmatpush1.msra.mxu0 0.0
        %7075 = vmatprep.subr.mxu0 0.0
        %7076 = vmatpush1.msra.mxu0 0.0
        %7077 = vmatprep.subr.mxu0 0.0
        %7078 = vmatpush1.msra.mxu0 0.0
        %7079 = vmatprep.subr.mxu0 0.0
        %7080 = vmatpush1.msra.mxu0 0.0
        %7081 = vmatprep.subr.mxu0 0.0
        %7082 = vmatpush1.msra.mxu0 0.0
        %7083 = vmatprep.subr.mxu0 0.0
        %7084 = vmatpush1.msra.mxu0 0.0
        %7085 = vmatprep.subr.mxu0 0.0
        %7086 = vmatpush1.msra.mxu0 0.0
        %7087 = vmatprep.subr.mxu0 0.0
        %7088 = vmatpush1.msra.mxu0 0.0
        %7089 = vmatprep.subr.mxu0 0.0
        %7090 = vmatpush1.msra.mxu0 %v6893
        %7091 = vmatprep.subr.mxu0 0.0
        %7092 = vmatpush1.msra.mxu0 %v6892
        %7093 = vmatprep.subr.mxu0 0.0
        %7094 = vmatpush1.msra.mxu0 %v6891
        %7095 = vmatprep.subr.mxu0 0.0
        %7096 = vmatpush1.msra.mxu0 %v6890
        %7097 = vmatprep.subr.mxu0 0.0
        %7098 = vmatpush1.msra.mxu0 %v6889
        %7099 = vmatprep.subr.mxu0 0.0
        %7100 = vmatpush1.msra.mxu0 %v6888
        %7101 = vmatprep.subr.mxu0 0.0
        %7102 = vmatpush1.msra.mxu0 %v6887
        %7103 = vmatprep.subr.mxu0 0.0
        %7104 = vmatpush1.msra.mxu0 %v6886
        %7105 = vmatprep.subr.mxu0 0.0
        %7106 = vmatpush2.msra.mxu0 0.0
        %7107 = vmatprep.subr.mxu0 0.0
        %7108 = vmatpush2.msra.mxu0 0.0
        %7109 = vmatprep.subr.mxu0 0.0
        %7110 = vmatpush2.msra.mxu0 0.0
        %7111 = vmatprep.subr.mxu0 0.0
        %7112 = vmatpush2.msra.mxu0 0.0
        %7113 = vmatprep.subr.mxu0 0.0
        %7114 = vmatpush2.msra.mxu0 0.0
        %7115 = vmatprep.subr.mxu0 0.0
        %7116 = vmatpush2.msra.mxu0 0.0
        %7117 = vmatprep.subr.mxu0 0.0
        %7118 = vmatpush2.msra.mxu0 0.0
        %7119 = vmatprep.subr.mxu0 0.0
        %7120 = vmatpush2.msra.mxu0 0.0
        %7121 = vmatprep.subr.mxu0 0.0
        %7122 = vmatpush2.msra.mxu0 0.0
        %7123 = vmatprep.subr.mxu0 0.0
        %7124 = vmatpush2.msra.mxu0 0.0
        %7125 = vmatprep.subr.mxu0 0.0
        %7126 = vmatpush2.msra.mxu0 0.0
        %7127 = vmatprep.subr.mxu0 0.0
        %7128 = vmatpush2.msra.mxu0 0.0
        %7129 = vmatprep.subr.mxu0 0.0
        %7130 = vmatpush2.msra.mxu0 0.0
        %7131 = vmatprep.subr.mxu0 0.0
        %7132 = vmatpush2.msra.mxu0 0.0
        %7133 = vmatprep.subr.mxu0 0.0
        %7134 = vmatpush2.msra.mxu0 0.0
        %7135 = vmatprep.subr.mxu0 0.0
        %7136 = vmatpush2.msra.mxu0 0.0
        %7137 = vmatprep.mubr.f32.mxu0 0.0
        %7138 = vmatmul.mubr.f32.gmra.mxu0 %v7068
        %v7139 = vpop.f32.mrf.mxu0
        %v7140 = vadd.f32 0.0, %v7139
        %v7141 = vpop.f32.mrf.mxu0
        %7142 = vmatprep.mubr.f32.mxu0 0.0
        %7143 = vmatmul.mubr.f32.gmra.mxu0 %v7071
        %v7144 = vpop.f32.mrf.mxu0
        %v7145 = vadd.f32 0.0, %v7144
        %v7146 = vpop.f32.mrf.mxu0
        %7147 = vdwg.mxu0
        %v7148 = vmax.f32 %v7062, %v7140
        %v7149 = vmax.f32 %v7063, %v7145
        %s7150 = scalar_lea.vmem %s6, 48
        %v7151 = vld [vmem:[%s7150] sm:$0xff]
        %v7152 = vld [vmem:[%s7150 + $0x8] sm:$0xff]
        %v7154 = vsel %vm6896, %v7151, 0
        %v7157 = vsel %vm6896, %v7152, 0
        %7159 = vmatprep.subr.mxu0 0.0
        %7160 = vmatpush1.msra.mxu0 0.0
        %7161 = vmatprep.subr.mxu0 0.0
        %7162 = vmatpush1.msra.mxu0 0.0
        %7163 = vmatprep.subr.mxu0 0.0
        %7164 = vmatpush1.msra.mxu0 0.0
        %7165 = vmatprep.subr.mxu0 0.0
        %7166 = vmatpush1.msra.mxu0 0.0
        %7167 = vmatprep.subr.mxu0 0.0
        %7168 = vmatpush1.msra.mxu0 0.0
        %7169 = vmatprep.subr.mxu0 0.0
        %7170 = vmatpush1.msra.mxu0 0.0
        %7171 = vmatprep.subr.mxu0 0.0
        %7172 = vmatpush1.msra.mxu0 0.0
        %7173 = vmatprep.subr.mxu0 0.0
        %7174 = vmatpush1.msra.mxu0 0.0
        %7175 = vmatprep.subr.mxu0 0.0
        %7176 = vmatpush1.msra.mxu0 %v6893
        %7177 = vmatprep.subr.mxu0 0.0
        %7178 = vmatpush1.msra.mxu0 %v6892
        %7179 = vmatprep.subr.mxu0 0.0
        %7180 = vmatpush1.msra.mxu0 %v6891
        %7181 = vmatprep.subr.mxu0 0.0
        %7182 = vmatpush1.msra.mxu0 %v6890
        %7183 = vmatprep.subr.mxu0 0.0
        %7184 = vmatpush1.msra.mxu0 %v6889
        %7185 = vmatprep.subr.mxu0 0.0
        %7186 = vmatpush1.msra.mxu0 %v6888
        %7187 = vmatprep.subr.mxu0 0.0
        %7188 = vmatpush1.msra.mxu0 %v6887
        %7189 = vmatprep.subr.mxu0 0.0
        %7190 = vmatpush1.msra.mxu0 %v6886
        %7191 = vmatprep.subr.mxu0 0.0
        %7192 = vmatpush2.msra.mxu0 0.0
        %7193 = vmatprep.subr.mxu0 0.0
        %7194 = vmatpush2.msra.mxu0 0.0
        %7195 = vmatprep.subr.mxu0 0.0
        %7196 = vmatpush2.msra.mxu0 0.0
        %7197 = vmatprep.subr.mxu0 0.0
        %7198 = vmatpush2.msra.mxu0 0.0
        %7199 = vmatprep.subr.mxu0 0.0
        %7200 = vmatpush2.msra.mxu0 0.0
        %7201 = vmatprep.subr.mxu0 0.0
        %7202 = vmatpush2.msra.mxu0 0.0
        %7203 = vmatprep.subr.mxu0 0.0
        %7204 = vmatpush2.msra.mxu0 0.0
        %7205 = vmatprep.subr.mxu0 0.0
        %7206 = vmatpush2.msra.mxu0 0.0
        %7207 = vmatprep.subr.mxu0 0.0
        %7208 = vmatpush2.msra.mxu0 0.0
        %7209 = vmatprep.subr.mxu0 0.0
        %7210 = vmatpush2.msra.mxu0 0.0
        %7211 = vmatprep.subr.mxu0 0.0
        %7212 = vmatpush2.msra.mxu0 0.0
        %7213 = vmatprep.subr.mxu0 0.0
        %7214 = vmatpush2.msra.mxu0 0.0
        %7215 = vmatprep.subr.mxu0 0.0
        %7216 = vmatpush2.msra.mxu0 0.0
        %7217 = vmatprep.subr.mxu0 0.0
        %7218 = vmatpush2.msra.mxu0 0.0
        %7219 = vmatprep.subr.mxu0 0.0
        %7220 = vmatpush2.msra.mxu0 0.0
        %7221 = vmatprep.subr.mxu0 0.0
        %7222 = vmatpush2.msra.mxu0 0.0
        %7223 = vmatprep.mubr.f32.mxu0 0.0
        %7224 = vmatmul.mubr.f32.gmra.mxu0 %v7154
        %v7225 = vpop.f32.mrf.mxu0
        %v7226 = vadd.f32 0.0, %v7225
        %v7227 = vpop.f32.mrf.mxu0
        %7228 = vmatprep.mubr.f32.mxu0 0.0
        %7229 = vmatmul.mubr.f32.gmra.mxu0 %v7157
        %v7230 = vpop.f32.mrf.mxu0
        %v7231 = vadd.f32 0.0, %v7230
        %v7232 = vpop.f32.mrf.mxu0
        %7233 = vdwg.mxu0
        %v7234 = vmax.f32 %v7148, %v7226
        %v7235 = vmax.f32 %v7149, %v7231
        %vm7236 = vcmask 261120
        %7237 = vst.msk [vmem:[#allocation4] sm:$0xff] %vm7236, 0.0
        %7238 = vst.msk [vmem:[#allocation4 + $0x8] sm:$0xff] %vm7236, 0.0
        %7239 = vst.msk [vmem:[#allocation4 + $0x10] sm:$0xff] %vm7236, 0.0
        %vm7240 = vcmask 254976
        %7241 = vst.msk [vmem:[#allocation4 + $0x18] sm:$0x3] %vm7240, 0.0
        %7242 = vst.msk [vmem:[#allocation4 + $0x5] sm:$0xff] %vm7236, %v7234
        %7243 = vst.msk [vmem:[#allocation4 + $0xd] sm:$0xff] %vm7236, %v7235
        %vm7244 = vcmp.lt.s32.totalorder %v515, 0
        %v7245 = vsub.s32 0, %v515
        %v7246 = vsel %vm7244, %v7245, %v515
        %v7247 = vshrl.u32 %v7246, 2
        %v7248 = vand.u32 %v7246, 3
        %v7249 = vsub.s32 0, %v7248
        %v7250 = vsel %vm7244, %v7249, %v7248
        %vm7251 = vcmp.lt.s32.totalorder %v516, 0
        %v7252 = vsub.s32 0, %v516
        %v7253 = vsel %vm7251, %v7252, %v516
        %v7254 = vshrl.u32 %v7253, 2
        %v7255 = vand.u32 %v7253, 3
        %v7256 = vsub.s32 0, %v7255
        %v7257 = vsel %vm7251, %v7256, %v7255
        %vm7258 = vcmp.ne.s32.totalorder %v7250, 0
        %vm7259 = vcmp.ne.s32.totalorder %v7257, 0
        %vm7260 = vcmp.lt.s32.totalorder %v7250, 0
        %vm7261 = vcmp.lt.s32.totalorder %v7257, 0
        %vm7262 = vmand %vm7260, %vm7258
        %vm7263 = vmand %vm7261, %vm7259
        %v7264 = vadd.s32 %v7250, 4
        %v7265 = vadd.s32 %v7257, 4
        %v7266 = vsel %vm7262, %v7264, %v7250
        %v7267 = vsel %vm7263, %v7265, %v7257
        %v7268 = vld [vmem:[#allocation4] sm:$0xff]
        %v7269 = vld [vmem:[#allocation4 + $0x8] sm:$0xff]
        %vm7270 = vcmp.ge.s32.totalorder %v7266, 1
        %vm7271 = vcmp.ge.s32.totalorder %v7267, 1
        %v7272 = vsel %vm7270, 1, 0
        %v7273 = vsel %vm7271, 1, 0
        %vm7274 = vcmp.eq.s32.totalorder %v7272, 1
        %vm7275 = vcmp.eq.s32.totalorder %v7273, 1
        %v7276 = vsel %vm7274, %v7268, 0.0
        %v7277 = vsel %vm7275, %v7269, 0.0
        %v7278 = vld [vmem:[%s7] sm:$0xff]
        %v7279 = vld [vmem:[%s7 + $0x8] sm:$0xff]
        %v7280 = vld [vmem:[%s7 + $0x10] sm:$0xff]
        %v7281 = vld [vmem:[%s7 + $0x18] sm:$0xff]
        %v7282 = vld [vmem:[#allocation4 + $0x1] sm:$0xff]
        %v7283 = vld [vmem:[#allocation4 + $0x9] sm:$0xff]
        %s7284 = scalar_lea.vmem %s7, 32
        %v7285 = vld [vmem:[%s7284] sm:$0xff]
        %v7286 = vld [vmem:[%s7284 + $0x8] sm:$0xff]
        %v7287 = vld [vmem:[%s7284 + $0x10] sm:$0xff]
        %v7288 = vld [vmem:[%s7284 + $0x18] sm:$0xff]
        %v7290 = vsel %vm7236, %v7282, 0
        %v7293 = vsel %vm7236, %v7283, 0
        %7295 = vmatprep.subr.mxu0 0.0
        %7296 = vmatpush1.msra.mxu0 0.0
        %7297 = vmatprep.subr.mxu0 0.0
        %7298 = vmatpush1.msra.mxu0 0.0
        %7299 = vmatprep.subr.mxu0 0.0
        %7300 = vmatpush1.msra.mxu0 0.0
        %7301 = vmatprep.subr.mxu0 0.0
        %7302 = vmatpush1.msra.mxu0 0.0
        %7303 = vmatprep.subr.mxu0 0.0
        %7304 = vmatpush1.msra.mxu0 0.0
        %7305 = vmatprep.subr.mxu0 0.0
        %7306 = vmatpush1.msra.mxu0 0.0
        %7307 = vmatprep.subr.mxu0 0.0
        %7308 = vmatpush1.msra.mxu0 0.0
        %7309 = vmatprep.subr.mxu0 0.0
        %7310 = vmatpush1.msra.mxu0 0.0
        %7311 = vmatprep.subr.mxu0 0.0
        %7312 = vmatpush1.msra.mxu0 0.0
        %7313 = vmatprep.subr.mxu0 0.0
        %7314 = vmatpush1.msra.mxu0 0.0
        %7315 = vmatprep.subr.mxu0 0.0
        %7316 = vmatpush1.msra.mxu0 0.0
        %7317 = vmatprep.subr.mxu0 0.0
        %7318 = vmatpush1.msra.mxu0 0.0
        %7319 = vmatprep.subr.mxu0 0.0
        %7320 = vmatpush1.msra.mxu0 %v7288
        %7321 = vmatprep.subr.mxu0 0.0
        %7322 = vmatpush1.msra.mxu0 %v7287
        %7323 = vmatprep.subr.mxu0 0.0
        %7324 = vmatpush1.msra.mxu0 %v7286
        %7325 = vmatprep.subr.mxu0 0.0
        %7326 = vmatpush1.msra.mxu0 %v7285
        %7327 = vmatprep.subr.mxu0 0.0
        %7328 = vmatpush2.msra.mxu0 0.0
        %7329 = vmatprep.subr.mxu0 0.0
        %7330 = vmatpush2.msra.mxu0 0.0
        %7331 = vmatprep.subr.mxu0 0.0
        %7332 = vmatpush2.msra.mxu0 0.0
        %7333 = vmatprep.subr.mxu0 0.0
        %7334 = vmatpush2.msra.mxu0 0.0
        %7335 = vmatprep.subr.mxu0 0.0
        %7336 = vmatpush2.msra.mxu0 0.0
        %7337 = vmatprep.subr.mxu0 0.0
        %7338 = vmatpush2.msra.mxu0 0.0
        %7339 = vmatprep.subr.mxu0 0.0
        %7340 = vmatpush2.msra.mxu0 0.0
        %7341 = vmatprep.subr.mxu0 0.0
        %7342 = vmatpush2.msra.mxu0 0.0
        %7343 = vmatprep.subr.mxu0 0.0
        %7344 = vmatpush2.msra.mxu0 0.0
        %7345 = vmatprep.subr.mxu0 0.0
        %7346 = vmatpush2.msra.mxu0 0.0
        %7347 = vmatprep.subr.mxu0 0.0
        %7348 = vmatpush2.msra.mxu0 0.0
        %7349 = vmatprep.subr.mxu0 0.0
        %7350 = vmatpush2.msra.mxu0 0.0
        %7351 = vmatprep.subr.mxu0 0.0
        %7352 = vmatpush2.msra.mxu0 0.0
        %7353 = vmatprep.subr.mxu0 0.0
        %7354 = vmatpush2.msra.mxu0 0.0
        %7355 = vmatprep.subr.mxu0 0.0
        %7356 = vmatpush2.msra.mxu0 0.0
        %7357 = vmatprep.subr.mxu0 0.0
        %7358 = vmatpush2.msra.mxu0 0.0
        %7359 = vmatprep.mubr.f32.mxu0 0.0
        %7360 = vmatmul.mubr.f32.gmra.mxu0 %v7290
        %v7361 = vpop.f32.mrf.mxu0
        %v7362 = vadd.f32 0.0, %v7361
        %v7363 = vpop.f32.mrf.mxu0
        %7364 = vmatprep.mubr.f32.mxu0 0.0
        %7365 = vmatmul.mubr.f32.gmra.mxu0 %v7293
        %v7366 = vpop.f32.mrf.mxu0
        %v7367 = vadd.f32 0.0, %v7366
        %v7368 = vpop.f32.mrf.mxu0
        %7369 = vdwg.mxu0
        %v7371 = vsel %vm7236, %v7276, 0
        %v7374 = vsel %vm7236, %v7277, 0
        %7376 = vmatprep.subr.mxu0 0.0
        %7377 = vmatpush1.msra.mxu0 0.0
        %7378 = vmatprep.subr.mxu0 0.0
        %7379 = vmatpush1.msra.mxu0 0.0
        %7380 = vmatprep.subr.mxu0 0.0
        %7381 = vmatpush1.msra.mxu0 0.0
        %7382 = vmatprep.subr.mxu0 0.0
        %7383 = vmatpush1.msra.mxu0 0.0
        %7384 = vmatprep.subr.mxu0 0.0
        %7385 = vmatpush1.msra.mxu0 0.0
        %7386 = vmatprep.subr.mxu0 0.0
        %7387 = vmatpush1.msra.mxu0 0.0
        %7388 = vmatprep.subr.mxu0 0.0
        %7389 = vmatpush1.msra.mxu0 0.0
        %7390 = vmatprep.subr.mxu0 0.0
        %7391 = vmatpush1.msra.mxu0 0.0
        %7392 = vmatprep.subr.mxu0 0.0
        %7393 = vmatpush1.msra.mxu0 0.0
        %7394 = vmatprep.subr.mxu0 0.0
        %7395 = vmatpush1.msra.mxu0 0.0
        %7396 = vmatprep.subr.mxu0 0.0
        %7397 = vmatpush1.msra.mxu0 0.0
        %7398 = vmatprep.subr.mxu0 0.0
        %7399 = vmatpush1.msra.mxu0 0.0
        %7400 = vmatprep.subr.mxu0 0.0
        %7401 = vmatpush1.msra.mxu0 %v7281
        %7402 = vmatprep.subr.mxu0 0.0
        %7403 = vmatpush1.msra.mxu0 %v7280
        %7404 = vmatprep.subr.mxu0 0.0
        %7405 = vmatpush1.msra.mxu0 %v7279
        %7406 = vmatprep.subr.mxu0 0.0
        %7407 = vmatpush1.msra.mxu0 %v7278
        %7408 = vmatprep.subr.mxu0 0.0
        %7409 = vmatpush2.msra.mxu0 0.0
        %7410 = vmatprep.subr.mxu0 0.0
        %7411 = vmatpush2.msra.mxu0 0.0
        %7412 = vmatprep.subr.mxu0 0.0
        %7413 = vmatpush2.msra.mxu0 0.0
        %7414 = vmatprep.subr.mxu0 0.0
        %7415 = vmatpush2.msra.mxu0 0.0
        %7416 = vmatprep.subr.mxu0 0.0
        %7417 = vmatpush2.msra.mxu0 0.0
        %7418 = vmatprep.subr.mxu0 0.0
        %7419 = vmatpush2.msra.mxu0 0.0
        %7420 = vmatprep.subr.mxu0 0.0
        %7421 = vmatpush2.msra.mxu0 0.0
        %7422 = vmatprep.subr.mxu0 0.0
        %7423 = vmatpush2.msra.mxu0 0.0
        %7424 = vmatprep.subr.mxu0 0.0
        %7425 = vmatpush2.msra.mxu0 0.0
        %7426 = vmatprep.subr.mxu0 0.0
        %7427 = vmatpush2.msra.mxu0 0.0
        %7428 = vmatprep.subr.mxu0 0.0
        %7429 = vmatpush2.msra.mxu0 0.0
        %7430 = vmatprep.subr.mxu0 0.0
        %7431 = vmatpush2.msra.mxu0 0.0
        %7432 = vmatprep.subr.mxu0 0.0
        %7433 = vmatpush2.msra.mxu0 0.0
        %7434 = vmatprep.subr.mxu0 0.0
        %7435 = vmatpush2.msra.mxu0 0.0
        %7436 = vmatprep.subr.mxu0 0.0
        %7437 = vmatpush2.msra.mxu0 0.0
        %7438 = vmatprep.subr.mxu0 0.0
        %7439 = vmatpush2.msra.mxu0 0.0
        %7440 = vmatprep.mubr.f32.mxu0 0.0
        %7441 = vmatmul.mubr.f32.gmra.mxu0 %v7371
        %v7442 = vpop.f32.mrf.mxu0
        %v7443 = vadd.f32 %v7362, %v7442
        %v7444 = vpop.f32.mrf.mxu0
        %7445 = vmatprep.mubr.f32.mxu0 0.0
        %7446 = vmatmul.mubr.f32.gmra.mxu0 %v7374
        %v7447 = vpop.f32.mrf.mxu0
        %v7448 = vadd.f32 %v7367, %v7447
        %v7449 = vpop.f32.mrf.mxu0
        %7450 = vdwg.mxu0
        %v7451 = vld [vmem:[#allocation4 + $0x2] sm:$0xff]
        %v7452 = vld [vmem:[#allocation4 + $0xa] sm:$0xff]
        %vm7453 = vcmp.le.s32.totalorder %v7266, 2
        %vm7454 = vcmp.le.s32.totalorder %v7267, 2
        %v7455 = vsel %vm7453, 1, 0
        %v7456 = vsel %vm7454, 1, 0
        %vm7457 = vcmp.eq.s32.totalorder %v7455, 1
        %vm7458 = vcmp.eq.s32.totalorder %v7456, 1
        %v7459 = vsel %vm7457, %v7451, 0.0
        %v7460 = vsel %vm7458, %v7452, 0.0
        %s7461 = scalar_lea.vmem %s7, 64
        %v7462 = vld [vmem:[%s7461] sm:$0xff]
        %v7463 = vld [vmem:[%s7461 + $0x8] sm:$0xff]
        %v7464 = vld [vmem:[%s7461 + $0x10] sm:$0xff]
        %v7465 = vld [vmem:[%s7461 + $0x18] sm:$0xff]
        %v7467 = vsel %vm7236, %v7459, 0
        %v7470 = vsel %vm7236, %v7460, 0
        %7472 = vmatprep.subr.mxu0 0.0
        %7473 = vmatpush1.msra.mxu0 0.0
        %7474 = vmatprep.subr.mxu0 0.0
        %7475 = vmatpush1.msra.mxu0 0.0
        %7476 = vmatprep.subr.mxu0 0.0
        %7477 = vmatpush1.msra.mxu0 0.0
        %7478 = vmatprep.subr.mxu0 0.0
        %7479 = vmatpush1.msra.mxu0 0.0
        %7480 = vmatprep.subr.mxu0 0.0
        %7481 = vmatpush1.msra.mxu0 0.0
        %7482 = vmatprep.subr.mxu0 0.0
        %7483 = vmatpush1.msra.mxu0 0.0
        %7484 = vmatprep.subr.mxu0 0.0
        %7485 = vmatpush1.msra.mxu0 0.0
        %7486 = vmatprep.subr.mxu0 0.0
        %7487 = vmatpush1.msra.mxu0 0.0
        %7488 = vmatprep.subr.mxu0 0.0
        %7489 = vmatpush1.msra.mxu0 0.0
        %7490 = vmatprep.subr.mxu0 0.0
        %7491 = vmatpush1.msra.mxu0 0.0
        %7492 = vmatprep.subr.mxu0 0.0
        %7493 = vmatpush1.msra.mxu0 0.0
        %7494 = vmatprep.subr.mxu0 0.0
        %7495 = vmatpush1.msra.mxu0 0.0
        %7496 = vmatprep.subr.mxu0 0.0
        %7497 = vmatpush1.msra.mxu0 %v7465
        %7498 = vmatprep.subr.mxu0 0.0
        %7499 = vmatpush1.msra.mxu0 %v7464
        %7500 = vmatprep.subr.mxu0 0.0
        %7501 = vmatpush1.msra.mxu0 %v7463
        %7502 = vmatprep.subr.mxu0 0.0
        %7503 = vmatpush1.msra.mxu0 %v7462
        %7504 = vmatprep.subr.mxu0 0.0
        %7505 = vmatpush2.msra.mxu0 0.0
        %7506 = vmatprep.subr.mxu0 0.0
        %7507 = vmatpush2.msra.mxu0 0.0
        %7508 = vmatprep.subr.mxu0 0.0
        %7509 = vmatpush2.msra.mxu0 0.0
        %7510 = vmatprep.subr.mxu0 0.0
        %7511 = vmatpush2.msra.mxu0 0.0
        %7512 = vmatprep.subr.mxu0 0.0
        %7513 = vmatpush2.msra.mxu0 0.0
        %7514 = vmatprep.subr.mxu0 0.0
        %7515 = vmatpush2.msra.mxu0 0.0
        %7516 = vmatprep.subr.mxu0 0.0
        %7517 = vmatpush2.msra.mxu0 0.0
        %7518 = vmatprep.subr.mxu0 0.0
        %7519 = vmatpush2.msra.mxu0 0.0
        %7520 = vmatprep.subr.mxu0 0.0
        %7521 = vmatpush2.msra.mxu0 0.0
        %7522 = vmatprep.subr.mxu0 0.0
        %7523 = vmatpush2.msra.mxu0 0.0
        %7524 = vmatprep.subr.mxu0 0.0
        %7525 = vmatpush2.msra.mxu0 0.0
        %7526 = vmatprep.subr.mxu0 0.0
        %7527 = vmatpush2.msra.mxu0 0.0
        %7528 = vmatprep.subr.mxu0 0.0
        %7529 = vmatpush2.msra.mxu0 0.0
        %7530 = vmatprep.subr.mxu0 0.0
        %7531 = vmatpush2.msra.mxu0 0.0
        %7532 = vmatprep.subr.mxu0 0.0
        %7533 = vmatpush2.msra.mxu0 0.0
        %7534 = vmatprep.subr.mxu0 0.0
        %7535 = vmatpush2.msra.mxu0 0.0
        %7536 = vmatprep.mubr.f32.mxu0 0.0
        %7537 = vmatmul.mubr.f32.gmra.mxu0 %v7467
        %v7538 = vpop.f32.mrf.mxu0
        %v7539 = vadd.f32 0.0, %v7538
        %v7540 = vpop.f32.mrf.mxu0
        %7541 = vmatprep.mubr.f32.mxu0 0.0
        %7542 = vmatmul.mubr.f32.gmra.mxu0 %v7470
        %v7543 = vpop.f32.mrf.mxu0
        %v7544 = vadd.f32 0.0, %v7543
        %v7545 = vpop.f32.mrf.mxu0
        %7546 = vdwg.mxu0
        %v7547 = vadd.f32 %v7443, %v7539
        %v7548 = vadd.f32 %v7448, %v7544
        %v7549 = vld [vmem:[#allocation4 + $0x4] sm:$0xff]
        %v7550 = vld [vmem:[#allocation4 + $0xc] sm:$0xff]
        %v7551 = vsel %vm7274, %v7549, 0.0
        %v7552 = vsel %vm7275, %v7550, 0.0
        %s7553 = scalar_lea.vmem %s7, 96
        %v7554 = vld [vmem:[%s7553] sm:$0xff]
        %v7555 = vld [vmem:[%s7553 + $0x8] sm:$0xff]
        %v7556 = vld [vmem:[%s7553 + $0x10] sm:$0xff]
        %v7557 = vld [vmem:[%s7553 + $0x18] sm:$0xff]
        %v7559 = vsel %vm7236, %v7551, 0
        %v7562 = vsel %vm7236, %v7552, 0
        %7564 = vmatprep.subr.mxu0 0.0
        %7565 = vmatpush1.msra.mxu0 0.0
        %7566 = vmatprep.subr.mxu0 0.0
        %7567 = vmatpush1.msra.mxu0 0.0
        %7568 = vmatprep.subr.mxu0 0.0
        %7569 = vmatpush1.msra.mxu0 0.0
        %7570 = vmatprep.subr.mxu0 0.0
        %7571 = vmatpush1.msra.mxu0 0.0
        %7572 = vmatprep.subr.mxu0 0.0
        %7573 = vmatpush1.msra.mxu0 0.0
        %7574 = vmatprep.subr.mxu0 0.0
        %7575 = vmatpush1.msra.mxu0 0.0
        %7576 = vmatprep.subr.mxu0 0.0
        %7577 = vmatpush1.msra.mxu0 0.0
        %7578 = vmatprep.subr.mxu0 0.0
        %7579 = vmatpush1.msra.mxu0 0.0
        %7580 = vmatprep.subr.mxu0 0.0
        %7581 = vmatpush1.msra.mxu0 0.0
        %7582 = vmatprep.subr.mxu0 0.0
        %7583 = vmatpush1.msra.mxu0 0.0
        %7584 = vmatprep.subr.mxu0 0.0
        %7585 = vmatpush1.msra.mxu0 0.0
        %7586 = vmatprep.subr.mxu0 0.0
        %7587 = vmatpush1.msra.mxu0 0.0
        %7588 = vmatprep.subr.mxu0 0.0
        %7589 = vmatpush1.msra.mxu0 %v7557
        %7590 = vmatprep.subr.mxu0 0.0
        %7591 = vmatpush1.msra.mxu0 %v7556
        %7592 = vmatprep.subr.mxu0 0.0
        %7593 = vmatpush1.msra.mxu0 %v7555
        %7594 = vmatprep.subr.mxu0 0.0
        %7595 = vmatpush1.msra.mxu0 %v7554
        %7596 = vmatprep.subr.mxu0 0.0
        %7597 = vmatpush2.msra.mxu0 0.0
        %7598 = vmatprep.subr.mxu0 0.0
        %7599 = vmatpush2.msra.mxu0 0.0
        %7600 = vmatprep.subr.mxu0 0.0
        %7601 = vmatpush2.msra.mxu0 0.0
        %7602 = vmatprep.subr.mxu0 0.0
        %7603 = vmatpush2.msra.mxu0 0.0
        %7604 = vmatprep.subr.mxu0 0.0
        %7605 = vmatpush2.msra.mxu0 0.0
        %7606 = vmatprep.subr.mxu0 0.0
        %7607 = vmatpush2.msra.mxu0 0.0
        %7608 = vmatprep.subr.mxu0 0.0
        %7609 = vmatpush2.msra.mxu0 0.0
        %7610 = vmatprep.subr.mxu0 0.0
        %7611 = vmatpush2.msra.mxu0 0.0
        %7612 = vmatprep.subr.mxu0 0.0
        %7613 = vmatpush2.msra.mxu0 0.0
        %7614 = vmatprep.subr.mxu0 0.0
        %7615 = vmatpush2.msra.mxu0 0.0
        %7616 = vmatprep.subr.mxu0 0.0
        %7617 = vmatpush2.msra.mxu0 0.0
        %7618 = vmatprep.subr.mxu0 0.0
        %7619 = vmatpush2.msra.mxu0 0.0
        %7620 = vmatprep.subr.mxu0 0.0
        %7621 = vmatpush2.msra.mxu0 0.0
        %7622 = vmatprep.subr.mxu0 0.0
        %7623 = vmatpush2.msra.mxu0 0.0
        %7624 = vmatprep.subr.mxu0 0.0
        %7625 = vmatpush2.msra.mxu0 0.0
        %7626 = vmatprep.subr.mxu0 0.0
        %7627 = vmatpush2.msra.mxu0 0.0
        %7628 = vmatprep.mubr.f32.mxu0 0.0
        %7629 = vmatmul.mubr.f32.gmra.mxu0 %v7559
        %v7630 = vpop.f32.mrf.mxu0
        %v7631 = vadd.f32 0.0, %v7630
        %v7632 = vpop.f32.mrf.mxu0
        %7633 = vmatprep.mubr.f32.mxu0 0.0
        %7634 = vmatmul.mubr.f32.gmra.mxu0 %v7562
        %v7635 = vpop.f32.mrf.mxu0
        %v7636 = vadd.f32 0.0, %v7635
        %v7637 = vpop.f32.mrf.mxu0
        %7638 = vdwg.mxu0
        %v7639 = vadd.f32 %v7547, %v7631
        %v7640 = vadd.f32 %v7548, %v7636
        %v7641 = vld [vmem:[#allocation4 + $0x5] sm:$0xff]
        %v7642 = vld [vmem:[#allocation4 + $0xd] sm:$0xff]
        %s7643 = scalar_lea.vmem %s7, 128
        %v7644 = vld [vmem:[%s7643] sm:$0xff]
        %v7645 = vld [vmem:[%s7643 + $0x8] sm:$0xff]
        %v7646 = vld [vmem:[%s7643 + $0x10] sm:$0xff]
        %v7647 = vld [vmem:[%s7643 + $0x18] sm:$0xff]
        %v7649 = vsel %vm7236, %v7641, 0
        %v7652 = vsel %vm7236, %v7642, 0
        %7654 = vmatprep.subr.mxu0 0.0
        %7655 = vmatpush1.msra.mxu0 0.0
        %7656 = vmatprep.subr.mxu0 0.0
        %7657 = vmatpush1.msra.mxu0 0.0
        %7658 = vmatprep.subr.mxu0 0.0
        %7659 = vmatpush1.msra.mxu0 0.0
        %7660 = vmatprep.subr.mxu0 0.0
        %7661 = vmatpush1.msra.mxu0 0.0
        %7662 = vmatprep.subr.mxu0 0.0
        %7663 = vmatpush1.msra.mxu0 0.0
        %7664 = vmatprep.subr.mxu0 0.0
        %7665 = vmatpush1.msra.mxu0 0.0
        %7666 = vmatprep.subr.mxu0 0.0
        %7667 = vmatpush1.msra.mxu0 0.0
        %7668 = vmatprep.subr.mxu0 0.0
        %7669 = vmatpush1.msra.mxu0 0.0
        %7670 = vmatprep.subr.mxu0 0.0
        %7671 = vmatpush1.msra.mxu0 0.0
        %7672 = vmatprep.subr.mxu0 0.0
        %7673 = vmatpush1.msra.mxu0 0.0
        %7674 = vmatprep.subr.mxu0 0.0
        %7675 = vmatpush1.msra.mxu0 0.0
        %7676 = vmatprep.subr.mxu0 0.0
        %7677 = vmatpush1.msra.mxu0 0.0
        %7678 = vmatprep.subr.mxu0 0.0
        %7679 = vmatpush1.msra.mxu0 %v7647
        %7680 = vmatprep.subr.mxu0 0.0
        %7681 = vmatpush1.msra.mxu0 %v7646
        %7682 = vmatprep.subr.mxu0 0.0
        %7683 = vmatpush1.msra.mxu0 %v7645
        %7684 = vmatprep.subr.mxu0 0.0
        %7685 = vmatpush1.msra.mxu0 %v7644
        %7686 = vmatprep.subr.mxu0 0.0
        %7687 = vmatpush2.msra.mxu0 0.0
        %7688 = vmatprep.subr.mxu0 0.0
        %7689 = vmatpush2.msra.mxu0 0.0
        %7690 = vmatprep.subr.mxu0 0.0
        %7691 = vmatpush2.msra.mxu0 0.0
        %7692 = vmatprep.subr.mxu0 0.0
        %7693 = vmatpush2.msra.mxu0 0.0
        %7694 = vmatprep.subr.mxu0 0.0
        %7695 = vmatpush2.msra.mxu0 0.0
        %7696 = vmatprep.subr.mxu0 0.0
        %7697 = vmatpush2.msra.mxu0 0.0
        %7698 = vmatprep.subr.mxu0 0.0
        %7699 = vmatpush2.msra.mxu0 0.0
        %7700 = vmatprep.subr.mxu0 0.0
        %7701 = vmatpush2.msra.mxu0 0.0
        %7702 = vmatprep.subr.mxu0 0.0
        %7703 = vmatpush2.msra.mxu0 0.0
        %7704 = vmatprep.subr.mxu0 0.0
        %7705 = vmatpush2.msra.mxu0 0.0
        %7706 = vmatprep.subr.mxu0 0.0
        %7707 = vmatpush2.msra.mxu0 0.0
        %7708 = vmatprep.subr.mxu0 0.0
        %7709 = vmatpush2.msra.mxu0 0.0
        %7710 = vmatprep.subr.mxu0 0.0
        %7711 = vmatpush2.msra.mxu0 0.0
        %7712 = vmatprep.subr.mxu0 0.0
        %7713 = vmatpush2.msra.mxu0 0.0
        %7714 = vmatprep.subr.mxu0 0.0
        %7715 = vmatpush2.msra.mxu0 0.0
        %7716 = vmatprep.subr.mxu0 0.0
        %7717 = vmatpush2.msra.mxu0 0.0
        %7718 = vmatprep.mubr.f32.mxu0 0.0
        %7719 = vmatmul.mubr.f32.gmra.mxu0 %v7649
        %v7720 = vpop.f32.mrf.mxu0
        %v7721 = vadd.f32 0.0, %v7720
        %v7722 = vpop.f32.mrf.mxu0
        %7723 = vmatprep.mubr.f32.mxu0 0.0
        %7724 = vmatmul.mubr.f32.gmra.mxu0 %v7652
        %v7725 = vpop.f32.mrf.mxu0
        %v7726 = vadd.f32 0.0, %v7725
        %v7727 = vpop.f32.mrf.mxu0
        %7728 = vdwg.mxu0
        %v7729 = vadd.f32 %v7639, %v7721
        %v7730 = vadd.f32 %v7640, %v7726
        %v7731 = vld [vmem:[#allocation4 + $0x6] sm:$0xff]
        %v7732 = vld [vmem:[#allocation4 + $0xe] sm:$0xff]
        %v7733 = vsel %vm7457, %v7731, 0.0
        %v7734 = vsel %vm7458, %v7732, 0.0
        %s7735 = scalar_lea.vmem %s7, 160
        %v7736 = vld [vmem:[%s7735] sm:$0xff]
        %v7737 = vld [vmem:[%s7735 + $0x8] sm:$0xff]
        %v7738 = vld [vmem:[%s7735 + $0x10] sm:$0xff]
        %v7739 = vld [vmem:[%s7735 + $0x18] sm:$0xff]
        %v7741 = vsel %vm7236, %v7733, 0
        %v7744 = vsel %vm7236, %v7734, 0
        %7746 = vmatprep.subr.mxu0 0.0
        %7747 = vmatpush1.msra.mxu0 0.0
        %7748 = vmatprep.subr.mxu0 0.0
        %7749 = vmatpush1.msra.mxu0 0.0
        %7750 = vmatprep.subr.mxu0 0.0
        %7751 = vmatpush1.msra.mxu0 0.0
        %7752 = vmatprep.subr.mxu0 0.0
        %7753 = vmatpush1.msra.mxu0 0.0
        %7754 = vmatprep.subr.mxu0 0.0
        %7755 = vmatpush1.msra.mxu0 0.0
        %7756 = vmatprep.subr.mxu0 0.0
        %7757 = vmatpush1.msra.mxu0 0.0
        %7758 = vmatprep.subr.mxu0 0.0
        %7759 = vmatpush1.msra.mxu0 0.0
        %7760 = vmatprep.subr.mxu0 0.0
        %7761 = vmatpush1.msra.mxu0 0.0
        %7762 = vmatprep.subr.mxu0 0.0
        %7763 = vmatpush1.msra.mxu0 0.0
        %7764 = vmatprep.subr.mxu0 0.0
        %7765 = vmatpush1.msra.mxu0 0.0
        %7766 = vmatprep.subr.mxu0 0.0
        %7767 = vmatpush1.msra.mxu0 0.0
        %7768 = vmatprep.subr.mxu0 0.0
        %7769 = vmatpush1.msra.mxu0 0.0
        %7770 = vmatprep.subr.mxu0 0.0
        %7771 = vmatpush1.msra.mxu0 %v7739
        %7772 = vmatprep.subr.mxu0 0.0
        %7773 = vmatpush1.msra.mxu0 %v7738
        %7774 = vmatprep.subr.mxu0 0.0
        %7775 = vmatpush1.msra.mxu0 %v7737
        %7776 = vmatprep.subr.mxu0 0.0
        %7777 = vmatpush1.msra.mxu0 %v7736
        %7778 = vmatprep.subr.mxu0 0.0
        %7779 = vmatpush2.msra.mxu0 0.0
        %7780 = vmatprep.subr.mxu0 0.0
        %7781 = vmatpush2.msra.mxu0 0.0
        %7782 = vmatprep.subr.mxu0 0.0
        %7783 = vmatpush2.msra.mxu0 0.0
        %7784 = vmatprep.subr.mxu0 0.0
        %7785 = vmatpush2.msra.mxu0 0.0
        %7786 = vmatprep.subr.mxu0 0.0
        %7787 = vmatpush2.msra.mxu0 0.0
        %7788 = vmatprep.subr.mxu0 0.0
        %7789 = vmatpush2.msra.mxu0 0.0
        %7790 = vmatprep.subr.mxu0 0.0
        %7791 = vmatpush2.msra.mxu0 0.0
        %7792 = vmatprep.subr.mxu0 0.0
        %7793 = vmatpush2.msra.mxu0 0.0
        %7794 = vmatprep.subr.mxu0 0.0
        %7795 = vmatpush2.msra.mxu0 0.0
        %7796 = vmatprep.subr.mxu0 0.0
        %7797 = vmatpush2.msra.mxu0 0.0
        %7798 = vmatprep.subr.mxu0 0.0
        %7799 = vmatpush2.msra.mxu0 0.0
        %7800 = vmatprep.subr.mxu0 0.0
        %7801 = vmatpush2.msra.mxu0 0.0
        %7802 = vmatprep.subr.mxu0 0.0
        %7803 = vmatpush2.msra.mxu0 0.0
        %7804 = vmatprep.subr.mxu0 0.0
        %7805 = vmatpush2.msra.mxu0 0.0
        %7806 = vmatprep.subr.mxu0 0.0
        %7807 = vmatpush2.msra.mxu0 0.0
        %7808 = vmatprep.subr.mxu0 0.0
        %7809 = vmatpush2.msra.mxu0 0.0
        %7810 = vmatprep.mubr.f32.mxu0 0.0
        %7811 = vmatmul.mubr.f32.gmra.mxu0 %v7741
        %v7812 = vpop.f32.mrf.mxu0
        %v7813 = vadd.f32 0.0, %v7812
        %v7814 = vpop.f32.mrf.mxu0
        %7815 = vmatprep.mubr.f32.mxu0 0.0
        %7816 = vmatmul.mubr.f32.gmra.mxu0 %v7744
        %v7817 = vpop.f32.mrf.mxu0
        %v7818 = vadd.f32 0.0, %v7817
        %v7819 = vpop.f32.mrf.mxu0
        %7820 = vdwg.mxu0
        %v7821 = vadd.f32 %v7729, %v7813
        %v7822 = vadd.f32 %v7730, %v7818
        %v7823 = vld [vmem:[#allocation4 + $0x8] sm:$0xff]
        %v7824 = vld [vmem:[#allocation4 + $0x10] sm:$0xff]
        %v7825 = vsel %vm7274, %v7823, 0.0
        %v7826 = vsel %vm7275, %v7824, 0.0
        %s7827 = scalar_lea.vmem %s7, 192
        %v7828 = vld [vmem:[%s7827] sm:$0xff]
        %v7829 = vld [vmem:[%s7827 + $0x8] sm:$0xff]
        %v7830 = vld [vmem:[%s7827 + $0x10] sm:$0xff]
        %v7831 = vld [vmem:[%s7827 + $0x18] sm:$0xff]
        %v7833 = vsel %vm7236, %v7825, 0
        %v7836 = vsel %vm7236, %v7826, 0
        %7838 = vmatprep.subr.mxu0 0.0
        %7839 = vmatpush1.msra.mxu0 0.0
        %7840 = vmatprep.subr.mxu0 0.0
        %7841 = vmatpush1.msra.mxu0 0.0
        %7842 = vmatprep.subr.mxu0 0.0
        %7843 = vmatpush1.msra.mxu0 0.0
        %7844 = vmatprep.subr.mxu0 0.0
        %7845 = vmatpush1.msra.mxu0 0.0
        %7846 = vmatprep.subr.mxu0 0.0
        %7847 = vmatpush1.msra.mxu0 0.0
        %7848 = vmatprep.subr.mxu0 0.0
        %7849 = vmatpush1.msra.mxu0 0.0
        %7850 = vmatprep.subr.mxu0 0.0
        %7851 = vmatpush1.msra.mxu0 0.0
        %7852 = vmatprep.subr.mxu0 0.0
        %7853 = vmatpush1.msra.mxu0 0.0
        %7854 = vmatprep.subr.mxu0 0.0
        %7855 = vmatpush1.msra.mxu0 0.0
        %7856 = vmatprep.subr.mxu0 0.0
        %7857 = vmatpush1.msra.mxu0 0.0
        %7858 = vmatprep.subr.mxu0 0.0
        %7859 = vmatpush1.msra.mxu0 0.0
        %7860 = vmatprep.subr.mxu0 0.0
        %7861 = vmatpush1.msra.mxu0 0.0
        %7862 = vmatprep.subr.mxu0 0.0
        %7863 = vmatpush1.msra.mxu0 %v7831
        %7864 = vmatprep.subr.mxu0 0.0
        %7865 = vmatpush1.msra.mxu0 %v7830
        %7866 = vmatprep.subr.mxu0 0.0
        %7867 = vmatpush1.msra.mxu0 %v7829
        %7868 = vmatprep.subr.mxu0 0.0
        %7869 = vmatpush1.msra.mxu0 %v7828
        %7870 = vmatprep.subr.mxu0 0.0
        %7871 = vmatpush2.msra.mxu0 0.0
        %7872 = vmatprep.subr.mxu0 0.0
        %7873 = vmatpush2.msra.mxu0 0.0
        %7874 = vmatprep.subr.mxu0 0.0
        %7875 = vmatpush2.msra.mxu0 0.0
        %7876 = vmatprep.subr.mxu0 0.0
        %7877 = vmatpush2.msra.mxu0 0.0
        %7878 = vmatprep.subr.mxu0 0.0
        %7879 = vmatpush2.msra.mxu0 0.0
        %7880 = vmatprep.subr.mxu0 0.0
        %7881 = vmatpush2.msra.mxu0 0.0
        %7882 = vmatprep.subr.mxu0 0.0
        %7883 = vmatpush2.msra.mxu0 0.0
        %7884 = vmatprep.subr.mxu0 0.0
        %7885 = vmatpush2.msra.mxu0 0.0
        %7886 = vmatprep.subr.mxu0 0.0
        %7887 = vmatpush2.msra.mxu0 0.0
        %7888 = vmatprep.subr.mxu0 0.0
        %7889 = vmatpush2.msra.mxu0 0.0
        %7890 = vmatprep.subr.mxu0 0.0
        %7891 = vmatpush2.msra.mxu0 0.0
        %7892 = vmatprep.subr.mxu0 0.0
        %7893 = vmatpush2.msra.mxu0 0.0
        %7894 = vmatprep.subr.mxu0 0.0
        %7895 = vmatpush2.msra.mxu0 0.0
        %7896 = vmatprep.subr.mxu0 0.0
        %7897 = vmatpush2.msra.mxu0 0.0
        %7898 = vmatprep.subr.mxu0 0.0
        %7899 = vmatpush2.msra.mxu0 0.0
        %7900 = vmatprep.subr.mxu0 0.0
        %7901 = vmatpush2.msra.mxu0 0.0
        %7902 = vmatprep.mubr.f32.mxu0 0.0
        %7903 = vmatmul.mubr.f32.gmra.mxu0 %v7833
        %v7904 = vpop.f32.mrf.mxu0
        %v7905 = vadd.f32 0.0, %v7904
        %v7906 = vpop.f32.mrf.mxu0
        %7907 = vmatprep.mubr.f32.mxu0 0.0
        %7908 = vmatmul.mubr.f32.gmra.mxu0 %v7836
        %v7909 = vpop.f32.mrf.mxu0
        %v7910 = vadd.f32 0.0, %v7909
        %v7911 = vpop.f32.mrf.mxu0
        %7912 = vdwg.mxu0
        %v7913 = vadd.f32 %v7821, %v7905
        %v7914 = vadd.f32 %v7822, %v7910
        %v7915 = vld [vmem:[#allocation4 + $0x9] sm:$0xff]
        %v7916 = vld [vmem:[#allocation4 + $0x11] sm:$0xff]
        %s7917 = scalar_lea.vmem %s7, 224
        %v7918 = vld [vmem:[%s7917] sm:$0xff]
        %v7919 = vld [vmem:[%s7917 + $0x8] sm:$0xff]
        %v7920 = vld [vmem:[%s7917 + $0x10] sm:$0xff]
        %v7921 = vld [vmem:[%s7917 + $0x18] sm:$0xff]
        %v7923 = vsel %vm7236, %v7915, 0
        %v7926 = vsel %vm7236, %v7916, 0
        %7928 = vmatprep.subr.mxu0 0.0
        %7929 = vmatpush1.msra.mxu0 0.0
        %7930 = vmatprep.subr.mxu0 0.0
        %7931 = vmatpush1.msra.mxu0 0.0
        %7932 = vmatprep.subr.mxu0 0.0
        %7933 = vmatpush1.msra.mxu0 0.0
        %7934 = vmatprep.subr.mxu0 0.0
        %7935 = vmatpush1.msra.mxu0 0.0
        %7936 = vmatprep.subr.mxu0 0.0
        %7937 = vmatpush1.msra.mxu0 0.0
        %7938 = vmatprep.subr.mxu0 0.0
        %7939 = vmatpush1.msra.mxu0 0.0
        %7940 = vmatprep.subr.mxu0 0.0
        %7941 = vmatpush1.msra.mxu0 0.0
        %7942 = vmatprep.subr.mxu0 0.0
        %7943 = vmatpush1.msra.mxu0 0.0
        %7944 = vmatprep.subr.mxu0 0.0
        %7945 = vmatpush1.msra.mxu0 0.0
        %7946 = vmatprep.subr.mxu0 0.0
        %7947 = vmatpush1.msra.mxu0 0.0
        %7948 = vmatprep.subr.mxu0 0.0
        %7949 = vmatpush1.msra.mxu0 0.0
        %7950 = vmatprep.subr.mxu0 0.0
        %7951 = vmatpush1.msra.mxu0 0.0
        %7952 = vmatprep.subr.mxu0 0.0
        %7953 = vmatpush1.msra.mxu0 %v7921
        %7954 = vmatprep.subr.mxu0 0.0
        %7955 = vmatpush1.msra.mxu0 %v7920
        %7956 = vmatprep.subr.mxu0 0.0
        %7957 = vmatpush1.msra.mxu0 %v7919
        %7958 = vmatprep.subr.mxu0 0.0
        %7959 = vmatpush1.msra.mxu0 %v7918
        %7960 = vmatprep.subr.mxu0 0.0
        %7961 = vmatpush2.msra.mxu0 0.0
        %7962 = vmatprep.subr.mxu0 0.0
        %7963 = vmatpush2.msra.mxu0 0.0
        %7964 = vmatprep.subr.mxu0 0.0
        %7965 = vmatpush2.msra.mxu0 0.0
        %7966 = vmatprep.subr.mxu0 0.0
        %7967 = vmatpush2.msra.mxu0 0.0
        %7968 = vmatprep.subr.mxu0 0.0
        %7969 = vmatpush2.msra.mxu0 0.0
        %7970 = vmatprep.subr.mxu0 0.0
        %7971 = vmatpush2.msra.mxu0 0.0
        %7972 = vmatprep.subr.mxu0 0.0
        %7973 = vmatpush2.msra.mxu0 0.0
        %7974 = vmatprep.subr.mxu0 0.0
        %7975 = vmatpush2.msra.mxu0 0.0
        %7976 = vmatprep.subr.mxu0 0.0
        %7977 = vmatpush2.msra.mxu0 0.0
        %7978 = vmatprep.subr.mxu0 0.0
        %7979 = vmatpush2.msra.mxu0 0.0
        %7980 = vmatprep.subr.mxu0 0.0
        %7981 = vmatpush2.msra.mxu0 0.0
        %7982 = vmatprep.subr.mxu0 0.0
        %7983 = vmatpush2.msra.mxu0 0.0
        %7984 = vmatprep.subr.mxu0 0.0
        %7985 = vmatpush2.msra.mxu0 0.0
        %7986 = vmatprep.subr.mxu0 0.0
        %7987 = vmatpush2.msra.mxu0 0.0
        %7988 = vmatprep.subr.mxu0 0.0
        %7989 = vmatpush2.msra.mxu0 0.0
        %7990 = vmatprep.subr.mxu0 0.0
        %7991 = vmatpush2.msra.mxu0 0.0
        %7992 = vmatprep.mubr.f32.mxu0 0.0
        %7993 = vmatmul.mubr.f32.gmra.mxu0 %v7923
        %v7994 = vpop.f32.mrf.mxu0
        %v7995 = vadd.f32 0.0, %v7994
        %v7996 = vpop.f32.mrf.mxu0
        %7997 = vmatprep.mubr.f32.mxu0 0.0
        %7998 = vmatmul.mubr.f32.gmra.mxu0 %v7926
        %v7999 = vpop.f32.mrf.mxu0
        %v8000 = vadd.f32 0.0, %v7999
        %v8001 = vpop.f32.mrf.mxu0
        %8002 = vdwg.mxu0
        %v8003 = vadd.f32 %v7913, %v7995
        %v8004 = vadd.f32 %v7914, %v8000
        %v8005 = vld [vmem:[#allocation4 + $0xa] sm:$0xff]
        %v8006 = vld [vmem:[#allocation4 + $0x12] sm:$0xff]
        %v8007 = vsel %vm7457, %v8005, 0.0
        %v8008 = vsel %vm7458, %v8006, 0.0
        %s8009 = scalar_lea.vmem %s7, 256
        %v8010 = vld [vmem:[%s8009] sm:$0xff]
        %v8011 = vld [vmem:[%s8009 + $0x8] sm:$0xff]
        %v8012 = vld [vmem:[%s8009 + $0x10] sm:$0xff]
        %v8013 = vld [vmem:[%s8009 + $0x18] sm:$0xff]
        %v8015 = vsel %vm7236, %v8007, 0
        %v8018 = vsel %vm7236, %v8008, 0
        %8020 = vmatprep.subr.mxu0 0.0
        %8021 = vmatpush1.msra.mxu0 0.0
        %8022 = vmatprep.subr.mxu0 0.0
        %8023 = vmatpush1.msra.mxu0 0.0
        %8024 = vmatprep.subr.mxu0 0.0
        %8025 = vmatpush1.msra.mxu0 0.0
        %8026 = vmatprep.subr.mxu0 0.0
        %8027 = vmatpush1.msra.mxu0 0.0
        %8028 = vmatprep.subr.mxu0 0.0
        %8029 = vmatpush1.msra.mxu0 0.0
        %8030 = vmatprep.subr.mxu0 0.0
        %8031 = vmatpush1.msra.mxu0 0.0
        %8032 = vmatprep.subr.mxu0 0.0
        %8033 = vmatpush1.msra.mxu0 0.0
        %8034 = vmatprep.subr.mxu0 0.0
        %8035 = vmatpush1.msra.mxu0 0.0
        %8036 = vmatprep.subr.mxu0 0.0
        %8037 = vmatpush1.msra.mxu0 0.0
        %8038 = vmatprep.subr.mxu0 0.0
        %8039 = vmatpush1.msra.mxu0 0.0
        %8040 = vmatprep.subr.mxu0 0.0
        %8041 = vmatpush1.msra.mxu0 0.0
        %8042 = vmatprep.subr.mxu0 0.0
        %8043 = vmatpush1.msra.mxu0 0.0
        %8044 = vmatprep.subr.mxu0 0.0
        %8045 = vmatpush1.msra.mxu0 %v8013
        %8046 = vmatprep.subr.mxu0 0.0
        %8047 = vmatpush1.msra.mxu0 %v8012
        %8048 = vmatprep.subr.mxu0 0.0
        %8049 = vmatpush1.msra.mxu0 %v8011
        %8050 = vmatprep.subr.mxu0 0.0
        %8051 = vmatpush1.msra.mxu0 %v8010
        %8052 = vmatprep.subr.mxu0 0.0
        %8053 = vmatpush2.msra.mxu0 0.0
        %8054 = vmatprep.subr.mxu0 0.0
        %8055 = vmatpush2.msra.mxu0 0.0
        %8056 = vmatprep.subr.mxu0 0.0
        %8057 = vmatpush2.msra.mxu0 0.0
        %8058 = vmatprep.subr.mxu0 0.0
        %8059 = vmatpush2.msra.mxu0 0.0
        %8060 = vmatprep.subr.mxu0 0.0
        %8061 = vmatpush2.msra.mxu0 0.0
        %8062 = vmatprep.subr.mxu0 0.0
        %8063 = vmatpush2.msra.mxu0 0.0
        %8064 = vmatprep.subr.mxu0 0.0
        %8065 = vmatpush2.msra.mxu0 0.0
        %8066 = vmatprep.subr.mxu0 0.0
        %8067 = vmatpush2.msra.mxu0 0.0
        %8068 = vmatprep.subr.mxu0 0.0
        %8069 = vmatpush2.msra.mxu0 0.0
        %8070 = vmatprep.subr.mxu0 0.0
        %8071 = vmatpush2.msra.mxu0 0.0
        %8072 = vmatprep.subr.mxu0 0.0
        %8073 = vmatpush2.msra.mxu0 0.0
        %8074 = vmatprep.subr.mxu0 0.0
        %8075 = vmatpush2.msra.mxu0 0.0
        %8076 = vmatprep.subr.mxu0 0.0
        %8077 = vmatpush2.msra.mxu0 0.0
        %8078 = vmatprep.subr.mxu0 0.0
        %8079 = vmatpush2.msra.mxu0 0.0
        %8080 = vmatprep.subr.mxu0 0.0
        %8081 = vmatpush2.msra.mxu0 0.0
        %8082 = vmatprep.subr.mxu0 0.0
        %8083 = vmatpush2.msra.mxu0 0.0
        %8084 = vmatprep.mubr.f32.mxu0 0.0
        %8085 = vmatmul.mubr.f32.gmra.mxu0 %v8015
        %v8086 = vpop.f32.mrf.mxu0
        %v8087 = vadd.f32 0.0, %v8086
        %v8088 = vpop.f32.mrf.mxu0
        %8089 = vmatprep.mubr.f32.mxu0 0.0
        %8090 = vmatmul.mubr.f32.gmra.mxu0 %v8018
        %v8091 = vpop.f32.mrf.mxu0
        %v8092 = vadd.f32 0.0, %v8091
        %v8093 = vpop.f32.mrf.mxu0
        %8094 = vdwg.mxu0
        %v8095 = vadd.f32 %v8003, %v8087
        %v8096 = vadd.f32 %v8004, %v8092
        %v8097 = vld [vmem:[%s8] sm:$0x1]
        %v8099 = vlaneseq
        %v8100 = vshrl.u32 %v8099, 7
        %v8101 = vsub.s32 0, %v8100
        %v8102 = vrot.slane %v8097, %v8101
        %v8104 = vadd.f32 %v8095, %v8102
        %v8105 = vadd.f32 %v8096, %v8102
        %v8106 = vmax.f32 %v8104, 0.0
        %v8107 = vmax.f32 %v8105, 0.0
        %v8108 = vld [vmem:[%s9] sm:$0xf]
        %v8110 = vsel %vm5343, %v8108, 0
        %8112 = vmatprep.subr.mxu0 0.0
        %8113 = vmatpush1.msra.mxu0 0.0
        %8114 = vmatprep.subr.mxu0 0.0
        %8115 = vmatpush1.msra.mxu0 0.0
        %8116 = vmatprep.subr.mxu0 0.0
        %8117 = vmatpush1.msra.mxu0 0.0
        %8118 = vmatprep.subr.mxu0 0.0
        %8119 = vmatpush1.msra.mxu0 0.0
        %8120 = vmatprep.subr.mxu0 0.0
        %8121 = vmatpush1.msra.mxu0 0.0
        %8122 = vmatprep.subr.mxu0 0.0
        %8123 = vmatpush1.msra.mxu0 0.0
        %8124 = vmatprep.subr.mxu0 0.0
        %8125 = vmatpush1.msra.mxu0 0.0
        %8126 = vmatprep.subr.mxu0 0.0
        %8127 = vmatpush1.msra.mxu0 0.0
        %8128 = vmatprep.subr.mxu0 0.0
        %8129 = vmatpush1.msra.mxu0 0.0
        %8130 = vmatprep.subr.mxu0 0.0
        %8131 = vmatpush1.msra.mxu0 0.0
        %8132 = vmatprep.subr.mxu0 0.0
        %8133 = vmatpush1.msra.mxu0 0.0
        %8134 = vmatprep.subr.mxu0 0.0
        %8135 = vmatpush1.msra.mxu0 0.0
        %8136 = vmatprep.subr.mxu0 0.0
        %8137 = vmatpush1.msra.mxu0 0.0
        %8138 = vmatprep.subr.mxu0 0.0
        %8139 = vmatpush1.msra.mxu0 0.0
        %8140 = vmatprep.subr.mxu0 0.0
        %8141 = vmatpush1.msra.mxu0 %v8107
        %8142 = vmatprep.subr.mxu0 0.0
        %8143 = vmatpush1.msra.mxu0 %v8106
        %8144 = vmatprep.subr.mxu0 0.0
        %8145 = vmatpush2.msra.mxu0 0.0
        %8146 = vmatprep.subr.mxu0 0.0
        %8147 = vmatpush2.msra.mxu0 0.0
        %8148 = vmatprep.subr.mxu0 0.0
        %8149 = vmatpush2.msra.mxu0 0.0
        %8150 = vmatprep.subr.mxu0 0.0
        %8151 = vmatpush2.msra.mxu0 0.0
        %8152 = vmatprep.subr.mxu0 0.0
        %8153 = vmatpush2.msra.mxu0 0.0
        %8154 = vmatprep.subr.mxu0 0.0
        %8155 = vmatpush2.msra.mxu0 0.0
        %8156 = vmatprep.subr.mxu0 0.0
        %8157 = vmatpush2.msra.mxu0 0.0
        %8158 = vmatprep.subr.mxu0 0.0
        %8159 = vmatpush2.msra.mxu0 0.0
        %8160 = vmatprep.subr.mxu0 0.0
        %8161 = vmatpush2.msra.mxu0 0.0
        %8162 = vmatprep.subr.mxu0 0.0
        %8163 = vmatpush2.msra.mxu0 0.0
        %8164 = vmatprep.subr.mxu0 0.0
        %8165 = vmatpush2.msra.mxu0 0.0
        %8166 = vmatprep.subr.mxu0 0.0
        %8167 = vmatpush2.msra.mxu0 0.0
        %8168 = vmatprep.subr.mxu0 0.0
        %8169 = vmatpush2.msra.mxu0 0.0
        %8170 = vmatprep.subr.mxu0 0.0
        %8171 = vmatpush2.msra.mxu0 0.0
        %8172 = vmatprep.subr.mxu0 0.0
        %8173 = vmatpush2.msra.mxu0 0.0
        %8174 = vmatprep.subr.mxu0 0.0
        %8175 = vmatpush2.msra.mxu0 0.0
        %8176 = vmatprep.mubr.f32.mxu0 0.0
        %8177 = vmatmul.mubr.f32.gmra.mxu0 %v8110
        %v8178 = vpop.f32.mrf.mxu0
        %v8179 = vadd.f32 0.0, %v8178
        %v8180 = vpop.f32.mrf.mxu0
        %8181 = vdwg.mxu0
        %s8182 = scalar_lea.vmem %s9, 4
        %v8183 = vld [vmem:[%s8182] sm:$0xf]
        %v8185 = vsel %vm5343, %v8183, 0
        %8187 = vmatprep.subr.mxu0 0.0
        %8188 = vmatpush1.msra.mxu0 0.0
        %8189 = vmatprep.subr.mxu0 0.0
        %8190 = vmatpush1.msra.mxu0 0.0
        %8191 = vmatprep.subr.mxu0 0.0
        %8192 = vmatpush1.msra.mxu0 0.0
        %8193 = vmatprep.subr.mxu0 0.0
        %8194 = vmatpush1.msra.mxu0 0.0
        %8195 = vmatprep.subr.mxu0 0.0
        %8196 = vmatpush1.msra.mxu0 0.0
        %8197 = vmatprep.subr.mxu0 0.0
        %8198 = vmatpush1.msra.mxu0 0.0
        %8199 = vmatprep.subr.mxu0 0.0
        %8200 = vmatpush1.msra.mxu0 0.0
        %8201 = vmatprep.subr.mxu0 0.0
        %8202 = vmatpush1.msra.mxu0 0.0
        %8203 = vmatprep.subr.mxu0 0.0
        %8204 = vmatpush1.msra.mxu0 0.0
        %8205 = vmatprep.subr.mxu0 0.0
        %8206 = vmatpush1.msra.mxu0 0.0
        %8207 = vmatprep.subr.mxu0 0.0
        %8208 = vmatpush1.msra.mxu0 0.0
        %8209 = vmatprep.subr.mxu0 0.0
        %8210 = vmatpush1.msra.mxu0 0.0
        %8211 = vmatprep.subr.mxu0 0.0
        %8212 = vmatpush1.msra.mxu0 0.0
        %8213 = vmatprep.subr.mxu0 0.0
        %8214 = vmatpush1.msra.mxu0 0.0
        %8215 = vmatprep.subr.mxu0 0.0
        %8216 = vmatpush1.msra.mxu0 %v8107
        %8217 = vmatprep.subr.mxu0 0.0
        %8218 = vmatpush1.msra.mxu0 %v8106
        %8219 = vmatprep.subr.mxu0 0.0
        %8220 = vmatpush2.msra.mxu0 0.0
        %8221 = vmatprep.subr.mxu0 0.0
        %8222 = vmatpush2.msra.mxu0 0.0
        %8223 = vmatprep.subr.mxu0 0.0
        %8224 = vmatpush2.msra.mxu0 0.0
        %8225 = vmatprep.subr.mxu0 0.0
        %8226 = vmatpush2.msra.mxu0 0.0
        %8227 = vmatprep.subr.mxu0 0.0
        %8228 = vmatpush2.msra.mxu0 0.0
        %8229 = vmatprep.subr.mxu0 0.0
        %8230 = vmatpush2.msra.mxu0 0.0
        %8231 = vmatprep.subr.mxu0 0.0
        %8232 = vmatpush2.msra.mxu0 0.0
        %8233 = vmatprep.subr.mxu0 0.0
        %8234 = vmatpush2.msra.mxu0 0.0
        %8235 = vmatprep.subr.mxu0 0.0
        %8236 = vmatpush2.msra.mxu0 0.0
        %8237 = vmatprep.subr.mxu0 0.0
        %8238 = vmatpush2.msra.mxu0 0.0
        %8239 = vmatprep.subr.mxu0 0.0
        %8240 = vmatpush2.msra.mxu0 0.0
        %8241 = vmatprep.subr.mxu0 0.0
        %8242 = vmatpush2.msra.mxu0 0.0
        %8243 = vmatprep.subr.mxu0 0.0
        %8244 = vmatpush2.msra.mxu0 0.0
        %8245 = vmatprep.subr.mxu0 0.0
        %8246 = vmatpush2.msra.mxu0 0.0
        %8247 = vmatprep.subr.mxu0 0.0
        %8248 = vmatpush2.msra.mxu0 0.0
        %8249 = vmatprep.subr.mxu0 0.0
        %8250 = vmatpush2.msra.mxu0 0.0
        %8251 = vmatprep.mubr.f32.mxu0 0.0
        %8252 = vmatmul.mubr.f32.gmra.mxu0 %v8185
        %v8253 = vpop.f32.mrf.mxu0
        %v8254 = vadd.f32 0.0, %v8253
        %v8255 = vpop.f32.mrf.mxu0
        %8256 = vdwg.mxu0
        %v8257 = vmax.f32 %v8179, %v8254
        %s8258 = scalar_lea.vmem %s9, 8
        %v8259 = vld [vmem:[%s8258] sm:$0xf]
        %v8261 = vsel %vm5343, %v8259, 0
        %8263 = vmatprep.subr.mxu0 0.0
        %8264 = vmatpush1.msra.mxu0 0.0
        %8265 = vmatprep.subr.mxu0 0.0
        %8266 = vmatpush1.msra.mxu0 0.0
        %8267 = vmatprep.subr.mxu0 0.0
        %8268 = vmatpush1.msra.mxu0 0.0
        %8269 = vmatprep.subr.mxu0 0.0
        %8270 = vmatpush1.msra.mxu0 0.0
        %8271 = vmatprep.subr.mxu0 0.0
        %8272 = vmatpush1.msra.mxu0 0.0
        %8273 = vmatprep.subr.mxu0 0.0
        %8274 = vmatpush1.msra.mxu0 0.0
        %8275 = vmatprep.subr.mxu0 0.0
        %8276 = vmatpush1.msra.mxu0 0.0
        %8277 = vmatprep.subr.mxu0 0.0
        %8278 = vmatpush1.msra.mxu0 0.0
        %8279 = vmatprep.subr.mxu0 0.0
        %8280 = vmatpush1.msra.mxu0 0.0
        %8281 = vmatprep.subr.mxu0 0.0
        %8282 = vmatpush1.msra.mxu0 0.0
        %8283 = vmatprep.subr.mxu0 0.0
        %8284 = vmatpush1.msra.mxu0 0.0
        %8285 = vmatprep.subr.mxu0 0.0
        %8286 = vmatpush1.msra.mxu0 0.0
        %8287 = vmatprep.subr.mxu0 0.0
        %8288 = vmatpush1.msra.mxu0 0.0
        %8289 = vmatprep.subr.mxu0 0.0
        %8290 = vmatpush1.msra.mxu0 0.0
        %8291 = vmatprep.subr.mxu0 0.0
        %8292 = vmatpush1.msra.mxu0 %v8107
        %8293 = vmatprep.subr.mxu0 0.0
        %8294 = vmatpush1.msra.mxu0 %v8106
        %8295 = vmatprep.subr.mxu0 0.0
        %8296 = vmatpush2.msra.mxu0 0.0
        %8297 = vmatprep.subr.mxu0 0.0
        %8298 = vmatpush2.msra.mxu0 0.0
        %8299 = vmatprep.subr.mxu0 0.0
        %8300 = vmatpush2.msra.mxu0 0.0
        %8301 = vmatprep.subr.mxu0 0.0
        %8302 = vmatpush2.msra.mxu0 0.0
        %8303 = vmatprep.subr.mxu0 0.0
        %8304 = vmatpush2.msra.mxu0 0.0
        %8305 = vmatprep.subr.mxu0 0.0
        %8306 = vmatpush2.msra.mxu0 0.0
        %8307 = vmatprep.subr.mxu0 0.0
        %8308 = vmatpush2.msra.mxu0 0.0
        %8309 = vmatprep.subr.mxu0 0.0
        %8310 = vmatpush2.msra.mxu0 0.0
        %8311 = vmatprep.subr.mxu0 0.0
        %8312 = vmatpush2.msra.mxu0 0.0
        %8313 = vmatprep.subr.mxu0 0.0
        %8314 = vmatpush2.msra.mxu0 0.0
        %8315 = vmatprep.subr.mxu0 0.0
        %8316 = vmatpush2.msra.mxu0 0.0
        %8317 = vmatprep.subr.mxu0 0.0
        %8318 = vmatpush2.msra.mxu0 0.0
        %8319 = vmatprep.subr.mxu0 0.0
        %8320 = vmatpush2.msra.mxu0 0.0
        %8321 = vmatprep.subr.mxu0 0.0
        %8322 = vmatpush2.msra.mxu0 0.0
        %8323 = vmatprep.subr.mxu0 0.0
        %8324 = vmatpush2.msra.mxu0 0.0
        %8325 = vmatprep.subr.mxu0 0.0
        %8326 = vmatpush2.msra.mxu0 0.0
        %8327 = vmatprep.mubr.f32.mxu0 0.0
        %8328 = vmatmul.mubr.f32.gmra.mxu0 %v8261
        %v8329 = vpop.f32.mrf.mxu0
        %v8330 = vadd.f32 0.0, %v8329
        %v8331 = vpop.f32.mrf.mxu0
        %8332 = vdwg.mxu0
        %v8333 = vmax.f32 %v8257, %v8330
        %s8334 = scalar_lea.vmem %s9, 12
        %v8335 = vld [vmem:[%s8334] sm:$0xf]
        %v8337 = vsel %vm5343, %v8335, 0
        %8339 = vmatprep.subr.mxu0 0.0
        %8340 = vmatpush1.msra.mxu0 0.0
        %8341 = vmatprep.subr.mxu0 0.0
        %8342 = vmatpush1.msra.mxu0 0.0
        %8343 = vmatprep.subr.mxu0 0.0
        %8344 = vmatpush1.msra.mxu0 0.0
        %8345 = vmatprep.subr.mxu0 0.0
        %8346 = vmatpush1.msra.mxu0 0.0
        %8347 = vmatprep.subr.mxu0 0.0
        %8348 = vmatpush1.msra.mxu0 0.0
        %8349 = vmatprep.subr.mxu0 0.0
        %8350 = vmatpush1.msra.mxu0 0.0
        %8351 = vmatprep.subr.mxu0 0.0
        %8352 = vmatpush1.msra.mxu0 0.0
        %8353 = vmatprep.subr.mxu0 0.0
        %8354 = vmatpush1.msra.mxu0 0.0
        %8355 = vmatprep.subr.mxu0 0.0
        %8356 = vmatpush1.msra.mxu0 0.0
        %8357 = vmatprep.subr.mxu0 0.0
        %8358 = vmatpush1.msra.mxu0 0.0
        %8359 = vmatprep.subr.mxu0 0.0
        %8360 = vmatpush1.msra.mxu0 0.0
        %8361 = vmatprep.subr.mxu0 0.0
        %8362 = vmatpush1.msra.mxu0 0.0
        %8363 = vmatprep.subr.mxu0 0.0
        %8364 = vmatpush1.msra.mxu0 0.0
        %8365 = vmatprep.subr.mxu0 0.0
        %8366 = vmatpush1.msra.mxu0 0.0
        %8367 = vmatprep.subr.mxu0 0.0
        %8368 = vmatpush1.msra.mxu0 %v8107
        %8369 = vmatprep.subr.mxu0 0.0
        %8370 = vmatpush1.msra.mxu0 %v8106
        %8371 = vmatprep.subr.mxu0 0.0
        %8372 = vmatpush2.msra.mxu0 0.0
        %8373 = vmatprep.subr.mxu0 0.0
        %8374 = vmatpush2.msra.mxu0 0.0
        %8375 = vmatprep.subr.mxu0 0.0
        %8376 = vmatpush2.msra.mxu0 0.0
        %8377 = vmatprep.subr.mxu0 0.0
        %8378 = vmatpush2.msra.mxu0 0.0
        %8379 = vmatprep.subr.mxu0 0.0
        %8380 = vmatpush2.msra.mxu0 0.0
        %8381 = vmatprep.subr.mxu0 0.0
        %8382 = vmatpush2.msra.mxu0 0.0
        %8383 = vmatprep.subr.mxu0 0.0
        %8384 = vmatpush2.msra.mxu0 0.0
        %8385 = vmatprep.subr.mxu0 0.0
        %8386 = vmatpush2.msra.mxu0 0.0
        %8387 = vmatprep.subr.mxu0 0.0
        %8388 = vmatpush2.msra.mxu0 0.0
        %8389 = vmatprep.subr.mxu0 0.0
        %8390 = vmatpush2.msra.mxu0 0.0
        %8391 = vmatprep.subr.mxu0 0.0
        %8392 = vmatpush2.msra.mxu0 0.0
        %8393 = vmatprep.subr.mxu0 0.0
        %8394 = vmatpush2.msra.mxu0 0.0
        %8395 = vmatprep.subr.mxu0 0.0
        %8396 = vmatpush2.msra.mxu0 0.0
        %8397 = vmatprep.subr.mxu0 0.0
        %8398 = vmatpush2.msra.mxu0 0.0
        %8399 = vmatprep.subr.mxu0 0.0
        %8400 = vmatpush2.msra.mxu0 0.0
        %8401 = vmatprep.subr.mxu0 0.0
        %8402 = vmatpush2.msra.mxu0 0.0
        %8403 = vmatprep.mubr.f32.mxu0 0.0
        %8404 = vmatmul.mubr.f32.gmra.mxu0 %v8337
        %v8405 = vpop.f32.mrf.mxu0
        %v8406 = vadd.f32 0.0, %v8405
        %v8407 = vpop.f32.mrf.mxu0
        %8408 = vdwg.mxu0
        %v8409 = vmax.f32 %v8333, %v8406
        %v8410 = vld [vmem:[%s11] sm:$0x1]
        %v8411 = vld [vmem:[%s10] sm:$0xff]
        %v8412 = vld [vmem:[%s10 + $0x8] sm:$0xff]
        %v8413 = vld [vmem:[%s10 + $0x10] sm:$0xff]
        %v8414 = vld [vmem:[%s10 + $0x18] sm:$0xff]
        %v8415 = vld [vmem:[%s10 + $0x20] sm:$0xff]
        %v8416 = vld [vmem:[%s10 + $0x28] sm:$0xff]
        %v8417 = vld [vmem:[%s10 + $0x30] sm:$0xff]
        %v8418 = vld [vmem:[%s10 + $0x38] sm:$0xff]
        %v8420 = vsel %vm6896, %v8409, 0
        %8422 = vmatprep.subr.mxu0 0.0
        %8423 = vmatpush1.msra.mxu0 0.0
        %8424 = vmatprep.subr.mxu0 0.0
        %8425 = vmatpush1.msra.mxu0 0.0
        %8426 = vmatprep.subr.mxu0 0.0
        %8427 = vmatpush1.msra.mxu0 0.0
        %8428 = vmatprep.subr.mxu0 0.0
        %8429 = vmatpush1.msra.mxu0 0.0
        %8430 = vmatprep.subr.mxu0 0.0
        %8431 = vmatpush1.msra.mxu0 0.0
        %8432 = vmatprep.subr.mxu0 0.0
        %8433 = vmatpush1.msra.mxu0 0.0
        %8434 = vmatprep.subr.mxu0 0.0
        %8435 = vmatpush1.msra.mxu0 0.0
        %8436 = vmatprep.subr.mxu0 0.0
        %8437 = vmatpush1.msra.mxu0 0.0
        %8438 = vmatprep.subr.mxu0 0.0
        %8439 = vmatpush1.msra.mxu0 %v8418
        %8440 = vmatprep.subr.mxu0 0.0
        %8441 = vmatpush1.msra.mxu0 %v8417
        %8442 = vmatprep.subr.mxu0 0.0
        %8443 = vmatpush1.msra.mxu0 %v8416
        %8444 = vmatprep.subr.mxu0 0.0
        %8445 = vmatpush1.msra.mxu0 %v8415
        %8446 = vmatprep.subr.mxu0 0.0
        %8447 = vmatpush1.msra.mxu0 %v8414
        %8448 = vmatprep.subr.mxu0 0.0
        %8449 = vmatpush1.msra.mxu0 %v8413
        %8450 = vmatprep.subr.mxu0 0.0
        %8451 = vmatpush1.msra.mxu0 %v8412
        %8452 = vmatprep.subr.mxu0 0.0
        %8453 = vmatpush1.msra.mxu0 %v8411
        %8454 = vmatprep.subr.mxu0 0.0
        %8455 = vmatpush2.msra.mxu0 0.0
        %8456 = vmatprep.subr.mxu0 0.0
        %8457 = vmatpush2.msra.mxu0 0.0
        %8458 = vmatprep.subr.mxu0 0.0
        %8459 = vmatpush2.msra.mxu0 0.0
        %8460 = vmatprep.subr.mxu0 0.0
        %8461 = vmatpush2.msra.mxu0 0.0
        %8462 = vmatprep.subr.mxu0 0.0
        %8463 = vmatpush2.msra.mxu0 0.0
        %8464 = vmatprep.subr.mxu0 0.0
        %8465 = vmatpush2.msra.mxu0 0.0
        %8466 = vmatprep.subr.mxu0 0.0
        %8467 = vmatpush2.msra.mxu0 0.0
        %8468 = vmatprep.subr.mxu0 0.0
        %8469 = vmatpush2.msra.mxu0 0.0
        %8470 = vmatprep.subr.mxu0 0.0
        %8471 = vmatpush2.msra.mxu0 0.0
        %8472 = vmatprep.subr.mxu0 0.0
        %8473 = vmatpush2.msra.mxu0 0.0
        %8474 = vmatprep.subr.mxu0 0.0
        %8475 = vmatpush2.msra.mxu0 0.0
        %8476 = vmatprep.subr.mxu0 0.0
        %8477 = vmatpush2.msra.mxu0 0.0
        %8478 = vmatprep.subr.mxu0 0.0
        %8479 = vmatpush2.msra.mxu0 0.0
        %8480 = vmatprep.subr.mxu0 0.0
        %8481 = vmatpush2.msra.mxu0 0.0
        %8482 = vmatprep.subr.mxu0 0.0
        %8483 = vmatpush2.msra.mxu0 0.0
        %8484 = vmatprep.subr.mxu0 0.0
        %8485 = vmatpush2.msra.mxu0 0.0
        %8486 = vmatprep.mubr.f32.mxu0 0.0
        %8487 = vmatmul.mubr.f32.gmra.mxu0 %v8420
        %v8488 = vpop.f32.mrf.mxu0
        %v8489 = vadd.f32 0.0, %v8488
        %v8490 = vpop.f32.mrf.mxu0
        %8491 = vdwg.mxu0
        %v8492 = vadd.f32 %v8410, %v8489
        %s8493 = scalar_lea.vmem %s10, 64
        %v8494 = vld [vmem:[%s8493] sm:$0xff]
        %v8495 = vld [vmem:[%s8493 + $0x8] sm:$0xff]
        %v8496 = vld [vmem:[%s8493 + $0x10] sm:$0xff]
        %v8497 = vld [vmem:[%s8493 + $0x18] sm:$0xff]
        %v8498 = vld [vmem:[%s8493 + $0x20] sm:$0xff]
        %v8499 = vld [vmem:[%s8493 + $0x28] sm:$0xff]
        %v8500 = vld [vmem:[%s8493 + $0x30] sm:$0xff]
        %v8501 = vld [vmem:[%s8493 + $0x38] sm:$0xff]
        %v8502 = vrot.slane %v8409, 1
        %v8503 = vsel %vm6896, %v8502, 0
        %8505 = vmatprep.subr.mxu0 0.0
        %8506 = vmatpush1.msra.mxu0 0.0
        %8507 = vmatprep.subr.mxu0 0.0
        %8508 = vmatpush1.msra.mxu0 0.0
        %8509 = vmatprep.subr.mxu0 0.0
        %8510 = vmatpush1.msra.mxu0 0.0
        %8511 = vmatprep.subr.mxu0 0.0
        %8512 = vmatpush1.msra.mxu0 0.0
        %8513 = vmatprep.subr.mxu0 0.0
        %8514 = vmatpush1.msra.mxu0 0.0
        %8515 = vmatprep.subr.mxu0 0.0
        %8516 = vmatpush1.msra.mxu0 0.0
        %8517 = vmatprep.subr.mxu0 0.0
        %8518 = vmatpush1.msra.mxu0 0.0
        %8519 = vmatprep.subr.mxu0 0.0
        %8520 = vmatpush1.msra.mxu0 0.0
        %8521 = vmatprep.subr.mxu0 0.0
        %8522 = vmatpush1.msra.mxu0 %v8501
        %8523 = vmatprep.subr.mxu0 0.0
        %8524 = vmatpush1.msra.mxu0 %v8500
        %8525 = vmatprep.subr.mxu0 0.0
        %8526 = vmatpush1.msra.mxu0 %v8499
        %8527 = vmatprep.subr.mxu0 0.0
        %8528 = vmatpush1.msra.mxu0 %v8498
        %8529 = vmatprep.subr.mxu0 0.0
        %8530 = vmatpush1.msra.mxu0 %v8497
        %8531 = vmatprep.subr.mxu0 0.0
        %8532 = vmatpush1.msra.mxu0 %v8496
        %8533 = vmatprep.subr.mxu0 0.0
        %8534 = vmatpush1.msra.mxu0 %v8495
        %8535 = vmatprep.subr.mxu0 0.0
        %8536 = vmatpush1.msra.mxu0 %v8494
        %8537 = vmatprep.subr.mxu0 0.0
        %8538 = vmatpush2.msra.mxu0 0.0
        %8539 = vmatprep.subr.mxu0 0.0
        %8540 = vmatpush2.msra.mxu0 0.0
        %8541 = vmatprep.subr.mxu0 0.0
        %8542 = vmatpush2.msra.mxu0 0.0
        %8543 = vmatprep.subr.mxu0 0.0
        %8544 = vmatpush2.msra.mxu0 0.0
        %8545 = vmatprep.subr.mxu0 0.0
        %8546 = vmatpush2.msra.mxu0 0.0
        %8547 = vmatprep.subr.mxu0 0.0
        %8548 = vmatpush2.msra.mxu0 0.0
        %8549 = vmatprep.subr.mxu0 0.0
        %8550 = vmatpush2.msra.mxu0 0.0
        %8551 = vmatprep.subr.mxu0 0.0
        %8552 = vmatpush2.msra.mxu0 0.0
        %8553 = vmatprep.subr.mxu0 0.0
        %8554 = vmatpush2.msra.mxu0 0.0
        %8555 = vmatprep.subr.mxu0 0.0
        %8556 = vmatpush2.msra.mxu0 0.0
        %8557 = vmatprep.subr.mxu0 0.0
        %8558 = vmatpush2.msra.mxu0 0.0
        %8559 = vmatprep.subr.mxu0 0.0
        %8560 = vmatpush2.msra.mxu0 0.0
        %8561 = vmatprep.subr.mxu0 0.0
        %8562 = vmatpush2.msra.mxu0 0.0
        %8563 = vmatprep.subr.mxu0 0.0
        %8564 = vmatpush2.msra.mxu0 0.0
        %8565 = vmatprep.subr.mxu0 0.0
        %8566 = vmatpush2.msra.mxu0 0.0
        %8567 = vmatprep.subr.mxu0 0.0
        %8568 = vmatpush2.msra.mxu0 0.0
        %8569 = vmatprep.mubr.f32.mxu0 0.0
        %8570 = vmatmul.mubr.f32.gmra.mxu0 %v8503
        %v8571 = vpop.f32.mrf.mxu0
        %v8572 = vadd.f32 0.0, %v8571
        %v8573 = vpop.f32.mrf.mxu0
        %8574 = vdwg.mxu0
        %v8575 = vadd.f32 %v8492, %v8572
        %s8576 = scalar_lea.vmem %s10, 128
        %v8577 = vld [vmem:[%s8576] sm:$0xff]
        %v8578 = vld [vmem:[%s8576 + $0x8] sm:$0xff]
        %v8579 = vld [vmem:[%s8576 + $0x10] sm:$0xff]
        %v8580 = vld [vmem:[%s8576 + $0x18] sm:$0xff]
        %v8581 = vld [vmem:[%s8576 + $0x20] sm:$0xff]
        %v8582 = vld [vmem:[%s8576 + $0x28] sm:$0xff]
        %v8583 = vld [vmem:[%s8576 + $0x30] sm:$0xff]
        %v8584 = vld [vmem:[%s8576 + $0x38] sm:$0xff]
        %v8585 = vrot.slane %v8409, 2
        %v8586 = vsel %vm6896, %v8585, 0
        %8588 = vmatprep.subr.mxu0 0.0
        %8589 = vmatpush1.msra.mxu0 0.0
        %8590 = vmatprep.subr.mxu0 0.0
        %8591 = vmatpush1.msra.mxu0 0.0
        %8592 = vmatprep.subr.mxu0 0.0
        %8593 = vmatpush1.msra.mxu0 0.0
        %8594 = vmatprep.subr.mxu0 0.0
        %8595 = vmatpush1.msra.mxu0 0.0
        %8596 = vmatprep.subr.mxu0 0.0
        %8597 = vmatpush1.msra.mxu0 0.0
        %8598 = vmatprep.subr.mxu0 0.0
        %8599 = vmatpush1.msra.mxu0 0.0
        %8600 = vmatprep.subr.mxu0 0.0
        %8601 = vmatpush1.msra.mxu0 0.0
        %8602 = vmatprep.subr.mxu0 0.0
        %8603 = vmatpush1.msra.mxu0 0.0
        %8604 = vmatprep.subr.mxu0 0.0
        %8605 = vmatpush1.msra.mxu0 %v8584
        %8606 = vmatprep.subr.mxu0 0.0
        %8607 = vmatpush1.msra.mxu0 %v8583
        %8608 = vmatprep.subr.mxu0 0.0
        %8609 = vmatpush1.msra.mxu0 %v8582
        %8610 = vmatprep.subr.mxu0 0.0
        %8611 = vmatpush1.msra.mxu0 %v8581
        %8612 = vmatprep.subr.mxu0 0.0
        %8613 = vmatpush1.msra.mxu0 %v8580
        %8614 = vmatprep.subr.mxu0 0.0
        %8615 = vmatpush1.msra.mxu0 %v8579
        %8616 = vmatprep.subr.mxu0 0.0
        %8617 = vmatpush1.msra.mxu0 %v8578
        %8618 = vmatprep.subr.mxu0 0.0
        %8619 = vmatpush1.msra.mxu0 %v8577
        %8620 = vmatprep.subr.mxu0 0.0
        %8621 = vmatpush2.msra.mxu0 0.0
        %8622 = vmatprep.subr.mxu0 0.0
        %8623 = vmatpush2.msra.mxu0 0.0
        %8624 = vmatprep.subr.mxu0 0.0
        %8625 = vmatpush2.msra.mxu0 0.0
        %8626 = vmatprep.subr.mxu0 0.0
        %8627 = vmatpush2.msra.mxu0 0.0
        %8628 = vmatprep.subr.mxu0 0.0
        %8629 = vmatpush2.msra.mxu0 0.0
        %8630 = vmatprep.subr.mxu0 0.0
        %8631 = vmatpush2.msra.mxu0 0.0
        %8632 = vmatprep.subr.mxu0 0.0
        %8633 = vmatpush2.msra.mxu0 0.0
        %8634 = vmatprep.subr.mxu0 0.0
        %8635 = vmatpush2.msra.mxu0 0.0
        %8636 = vmatprep.subr.mxu0 0.0
        %8637 = vmatpush2.msra.mxu0 0.0
        %8638 = vmatprep.subr.mxu0 0.0
        %8639 = vmatpush2.msra.mxu0 0.0
        %8640 = vmatprep.subr.mxu0 0.0
        %8641 = vmatpush2.msra.mxu0 0.0
        %8642 = vmatprep.subr.mxu0 0.0
        %8643 = vmatpush2.msra.mxu0 0.0
        %8644 = vmatprep.subr.mxu0 0.0
        %8645 = vmatpush2.msra.mxu0 0.0
        %8646 = vmatprep.subr.mxu0 0.0
        %8647 = vmatpush2.msra.mxu0 0.0
        %8648 = vmatprep.subr.mxu0 0.0
        %8649 = vmatpush2.msra.mxu0 0.0
        %8650 = vmatprep.subr.mxu0 0.0
        %8651 = vmatpush2.msra.mxu0 0.0
        %8652 = vmatprep.mubr.f32.mxu0 0.0
        %8653 = vmatmul.mubr.f32.gmra.mxu0 %v8586
        %v8654 = vpop.f32.mrf.mxu0
        %v8655 = vadd.f32 0.0, %v8654
        %v8656 = vpop.f32.mrf.mxu0
        %8657 = vdwg.mxu0
        %v8658 = vadd.f32 %v8575, %v8655
        %s8659 = scalar_lea.vmem %s10, 192
        %v8660 = vld [vmem:[%s8659] sm:$0xff]
        %v8661 = vld [vmem:[%s8659 + $0x8] sm:$0xff]
        %v8662 = vld [vmem:[%s8659 + $0x10] sm:$0xff]
        %v8663 = vld [vmem:[%s8659 + $0x18] sm:$0xff]
        %v8664 = vld [vmem:[%s8659 + $0x20] sm:$0xff]
        %v8665 = vld [vmem:[%s8659 + $0x28] sm:$0xff]
        %v8666 = vld [vmem:[%s8659 + $0x30] sm:$0xff]
        %v8667 = vld [vmem:[%s8659 + $0x38] sm:$0xff]
        %v8668 = vrot.slane %v8409, 3
        %v8669 = vsel %vm6896, %v8668, 0
        %8671 = vmatprep.subr.mxu0 0.0
        %8672 = vmatpush1.msra.mxu0 0.0
        %8673 = vmatprep.subr.mxu0 0.0
        %8674 = vmatpush1.msra.mxu0 0.0
        %8675 = vmatprep.subr.mxu0 0.0
        %8676 = vmatpush1.msra.mxu0 0.0
        %8677 = vmatprep.subr.mxu0 0.0
        %8678 = vmatpush1.msra.mxu0 0.0
        %8679 = vmatprep.subr.mxu0 0.0
        %8680 = vmatpush1.msra.mxu0 0.0
        %8681 = vmatprep.subr.mxu0 0.0
        %8682 = vmatpush1.msra.mxu0 0.0
        %8683 = vmatprep.subr.mxu0 0.0
        %8684 = vmatpush1.msra.mxu0 0.0
        %8685 = vmatprep.subr.mxu0 0.0
        %8686 = vmatpush1.msra.mxu0 0.0
        %8687 = vmatprep.subr.mxu0 0.0
        %8688 = vmatpush1.msra.mxu0 %v8667
        %8689 = vmatprep.subr.mxu0 0.0
        %8690 = vmatpush1.msra.mxu0 %v8666
        %8691 = vmatprep.subr.mxu0 0.0
        %8692 = vmatpush1.msra.mxu0 %v8665
        %8693 = vmatprep.subr.mxu0 0.0
        %8694 = vmatpush1.msra.mxu0 %v8664
        %8695 = vmatprep.subr.mxu0 0.0
        %8696 = vmatpush1.msra.mxu0 %v8663
        %8697 = vmatprep.subr.mxu0 0.0
        %8698 = vmatpush1.msra.mxu0 %v8662
        %8699 = vmatprep.subr.mxu0 0.0
        %8700 = vmatpush1.msra.mxu0 %v8661
        %8701 = vmatprep.subr.mxu0 0.0
        %8702 = vmatpush1.msra.mxu0 %v8660
        %8703 = vmatprep.subr.mxu0 0.0
        %8704 = vmatpush2.msra.mxu0 0.0
        %8705 = vmatprep.subr.mxu0 0.0
        %8706 = vmatpush2.msra.mxu0 0.0
        %8707 = vmatprep.subr.mxu0 0.0
        %8708 = vmatpush2.msra.mxu0 0.0
        %8709 = vmatprep.subr.mxu0 0.0
        %8710 = vmatpush2.msra.mxu0 0.0
        %8711 = vmatprep.subr.mxu0 0.0
        %8712 = vmatpush2.msra.mxu0 0.0
        %8713 = vmatprep.subr.mxu0 0.0
        %8714 = vmatpush2.msra.mxu0 0.0
        %8715 = vmatprep.subr.mxu0 0.0
        %8716 = vmatpush2.msra.mxu0 0.0
        %8717 = vmatprep.subr.mxu0 0.0
        %8718 = vmatpush2.msra.mxu0 0.0
        %8719 = vmatprep.subr.mxu0 0.0
        %8720 = vmatpush2.msra.mxu0 0.0
        %8721 = vmatprep.subr.mxu0 0.0
        %8722 = vmatpush2.msra.mxu0 0.0
        %8723 = vmatprep.subr.mxu0 0.0
        %8724 = vmatpush2.msra.mxu0 0.0
        %8725 = vmatprep.subr.mxu0 0.0
        %8726 = vmatpush2.msra.mxu0 0.0
        %8727 = vmatprep.subr.mxu0 0.0
        %8728 = vmatpush2.msra.mxu0 0.0
        %8729 = vmatprep.subr.mxu0 0.0
        %8730 = vmatpush2.msra.mxu0 0.0
        %8731 = vmatprep.subr.mxu0 0.0
        %8732 = vmatpush2.msra.mxu0 0.0
        %8733 = vmatprep.subr.mxu0 0.0
        %8734 = vmatpush2.msra.mxu0 0.0
        %8735 = vmatprep.mubr.f32.mxu0 0.0
        %8736 = vmatmul.mubr.f32.gmra.mxu0 %v8669
        %v8737 = vpop.f32.mrf.mxu0
        %v8738 = vadd.f32 0.0, %v8737
        %v8739 = vpop.f32.mrf.mxu0
        %8740 = vdwg.mxu0
        %v8741 = vadd.f32 %v8658, %v8738
        %vm8742 = vcmask 8192
        %8743 = vst.msk [vmem:[%s405] sm:$0x1] %vm8742, %v8741
        %s8744 = sand.u32 %s291, 1
        %s8745 = scalar_lea.sflag [#allocation6], %s8744
        %s8746 = sand.u32 %s291, 1
        %s8747 = scalar_lea.vmem [#allocation5], %s8746
        // Predicated region
        $region69: #{forward.1} parent=67 // pred_check
          %p8748 = pneg %p301
        $region70: #{forward.1} parent=67 // pred_check_branch
          %8750 = sbr.rel (%p8748) target = $region72
        $region71: #{forward.1} parent=67 // pred_region
          %s8752 = ssub.s32 16, 16
          %8753 = vsyncadd %s8745, %s8752
          %s8754 = smul.addr %s26, 16
          %s8755 = scalar_lea.hbm %s12, %s8754
          %s8757 = sshll.u32 %s8747, 4
          %s8758 = int_to_ptr.vmem [resolvable:$true] %s8757
          %8760 = dma.vmem_to_hbm [thread:$0]  %s8758, 16, %s8755, %s8745
        $region72: #{forward.1} parent=67 // pred_fallthru
          _
      $region68: #{forward.1} parent=5 // pred_fallthru
        _
      %p8761 = scmp.le.s32.totalorder 2, %s21
      // Predicated region
      $region73: #{forward.1} parent=5 // pred_check
        %p8762 = pneg %p8761
      $region74: #{forward.1} parent=5 // pred_check_branch
        %8764 = sbr.rel (%p8762) target = $region76
      $region75: #{forward.1} parent=5 // pred_region
        %s8765 = ssub.s32 %s21, 2
        // Predicated region
        $region77: #{forward.1} parent=75 // pred_check
          %p8766 = pneg %p307
        $region78: #{forward.1} parent=75 // pred_check_branch
          %8768 = sbr.rel (%p8766) target = $region80
        $region79: #{forward.1} parent=75 // pred_region
          %s8769 = sand.u32 %s292, 1
          %s8770 = scalar_lea.sflag [#allocation6], %s8769
          %s8771 = sand.u32 %s292, 1
          %s8772 = scalar_lea.vmem [#allocation5], %s8771
          %8773 = dma.done %s8770, 16
        $region80: #{forward.1} parent=75 // pred_fallthru
          _
      $region76: #{forward.1} parent=5 // pred_fallthru
        _
    $region6: #{forward.1} parent=1 // loop_footer
      %s25 = sadd.s32 1, %s21
    $region7: #{forward.1} parent=1 // loop_footer_branch
      %20 = sbr.rel target = $region3
    $region8: #{forward.1} parent=1 // loop_exit
      _
    %8774 = vsyncpa [#allocation6], 1
    %s8775 = scalar_lea.sflag [#allocation6], 1
    %8776 = vsyncpa %s8775, 1

</llo_original>
